<compile_context>
chip_gen: v6e
topology: v6e:2x2x1
jax: 0.10.0
libtpu: 0.0.40
codegen_flags: <defaults>
</compile_context>

<pallas_src>
import jax
import jax.numpy as jnp
from jax.experimental import pallas as pl
from jax.experimental.pallas import tpu as pltpu


def mix_small_kernel(x_spa_ref, x_flow_ref,
                     w_spa_ref, w_tmp_ref, b_head_ref,
                     w_f1_ref, b_f1_ref,
                     w_f2_ref, b_f2_ref,
                     w_f3_ref, b_f3_ref,
                     w_f4_ref, b_f4_ref,
                     out_ref):
    # Fused spatial + temporal heads.  w_spa is zero-padded into the left half
    # of the 2C-wide output and w_tmp into the right half, so the sum of the
    # two MXU dots IS torch.cat((spatial(x0), temporal(x1)), dim=1) — without
    # a wrapper concat or any in-kernel lane shuffle.
    h = (jnp.dot(x_spa_ref[...], w_spa_ref[...],
                 preferred_element_type=jnp.float32)
         + jnp.dot(x_flow_ref[...], w_tmp_ref[...],
                   preferred_element_type=jnp.float32)
         + b_head_ref[...])
    h = jnp.maximum(h, 0.0).astype(jnp.bfloat16)

    # Fusion = MixClassificationBig (eval mode: dropout == identity).
    # bf16 operands, f32 accumulate; bias + ReLU on the f32 accumulator.
    h = jnp.dot(h, w_f1_ref[...], preferred_element_type=jnp.float32) + b_f1_ref[...]
    h = jnp.maximum(h, 0.0).astype(jnp.bfloat16)
    h = jnp.dot(h, w_f2_ref[...], preferred_element_type=jnp.float32) + b_f2_ref[...]
    h = jnp.maximum(h, 0.0).astype(jnp.bfloat16)
    h = jnp.dot(h, w_f3_ref[...], preferred_element_type=jnp.float32) + b_f3_ref[...]
    h = jnp.maximum(h, 0.0).astype(jnp.bfloat16)
    # Final layer is padded to 128 lanes -> unmasked, lane-dense store.
    out_ref[...] = (jnp.dot(h, w_f4_ref[...], preferred_element_type=jnp.float32)
                    + b_f4_ref[...])


def prep_params(head_params, fusion_params, *, lane_pad=128):
    """One-time parameter prep.

    * Head weights are zero-padded into their half of the 2C-wide concat
      output (sum-of-two-dots == lane concat), and cast to bf16.
    * Fusion weights are cast to bf16; biases stay f32.
    * The final layer's N is zero-padded to a multiple of 128 lanes so the
      kernel's output store is unmasked; the wrapper slices back to C.
    """
    w_spa, b_spa, w_tmp, b_tmp = head_params
    w_f1, b_f1, w_f2, b_f2, w_f3, b_f3, w_f4, b_f4 = fusion_params
    wd = jnp.bfloat16

    c_spa = w_spa.shape[1]
    c_tmp = w_tmp.shape[1]
    two_c = c_spa + c_tmp
    w_spa_p = jnp.zeros((w_spa.shape[0], two_c), wd).at[:, :c_spa].set(w_spa.astype(wd))
    w_tmp_p = jnp.zeros((w_tmp.shape[0], two_c), wd).at[:, c_spa:].set(w_tmp.astype(wd))
    b_head = jnp.concatenate([b_spa, b_tmp], axis=1).astype(jnp.float32)

    c_out = w_f4.shape[1]
    n_pad = ((c_out + lane_pad - 1) // lane_pad) * lane_pad
    w_f4_p = jnp.zeros((w_f4.shape[0], n_pad), wd).at[:, :c_out].set(w_f4.astype(wd))
    b_f4_p = jnp.zeros((1, n_pad), jnp.float32).at[:, :c_out].set(b_f4.astype(jnp.float32))

    return (w_spa_p, w_tmp_p, b_head,
            w_f1.astype(wd), b_f1.astype(jnp.float32),
            w_f2.astype(wd), b_f2.astype(jnp.float32),
            w_f3.astype(wd), b_f3.astype(jnp.float32),
            w_f4_p, b_f4_p)


def mix_model_small(x_spa, x_flow, packed_params, *, num_classes, tm=512):
    (w_spa_p, w_tmp_p, b_head,
     w_f1, b_f1, w_f2, b_f2, w_f3, b_f3, w_f4_p, b_f4_p) = packed_params

    B, d_spa = x_spa.shape
    d_flow = x_flow.shape[1]
    n_pad = w_f4_p.shape[1]

    tm = min(tm, B)
    assert B % tm == 0, "example keeps B a multiple of the row tile"
    steps = B // tm

    # bf16 activation stream: halves the per-row input DMA and matches the
    # bf16 weight operands on the MXU.
    x_spa = x_spa.astype(jnp.bfloat16)
    x_flow = x_flow.astype(jnp.bfloat16)

    # Weights/biases: full-array blocks, constant index_map, single-buffered
    # (their block never changes across the grid, so 2x buffering is waste).
    def resident(a):
        return pl.BlockSpec(a.shape, lambda i: (0, 0),
                            pipeline_mode=pl.Buffered(1))

    # Megacore sharding only pays off when each core gets >=2 steps; for a
    # short grid it would just duplicate the resident-weight DMA (v7x).
    dim_sem = ("parallel",) if steps >= 4 else ("arbitrary",)

    out = pl.pallas_call(
        mix_small_kernel,
        out_shape=jax.ShapeDtypeStruct((B, n_pad), jnp.float32),
        grid=(steps,),
        in_specs=[pl.BlockSpec((tm, d_spa), lambda i: (i, 0)),
                  pl.BlockSpec((tm, d_flow), lambda i: (i, 0)),
                  resident(w_spa_p), resident(w_tmp_p), resident(b_head),
                  resident(w_f1), resident(b_f1),
                  resident(w_f2), resident(b_f2),
                  resident(w_f3), resident(b_f3),
                  resident(w_f4_p), resident(b_f4_p)],
        out_specs=pl.BlockSpec((tm, n_pad), lambda i: (i, 0)),
        compiler_params=pltpu.CompilerParams(dimension_semantics=dim_sem),
    )(x_spa, x_flow, w_spa_p, w_tmp_p, b_head,
      w_f1, b_f1, w_f2, b_f2, w_f3, b_f3, w_f4_p, b_f4_p)

    return out[:, :num_classes]


def mix_model_small_ref(x_spa, x_flow, head_params, fusion_params,
                        operand_dtype=jnp.float32):
    """Plain-JAX reference mirroring the PyTorch forward (eval mode).

    operand_dtype=bf16 mirrors the kernel's matmul operand precision exactly;
    operand_dtype=f32 is the full-precision PyTorch-equivalent reference.
    """
    w_spa, b_spa, w_tmp, b_tmp = head_params
    w_f1, b_f1, w_f2, b_f2, w_f3, b_f3, w_f4, b_f4 = fusion_params

    def dot(a, b):
        return jnp.dot(a.astype(operand_dtype), b.astype(operand_dtype),
                       preferred_element_type=jnp.float32)

    h_spa = jnp.maximum(dot(x_spa, w_spa) + b_spa, 0.0)
    h_tmp = jnp.maximum(dot(x_flow, w_tmp) + b_tmp, 0.0)
    h = jnp.concatenate([h_spa, h_tmp], axis=1)          # torch.cat(dim=1)
    h = jnp.maximum(dot(h, w_f1) + b_f1, 0.0)
    h = jnp.maximum(dot(h, w_f2) + b_f2, 0.0)
    h = jnp.maximum(dot(h, w_f3) + b_f3, 0.0)
    return dot(h, w_f4) + b_f4


if __name__ == "__main__":
    # Small, deterministic example shapes.
    B = 1024                # batch (tm=512 -> grid=(2,), "arbitrary" semantics)
    D_SPA = 128             # flattened spatial-stream feature width (stand-in)
    D_FLOW = 128            # flattened temporal-stream feature width (stand-in)
    NUM_CLASSES = 16        # C3DNN_Small output width / final class count
    H1, H2, H3 = 512, 512, 256   # MixClassificationBig hidden sizes (per spec)

    key = jax.random.PRNGKey(0)
    ks = jax.random.split(key, 14)

    x_spa = jax.random.normal(ks[0], (B, D_SPA), dtype=jnp.float32)
    x_flow = jax.random.normal(ks[1], (B, D_FLOW), dtype=jnp.float32)

    # Stand-in stream heads (C3DNN_Small -> NUM_CLASSES features), [in, out].
    w_spa = jax.random.normal(ks[2], (D_SPA, NUM_CLASSES), jnp.float32) / jnp.sqrt(D_SPA)
    b_spa = jax.random.normal(ks[3], (1, NUM_CLASSES), jnp.float32) * 0.01
    w_tmp = jax.random.normal(ks[4], (D_FLOW, NUM_CLASSES), jnp.float32) / jnp.sqrt(D_FLOW)
    b_tmp = jax.random.normal(ks[5], (1, NUM_CLASSES), jnp.float32) * 0.01

    # MixClassificationBig(NUM_CLASSES, NUM_CLASSES) fusion MLP, [in, out].
    w_f1 = jax.random.normal(ks[6], (2 * NUM_CLASSES, H1), jnp.float32) / jnp.sqrt(2 * NUM_CLASSES)
    b_f1 = jax.random.normal(ks[7], (1, H1), jnp.float32) * 0.01
    w_f2 = jax.random.normal(ks[8], (H1, H2), jnp.float32) / jnp.sqrt(H1)
    b_f2 = jax.random.normal(ks[9], (1, H2), jnp.float32) * 0.01
    w_f3 = jax.random.normal(ks[10], (H2, H3), jnp.float32) / jnp.sqrt(H2)
    b_f3 = jax.random.normal(ks[11], (1, H3), jnp.float32) * 0.01
    w_f4 = jax.random.normal(ks[12], (H3, NUM_CLASSES), jnp.float32) / jnp.sqrt(H3)
    b_f4 = jax.random.normal(ks[13], (1, NUM_CLASSES), jnp.float32) * 0.01

    head_params = (w_spa, b_spa, w_tmp, b_tmp)
    fusion_params = (w_f1, b_f1, w_f2, b_f2, w_f3, b_f3, w_f4, b_f4)

    # One-time parameter prep (half-padded head merge, bf16 cast, lane-dense
    # final layer).
    packed_params = prep_params(head_params, fusion_params)

    out = mix_model_small(x_spa, x_flow, packed_params,
                          num_classes=NUM_CLASSES, tm=512)
    out = jax.block_until_ready(out)
    assert out.shape == (B, NUM_CLASSES)

    # Exact-structure check against a reference with the same bf16 operands.
    ref_bf16 = mix_model_small_ref(x_spa, x_flow, head_params, fusion_params,
                                   operand_dtype=jnp.bfloat16)
    err_b = float(jnp.max(jnp.abs(out - ref_bf16)))
    assert jnp.allclose(out, ref_bf16, atol=1e-2, rtol=1e-2), (
        f"mismatch vs bf16-mirror reference: max abs err = {err_b}")

    # Semantic check against the full-f32 (PyTorch-equivalent) reference;
    # tolerance loosened for bf16 matmul operands.
    ref_f32 = mix_model_small_ref(x_spa, x_flow, head_params, fusion_params,
                                  operand_dtype=jnp.float32)
    err_f = float(jnp.max(jnp.abs(out - ref_f32)))
    assert jnp.allclose(out, ref_f32, atol=1e-1, rtol=1e-1), (
        f"mismatch vs f32 reference: max abs err = {err_f}")

    print("KERNEL_OK")
</pallas_src>

<mosaic_0001>
module attributes {stable_mosaic.version = 11 : i64} {
  func.func @mix_small_kernel(%arg0: i32, %arg1: memref<512x128xbf16, #tpu.memory_space<vmem>>, %arg2: memref<512x128xbf16, #tpu.memory_space<vmem>>, %arg3: memref<128x32xbf16, #tpu.memory_space<vmem>>, %arg4: memref<128x32xbf16, #tpu.memory_space<vmem>>, %arg5: memref<1x32xf32, #tpu.memory_space<vmem>>, %arg6: memref<32x512xbf16, #tpu.memory_space<vmem>>, %arg7: memref<1x512xf32, #tpu.memory_space<vmem>>, %arg8: memref<512x512xbf16, #tpu.memory_space<vmem>>, %arg9: memref<1x512xf32, #tpu.memory_space<vmem>>, %arg10: memref<512x256xbf16, #tpu.memory_space<vmem>>, %arg11: memref<1x256xf32, #tpu.memory_space<vmem>>, %arg12: memref<256x128xbf16, #tpu.memory_space<vmem>>, %arg13: memref<1x128xf32, #tpu.memory_space<vmem>>, %arg14: memref<512x128xf32, #tpu.memory_space<vmem>>) attributes {dimension_semantics = [#tpu.dimension_semantics<arbitrary>], iteration_bounds = array<i64: 2>, scalar_prefetch = 0 : i64, scratch_operands = 0 : i64, tpu.core_type = #tpu.core_type<tc>, window_params = [{transform_indices = @transform_0, window_bounds = array<i64: 512, 128>}, {transform_indices = @transform_1, window_bounds = array<i64: 512, 128>}, {pipeline_mode = #tpu.pipeline_mode<synchronous>, transform_indices = @transform_2, window_bounds = array<i64: 128, 32>}, {pipeline_mode = #tpu.pipeline_mode<synchronous>, transform_indices = @transform_3, window_bounds = array<i64: 128, 32>}, {pipeline_mode = #tpu.pipeline_mode<synchronous>, transform_indices = @transform_4, window_bounds = array<i64: 1, 32>}, {pipeline_mode = #tpu.pipeline_mode<synchronous>, transform_indices = @transform_5, window_bounds = array<i64: 32, 512>}, {pipeline_mode = #tpu.pipeline_mode<synchronous>, transform_indices = @transform_6, window_bounds = array<i64: 1, 512>}, {pipeline_mode = #tpu.pipeline_mode<synchronous>, transform_indices = @transform_7, window_bounds = array<i64: 512, 512>}, {pipeline_mode = #tpu.pipeline_mode<synchronous>, transform_indices = @transform_8, window_bounds = array<i64: 1, 512>}, {pipeline_mode = #tpu.pipeline_mode<synchronous>, transform_indices = @transform_9, window_bounds = array<i64: 512, 256>}, {pipeline_mode = #tpu.pipeline_mode<synchronous>, transform_indices = @transform_10, window_bounds = array<i64: 1, 256>}, {pipeline_mode = #tpu.pipeline_mode<synchronous>, transform_indices = @transform_11, window_bounds = array<i64: 256, 128>}, {pipeline_mode = #tpu.pipeline_mode<synchronous>, transform_indices = @transform_12, window_bounds = array<i64: 1, 128>}, {transform_indices = @transform_13, window_bounds = array<i64: 512, 128>}]} {
    %c0 = arith.constant 0 : index
    %c0_0 = arith.constant 0 : index
    %0 = vector.load %arg1[%c0, %c0_0] : memref<512x128xbf16, #tpu.memory_space<vmem>>, vector<512x128xbf16>
    %c0_1 = arith.constant 0 : index
    %c0_2 = arith.constant 0 : index
    %1 = vector.load %arg3[%c0_1, %c0_2] : memref<128x32xbf16, #tpu.memory_space<vmem>>, vector<128x32xbf16>
    %cst = arith.constant dense<0.000000e+00> : vector<512x32xf32>
    %2 = tpu.matmul %0, %1, %cst {dimension_numbers = #tpu.dot_dimension_numbers<[1], [0], [0], [1], [0, 0, 1, 1], [], []>} : vector<512x128xbf16>, vector<128x32xbf16>, vector<512x32xf32> -> vector<512x32xf32>
    %c0_3 = arith.constant 0 : index
    %c0_4 = arith.constant 0 : index
    %3 = vector.load %arg2[%c0_3, %c0_4] : memref<512x128xbf16, #tpu.memory_space<vmem>>, vector<512x128xbf16>
    %c0_5 = arith.constant 0 : index
    %c0_6 = arith.constant 0 : index
    %4 = vector.load %arg4[%c0_5, %c0_6] : memref<128x32xbf16, #tpu.memory_space<vmem>>, vector<128x32xbf16>
    %cst_7 = arith.constant dense<0.000000e+00> : vector<512x32xf32>
    %5 = tpu.matmul %3, %4, %cst_7 {dimension_numbers = #tpu.dot_dimension_numbers<[1], [0], [0], [1], [0, 0, 1, 1], [], []>} : vector<512x128xbf16>, vector<128x32xbf16>, vector<512x32xf32> -> vector<512x32xf32>
    %6 = arith.addf %2, %5 : vector<512x32xf32>
    %c0_8 = arith.constant 0 : index
    %c0_9 = arith.constant 0 : index
    %7 = vector.load %arg5[%c0_8, %c0_9] : memref<1x32xf32, #tpu.memory_space<vmem>>, vector<1x32xf32>
    %8 = vector.broadcast %7 : vector<1x32xf32> to vector<512x32xf32>
    %9 = arith.addf %6, %8 : vector<512x32xf32>
    %cst_10 = arith.constant 0.000000e+00 : f32
    %10 = vector.broadcast %cst_10 : f32 to vector<512x32xf32>
    %11 = arith.maximumf %9, %10 : vector<512x32xf32>
    %12 = arith.truncf %11 : vector<512x32xf32> to vector<512x32xbf16>
    %c0_11 = arith.constant 0 : index
    %c0_12 = arith.constant 0 : index
    %13 = vector.load %arg6[%c0_11, %c0_12] : memref<32x512xbf16, #tpu.memory_space<vmem>>, vector<32x512xbf16>
    %cst_13 = arith.constant dense<0.000000e+00> : vector<512x512xf32>
    %14 = tpu.matmul %12, %13, %cst_13 {dimension_numbers = #tpu.dot_dimension_numbers<[1], [0], [0], [1], [0, 0, 1, 1], [], []>} : vector<512x32xbf16>, vector<32x512xbf16>, vector<512x512xf32> -> vector<512x512xf32>
    %c0_14 = arith.constant 0 : index
    %c0_15 = arith.constant 0 : index
    %15 = vector.load %arg7[%c0_14, %c0_15] : memref<1x512xf32, #tpu.memory_space<vmem>>, vector<1x512xf32>
    %16 = vector.broadcast %15 : vector<1x512xf32> to vector<512x512xf32>
    %17 = arith.addf %14, %16 : vector<512x512xf32>
    %cst_16 = arith.constant 0.000000e+00 : f32
    %18 = vector.broadcast %cst_16 : f32 to vector<512x512xf32>
    %19 = arith.maximumf %17, %18 : vector<512x512xf32>
    %20 = arith.truncf %19 : vector<512x512xf32> to vector<512x512xbf16>
    %c0_17 = arith.constant 0 : index
    %c0_18 = arith.constant 0 : index
    %21 = vector.load %arg8[%c0_17, %c0_18] : memref<512x512xbf16, #tpu.memory_space<vmem>>, vector<512x512xbf16>
    %cst_19 = arith.constant dense<0.000000e+00> : vector<512x512xf32>
    %22 = tpu.matmul %20, %21, %cst_19 {dimension_numbers = #tpu.dot_dimension_numbers<[1], [0], [0], [1], [0, 0, 1, 1], [], []>} : vector<512x512xbf16>, vector<512x512xbf16>, vector<512x512xf32> -> vector<512x512xf32>
    %c0_20 = arith.constant 0 : index
    %c0_21 = arith.constant 0 : index
    %23 = vector.load %arg9[%c0_20, %c0_21] : memref<1x512xf32, #tpu.memory_space<vmem>>, vector<1x512xf32>
    %24 = vector.broadcast %23 : vector<1x512xf32> to vector<512x512xf32>
    %25 = arith.addf %22, %24 : vector<512x512xf32>
    %cst_22 = arith.constant 0.000000e+00 : f32
    %26 = vector.broadcast %cst_22 : f32 to vector<512x512xf32>
    %27 = arith.maximumf %25, %26 : vector<512x512xf32>
    %28 = arith.truncf %27 : vector<512x512xf32> to vector<512x512xbf16>
    %c0_23 = arith.constant 0 : index
    %c0_24 = arith.constant 0 : index
    %29 = vector.load %arg10[%c0_23, %c0_24] : memref<512x256xbf16, #tpu.memory_space<vmem>>, vector<512x256xbf16>
    %cst_25 = arith.constant dense<0.000000e+00> : vector<512x256xf32>
    %30 = tpu.matmul %28, %29, %cst_25 {dimension_numbers = #tpu.dot_dimension_numbers<[1], [0], [0], [1], [0, 0, 1, 1], [], []>} : vector<512x512xbf16>, vector<512x256xbf16>, vector<512x256xf32> -> vector<512x256xf32>
    %c0_26 = arith.constant 0 : index
    %c0_27 = arith.constant 0 : index
    %31 = vector.load %arg11[%c0_26, %c0_27] : memref<1x256xf32, #tpu.memory_space<vmem>>, vector<1x256xf32>
    %32 = vector.broadcast %31 : vector<1x256xf32> to vector<512x256xf32>
    %33 = arith.addf %30, %32 : vector<512x256xf32>
    %cst_28 = arith.constant 0.000000e+00 : f32
    %34 = vector.broadcast %cst_28 : f32 to vector<512x256xf32>
    %35 = arith.maximumf %33, %34 : vector<512x256xf32>
    %36 = arith.truncf %35 : vector<512x256xf32> to vector<512x256xbf16>
    %c0_29 = arith.constant 0 : index
    %c0_30 = arith.constant 0 : index
    %37 = vector.load %arg12[%c0_29, %c0_30] : memref<256x128xbf16, #tpu.memory_space<vmem>>, vector<256x128xbf16>
    %cst_31 = arith.constant dense<0.000000e+00> : vector<512x128xf32>
    %38 = tpu.matmul %36, %37, %cst_31 {dimension_numbers = #tpu.dot_dimension_numbers<[1], [0], [0], [1], [0, 0, 1, 1], [], []>} : vector<512x256xbf16>, vector<256x128xbf16>, vector<512x128xf32> -> vector<512x128xf32>
    %c0_32 = arith.constant 0 : index
    %c0_33 = arith.constant 0 : index
    %39 = vector.load %arg13[%c0_32, %c0_33] : memref<1x128xf32, #tpu.memory_space<vmem>>, vector<1x128xf32>
    %40 = vector.broadcast %39 : vector<1x128xf32> to vector<512x128xf32>
    %41 = arith.addf %38, %40 : vector<512x128xf32>
    %c0_34 = arith.constant 0 : index
    %c0_35 = arith.constant 0 : index
    %42 = vector.load %arg14[%c0_34, %c0_35] : memref<512x128xf32, #tpu.memory_space<vmem>>, vector<512x128xf32>
    tpu.vector_store %arg14[%c0_34, %c0_35], %41 {strides = array<i32>} : memref<512x128xf32, #tpu.memory_space<vmem>>, vector<512x128xf32>,
    return
  }
  func.func @transform_0(%arg0: i32) -> (i32, i32) {
    %c0_i32 = arith.constant 0 : i32
    %c0_i32_0 = arith.constant 0 : i32
    return %arg0, %c0_i32 : i32, i32
  }
  func.func @transform_1(%arg0: i32) -> (i32, i32) {
    %c0_i32 = arith.constant 0 : i32
    %c0_i32_0 = arith.constant 0 : i32
    return %arg0, %c0_i32 : i32, i32
  }
  func.func @transform_2(%arg0: i32) -> (i32, i32) {
    %c0_i32 = arith.constant 0 : i32
    %c0_i32_0 = arith.constant 0 : i32
    %c0_i32_1 = arith.constant 0 : i32
    return %c0_i32, %c0_i32_0 : i32, i32
  }
  func.func @transform_3(%arg0: i32) -> (i32, i32) {
    %c0_i32 = arith.constant 0 : i32
    %c0_i32_0 = arith.constant 0 : i32
    %c0_i32_1 = arith.constant 0 : i32
    return %c0_i32, %c0_i32_0 : i32, i32
  }
  func.func @transform_4(%arg0: i32) -> (i32, i32) {
    %c0_i32 = arith.constant 0 : i32
    %c0_i32_0 = arith.constant 0 : i32
    %c0_i32_1 = arith.constant 0 : i32
    return %c0_i32, %c0_i32_0 : i32, i32
  }
  func.func @transform_5(%arg0: i32) -> (i32, i32) {
    %c0_i32 = arith.constant 0 : i32
    %c0_i32_0 = arith.constant 0 : i32
    %c0_i32_1 = arith.constant 0 : i32
    return %c0_i32, %c0_i32_0 : i32, i32
  }
  func.func @transform_6(%arg0: i32) -> (i32, i32) {
    %c0_i32 = arith.constant 0 : i32
    %c0_i32_0 = arith.constant 0 : i32
    %c0_i32_1 = arith.constant 0 : i32
    return %c0_i32, %c0_i32_0 : i32, i32
  }
  func.func @transform_7(%arg0: i32) -> (i32, i32) {
    %c0_i32 = arith.constant 0 : i32
    %c0_i32_0 = arith.constant 0 : i32
    %c0_i32_1 = arith.constant 0 : i32
    return %c0_i32, %c0_i32_0 : i32, i32
  }
  func.func @transform_8(%arg0: i32) -> (i32, i32) {
    %c0_i32 = arith.constant 0 : i32
    %c0_i32_0 = arith.constant 0 : i32
    %c0_i32_1 = arith.constant 0 : i32
    return %c0_i32, %c0_i32_0 : i32, i32
  }
  func.func @transform_9(%arg0: i32) -> (i32, i32) {
    %c0_i32 = arith.constant 0 : i32
    %c0_i32_0 = arith.constant 0 : i32
    %c0_i32_1 = arith.constant 0 : i32
    return %c0_i32, %c0_i32_0 : i32, i32
  }
  func.func @transform_10(%arg0: i32) -> (i32, i32) {
    %c0_i32 = arith.constant 0 : i32
    %c0_i32_0 = arith.constant 0 : i32
    %c0_i32_1 = arith.constant 0 : i32
    return %c0_i32, %c0_i32_0 : i32, i32
  }
  func.func @transform_11(%arg0: i32) -> (i32, i32) {
    %c0_i32 = arith.constant 0 : i32
    %c0_i32_0 = arith.constant 0 : i32
    %c0_i32_1 = arith.constant 0 : i32
    return %c0_i32, %c0_i32_0 : i32, i32
  }
  func.func @transform_12(%arg0: i32) -> (i32, i32) {
    %c0_i32 = arith.constant 0 : i32
    %c0_i32_0 = arith.constant 0 : i32
    %c0_i32_1 = arith.constant 0 : i32
    return %c0_i32, %c0_i32_0 : i32, i32
  }
  func.func @transform_13(%arg0: i32) -> (i32, i32) {
    %c0_i32 = arith.constant 0 : i32
    %c0_i32_0 = arith.constant 0 : i32
    return %arg0, %c0_i32 : i32, i32
  }
}

</mosaic_0001>

<llo_original>
// kernel: tpu_custom_call.1
$region0: #{tpu_custom_call.1}
  #allocation0 [shape = 'u32[]', space=smem, size = 0x4, offset = 0x4, fixed_abs, tag = 'smem constant byte address 0x4 - core index']
  #allocation1 [shape = 'u32[144,128]{1,0:T(1,128)}', space=vmem, size = 0x12000, scoped, tag = 'internal scratch']
  %s0 = inlined_call_operand.hbm [shape: bf16[1024,128], index: 0, kind: input, shape index: {}]
  %s1 = inlined_call_operand.hbm [shape: bf16[1024,128], index: 1, kind: input, shape index: {}]
  %s2 = inlined_call_operand.vmem [shape: bf16[128,32], index: 2, kind: input, shape index: {}]
  %s3 = inlined_call_operand.vmem [shape: bf16[128,32], index: 3, kind: input, shape index: {}]
  %s4 = inlined_call_operand.vmem [shape: f32[1,32], index: 4, kind: input, shape index: {}]
  %s5 = inlined_call_operand.hbm [shape: bf16[32,512], index: 5, kind: input, shape index: {}]
  %s6 = inlined_call_operand.vmem [shape: f32[1,512], index: 6, kind: input, shape index: {}]
  %s7 = inlined_call_operand.hbm [shape: bf16[512,512], index: 7, kind: input, shape index: {}]
  %s8 = inlined_call_operand.vmem [shape: f32[1,512], index: 8, kind: input, shape index: {}]
  %s9 = inlined_call_operand.hbm [shape: bf16[512,256], index: 9, kind: input, shape index: {}]
  %s10 = inlined_call_operand.vmem [shape: f32[1,256], index: 10, kind: input, shape index: {}]
  %s11 = inlined_call_operand.vmem [shape: bf16[256,128], index: 11, kind: input, shape index: {}]
  %s12 = inlined_call_operand.vmem [shape: f32[1,128], index: 12, kind: input, shape index: {}]
  %s13 = inlined_call_operand.hbm [shape: f32[1024,128], index: 13, kind: output, shape index: {}]
  %s14 = sld [smem:[#allocation0]]
  $region105: #{tpu_custom_call.1} parent=0
    _
  %s16 = ssub.s32 1, %s14
  %s17 = scalar_select 0, %s16, %s14
  $region1: #{tpu_custom_call.1} parent=0
    #allocation2 [shape = 'u8[262144]{0}', space=vmem, size = 0x40000, scoped, tag = 'input window, operand 0']
    #allocation3 [shape = 's32[2]{0}', space=sflag, size = 0x8, scoped, tag = 'scoped memory for tpu_custom_call.1']
    #allocation4 [shape = 's32[2]{0}', space=sflag, size = 0x8, scoped, tag = 'scoped memory for tpu_custom_call.1']
    #allocation5 [shape = 'u8[262144]{0}', space=vmem, size = 0x40000, scoped, tag = 'input window, operand 1']
    #allocation6 [shape = 's32[2]{0}', space=sflag, size = 0x8, scoped, tag = 'scoped memory for tpu_custom_call.1']
    #allocation7 [shape = 'u8[32768]{0}', space=vmem, size = 0x8000, scoped, tag = 'input window, operand 5, single buffered']
    #allocation8 [shape = 'u8[524288]{0}', space=vmem, size = 0x80000, scoped, tag = 'input window, operand 7, single buffered']
    #allocation9 [shape = 's32[1]{0}', space=sflag, size = 0x4, scoped, tag = 'scoped memory for tpu_custom_call.1']
    #allocation10 [shape = 'u8[262144]{0}', space=vmem, size = 0x40000, scoped, tag = 'input window, operand 9, single buffered']
    #allocation11 [shape = 'u8[524288]{0}', space=vmem, size = 0x80000, scoped, tag = 'output window, operand 0']
    %18 = vsyncpa [#allocation3], 0
    %s19 = scalar_lea.sflag [#allocation3], 1
    %20 = vsyncpa %s19, 0
    %21 = vsyncpa [#allocation6], 0
    %s22 = scalar_lea.sflag [#allocation6], 1
    %23 = vsyncpa %s22, 0
    %24 = vsyncpa [#allocation9], 0
    %25 = vsyncpa [#allocation4], 0
    %s26 = scalar_lea.sflag [#allocation4], 1
    %27 = vsyncpa %s26, 0
    loop: start=0, step=1, limit=4
    $region2: #{tpu_custom_call.1} parent=1 // loop_pre_header
      _
    $region3: #{tpu_custom_call.1} parent=1 // loop_header
      %s29 = sphi 0, %s33
      %p30 = scmp.ge.s32.totalorder %s29, 4
      %s39 = sphi 0, %s41
      %s42 = sphi 0, %s39
      %s43 = sphi 0, %s42
      %s59 = sphi 0, %s43
      %s65 = sphi 0, %s67
      %s68 = sphi 0, %s65
      %s69 = sphi 0, %s68
      %s85 = sphi 0, %s69
      %s89 = sphi 0, %s89
      %s91 = sphi 0, %s89
      %s92 = sphi 0, %s91
      %s106 = sphi 0, %s92
      %s110 = sphi 0, %s110
      %s112 = sphi 0, %s110
      %s113 = sphi 0, %s112
      %s127 = sphi 0, %s113
      %s131 = sphi 0, %s131
      %s133 = sphi 0, %s131
      %s134 = sphi 0, %s133
      %s148 = sphi 0, %s134
      %s152 = sphi 0, %s152
      %s154 = sphi 0, %s152
      %s155 = sphi 0, %s154
      %s169 = sphi 0, %s155
      %s173 = sphi 0, %s173
      %s175 = sphi 0, %s173
      %s176 = sphi 0, %s175
      %s190 = sphi 0, %s176
      %s194 = sphi 0, %s194
      %s196 = sphi 0, %s194
      %s197 = sphi 0, %s196
      %s211 = sphi 0, %s197
      %s215 = sphi 0, %s215
      %s217 = sphi 0, %s215
      %s218 = sphi 0, %s217
      %s232 = sphi 0, %s218
      %s236 = sphi 0, %s236
      %s238 = sphi 0, %s236
      %s239 = sphi 0, %s238
      %s253 = sphi 0, %s239
      %s257 = sphi 0, %s257
      %s259 = sphi 0, %s257
      %s260 = sphi 0, %s259
      %s274 = sphi 0, %s260
      %s278 = sphi 0, %s278
      %s280 = sphi 0, %s278
      %s281 = sphi 0, %s280
      %s295 = sphi 0, %s281
      %s299 = sphi 0, %s299
      %s301 = sphi 0, %s299
      %s302 = sphi 0, %s301
      %s316 = sphi 0, %s302
      %s322 = sphi 0, %s324
      %s325 = sphi 0, %s322
      %s326 = sphi 0, %s325
      %s342 = sphi 0, %s326
    $region4: #{tpu_custom_call.1} parent=1 // loop_header_branch
      %32 = sbr.rel (%p30) target = $region8
    $region5: #{tpu_custom_call.1} parent=1 // loop_body
      %s34 = ssub.s32 %s29, 1
      %s35 = ssub.s32 %s29, 2
      %s36 = sadd.s32 %s29, 1
      %s37 = ssub.s32 %s29, %s36
      %p38 = scmp.eq.s32.totalorder %s37, 0
      %s40 = sadd.s32 %s39, 1
      %s41 = scalar_select %p38, %s39, %s40
      %p44 = pneg %p38
      %p45 = scmp.eq.s32.totalorder %s29, 1
      %p46 = por %p44, %p45
      %p47 = scmp.ne.s32.totalorder %s39, %s42
      %p48 = scmp.eq.s32.totalorder %s29, 0
      %p49 = por %p47, %p48
      %p50 = scmp.ne.s32.totalorder %s39, %s42
      %p51 = scmp.eq.s32.totalorder %s34, 1
      %p52 = por %p50, %p51
      %p53 = scmp.ne.s32.totalorder %s42, %s43
      %p54 = scmp.eq.s32.totalorder %s34, 0
      %p55 = por %p53, %p54
      %p56 = scmp.ne.s32.totalorder %s42, %s43
      %p57 = scmp.eq.s32.totalorder %s35, 1
      %p58 = por %p56, %p57
      %p60 = scmp.ne.s32.totalorder %s43, %s59
      %p61 = scmp.eq.s32.totalorder %s35, 0
      %p62 = por %p60, %p61
      %s63 = ssub.s32 %s29, %s36
      %p64 = scmp.eq.s32.totalorder %s63, 0
      %s66 = sadd.s32 %s65, 1
      %s67 = scalar_select %p64, %s65, %s66
      %p70 = pneg %p64
      %p71 = scmp.eq.s32.totalorder %s29, 1
      %p72 = por %p70, %p71
      %p73 = scmp.ne.s32.totalorder %s65, %s68
      %p74 = scmp.eq.s32.totalorder %s29, 0
      %p75 = por %p73, %p74
      %p76 = scmp.ne.s32.totalorder %s65, %s68
      %p77 = scmp.eq.s32.totalorder %s34, 1
      %p78 = por %p76, %p77
      %p79 = scmp.ne.s32.totalorder %s68, %s69
      %p80 = scmp.eq.s32.totalorder %s34, 0
      %p81 = por %p79, %p80
      %p82 = scmp.ne.s32.totalorder %s68, %s69
      %p83 = scmp.eq.s32.totalorder %s35, 1
      %p84 = por %p82, %p83
      %p86 = scmp.ne.s32.totalorder %s69, %s85
      %p87 = scmp.eq.s32.totalorder %s35, 0
      %p88 = por %p86, %p87
      %s90 = sadd.s32 %s89, 1
      %p93 = scmp.eq.s32.totalorder %s29, 1
      %p94 = scmp.ne.s32.totalorder %s89, %s91
      %p95 = scmp.eq.s32.totalorder %s29, 0
      %p96 = por %p94, %p95
      %p97 = scmp.ne.s32.totalorder %s89, %s91
      %p98 = scmp.eq.s32.totalorder %s34, 1
      %p99 = por %p97, %p98
      %p100 = scmp.ne.s32.totalorder %s91, %s92
      %p101 = scmp.eq.s32.totalorder %s34, 0
      %p102 = por %p100, %p101
      %p103 = scmp.ne.s32.totalorder %s91, %s92
      %p104 = scmp.eq.s32.totalorder %s35, 1
      %p105 = por %p103, %p104
      %p107 = scmp.ne.s32.totalorder %s92, %s106
      %p108 = scmp.eq.s32.totalorder %s35, 0
      %p109 = por %p107, %p108
      %s111 = sadd.s32 %s110, 1
      %p114 = scmp.eq.s32.totalorder %s29, 1
      %p115 = scmp.ne.s32.totalorder %s110, %s112
      %p116 = scmp.eq.s32.totalorder %s29, 0
      %p117 = por %p115, %p116
      %p118 = scmp.ne.s32.totalorder %s110, %s112
      %p119 = scmp.eq.s32.totalorder %s34, 1
      %p120 = por %p118, %p119
      %p121 = scmp.ne.s32.totalorder %s112, %s113
      %p122 = scmp.eq.s32.totalorder %s34, 0
      %p123 = por %p121, %p122
      %p124 = scmp.ne.s32.totalorder %s112, %s113
      %p125 = scmp.eq.s32.totalorder %s35, 1
      %p126 = por %p124, %p125
      %p128 = scmp.ne.s32.totalorder %s113, %s127
      %p129 = scmp.eq.s32.totalorder %s35, 0
      %p130 = por %p128, %p129
      %s132 = sadd.s32 %s131, 1
      %p135 = scmp.eq.s32.totalorder %s29, 1
      %p136 = scmp.ne.s32.totalorder %s131, %s133
      %p137 = scmp.eq.s32.totalorder %s29, 0
      %p138 = por %p136, %p137
      %p139 = scmp.ne.s32.totalorder %s131, %s133
      %p140 = scmp.eq.s32.totalorder %s34, 1
      %p141 = por %p139, %p140
      %p142 = scmp.ne.s32.totalorder %s133, %s134
      %p143 = scmp.eq.s32.totalorder %s34, 0
      %p144 = por %p142, %p143
      %p145 = scmp.ne.s32.totalorder %s133, %s134
      %p146 = scmp.eq.s32.totalorder %s35, 1
      %p147 = por %p145, %p146
      %p149 = scmp.ne.s32.totalorder %s134, %s148
      %p150 = scmp.eq.s32.totalorder %s35, 0
      %p151 = por %p149, %p150
      %s153 = sadd.s32 %s152, 1
      %p156 = scmp.eq.s32.totalorder %s29, 1
      %p157 = scmp.ne.s32.totalorder %s152, %s154
      %p158 = scmp.eq.s32.totalorder %s29, 0
      %p159 = por %p157, %p158
      %p160 = scmp.ne.s32.totalorder %s152, %s154
      %p161 = scmp.eq.s32.totalorder %s34, 1
      %p162 = por %p160, %p161
      %p163 = scmp.ne.s32.totalorder %s154, %s155
      %p164 = scmp.eq.s32.totalorder %s34, 0
      %p165 = por %p163, %p164
      %p166 = scmp.ne.s32.totalorder %s154, %s155
      %p167 = scmp.eq.s32.totalorder %s35, 1
      %p168 = por %p166, %p167
      %p170 = scmp.ne.s32.totalorder %s155, %s169
      %p171 = scmp.eq.s32.totalorder %s35, 0
      %p172 = por %p170, %p171
      %s174 = sadd.s32 %s173, 1
      %p177 = scmp.eq.s32.totalorder %s29, 1
      %p178 = scmp.ne.s32.totalorder %s173, %s175
      %p179 = scmp.eq.s32.totalorder %s29, 0
      %p180 = por %p178, %p179
      %p181 = scmp.ne.s32.totalorder %s173, %s175
      %p182 = scmp.eq.s32.totalorder %s34, 1
      %p183 = por %p181, %p182
      %p184 = scmp.ne.s32.totalorder %s175, %s176
      %p185 = scmp.eq.s32.totalorder %s34, 0
      %p186 = por %p184, %p185
      %p187 = scmp.ne.s32.totalorder %s175, %s176
      %p188 = scmp.eq.s32.totalorder %s35, 1
      %p189 = por %p187, %p188
      %p191 = scmp.ne.s32.totalorder %s176, %s190
      %p192 = scmp.eq.s32.totalorder %s35, 0
      %p193 = por %p191, %p192
      %s195 = sadd.s32 %s194, 1
      %p198 = scmp.eq.s32.totalorder %s29, 1
      %p199 = scmp.ne.s32.totalorder %s194, %s196
      %p200 = scmp.eq.s32.totalorder %s29, 0
      %p201 = por %p199, %p200
      %p202 = scmp.ne.s32.totalorder %s194, %s196
      %p203 = scmp.eq.s32.totalorder %s34, 1
      %p204 = por %p202, %p203
      %p205 = scmp.ne.s32.totalorder %s196, %s197
      %p206 = scmp.eq.s32.totalorder %s34, 0
      %p207 = por %p205, %p206
      %p208 = scmp.ne.s32.totalorder %s196, %s197
      %p209 = scmp.eq.s32.totalorder %s35, 1
      %p210 = por %p208, %p209
      %p212 = scmp.ne.s32.totalorder %s197, %s211
      %p213 = scmp.eq.s32.totalorder %s35, 0
      %p214 = por %p212, %p213
      %s216 = sadd.s32 %s215, 1
      %p219 = scmp.eq.s32.totalorder %s29, 1
      %p220 = scmp.ne.s32.totalorder %s215, %s217
      %p221 = scmp.eq.s32.totalorder %s29, 0
      %p222 = por %p220, %p221
      %p223 = scmp.ne.s32.totalorder %s215, %s217
      %p224 = scmp.eq.s32.totalorder %s34, 1
      %p225 = por %p223, %p224
      %p226 = scmp.ne.s32.totalorder %s217, %s218
      %p227 = scmp.eq.s32.totalorder %s34, 0
      %p228 = por %p226, %p227
      %p229 = scmp.ne.s32.totalorder %s217, %s218
      %p230 = scmp.eq.s32.totalorder %s35, 1
      %p231 = por %p229, %p230
      %p233 = scmp.ne.s32.totalorder %s218, %s232
      %p234 = scmp.eq.s32.totalorder %s35, 0
      %p235 = por %p233, %p234
      %s237 = sadd.s32 %s236, 1
      %p240 = scmp.eq.s32.totalorder %s29, 1
      %p241 = scmp.ne.s32.totalorder %s236, %s238
      %p242 = scmp.eq.s32.totalorder %s29, 0
      %p243 = por %p241, %p242
      %p244 = scmp.ne.s32.totalorder %s236, %s238
      %p245 = scmp.eq.s32.totalorder %s34, 1
      %p246 = por %p244, %p245
      %p247 = scmp.ne.s32.totalorder %s238, %s239
      %p248 = scmp.eq.s32.totalorder %s34, 0
      %p249 = por %p247, %p248
      %p250 = scmp.ne.s32.totalorder %s238, %s239
      %p251 = scmp.eq.s32.totalorder %s35, 1
      %p252 = por %p250, %p251
      %p254 = scmp.ne.s32.totalorder %s239, %s253
      %p255 = scmp.eq.s32.totalorder %s35, 0
      %p256 = por %p254, %p255
      %s258 = sadd.s32 %s257, 1
      %p261 = scmp.eq.s32.totalorder %s29, 1
      %p262 = scmp.ne.s32.totalorder %s257, %s259
      %p263 = scmp.eq.s32.totalorder %s29, 0
      %p264 = por %p262, %p263
      %p265 = scmp.ne.s32.totalorder %s257, %s259
      %p266 = scmp.eq.s32.totalorder %s34, 1
      %p267 = por %p265, %p266
      %p268 = scmp.ne.s32.totalorder %s259, %s260
      %p269 = scmp.eq.s32.totalorder %s34, 0
      %p270 = por %p268, %p269
      %p271 = scmp.ne.s32.totalorder %s259, %s260
      %p272 = scmp.eq.s32.totalorder %s35, 1
      %p273 = por %p271, %p272
      %p275 = scmp.ne.s32.totalorder %s260, %s274
      %p276 = scmp.eq.s32.totalorder %s35, 0
      %p277 = por %p275, %p276
      %s279 = sadd.s32 %s278, 1
      %p282 = scmp.eq.s32.totalorder %s29, 1
      %p283 = scmp.ne.s32.totalorder %s278, %s280
      %p284 = scmp.eq.s32.totalorder %s29, 0
      %p285 = por %p283, %p284
      %p286 = scmp.ne.s32.totalorder %s278, %s280
      %p287 = scmp.eq.s32.totalorder %s34, 1
      %p288 = por %p286, %p287
      %p289 = scmp.ne.s32.totalorder %s280, %s281
      %p290 = scmp.eq.s32.totalorder %s34, 0
      %p291 = por %p289, %p290
      %p292 = scmp.ne.s32.totalorder %s280, %s281
      %p293 = scmp.eq.s32.totalorder %s35, 1
      %p294 = por %p292, %p293
      %p296 = scmp.ne.s32.totalorder %s281, %s295
      %p297 = scmp.eq.s32.totalorder %s35, 0
      %p298 = por %p296, %p297
      %s300 = sadd.s32 %s299, 1
      %p303 = scmp.eq.s32.totalorder %s29, 1
      %p304 = scmp.ne.s32.totalorder %s299, %s301
      %p305 = scmp.eq.s32.totalorder %s29, 0
      %p306 = por %p304, %p305
      %p307 = scmp.ne.s32.totalorder %s299, %s301
      %p308 = scmp.eq.s32.totalorder %s34, 1
      %p309 = por %p307, %p308
      %p310 = scmp.ne.s32.totalorder %s301, %s302
      %p311 = scmp.eq.s32.totalorder %s34, 0
      %p312 = por %p310, %p311
      %p313 = scmp.ne.s32.totalorder %s301, %s302
      %p314 = scmp.eq.s32.totalorder %s35, 1
      %p315 = por %p313, %p314
      %p317 = scmp.ne.s32.totalorder %s302, %s316
      %p318 = scmp.eq.s32.totalorder %s35, 0
      %p319 = por %p317, %p318
      %s320 = ssub.s32 %s29, %s36
      %p321 = scmp.eq.s32.totalorder %s320, 0
      %s323 = sadd.s32 %s322, 1
      %s324 = scalar_select %p321, %s322, %s323
      %p327 = pneg %p321
      %p328 = scmp.eq.s32.totalorder %s29, 1
      %p329 = por %p327, %p328
      %p330 = scmp.ne.s32.totalorder %s322, %s325
      %p331 = scmp.eq.s32.totalorder %s29, 0
      %p332 = por %p330, %p331
      %p333 = scmp.ne.s32.totalorder %s322, %s325
      %p334 = scmp.eq.s32.totalorder %s34, 1
      %p335 = por %p333, %p334
      %p336 = scmp.ne.s32.totalorder %s325, %s326
      %p337 = scmp.eq.s32.totalorder %s34, 0
      %p338 = por %p336, %p337
      %p339 = scmp.ne.s32.totalorder %s325, %s326
      %p340 = scmp.eq.s32.totalorder %s35, 1
      %p341 = por %p339, %p340
      %p343 = scmp.ne.s32.totalorder %s326, %s342
      %p344 = scmp.eq.s32.totalorder %s35, 0
      %p345 = por %p343, %p344
      %p346 = scmp.le.s32.totalorder 1, %s29
      %p347 = scmp.lt.s32.totalorder %s29, 3
      %p348 = pnand %p346, %p347
      %p349 = pneg %p348
      // Predicated region
      $region9: #{tpu_custom_call.1} parent=5 // pred_check
        _
      $region10: #{tpu_custom_call.1} parent=5 // pred_check_branch
        %351 = sbr.rel (%p348) target = $region12
      $region11: #{tpu_custom_call.1} parent=5 // pred_region
        %s352 = ssub.s32 %s29, 1
        // Predicated region
        $region13: #{tpu_custom_call.1} parent=11 // pred_check
          %p353 = pneg %p102
        $region14: #{tpu_custom_call.1} parent=11 // pred_check_branch
          %355 = sbr.rel (%p353) target = $region16
        $region15: #{tpu_custom_call.1} parent=11 // pred_region
          _
        $region16: #{tpu_custom_call.1} parent=11 // pred_fallthru
          _
        // Predicated region
        $region17: #{tpu_custom_call.1} parent=11 // pred_check
          %p356 = pneg %p123
        $region18: #{tpu_custom_call.1} parent=11 // pred_check_branch
          %358 = sbr.rel (%p356) target = $region20
        $region19: #{tpu_custom_call.1} parent=11 // pred_region
          _
        $region20: #{tpu_custom_call.1} parent=11 // pred_fallthru
          _
        // Predicated region
        $region21: #{tpu_custom_call.1} parent=11 // pred_check
          %p359 = pneg %p144
        $region22: #{tpu_custom_call.1} parent=11 // pred_check_branch
          %361 = sbr.rel (%p359) target = $region24
        $region23: #{tpu_custom_call.1} parent=11 // pred_region
          _
        $region24: #{tpu_custom_call.1} parent=11 // pred_fallthru
          _
        // Predicated region
        $region25: #{tpu_custom_call.1} parent=11 // pred_check
          %p362 = pneg %p165
        $region26: #{tpu_custom_call.1} parent=11 // pred_check_branch
          %364 = sbr.rel (%p362) target = $region28
        $region27: #{tpu_custom_call.1} parent=11 // pred_region
          %s366 = ssub.s32 1024, 1024
          %367 = vsyncadd [#allocation6], %s366
          %s368 = sshll.u32 [#allocation7], 4
          %s369 = int_to_ptr.vmem [resolvable:$true] %s368
          %374 = dma.hbm_to_vmem [thread:$0]  %s5, 1024, %s369, [#allocation6], 256, 256, 16
        $region28: #{tpu_custom_call.1} parent=11 // pred_fallthru
          _
        // Predicated region
        $region29: #{tpu_custom_call.1} parent=11 // pred_check
          %p375 = pneg %p186
        $region30: #{tpu_custom_call.1} parent=11 // pred_check_branch
          %377 = sbr.rel (%p375) target = $region32
        $region31: #{tpu_custom_call.1} parent=11 // pred_region
          _
        $region32: #{tpu_custom_call.1} parent=11 // pred_fallthru
          _
        // Predicated region
        $region33: #{tpu_custom_call.1} parent=11 // pred_check
          %p378 = pneg %p207
        $region34: #{tpu_custom_call.1} parent=11 // pred_check_branch
          %380 = sbr.rel (%p378) target = $region36
        $region35: #{tpu_custom_call.1} parent=11 // pred_region
          %s382 = ssub.s32 16384, 16384
          %383 = vsyncadd [#allocation9], %s382
          %s384 = sshll.u32 [#allocation8], 4
          %s385 = int_to_ptr.vmem [resolvable:$true] %s384
          %390 = dma.hbm_to_vmem [thread:$0]  %s7, 16384, %s385, [#allocation9], 256, 256, 16
        $region36: #{tpu_custom_call.1} parent=11 // pred_fallthru
          _
        // Predicated region
        $region37: #{tpu_custom_call.1} parent=11 // pred_check
          %p391 = pneg %p228
        $region38: #{tpu_custom_call.1} parent=11 // pred_check_branch
          %393 = sbr.rel (%p391) target = $region40
        $region39: #{tpu_custom_call.1} parent=11 // pred_region
          _
        $region40: #{tpu_custom_call.1} parent=11 // pred_fallthru
          _
        // Predicated region
        $region41: #{tpu_custom_call.1} parent=11 // pred_check
          %p394 = pneg %p249
        $region42: #{tpu_custom_call.1} parent=11 // pred_check_branch
          %396 = sbr.rel (%p394) target = $region44
        $region43: #{tpu_custom_call.1} parent=11 // pred_region
          %s398 = ssub.s32 8192, 8192
          %399 = vsyncadd [#allocation9], %s398
          %s400 = sshll.u32 [#allocation10], 4
          %s401 = int_to_ptr.vmem [resolvable:$true] %s400
          %406 = dma.hbm_to_vmem [thread:$0]  %s9, 8192, %s401, [#allocation9], 128, 128, 8
        $region44: #{tpu_custom_call.1} parent=11 // pred_fallthru
          _
        // Predicated region
        $region45: #{tpu_custom_call.1} parent=11 // pred_check
          %p407 = pneg %p270
        $region46: #{tpu_custom_call.1} parent=11 // pred_check_branch
          %409 = sbr.rel (%p407) target = $region48
        $region47: #{tpu_custom_call.1} parent=11 // pred_region
          _
        $region48: #{tpu_custom_call.1} parent=11 // pred_fallthru
          _
        // Predicated region
        $region49: #{tpu_custom_call.1} parent=11 // pred_check
          %p410 = pneg %p291
        $region50: #{tpu_custom_call.1} parent=11 // pred_check_branch
          %412 = sbr.rel (%p410) target = $region52
        $region51: #{tpu_custom_call.1} parent=11 // pred_region
          _
        $region52: #{tpu_custom_call.1} parent=11 // pred_fallthru
          _
        // Predicated region
        $region53: #{tpu_custom_call.1} parent=11 // pred_check
          %p413 = pneg %p312
        $region54: #{tpu_custom_call.1} parent=11 // pred_check_branch
          %415 = sbr.rel (%p413) target = $region56
        $region55: #{tpu_custom_call.1} parent=11 // pred_region
          _
        $region56: #{tpu_custom_call.1} parent=11 // pred_fallthru
          _
      $region12: #{tpu_custom_call.1} parent=5 // pred_fallthru
        _
      %p416 = scmp.lt.s32.totalorder %s29, 2
      // Predicated region
      $region57: #{tpu_custom_call.1} parent=5 // pred_check
        %p417 = pneg %p416
      $region58: #{tpu_custom_call.1} parent=5 // pred_check_branch
        %419 = sbr.rel (%p417) target = $region60
      $region59: #{tpu_custom_call.1} parent=5 // pred_region
        // Predicated region
        $region61: #{tpu_custom_call.1} parent=59 // pred_check
          %p420 = pneg %p49
        $region62: #{tpu_custom_call.1} parent=59 // pred_check_branch
          %422 = sbr.rel (%p420) target = $region64
        $region63: #{tpu_custom_call.1} parent=59 // pred_region
          %s423 = sand.u32 %s39, 1
          %s424 = scalar_lea.sflag [#allocation3], %s423
          %s425 = sand.u32 %s39, 1
          %s426 = smul.addr %s425, 256
          %s427 = scalar_lea.vmem [#allocation2], %s426
          %s428 = smul.u32 64, %s29
          %s430 = ssub.s32 4096, 4096
          %431 = vsyncadd %s424, %s430
          %s432 = smul.addr %s428, 64
          %s433 = scalar_lea.hbm %s0, %s432
          %s434 = sshll.u32 %s427, 4
          %s435 = int_to_ptr.vmem [resolvable:$true] %s434
          %440 = dma.hbm_to_vmem [thread:$0]  %s433, 4096, %s435, %s424, 64, 64, 4
        $region64: #{tpu_custom_call.1} parent=59 // pred_fallthru
          _
        // Predicated region
        $region65: #{tpu_custom_call.1} parent=59 // pred_check
          %p441 = pneg %p75
        $region66: #{tpu_custom_call.1} parent=59 // pred_check_branch
          %443 = sbr.rel (%p441) target = $region68
        $region67: #{tpu_custom_call.1} parent=59 // pred_region
          %s444 = sand.u32 %s29, 1
          %s445 = scalar_lea.sflag [#allocation6], %s444
          %s446 = sand.u32 %s65, 1
          %s447 = smul.addr %s446, 256
          %s448 = scalar_lea.vmem [#allocation5], %s447
          %s449 = smul.u32 64, %s29
          %s451 = ssub.s32 4096, 4096
          %452 = vsyncadd %s445, %s451
          %s453 = smul.addr %s449, 64
          %s454 = scalar_lea.hbm %s1, %s453
          %s455 = sshll.u32 %s448, 4
          %s456 = int_to_ptr.vmem [resolvable:$true] %s455
          %461 = dma.hbm_to_vmem [thread:$0]  %s454, 4096, %s456, %s445, 64, 64, 4
        $region68: #{tpu_custom_call.1} parent=59 // pred_fallthru
          _
      $region60: #{tpu_custom_call.1} parent=5 // pred_fallthru
        _
      %p462 = scmp.le.s32.totalorder 1, %s29
      %p463 = scmp.lt.s32.totalorder %s29, 3
      %p464 = pnand %p462, %p463
      %p465 = pneg %p464
      // Predicated region
      $region69: #{tpu_custom_call.1} parent=5 // pred_check
        _
      $region70: #{tpu_custom_call.1} parent=5 // pred_check_branch
        %467 = sbr.rel (%p464) target = $region72
      $region71: #{tpu_custom_call.1} parent=5 // pred_region
        %s468 = ssub.s32 %s29, 1
        %s469 = sand.u32 %s42, 1
        %s470 = scalar_lea.sflag [#allocation3], %s469
        %s471 = sand.u32 %s42, 1
        %s472 = smul.addr %s471, 256
        %s473 = scalar_lea.vmem [#allocation2], %s472
        // Predicated region
        $region73: #{tpu_custom_call.1} parent=71 // pred_check
          %p474 = pneg %p55
        $region74: #{tpu_custom_call.1} parent=71 // pred_check_branch
          %476 = sbr.rel (%p474) target = $region76
        $region75: #{tpu_custom_call.1} parent=71 // pred_region
          %477 = dma.done %s470, 4096
        $region76: #{tpu_custom_call.1} parent=71 // pred_fallthru
          _
        %s478 = sand.u32 %s34, 1
        %s479 = scalar_lea.sflag [#allocation6], %s478
        %s480 = sand.u32 %s68, 1
        %s481 = smul.addr %s480, 256
        %s482 = scalar_lea.vmem [#allocation5], %s481
        // Predicated region
        $region77: #{tpu_custom_call.1} parent=71 // pred_check
          %p483 = pneg %p81
        $region78: #{tpu_custom_call.1} parent=71 // pred_check_branch
          %485 = sbr.rel (%p483) target = $region80
        $region79: #{tpu_custom_call.1} parent=71 // pred_region
          %486 = dma.done %s479, 4096
        $region80: #{tpu_custom_call.1} parent=71 // pred_fallthru
          _
        // Predicated region
        $region81: #{tpu_custom_call.1} parent=71 // pred_check
          %p487 = pneg %p165
        $region82: #{tpu_custom_call.1} parent=71 // pred_check_branch
          %489 = sbr.rel (%p487) target = $region84
        $region83: #{tpu_custom_call.1} parent=71 // pred_region
          %490 = dma.done [#allocation6], 1024
        $region84: #{tpu_custom_call.1} parent=71 // pred_fallthru
          _
        // Predicated region
        $region85: #{tpu_custom_call.1} parent=71 // pred_check
          %p491 = pneg %p207
        $region86: #{tpu_custom_call.1} parent=71 // pred_check_branch
          %493 = sbr.rel (%p491) target = $region88
        $region87: #{tpu_custom_call.1} parent=71 // pred_region
          %494 = dma.done [#allocation9], 16384
        $region88: #{tpu_custom_call.1} parent=71 // pred_fallthru
          _
        // Predicated region
        $region89: #{tpu_custom_call.1} parent=71 // pred_check
          %p495 = pneg %p249
        $region90: #{tpu_custom_call.1} parent=71 // pred_check_branch
          %497 = sbr.rel (%p495) target = $region92
        $region91: #{tpu_custom_call.1} parent=71 // pred_region
          %498 = dma.done [#allocation9], 8192
        $region92: #{tpu_custom_call.1} parent=71 // pred_fallthru
          _
        %s499 = sand.u32 %s42, 1
        %s500 = scalar_lea.sflag [#allocation3], %s499
        %s501 = sand.u32 %s42, 1
        %s502 = smul.addr %s501, 256
        %s503 = scalar_lea.vmem [#allocation2], %s502
        %p504 = pneg %p55
        %p505 = pneg %p52
        %s506 = sand.u32 %s34, 1
        %s507 = scalar_lea.sflag [#allocation6], %s506
        %s508 = sand.u32 %s68, 1
        %s509 = smul.addr %s508, 256
        %s510 = scalar_lea.vmem [#allocation5], %s509
        %p511 = pneg %p81
        %p512 = pneg %p78
        %p513 = pneg %p102
        %p514 = pneg %p99
        %p515 = pneg %p123
        %p516 = pneg %p120
        %p517 = pneg %p144
        %p518 = pneg %p141
        %p519 = pneg %p165
        %p520 = pneg %p162
        %p521 = pneg %p186
        %p522 = pneg %p183
        %p523 = pneg %p207
        %p524 = pneg %p204
        %p525 = pneg %p228
        %p526 = pneg %p225
        %p527 = pneg %p249
        %p528 = pneg %p246
        %p529 = pneg %p270
        %p530 = pneg %p267
        %p531 = pneg %p291
        %p532 = pneg %p288
        %p533 = pneg %p312
        %p534 = pneg %p309
        %p535 = pneg %p338
        %p536 = pneg %p335
        %s537 = sand.u32 %s325, 1
        %s538 = scalar_lea.sflag [#allocation4], %s537
        %s539 = sand.u32 %s325, 1
        %s540 = smul.addr %s539, 512
        %s541 = scalar_lea.vmem [#allocation11], %s540
        %s542 = smul.u32 64, %s34
        %s543 = smul.u32 64, %s34
        %s544 = smul.u32 64, %s34
        %v546 = vld [vmem:[%s473] sm:$0xf]
        %v547 = vld [vmem:[%s473 + $0x4] sm:$0xf]
        %v548 = vld [vmem:[%s473 + $0x8] sm:$0xf]
        %v549 = vld [vmem:[%s473 + $0xc] sm:$0xf]
        %v550 = vld [vmem:[%s473 + $0x10] sm:$0xf]
        %v551 = vld [vmem:[%s473 + $0x14] sm:$0xf]
        %v552 = vld [vmem:[%s473 + $0x18] sm:$0xf]
        %v553 = vld [vmem:[%s473 + $0x1c] sm:$0xf]
        %v554 = vld [vmem:[%s473 + $0x20] sm:$0xf]
        %v555 = vld [vmem:[%s473 + $0x24] sm:$0xf]
        %v556 = vld [vmem:[%s473 + $0x28] sm:$0xf]
        %v557 = vld [vmem:[%s473 + $0x2c] sm:$0xf]
        %v558 = vld [vmem:[%s473 + $0x30] sm:$0xf]
        %v559 = vld [vmem:[%s473 + $0x34] sm:$0xf]
        %v560 = vld [vmem:[%s473 + $0x38] sm:$0xf]
        %v561 = vld [vmem:[%s473 + $0x3c] sm:$0xf]
        %v562 = vld [vmem:[%s473 + $0x40] sm:$0xf]
        %v563 = vld [vmem:[%s473 + $0x44] sm:$0xf]
        %v564 = vld [vmem:[%s473 + $0x48] sm:$0xf]
        %v565 = vld [vmem:[%s473 + $0x4c] sm:$0xf]
        %v566 = vld [vmem:[%s473 + $0x50] sm:$0xf]
        %v567 = vld [vmem:[%s473 + $0x54] sm:$0xf]
        %v568 = vld [vmem:[%s473 + $0x58] sm:$0xf]
        %v569 = vld [vmem:[%s473 + $0x5c] sm:$0xf]
        %v570 = vld [vmem:[%s473 + $0x60] sm:$0xf]
        %v571 = vld [vmem:[%s473 + $0x64] sm:$0xf]
        %v572 = vld [vmem:[%s473 + $0x68] sm:$0xf]
        %v573 = vld [vmem:[%s473 + $0x6c] sm:$0xf]
        %v574 = vld [vmem:[%s473 + $0x70] sm:$0xf]
        %v575 = vld [vmem:[%s473 + $0x74] sm:$0xf]
        %v576 = vld [vmem:[%s473 + $0x78] sm:$0xf]
        %v577 = vld [vmem:[%s473 + $0x7c] sm:$0xf]
        %v578 = vld [vmem:[%s473 + $0x80] sm:$0xf]
        %v579 = vld [vmem:[%s473 + $0x84] sm:$0xf]
        %v580 = vld [vmem:[%s473 + $0x88] sm:$0xf]
        %v581 = vld [vmem:[%s473 + $0x8c] sm:$0xf]
        %v582 = vld [vmem:[%s473 + $0x90] sm:$0xf]
        %v583 = vld [vmem:[%s473 + $0x94] sm:$0xf]
        %v584 = vld [vmem:[%s473 + $0x98] sm:$0xf]
        %v585 = vld [vmem:[%s473 + $0x9c] sm:$0xf]
        %v586 = vld [vmem:[%s473 + $0xa0] sm:$0xf]
        %v587 = vld [vmem:[%s473 + $0xa4] sm:$0xf]
        %v588 = vld [vmem:[%s473 + $0xa8] sm:$0xf]
        %v589 = vld [vmem:[%s473 + $0xac] sm:$0xf]
        %v590 = vld [vmem:[%s473 + $0xb0] sm:$0xf]
        %v591 = vld [vmem:[%s473 + $0xb4] sm:$0xf]
        %v592 = vld [vmem:[%s473 + $0xb8] sm:$0xf]
        %v593 = vld [vmem:[%s473 + $0xbc] sm:$0xf]
        %v594 = vld [vmem:[%s473 + $0xc0] sm:$0xf]
        %v595 = vld [vmem:[%s473 + $0xc4] sm:$0xf]
        %v596 = vld [vmem:[%s473 + $0xc8] sm:$0xf]
        %v597 = vld [vmem:[%s473 + $0xcc] sm:$0xf]
        %v598 = vld [vmem:[%s473 + $0xd0] sm:$0xf]
        %v599 = vld [vmem:[%s473 + $0xd4] sm:$0xf]
        %v600 = vld [vmem:[%s473 + $0xd8] sm:$0xf]
        %v601 = vld [vmem:[%s473 + $0xdc] sm:$0xf]
        %v602 = vld [vmem:[%s473 + $0xe0] sm:$0xf]
        %v603 = vld [vmem:[%s473 + $0xe4] sm:$0xf]
        %v604 = vld [vmem:[%s473 + $0xe8] sm:$0xf]
        %v605 = vld [vmem:[%s473 + $0xec] sm:$0xf]
        %v606 = vld [vmem:[%s473 + $0xf0] sm:$0xf]
        %v607 = vld [vmem:[%s473 + $0xf4] sm:$0xf]
        %v608 = vld [vmem:[%s473 + $0xf8] sm:$0xf]
        %v609 = vld [vmem:[%s473 + $0xfc] sm:$0xf]
        %v610 = vld [vmem:[%s2] sm:$0xf]
        %v611 = vld [vmem:[%s2 + $0x4] sm:$0xf]
        %v612 = vld [vmem:[%s2 + $0x8] sm:$0xf]
        %v613 = vld [vmem:[%s2 + $0xc] sm:$0xf]
        %v614 = vld [vmem:[%s2 + $0x10] sm:$0xf]
        %v615 = vld [vmem:[%s2 + $0x14] sm:$0xf]
        %v616 = vld [vmem:[%s2 + $0x18] sm:$0xf]
        %v617 = vld [vmem:[%s2 + $0x1c] sm:$0xf]
        %v618 = vld [vmem:[%s2 + $0x20] sm:$0xf]
        %v619 = vld [vmem:[%s2 + $0x24] sm:$0xf]
        %v620 = vld [vmem:[%s2 + $0x28] sm:$0xf]
        %v621 = vld [vmem:[%s2 + $0x2c] sm:$0xf]
        %v622 = vld [vmem:[%s2 + $0x30] sm:$0xf]
        %v623 = vld [vmem:[%s2 + $0x34] sm:$0xf]
        %v624 = vld [vmem:[%s2 + $0x38] sm:$0xf]
        %v625 = vld [vmem:[%s2 + $0x3c] sm:$0xf]
        %v626 = vld [vmem:[%s482] sm:$0xf]
        %v627 = vld [vmem:[%s482 + $0x4] sm:$0xf]
        %v628 = vld [vmem:[%s482 + $0x8] sm:$0xf]
        %v629 = vld [vmem:[%s482 + $0xc] sm:$0xf]
        %v630 = vld [vmem:[%s482 + $0x10] sm:$0xf]
        %v631 = vld [vmem:[%s482 + $0x14] sm:$0xf]
        %v632 = vld [vmem:[%s482 + $0x18] sm:$0xf]
        %v633 = vld [vmem:[%s482 + $0x1c] sm:$0xf]
        %v634 = vld [vmem:[%s482 + $0x20] sm:$0xf]
        %v635 = vld [vmem:[%s482 + $0x24] sm:$0xf]
        %v636 = vld [vmem:[%s482 + $0x28] sm:$0xf]
        %v637 = vld [vmem:[%s482 + $0x2c] sm:$0xf]
        %v638 = vld [vmem:[%s482 + $0x30] sm:$0xf]
        %v639 = vld [vmem:[%s482 + $0x34] sm:$0xf]
        %v640 = vld [vmem:[%s482 + $0x38] sm:$0xf]
        %v641 = vld [vmem:[%s482 + $0x3c] sm:$0xf]
        %v642 = vld [vmem:[%s482 + $0x40] sm:$0xf]
        %v643 = vld [vmem:[%s482 + $0x44] sm:$0xf]
        %v644 = vld [vmem:[%s482 + $0x48] sm:$0xf]
        %v645 = vld [vmem:[%s482 + $0x4c] sm:$0xf]
        %v646 = vld [vmem:[%s482 + $0x50] sm:$0xf]
        %v647 = vld [vmem:[%s482 + $0x54] sm:$0xf]
        %v648 = vld [vmem:[%s482 + $0x58] sm:$0xf]
        %v649 = vld [vmem:[%s482 + $0x5c] sm:$0xf]
        %v650 = vld [vmem:[%s482 + $0x60] sm:$0xf]
        %v651 = vld [vmem:[%s482 + $0x64] sm:$0xf]
        %v652 = vld [vmem:[%s482 + $0x68] sm:$0xf]
        %v653 = vld [vmem:[%s482 + $0x6c] sm:$0xf]
        %v654 = vld [vmem:[%s482 + $0x70] sm:$0xf]
        %v655 = vld [vmem:[%s482 + $0x74] sm:$0xf]
        %v656 = vld [vmem:[%s482 + $0x78] sm:$0xf]
        %v657 = vld [vmem:[%s482 + $0x7c] sm:$0xf]
        %v658 = vld [vmem:[%s482 + $0x80] sm:$0xf]
        %v659 = vld [vmem:[%s482 + $0x84] sm:$0xf]
        %v660 = vld [vmem:[%s482 + $0x88] sm:$0xf]
        %v661 = vld [vmem:[%s482 + $0x8c] sm:$0xf]
        %v662 = vld [vmem:[%s482 + $0x90] sm:$0xf]
        %v663 = vld [vmem:[%s482 + $0x94] sm:$0xf]
        %v664 = vld [vmem:[%s482 + $0x98] sm:$0xf]
        %v665 = vld [vmem:[%s482 + $0x9c] sm:$0xf]
        %v666 = vld [vmem:[%s482 + $0xa0] sm:$0xf]
        %v667 = vld [vmem:[%s482 + $0xa4] sm:$0xf]
        %v668 = vld [vmem:[%s482 + $0xa8] sm:$0xf]
        %v669 = vld [vmem:[%s482 + $0xac] sm:$0xf]
        %v670 = vld [vmem:[%s482 + $0xb0] sm:$0xf]
        %v671 = vld [vmem:[%s482 + $0xb4] sm:$0xf]
        %v672 = vld [vmem:[%s482 + $0xb8] sm:$0xf]
        %v673 = vld [vmem:[%s482 + $0xbc] sm:$0xf]
        %v674 = vld [vmem:[%s482 + $0xc0] sm:$0xf]
        %v675 = vld [vmem:[%s482 + $0xc4] sm:$0xf]
        %v676 = vld [vmem:[%s482 + $0xc8] sm:$0xf]
        %v677 = vld [vmem:[%s482 + $0xcc] sm:$0xf]
        %v678 = vld [vmem:[%s482 + $0xd0] sm:$0xf]
        %v679 = vld [vmem:[%s482 + $0xd4] sm:$0xf]
        %v680 = vld [vmem:[%s482 + $0xd8] sm:$0xf]
        %v681 = vld [vmem:[%s482 + $0xdc] sm:$0xf]
        %v682 = vld [vmem:[%s482 + $0xe0] sm:$0xf]
        %v683 = vld [vmem:[%s482 + $0xe4] sm:$0xf]
        %v684 = vld [vmem:[%s482 + $0xe8] sm:$0xf]
        %v685 = vld [vmem:[%s482 + $0xec] sm:$0xf]
        %v686 = vld [vmem:[%s482 + $0xf0] sm:$0xf]
        %v687 = vld [vmem:[%s482 + $0xf4] sm:$0xf]
        %v688 = vld [vmem:[%s482 + $0xf8] sm:$0xf]
        %v689 = vld [vmem:[%s482 + $0xfc] sm:$0xf]
        %v690 = vld [vmem:[%s3] sm:$0xf]
        %v691 = vld [vmem:[%s3 + $0x4] sm:$0xf]
        %v692 = vld [vmem:[%s3 + $0x8] sm:$0xf]
        %v693 = vld [vmem:[%s3 + $0xc] sm:$0xf]
        %v694 = vld [vmem:[%s3 + $0x10] sm:$0xf]
        %v695 = vld [vmem:[%s3 + $0x14] sm:$0xf]
        %v696 = vld [vmem:[%s3 + $0x18] sm:$0xf]
        %v697 = vld [vmem:[%s3 + $0x1c] sm:$0xf]
        %v698 = vld [vmem:[%s3 + $0x20] sm:$0xf]
        %v699 = vld [vmem:[%s3 + $0x24] sm:$0xf]
        %v700 = vld [vmem:[%s3 + $0x28] sm:$0xf]
        %v701 = vld [vmem:[%s3 + $0x2c] sm:$0xf]
        %v702 = vld [vmem:[%s3 + $0x30] sm:$0xf]
        %v703 = vld [vmem:[%s3 + $0x34] sm:$0xf]
        %v704 = vld [vmem:[%s3 + $0x38] sm:$0xf]
        %v705 = vld [vmem:[%s3 + $0x3c] sm:$0xf]
        %v770 = vunpack.c.l.b16 %v626
        %v771 = vunpack.c.l.b16 %v627
        %v772 = vunpack.c.l.b16 %v628
        %v773 = vunpack.c.l.b16 %v629
        %v774 = vunpack.c.l.b16 %v630
        %v775 = vunpack.c.l.b16 %v631
        %v776 = vunpack.c.l.b16 %v632
        %v777 = vunpack.c.l.b16 %v633
        %v778 = vunpack.c.l.b16 %v634
        %v779 = vunpack.c.l.b16 %v635
        %v780 = vunpack.c.l.b16 %v636
        %v781 = vunpack.c.l.b16 %v637
        %v782 = vunpack.c.l.b16 %v638
        %v783 = vunpack.c.l.b16 %v639
        %v784 = vunpack.c.l.b16 %v640
        %v785 = vunpack.c.l.b16 %v641
        %v786 = vunpack.c.l.b16 %v642
        %v787 = vunpack.c.l.b16 %v643
        %v788 = vunpack.c.l.b16 %v644
        %v789 = vunpack.c.l.b16 %v645
        %v790 = vunpack.c.l.b16 %v646
        %v791 = vunpack.c.l.b16 %v647
        %v792 = vunpack.c.l.b16 %v648
        %v793 = vunpack.c.l.b16 %v649
        %v794 = vunpack.c.l.b16 %v650
        %v795 = vunpack.c.l.b16 %v651
        %v796 = vunpack.c.l.b16 %v652
        %v797 = vunpack.c.l.b16 %v653
        %v798 = vunpack.c.l.b16 %v654
        %v799 = vunpack.c.l.b16 %v655
        %v800 = vunpack.c.l.b16 %v656
        %v801 = vunpack.c.l.b16 %v657
        %v802 = vunpack.c.l.b16 %v658
        %v803 = vunpack.c.l.b16 %v659
        %v804 = vunpack.c.l.b16 %v660
        %v805 = vunpack.c.l.b16 %v661
        %v806 = vunpack.c.l.b16 %v662
        %v807 = vunpack.c.l.b16 %v663
        %v808 = vunpack.c.l.b16 %v664
        %v809 = vunpack.c.l.b16 %v665
        %v810 = vunpack.c.l.b16 %v666
        %v811 = vunpack.c.l.b16 %v667
        %v812 = vunpack.c.l.b16 %v668
        %v813 = vunpack.c.l.b16 %v669
        %v814 = vunpack.c.l.b16 %v670
        %v815 = vunpack.c.l.b16 %v671
        %v816 = vunpack.c.l.b16 %v672
        %v817 = vunpack.c.l.b16 %v673
        %v818 = vunpack.c.l.b16 %v674
        %v819 = vunpack.c.l.b16 %v675
        %v820 = vunpack.c.l.b16 %v676
        %v821 = vunpack.c.l.b16 %v677
        %v822 = vunpack.c.l.b16 %v678
        %v823 = vunpack.c.l.b16 %v679
        %v824 = vunpack.c.l.b16 %v680
        %v825 = vunpack.c.l.b16 %v681
        %v826 = vunpack.c.l.b16 %v682
        %v827 = vunpack.c.l.b16 %v683
        %v828 = vunpack.c.l.b16 %v684
        %v829 = vunpack.c.l.b16 %v685
        %v830 = vunpack.c.l.b16 %v686
        %v831 = vunpack.c.l.b16 %v687
        %v832 = vunpack.c.l.b16 %v688
        %v833 = vunpack.c.l.b16 %v689
        %v834 = vpack.c.b16 %v771, %v770
        %v835 = vpack.c.b16 %v773, %v772
        %v836 = vpack.c.b16 %v775, %v774
        %v837 = vpack.c.b16 %v777, %v776
        %v838 = vpack.c.b16 %v779, %v778
        %v839 = vpack.c.b16 %v781, %v780
        %v840 = vpack.c.b16 %v783, %v782
        %v841 = vpack.c.b16 %v785, %v784
        %v842 = vpack.c.b16 %v787, %v786
        %v843 = vpack.c.b16 %v789, %v788
        %v844 = vpack.c.b16 %v791, %v790
        %v845 = vpack.c.b16 %v793, %v792
        %v846 = vpack.c.b16 %v795, %v794
        %v847 = vpack.c.b16 %v797, %v796
        %v848 = vpack.c.b16 %v799, %v798
        %v849 = vpack.c.b16 %v801, %v800
        %v850 = vpack.c.b16 %v803, %v802
        %v851 = vpack.c.b16 %v805, %v804
        %v852 = vpack.c.b16 %v807, %v806
        %v853 = vpack.c.b16 %v809, %v808
        %v854 = vpack.c.b16 %v811, %v810
        %v855 = vpack.c.b16 %v813, %v812
        %v856 = vpack.c.b16 %v815, %v814
        %v857 = vpack.c.b16 %v817, %v816
        %v858 = vpack.c.b16 %v819, %v818
        %v859 = vpack.c.b16 %v821, %v820
        %v860 = vpack.c.b16 %v823, %v822
        %v861 = vpack.c.b16 %v825, %v824
        %v862 = vpack.c.b16 %v827, %v826
        %v863 = vpack.c.b16 %v829, %v828
        %v864 = vpack.c.b16 %v831, %v830
        %v865 = vpack.c.b16 %v833, %v832
        %v914 = vunpack.c.l.b16 %v690
        %v915 = vunpack.c.l.b16 %v691
        %v916 = vunpack.c.l.b16 %v692
        %v917 = vunpack.c.l.b16 %v693
        %v918 = vunpack.c.l.b16 %v694
        %v919 = vunpack.c.l.b16 %v695
        %v920 = vunpack.c.l.b16 %v696
        %v921 = vunpack.c.l.b16 %v697
        %v922 = vunpack.c.l.b16 %v698
        %v923 = vunpack.c.l.b16 %v699
        %v924 = vunpack.c.l.b16 %v700
        %v925 = vunpack.c.l.b16 %v701
        %v926 = vunpack.c.l.b16 %v702
        %v927 = vunpack.c.l.b16 %v703
        %v928 = vunpack.c.l.b16 %v704
        %v929 = vunpack.c.l.b16 %v705
        %v930 = vpack.c.b16 %v915, %v914
        %v931 = vpack.c.b16 %v917, %v916
        %v932 = vpack.c.b16 %v919, %v918
        %v933 = vpack.c.b16 %v921, %v920
        %v934 = vpack.c.b16 %v923, %v922
        %v935 = vpack.c.b16 %v925, %v924
        %v936 = vpack.c.b16 %v927, %v926
        %v937 = vpack.c.b16 %v929, %v928
        %946 = vmatprep.subr.bf16.mxu0 0
        %947 = vmatpush1.bf16.msra.mxu0 %v937
        %948 = vmatprep.subr.bf16.mxu0 0
        %949 = vmatpush1.bf16.msra.mxu0 %v936
        %950 = vmatprep.subr.bf16.mxu0 0
        %951 = vmatpush1.bf16.msra.mxu0 %v935
        %952 = vmatprep.subr.bf16.mxu0 0
        %953 = vmatpush1.bf16.msra.mxu0 %v934
        %954 = vmatprep.subr.bf16.mxu0 0
        %955 = vmatpush1.bf16.msra.mxu0 %v933
        %956 = vmatprep.subr.bf16.mxu0 0
        %957 = vmatpush1.bf16.msra.mxu0 %v932
        %958 = vmatprep.subr.bf16.mxu0 0
        %959 = vmatpush1.bf16.msra.mxu0 %v931
        %960 = vmatprep.subr.bf16.mxu0 0
        %961 = vmatpush1.bf16.msra.mxu0 %v930
        %962 = vmatprep.subr.bf16.mxu0 0
        %963 = vmatpush2.bf16.msra.mxu0 0
        %964 = vmatprep.subr.bf16.mxu0 0
        %965 = vmatpush2.bf16.msra.mxu0 0
        %966 = vmatprep.subr.bf16.mxu0 0
        %967 = vmatpush2.bf16.msra.mxu0 0
        %968 = vmatprep.subr.bf16.mxu0 0
        %969 = vmatpush2.bf16.msra.mxu0 0
        %970 = vmatprep.subr.bf16.mxu0 0
        %971 = vmatpush2.bf16.msra.mxu0 0
        %972 = vmatprep.subr.bf16.mxu0 0
        %973 = vmatpush2.bf16.msra.mxu0 0
        %974 = vmatprep.subr.bf16.mxu0 0
        %975 = vmatpush2.bf16.msra.mxu0 0
        %976 = vmatprep.subr.bf16.mxu0 0
        %977 = vmatpush2.bf16.msra.mxu0 0
        %978 = vmatprep.mubr.bf16.mxu0 0
        %979 = vmatmul.mubr.bf16.gmra.mxu0 %v834
        %v980 = vpop.f32.mrf.mxu0
        %v981 = vadd.f32 0.0, %v980
        %v982 = vpop.f32.mrf.mxu0
        %v983 = vpop.f32.mrf.mxu0
        %v984 = vadd.f32 0.0, %v983
        %v985 = vpop.f32.mrf.mxu0
        %986 = vmatprep.mubr.bf16.mxu0 0
        %987 = vmatmul.mubr.bf16.gmra.mxu0 %v835
        %v988 = vpop.f32.mrf.mxu0
        %v989 = vadd.f32 0.0, %v988
        %v990 = vpop.f32.mrf.mxu0
        %v991 = vpop.f32.mrf.mxu0
        %v992 = vadd.f32 0.0, %v991
        %v993 = vpop.f32.mrf.mxu0
        %994 = vmatprep.mubr.bf16.mxu0 0
        %995 = vmatmul.mubr.bf16.gmra.mxu0 %v836
        %v996 = vpop.f32.mrf.mxu0
        %v997 = vadd.f32 0.0, %v996
        %v998 = vpop.f32.mrf.mxu0
        %v999 = vpop.f32.mrf.mxu0
        %v1000 = vadd.f32 0.0, %v999
        %v1001 = vpop.f32.mrf.mxu0
        %1002 = vmatprep.mubr.bf16.mxu0 0
        %1003 = vmatmul.mubr.bf16.gmra.mxu0 %v837
        %v1004 = vpop.f32.mrf.mxu0
        %v1005 = vadd.f32 0.0, %v1004
        %v1006 = vpop.f32.mrf.mxu0
        %v1007 = vpop.f32.mrf.mxu0
        %v1008 = vadd.f32 0.0, %v1007
        %v1009 = vpop.f32.mrf.mxu0
        %1010 = vmatprep.mubr.bf16.mxu0 0
        %1011 = vmatmul.mubr.bf16.gmra.mxu0 %v838
        %v1012 = vpop.f32.mrf.mxu0
        %v1013 = vadd.f32 0.0, %v1012
        %v1014 = vpop.f32.mrf.mxu0
        %v1015 = vpop.f32.mrf.mxu0
        %v1016 = vadd.f32 0.0, %v1015
        %v1017 = vpop.f32.mrf.mxu0
        %1018 = vmatprep.mubr.bf16.mxu0 0
        %1019 = vmatmul.mubr.bf16.gmra.mxu0 %v839
        %v1020 = vpop.f32.mrf.mxu0
        %v1021 = vadd.f32 0.0, %v1020
        %v1022 = vpop.f32.mrf.mxu0
        %v1023 = vpop.f32.mrf.mxu0
        %v1024 = vadd.f32 0.0, %v1023
        %v1025 = vpop.f32.mrf.mxu0
        %1026 = vmatprep.mubr.bf16.mxu0 0
        %1027 = vmatmul.mubr.bf16.gmra.mxu0 %v840
        %v1028 = vpop.f32.mrf.mxu0
        %v1029 = vadd.f32 0.0, %v1028
        %v1030 = vpop.f32.mrf.mxu0
        %v1031 = vpop.f32.mrf.mxu0
        %v1032 = vadd.f32 0.0, %v1031
        %v1033 = vpop.f32.mrf.mxu0
        %1034 = vmatprep.mubr.bf16.mxu0 0
        %1035 = vmatmul.mubr.bf16.gmra.mxu0 %v841
        %v1036 = vpop.f32.mrf.mxu0
        %v1037 = vadd.f32 0.0, %v1036
        %v1038 = vpop.f32.mrf.mxu0
        %v1039 = vpop.f32.mrf.mxu0
        %v1040 = vadd.f32 0.0, %v1039
        %v1041 = vpop.f32.mrf.mxu0
        %1042 = vmatprep.mubr.bf16.mxu0 0
        %1043 = vmatmul.mubr.bf16.gmra.mxu0 %v842
        %v1044 = vpop.f32.mrf.mxu0
        %v1045 = vadd.f32 0.0, %v1044
        %v1046 = vpop.f32.mrf.mxu0
        %v1047 = vpop.f32.mrf.mxu0
        %v1048 = vadd.f32 0.0, %v1047
        %v1049 = vpop.f32.mrf.mxu0
        %1050 = vmatprep.mubr.bf16.mxu0 0
        %1051 = vmatmul.mubr.bf16.gmra.mxu0 %v843
        %v1052 = vpop.f32.mrf.mxu0
        %v1053 = vadd.f32 0.0, %v1052
        %v1054 = vpop.f32.mrf.mxu0
        %v1055 = vpop.f32.mrf.mxu0
        %v1056 = vadd.f32 0.0, %v1055
        %v1057 = vpop.f32.mrf.mxu0
        %1058 = vmatprep.mubr.bf16.mxu0 0
        %1059 = vmatmul.mubr.bf16.gmra.mxu0 %v844
        %v1060 = vpop.f32.mrf.mxu0
        %v1061 = vadd.f32 0.0, %v1060
        %v1062 = vpop.f32.mrf.mxu0
        %v1063 = vpop.f32.mrf.mxu0
        %v1064 = vadd.f32 0.0, %v1063
        %v1065 = vpop.f32.mrf.mxu0
        %1066 = vmatprep.mubr.bf16.mxu0 0
        %1067 = vmatmul.mubr.bf16.gmra.mxu0 %v845
        %v1068 = vpop.f32.mrf.mxu0
        %v1069 = vadd.f32 0.0, %v1068
        %v1070 = vpop.f32.mrf.mxu0
        %v1071 = vpop.f32.mrf.mxu0
        %v1072 = vadd.f32 0.0, %v1071
        %v1073 = vpop.f32.mrf.mxu0
        %1074 = vmatprep.mubr.bf16.mxu0 0
        %1075 = vmatmul.mubr.bf16.gmra.mxu0 %v846
        %v1076 = vpop.f32.mrf.mxu0
        %v1077 = vadd.f32 0.0, %v1076
        %v1078 = vpop.f32.mrf.mxu0
        %v1079 = vpop.f32.mrf.mxu0
        %v1080 = vadd.f32 0.0, %v1079
        %v1081 = vpop.f32.mrf.mxu0
        %1082 = vmatprep.mubr.bf16.mxu0 0
        %1083 = vmatmul.mubr.bf16.gmra.mxu0 %v847
        %v1084 = vpop.f32.mrf.mxu0
        %v1085 = vadd.f32 0.0, %v1084
        %v1086 = vpop.f32.mrf.mxu0
        %v1087 = vpop.f32.mrf.mxu0
        %v1088 = vadd.f32 0.0, %v1087
        %v1089 = vpop.f32.mrf.mxu0
        %1090 = vmatprep.mubr.bf16.mxu0 0
        %1091 = vmatmul.mubr.bf16.gmra.mxu0 %v848
        %v1092 = vpop.f32.mrf.mxu0
        %v1093 = vadd.f32 0.0, %v1092
        %v1094 = vpop.f32.mrf.mxu0
        %v1095 = vpop.f32.mrf.mxu0
        %v1096 = vadd.f32 0.0, %v1095
        %v1097 = vpop.f32.mrf.mxu0
        %1098 = vmatprep.mubr.bf16.mxu0 0
        %1099 = vmatmul.mubr.bf16.gmra.mxu0 %v849
        %v1100 = vpop.f32.mrf.mxu0
        %v1101 = vadd.f32 0.0, %v1100
        %v1102 = vpop.f32.mrf.mxu0
        %v1103 = vpop.f32.mrf.mxu0
        %v1104 = vadd.f32 0.0, %v1103
        %v1105 = vpop.f32.mrf.mxu0
        %1106 = vmatprep.mubr.bf16.mxu0 0
        %1107 = vmatmul.mubr.bf16.gmra.mxu0 %v850
        %v1108 = vpop.f32.mrf.mxu0
        %v1109 = vadd.f32 0.0, %v1108
        %v1110 = vpop.f32.mrf.mxu0
        %v1111 = vpop.f32.mrf.mxu0
        %v1112 = vadd.f32 0.0, %v1111
        %v1113 = vpop.f32.mrf.mxu0
        %1114 = vmatprep.mubr.bf16.mxu0 0
        %1115 = vmatmul.mubr.bf16.gmra.mxu0 %v851
        %v1116 = vpop.f32.mrf.mxu0
        %v1117 = vadd.f32 0.0, %v1116
        %v1118 = vpop.f32.mrf.mxu0
        %v1119 = vpop.f32.mrf.mxu0
        %v1120 = vadd.f32 0.0, %v1119
        %v1121 = vpop.f32.mrf.mxu0
        %1122 = vmatprep.mubr.bf16.mxu0 0
        %1123 = vmatmul.mubr.bf16.gmra.mxu0 %v852
        %v1124 = vpop.f32.mrf.mxu0
        %v1125 = vadd.f32 0.0, %v1124
        %v1126 = vpop.f32.mrf.mxu0
        %v1127 = vpop.f32.mrf.mxu0
        %v1128 = vadd.f32 0.0, %v1127
        %v1129 = vpop.f32.mrf.mxu0
        %1130 = vmatprep.mubr.bf16.mxu0 0
        %1131 = vmatmul.mubr.bf16.gmra.mxu0 %v853
        %v1132 = vpop.f32.mrf.mxu0
        %v1133 = vadd.f32 0.0, %v1132
        %v1134 = vpop.f32.mrf.mxu0
        %v1135 = vpop.f32.mrf.mxu0
        %v1136 = vadd.f32 0.0, %v1135
        %v1137 = vpop.f32.mrf.mxu0
        %1138 = vmatprep.mubr.bf16.mxu0 0
        %1139 = vmatmul.mubr.bf16.gmra.mxu0 %v854
        %v1140 = vpop.f32.mrf.mxu0
        %v1141 = vadd.f32 0.0, %v1140
        %v1142 = vpop.f32.mrf.mxu0
        %v1143 = vpop.f32.mrf.mxu0
        %v1144 = vadd.f32 0.0, %v1143
        %v1145 = vpop.f32.mrf.mxu0
        %1146 = vmatprep.mubr.bf16.mxu0 0
        %1147 = vmatmul.mubr.bf16.gmra.mxu0 %v855
        %v1148 = vpop.f32.mrf.mxu0
        %v1149 = vadd.f32 0.0, %v1148
        %v1150 = vpop.f32.mrf.mxu0
        %v1151 = vpop.f32.mrf.mxu0
        %v1152 = vadd.f32 0.0, %v1151
        %v1153 = vpop.f32.mrf.mxu0
        %1154 = vmatprep.mubr.bf16.mxu0 0
        %1155 = vmatmul.mubr.bf16.gmra.mxu0 %v856
        %v1156 = vpop.f32.mrf.mxu0
        %v1157 = vadd.f32 0.0, %v1156
        %v1158 = vpop.f32.mrf.mxu0
        %v1159 = vpop.f32.mrf.mxu0
        %v1160 = vadd.f32 0.0, %v1159
        %v1161 = vpop.f32.mrf.mxu0
        %1162 = vmatprep.mubr.bf16.mxu0 0
        %1163 = vmatmul.mubr.bf16.gmra.mxu0 %v857
        %v1164 = vpop.f32.mrf.mxu0
        %v1165 = vadd.f32 0.0, %v1164
        %v1166 = vpop.f32.mrf.mxu0
        %v1167 = vpop.f32.mrf.mxu0
        %v1168 = vadd.f32 0.0, %v1167
        %v1169 = vpop.f32.mrf.mxu0
        %1170 = vmatprep.mubr.bf16.mxu0 0
        %1171 = vmatmul.mubr.bf16.gmra.mxu0 %v858
        %v1172 = vpop.f32.mrf.mxu0
        %v1173 = vadd.f32 0.0, %v1172
        %v1174 = vpop.f32.mrf.mxu0
        %v1175 = vpop.f32.mrf.mxu0
        %v1176 = vadd.f32 0.0, %v1175
        %v1177 = vpop.f32.mrf.mxu0
        %1178 = vmatprep.mubr.bf16.mxu0 0
        %1179 = vmatmul.mubr.bf16.gmra.mxu0 %v859
        %v1180 = vpop.f32.mrf.mxu0
        %v1181 = vadd.f32 0.0, %v1180
        %v1182 = vpop.f32.mrf.mxu0
        %v1183 = vpop.f32.mrf.mxu0
        %v1184 = vadd.f32 0.0, %v1183
        %v1185 = vpop.f32.mrf.mxu0
        %1186 = vmatprep.mubr.bf16.mxu0 0
        %1187 = vmatmul.mubr.bf16.gmra.mxu0 %v860
        %v1188 = vpop.f32.mrf.mxu0
        %v1189 = vadd.f32 0.0, %v1188
        %v1190 = vpop.f32.mrf.mxu0
        %v1191 = vpop.f32.mrf.mxu0
        %v1192 = vadd.f32 0.0, %v1191
        %v1193 = vpop.f32.mrf.mxu0
        %1194 = vmatprep.mubr.bf16.mxu0 0
        %1195 = vmatmul.mubr.bf16.gmra.mxu0 %v861
        %v1196 = vpop.f32.mrf.mxu0
        %v1197 = vadd.f32 0.0, %v1196
        %v1198 = vpop.f32.mrf.mxu0
        %v1199 = vpop.f32.mrf.mxu0
        %v1200 = vadd.f32 0.0, %v1199
        %v1201 = vpop.f32.mrf.mxu0
        %1202 = vmatprep.mubr.bf16.mxu0 0
        %1203 = vmatmul.mubr.bf16.gmra.mxu0 %v862
        %v1204 = vpop.f32.mrf.mxu0
        %v1205 = vadd.f32 0.0, %v1204
        %v1206 = vpop.f32.mrf.mxu0
        %v1207 = vpop.f32.mrf.mxu0
        %v1208 = vadd.f32 0.0, %v1207
        %v1209 = vpop.f32.mrf.mxu0
        %1210 = vmatprep.mubr.bf16.mxu0 0
        %1211 = vmatmul.mubr.bf16.gmra.mxu0 %v863
        %v1212 = vpop.f32.mrf.mxu0
        %v1213 = vadd.f32 0.0, %v1212
        %v1214 = vpop.f32.mrf.mxu0
        %v1215 = vpop.f32.mrf.mxu0
        %v1216 = vadd.f32 0.0, %v1215
        %v1217 = vpop.f32.mrf.mxu0
        %1218 = vmatprep.mubr.bf16.mxu0 0
        %1219 = vmatmul.mubr.bf16.gmra.mxu0 %v864
        %v1220 = vpop.f32.mrf.mxu0
        %v1221 = vadd.f32 0.0, %v1220
        %v1222 = vpop.f32.mrf.mxu0
        %v1223 = vpop.f32.mrf.mxu0
        %v1224 = vadd.f32 0.0, %v1223
        %v1225 = vpop.f32.mrf.mxu0
        %1226 = vmatprep.mubr.bf16.mxu0 0
        %1227 = vmatmul.mubr.bf16.gmra.mxu0 %v865
        %v1228 = vpop.f32.mrf.mxu0
        %v1229 = vadd.f32 0.0, %v1228
        %v1230 = vpop.f32.mrf.mxu0
        %v1231 = vpop.f32.mrf.mxu0
        %v1232 = vadd.f32 0.0, %v1231
        %v1233 = vpop.f32.mrf.mxu0
        %1234 = vdwg.mxu0
        %v1299 = vunpack.c.l.b16 %v546
        %v1300 = vunpack.c.l.b16 %v547
        %v1301 = vunpack.c.l.b16 %v548
        %v1302 = vunpack.c.l.b16 %v549
        %v1303 = vunpack.c.l.b16 %v550
        %v1304 = vunpack.c.l.b16 %v551
        %v1305 = vunpack.c.l.b16 %v552
        %v1306 = vunpack.c.l.b16 %v553
        %v1307 = vunpack.c.l.b16 %v554
        %v1308 = vunpack.c.l.b16 %v555
        %v1309 = vunpack.c.l.b16 %v556
        %v1310 = vunpack.c.l.b16 %v557
        %v1311 = vunpack.c.l.b16 %v558
        %v1312 = vunpack.c.l.b16 %v559
        %v1313 = vunpack.c.l.b16 %v560
        %v1314 = vunpack.c.l.b16 %v561
        %v1315 = vunpack.c.l.b16 %v562
        %v1316 = vunpack.c.l.b16 %v563
        %v1317 = vunpack.c.l.b16 %v564
        %v1318 = vunpack.c.l.b16 %v565
        %v1319 = vunpack.c.l.b16 %v566
        %v1320 = vunpack.c.l.b16 %v567
        %v1321 = vunpack.c.l.b16 %v568
        %v1322 = vunpack.c.l.b16 %v569
        %v1323 = vunpack.c.l.b16 %v570
        %v1324 = vunpack.c.l.b16 %v571
        %v1325 = vunpack.c.l.b16 %v572
        %v1326 = vunpack.c.l.b16 %v573
        %v1327 = vunpack.c.l.b16 %v574
        %v1328 = vunpack.c.l.b16 %v575
        %v1329 = vunpack.c.l.b16 %v576
        %v1330 = vunpack.c.l.b16 %v577
        %v1331 = vunpack.c.l.b16 %v578
        %v1332 = vunpack.c.l.b16 %v579
        %v1333 = vunpack.c.l.b16 %v580
        %v1334 = vunpack.c.l.b16 %v581
        %v1335 = vunpack.c.l.b16 %v582
        %v1336 = vunpack.c.l.b16 %v583
        %v1337 = vunpack.c.l.b16 %v584
        %v1338 = vunpack.c.l.b16 %v585
        %v1339 = vunpack.c.l.b16 %v586
        %v1340 = vunpack.c.l.b16 %v587
        %v1341 = vunpack.c.l.b16 %v588
        %v1342 = vunpack.c.l.b16 %v589
        %v1343 = vunpack.c.l.b16 %v590
        %v1344 = vunpack.c.l.b16 %v591
        %v1345 = vunpack.c.l.b16 %v592
        %v1346 = vunpack.c.l.b16 %v593
        %v1347 = vunpack.c.l.b16 %v594
        %v1348 = vunpack.c.l.b16 %v595
        %v1349 = vunpack.c.l.b16 %v596
        %v1350 = vunpack.c.l.b16 %v597
        %v1351 = vunpack.c.l.b16 %v598
        %v1352 = vunpack.c.l.b16 %v599
        %v1353 = vunpack.c.l.b16 %v600
        %v1354 = vunpack.c.l.b16 %v601
        %v1355 = vunpack.c.l.b16 %v602
        %v1356 = vunpack.c.l.b16 %v603
        %v1357 = vunpack.c.l.b16 %v604
        %v1358 = vunpack.c.l.b16 %v605
        %v1359 = vunpack.c.l.b16 %v606
        %v1360 = vunpack.c.l.b16 %v607
        %v1361 = vunpack.c.l.b16 %v608
        %v1362 = vunpack.c.l.b16 %v609
        %v1363 = vpack.c.b16 %v1300, %v1299
        %v1364 = vpack.c.b16 %v1302, %v1301
        %v1365 = vpack.c.b16 %v1304, %v1303
        %v1366 = vpack.c.b16 %v1306, %v1305
        %v1367 = vpack.c.b16 %v1308, %v1307
        %v1368 = vpack.c.b16 %v1310, %v1309
        %v1369 = vpack.c.b16 %v1312, %v1311
        %v1370 = vpack.c.b16 %v1314, %v1313
        %v1371 = vpack.c.b16 %v1316, %v1315
        %v1372 = vpack.c.b16 %v1318, %v1317
        %v1373 = vpack.c.b16 %v1320, %v1319
        %v1374 = vpack.c.b16 %v1322, %v1321
        %v1375 = vpack.c.b16 %v1324, %v1323
        %v1376 = vpack.c.b16 %v1326, %v1325
        %v1377 = vpack.c.b16 %v1328, %v1327
        %v1378 = vpack.c.b16 %v1330, %v1329
        %v1379 = vpack.c.b16 %v1332, %v1331
        %v1380 = vpack.c.b16 %v1334, %v1333
        %v1381 = vpack.c.b16 %v1336, %v1335
        %v1382 = vpack.c.b16 %v1338, %v1337
        %v1383 = vpack.c.b16 %v1340, %v1339
        %v1384 = vpack.c.b16 %v1342, %v1341
        %v1385 = vpack.c.b16 %v1344, %v1343
        %v1386 = vpack.c.b16 %v1346, %v1345
        %v1387 = vpack.c.b16 %v1348, %v1347
        %v1388 = vpack.c.b16 %v1350, %v1349
        %v1389 = vpack.c.b16 %v1352, %v1351
        %v1390 = vpack.c.b16 %v1354, %v1353
        %v1391 = vpack.c.b16 %v1356, %v1355
        %v1392 = vpack.c.b16 %v1358, %v1357
        %v1393 = vpack.c.b16 %v1360, %v1359
        %v1394 = vpack.c.b16 %v1362, %v1361
        %v1443 = vunpack.c.l.b16 %v610
        %v1444 = vunpack.c.l.b16 %v611
        %v1445 = vunpack.c.l.b16 %v612
        %v1446 = vunpack.c.l.b16 %v613
        %v1447 = vunpack.c.l.b16 %v614
        %v1448 = vunpack.c.l.b16 %v615
        %v1449 = vunpack.c.l.b16 %v616
        %v1450 = vunpack.c.l.b16 %v617
        %v1451 = vunpack.c.l.b16 %v618
        %v1452 = vunpack.c.l.b16 %v619
        %v1453 = vunpack.c.l.b16 %v620
        %v1454 = vunpack.c.l.b16 %v621
        %v1455 = vunpack.c.l.b16 %v622
        %v1456 = vunpack.c.l.b16 %v623
        %v1457 = vunpack.c.l.b16 %v624
        %v1458 = vunpack.c.l.b16 %v625
        %v1459 = vpack.c.b16 %v1444, %v1443
        %v1460 = vpack.c.b16 %v1446, %v1445
        %v1461 = vpack.c.b16 %v1448, %v1447
        %v1462 = vpack.c.b16 %v1450, %v1449
        %v1463 = vpack.c.b16 %v1452, %v1451
        %v1464 = vpack.c.b16 %v1454, %v1453
        %v1465 = vpack.c.b16 %v1456, %v1455
        %v1466 = vpack.c.b16 %v1458, %v1457
        %1475 = vmatprep.subr.bf16.mxu0 0
        %1476 = vmatpush1.bf16.msra.mxu0 %v1466
        %1477 = vmatprep.subr.bf16.mxu0 0
        %1478 = vmatpush1.bf16.msra.mxu0 %v1465
        %1479 = vmatprep.subr.bf16.mxu0 0
        %1480 = vmatpush1.bf16.msra.mxu0 %v1464
        %1481 = vmatprep.subr.bf16.mxu0 0
        %1482 = vmatpush1.bf16.msra.mxu0 %v1463
        %1483 = vmatprep.subr.bf16.mxu0 0
        %1484 = vmatpush1.bf16.msra.mxu0 %v1462
        %1485 = vmatprep.subr.bf16.mxu0 0
        %1486 = vmatpush1.bf16.msra.mxu0 %v1461
        %1487 = vmatprep.subr.bf16.mxu0 0
        %1488 = vmatpush1.bf16.msra.mxu0 %v1460
        %1489 = vmatprep.subr.bf16.mxu0 0
        %1490 = vmatpush1.bf16.msra.mxu0 %v1459
        %1491 = vmatprep.subr.bf16.mxu0 0
        %1492 = vmatpush2.bf16.msra.mxu0 0
        %1493 = vmatprep.subr.bf16.mxu0 0
        %1494 = vmatpush2.bf16.msra.mxu0 0
        %1495 = vmatprep.subr.bf16.mxu0 0
        %1496 = vmatpush2.bf16.msra.mxu0 0
        %1497 = vmatprep.subr.bf16.mxu0 0
        %1498 = vmatpush2.bf16.msra.mxu0 0
        %1499 = vmatprep.subr.bf16.mxu0 0
        %1500 = vmatpush2.bf16.msra.mxu0 0
        %1501 = vmatprep.subr.bf16.mxu0 0
        %1502 = vmatpush2.bf16.msra.mxu0 0
        %1503 = vmatprep.subr.bf16.mxu0 0
        %1504 = vmatpush2.bf16.msra.mxu0 0
        %1505 = vmatprep.subr.bf16.mxu0 0
        %1506 = vmatpush2.bf16.msra.mxu0 0
        %1507 = vmatprep.mubr.bf16.mxu0 0
        %1508 = vmatmul.mubr.bf16.gmra.mxu0 %v1363
        %v1509 = vpop.f32.mrf.mxu0
        %v1510 = vadd.f32 %v981, %v1509
        %v1511 = vpop.f32.mrf.mxu0
        %v1512 = vpop.f32.mrf.mxu0
        %v1513 = vadd.f32 %v984, %v1512
        %v1514 = vpop.f32.mrf.mxu0
        %1515 = vmatprep.mubr.bf16.mxu0 0
        %1516 = vmatmul.mubr.bf16.gmra.mxu0 %v1364
        %v1517 = vpop.f32.mrf.mxu0
        %v1518 = vadd.f32 %v989, %v1517
        %v1519 = vpop.f32.mrf.mxu0
        %v1520 = vpop.f32.mrf.mxu0
        %v1521 = vadd.f32 %v992, %v1520
        %v1522 = vpop.f32.mrf.mxu0
        %1523 = vmatprep.mubr.bf16.mxu0 0
        %1524 = vmatmul.mubr.bf16.gmra.mxu0 %v1365
        %v1525 = vpop.f32.mrf.mxu0
        %v1526 = vadd.f32 %v997, %v1525
        %v1527 = vpop.f32.mrf.mxu0
        %v1528 = vpop.f32.mrf.mxu0
        %v1529 = vadd.f32 %v1000, %v1528
        %v1530 = vpop.f32.mrf.mxu0
        %1531 = vmatprep.mubr.bf16.mxu0 0
        %1532 = vmatmul.mubr.bf16.gmra.mxu0 %v1366
        %v1533 = vpop.f32.mrf.mxu0
        %v1534 = vadd.f32 %v1005, %v1533
        %v1535 = vpop.f32.mrf.mxu0
        %v1536 = vpop.f32.mrf.mxu0
        %v1537 = vadd.f32 %v1008, %v1536
        %v1538 = vpop.f32.mrf.mxu0
        %1539 = vmatprep.mubr.bf16.mxu0 0
        %1540 = vmatmul.mubr.bf16.gmra.mxu0 %v1367
        %v1541 = vpop.f32.mrf.mxu0
        %v1542 = vadd.f32 %v1013, %v1541
        %v1543 = vpop.f32.mrf.mxu0
        %v1544 = vpop.f32.mrf.mxu0
        %v1545 = vadd.f32 %v1016, %v1544
        %v1546 = vpop.f32.mrf.mxu0
        %1547 = vmatprep.mubr.bf16.mxu0 0
        %1548 = vmatmul.mubr.bf16.gmra.mxu0 %v1368
        %v1549 = vpop.f32.mrf.mxu0
        %v1550 = vadd.f32 %v1021, %v1549
        %v1551 = vpop.f32.mrf.mxu0
        %v1552 = vpop.f32.mrf.mxu0
        %v1553 = vadd.f32 %v1024, %v1552
        %v1554 = vpop.f32.mrf.mxu0
        %1555 = vmatprep.mubr.bf16.mxu0 0
        %1556 = vmatmul.mubr.bf16.gmra.mxu0 %v1369
        %v1557 = vpop.f32.mrf.mxu0
        %v1558 = vadd.f32 %v1029, %v1557
        %v1559 = vpop.f32.mrf.mxu0
        %v1560 = vpop.f32.mrf.mxu0
        %v1561 = vadd.f32 %v1032, %v1560
        %v1562 = vpop.f32.mrf.mxu0
        %1563 = vmatprep.mubr.bf16.mxu0 0
        %1564 = vmatmul.mubr.bf16.gmra.mxu0 %v1370
        %v1565 = vpop.f32.mrf.mxu0
        %v1566 = vadd.f32 %v1037, %v1565
        %v1567 = vpop.f32.mrf.mxu0
        %v1568 = vpop.f32.mrf.mxu0
        %v1569 = vadd.f32 %v1040, %v1568
        %v1570 = vpop.f32.mrf.mxu0
        %1571 = vmatprep.mubr.bf16.mxu0 0
        %1572 = vmatmul.mubr.bf16.gmra.mxu0 %v1371
        %v1573 = vpop.f32.mrf.mxu0
        %v1574 = vadd.f32 %v1045, %v1573
        %v1575 = vpop.f32.mrf.mxu0
        %v1576 = vpop.f32.mrf.mxu0
        %v1577 = vadd.f32 %v1048, %v1576
        %v1578 = vpop.f32.mrf.mxu0
        %1579 = vmatprep.mubr.bf16.mxu0 0
        %1580 = vmatmul.mubr.bf16.gmra.mxu0 %v1372
        %v1581 = vpop.f32.mrf.mxu0
        %v1582 = vadd.f32 %v1053, %v1581
        %v1583 = vpop.f32.mrf.mxu0
        %v1584 = vpop.f32.mrf.mxu0
        %v1585 = vadd.f32 %v1056, %v1584
        %v1586 = vpop.f32.mrf.mxu0
        %1587 = vmatprep.mubr.bf16.mxu0 0
        %1588 = vmatmul.mubr.bf16.gmra.mxu0 %v1373
        %v1589 = vpop.f32.mrf.mxu0
        %v1590 = vadd.f32 %v1061, %v1589
        %v1591 = vpop.f32.mrf.mxu0
        %v1592 = vpop.f32.mrf.mxu0
        %v1593 = vadd.f32 %v1064, %v1592
        %v1594 = vpop.f32.mrf.mxu0
        %1595 = vmatprep.mubr.bf16.mxu0 0
        %1596 = vmatmul.mubr.bf16.gmra.mxu0 %v1374
        %v1597 = vpop.f32.mrf.mxu0
        %v1598 = vadd.f32 %v1069, %v1597
        %v1599 = vpop.f32.mrf.mxu0
        %v1600 = vpop.f32.mrf.mxu0
        %v1601 = vadd.f32 %v1072, %v1600
        %v1602 = vpop.f32.mrf.mxu0
        %1603 = vmatprep.mubr.bf16.mxu0 0
        %1604 = vmatmul.mubr.bf16.gmra.mxu0 %v1375
        %v1605 = vpop.f32.mrf.mxu0
        %v1606 = vadd.f32 %v1077, %v1605
        %v1607 = vpop.f32.mrf.mxu0
        %v1608 = vpop.f32.mrf.mxu0
        %v1609 = vadd.f32 %v1080, %v1608
        %v1610 = vpop.f32.mrf.mxu0
        %1611 = vmatprep.mubr.bf16.mxu0 0
        %1612 = vmatmul.mubr.bf16.gmra.mxu0 %v1376
        %v1613 = vpop.f32.mrf.mxu0
        %v1614 = vadd.f32 %v1085, %v1613
        %v1615 = vpop.f32.mrf.mxu0
        %v1616 = vpop.f32.mrf.mxu0
        %v1617 = vadd.f32 %v1088, %v1616
        %v1618 = vpop.f32.mrf.mxu0
        %1619 = vmatprep.mubr.bf16.mxu0 0
        %1620 = vmatmul.mubr.bf16.gmra.mxu0 %v1377
        %v1621 = vpop.f32.mrf.mxu0
        %v1622 = vadd.f32 %v1093, %v1621
        %v1623 = vpop.f32.mrf.mxu0
        %v1624 = vpop.f32.mrf.mxu0
        %v1625 = vadd.f32 %v1096, %v1624
        %v1626 = vpop.f32.mrf.mxu0
        %1627 = vmatprep.mubr.bf16.mxu0 0
        %1628 = vmatmul.mubr.bf16.gmra.mxu0 %v1378
        %v1629 = vpop.f32.mrf.mxu0
        %v1630 = vadd.f32 %v1101, %v1629
        %v1631 = vpop.f32.mrf.mxu0
        %v1632 = vpop.f32.mrf.mxu0
        %v1633 = vadd.f32 %v1104, %v1632
        %v1634 = vpop.f32.mrf.mxu0
        %1635 = vmatprep.mubr.bf16.mxu0 0
        %1636 = vmatmul.mubr.bf16.gmra.mxu0 %v1379
        %v1637 = vpop.f32.mrf.mxu0
        %v1638 = vadd.f32 %v1109, %v1637
        %v1639 = vpop.f32.mrf.mxu0
        %v1640 = vpop.f32.mrf.mxu0
        %v1641 = vadd.f32 %v1112, %v1640
        %v1642 = vpop.f32.mrf.mxu0
        %1643 = vmatprep.mubr.bf16.mxu0 0
        %1644 = vmatmul.mubr.bf16.gmra.mxu0 %v1380
        %v1645 = vpop.f32.mrf.mxu0
        %v1646 = vadd.f32 %v1117, %v1645
        %v1647 = vpop.f32.mrf.mxu0
        %v1648 = vpop.f32.mrf.mxu0
        %v1649 = vadd.f32 %v1120, %v1648
        %v1650 = vpop.f32.mrf.mxu0
        %1651 = vmatprep.mubr.bf16.mxu0 0
        %1652 = vmatmul.mubr.bf16.gmra.mxu0 %v1381
        %v1653 = vpop.f32.mrf.mxu0
        %v1654 = vadd.f32 %v1125, %v1653
        %v1655 = vpop.f32.mrf.mxu0
        %v1656 = vpop.f32.mrf.mxu0
        %v1657 = vadd.f32 %v1128, %v1656
        %v1658 = vpop.f32.mrf.mxu0
        %1659 = vmatprep.mubr.bf16.mxu0 0
        %1660 = vmatmul.mubr.bf16.gmra.mxu0 %v1382
        %v1661 = vpop.f32.mrf.mxu0
        %v1662 = vadd.f32 %v1133, %v1661
        %v1663 = vpop.f32.mrf.mxu0
        %v1664 = vpop.f32.mrf.mxu0
        %v1665 = vadd.f32 %v1136, %v1664
        %v1666 = vpop.f32.mrf.mxu0
        %1667 = vmatprep.mubr.bf16.mxu0 0
        %1668 = vmatmul.mubr.bf16.gmra.mxu0 %v1383
        %v1669 = vpop.f32.mrf.mxu0
        %v1670 = vadd.f32 %v1141, %v1669
        %v1671 = vpop.f32.mrf.mxu0
        %v1672 = vpop.f32.mrf.mxu0
        %v1673 = vadd.f32 %v1144, %v1672
        %v1674 = vpop.f32.mrf.mxu0
        %1675 = vmatprep.mubr.bf16.mxu0 0
        %1676 = vmatmul.mubr.bf16.gmra.mxu0 %v1384
        %v1677 = vpop.f32.mrf.mxu0
        %v1678 = vadd.f32 %v1149, %v1677
        %v1679 = vpop.f32.mrf.mxu0
        %v1680 = vpop.f32.mrf.mxu0
        %v1681 = vadd.f32 %v1152, %v1680
        %v1682 = vpop.f32.mrf.mxu0
        %1683 = vmatprep.mubr.bf16.mxu0 0
        %1684 = vmatmul.mubr.bf16.gmra.mxu0 %v1385
        %v1685 = vpop.f32.mrf.mxu0
        %v1686 = vadd.f32 %v1157, %v1685
        %v1687 = vpop.f32.mrf.mxu0
        %v1688 = vpop.f32.mrf.mxu0
        %v1689 = vadd.f32 %v1160, %v1688
        %v1690 = vpop.f32.mrf.mxu0
        %1691 = vmatprep.mubr.bf16.mxu0 0
        %1692 = vmatmul.mubr.bf16.gmra.mxu0 %v1386
        %v1693 = vpop.f32.mrf.mxu0
        %v1694 = vadd.f32 %v1165, %v1693
        %v1695 = vpop.f32.mrf.mxu0
        %v1696 = vpop.f32.mrf.mxu0
        %v1697 = vadd.f32 %v1168, %v1696
        %v1698 = vpop.f32.mrf.mxu0
        %1699 = vmatprep.mubr.bf16.mxu0 0
        %1700 = vmatmul.mubr.bf16.gmra.mxu0 %v1387
        %v1701 = vpop.f32.mrf.mxu0
        %v1702 = vadd.f32 %v1173, %v1701
        %v1703 = vpop.f32.mrf.mxu0
        %v1704 = vpop.f32.mrf.mxu0
        %v1705 = vadd.f32 %v1176, %v1704
        %v1706 = vpop.f32.mrf.mxu0
        %1707 = vmatprep.mubr.bf16.mxu0 0
        %1708 = vmatmul.mubr.bf16.gmra.mxu0 %v1388
        %v1709 = vpop.f32.mrf.mxu0
        %v1710 = vadd.f32 %v1181, %v1709
        %v1711 = vpop.f32.mrf.mxu0
        %v1712 = vpop.f32.mrf.mxu0
        %v1713 = vadd.f32 %v1184, %v1712
        %v1714 = vpop.f32.mrf.mxu0
        %1715 = vmatprep.mubr.bf16.mxu0 0
        %1716 = vmatmul.mubr.bf16.gmra.mxu0 %v1389
        %v1717 = vpop.f32.mrf.mxu0
        %v1718 = vadd.f32 %v1189, %v1717
        %v1719 = vpop.f32.mrf.mxu0
        %v1720 = vpop.f32.mrf.mxu0
        %v1721 = vadd.f32 %v1192, %v1720
        %v1722 = vpop.f32.mrf.mxu0
        %1723 = vmatprep.mubr.bf16.mxu0 0
        %1724 = vmatmul.mubr.bf16.gmra.mxu0 %v1390
        %v1725 = vpop.f32.mrf.mxu0
        %v1726 = vadd.f32 %v1197, %v1725
        %v1727 = vpop.f32.mrf.mxu0
        %v1728 = vpop.f32.mrf.mxu0
        %v1729 = vadd.f32 %v1200, %v1728
        %v1730 = vpop.f32.mrf.mxu0
        %1731 = vmatprep.mubr.bf16.mxu0 0
        %1732 = vmatmul.mubr.bf16.gmra.mxu0 %v1391
        %v1733 = vpop.f32.mrf.mxu0
        %v1734 = vadd.f32 %v1205, %v1733
        %v1735 = vpop.f32.mrf.mxu0
        %v1736 = vpop.f32.mrf.mxu0
        %v1737 = vadd.f32 %v1208, %v1736
        %v1738 = vpop.f32.mrf.mxu0
        %1739 = vmatprep.mubr.bf16.mxu0 0
        %1740 = vmatmul.mubr.bf16.gmra.mxu0 %v1392
        %v1741 = vpop.f32.mrf.mxu0
        %v1742 = vadd.f32 %v1213, %v1741
        %v1743 = vpop.f32.mrf.mxu0
        %v1744 = vpop.f32.mrf.mxu0
        %v1745 = vadd.f32 %v1216, %v1744
        %v1746 = vpop.f32.mrf.mxu0
        %1747 = vmatprep.mubr.bf16.mxu0 0
        %1748 = vmatmul.mubr.bf16.gmra.mxu0 %v1393
        %v1749 = vpop.f32.mrf.mxu0
        %v1750 = vadd.f32 %v1221, %v1749
        %v1751 = vpop.f32.mrf.mxu0
        %v1752 = vpop.f32.mrf.mxu0
        %v1753 = vadd.f32 %v1224, %v1752
        %v1754 = vpop.f32.mrf.mxu0
        %1755 = vmatprep.mubr.bf16.mxu0 0
        %1756 = vmatmul.mubr.bf16.gmra.mxu0 %v1394
        %v1757 = vpop.f32.mrf.mxu0
        %v1758 = vadd.f32 %v1229, %v1757
        %v1759 = vpop.f32.mrf.mxu0
        %v1760 = vpop.f32.mrf.mxu0
        %v1761 = vadd.f32 %v1232, %v1760
        %v1762 = vpop.f32.mrf.mxu0
        %1763 = vdwg.mxu0
        %v1764 = vld [vmem:[%s4] sm:$0x1]
        %v1766 = vlaneseq
        %v1767 = vshrl.u32 %v1766, 7
        %v1768 = vsub.s32 0, %v1767
        %v1769 = vrot.slane %v1764, %v1768
        %v1771 = vadd.f32 %v1510, %v1769
        %v1772 = vadd.f32 %v1513, %v1769
        %v1773 = vadd.f32 %v1518, %v1769
        %v1774 = vadd.f32 %v1521, %v1769
        %v1775 = vadd.f32 %v1526, %v1769
        %v1776 = vadd.f32 %v1529, %v1769
        %v1777 = vadd.f32 %v1534, %v1769
        %v1778 = vadd.f32 %v1537, %v1769
        %v1779 = vadd.f32 %v1542, %v1769
        %v1780 = vadd.f32 %v1545, %v1769
        %v1781 = vadd.f32 %v1550, %v1769
        %v1782 = vadd.f32 %v1553, %v1769
        %v1783 = vadd.f32 %v1558, %v1769
        %v1784 = vadd.f32 %v1561, %v1769
        %v1785 = vadd.f32 %v1566, %v1769
        %v1786 = vadd.f32 %v1569, %v1769
        %v1787 = vadd.f32 %v1574, %v1769
        %v1788 = vadd.f32 %v1577, %v1769
        %v1789 = vadd.f32 %v1582, %v1769
        %v1790 = vadd.f32 %v1585, %v1769
        %v1791 = vadd.f32 %v1590, %v1769
        %v1792 = vadd.f32 %v1593, %v1769
        %v1793 = vadd.f32 %v1598, %v1769
        %v1794 = vadd.f32 %v1601, %v1769
        %v1795 = vadd.f32 %v1606, %v1769
        %v1796 = vadd.f32 %v1609, %v1769
        %v1797 = vadd.f32 %v1614, %v1769
        %v1798 = vadd.f32 %v1617, %v1769
        %v1799 = vadd.f32 %v1622, %v1769
        %v1800 = vadd.f32 %v1625, %v1769
        %v1801 = vadd.f32 %v1630, %v1769
        %v1802 = vadd.f32 %v1633, %v1769
        %v1803 = vadd.f32 %v1638, %v1769
        %v1804 = vadd.f32 %v1641, %v1769
        %v1805 = vadd.f32 %v1646, %v1769
        %v1806 = vadd.f32 %v1649, %v1769
        %v1807 = vadd.f32 %v1654, %v1769
        %v1808 = vadd.f32 %v1657, %v1769
        %v1809 = vadd.f32 %v1662, %v1769
        %v1810 = vadd.f32 %v1665, %v1769
        %v1811 = vadd.f32 %v1670, %v1769
        %v1812 = vadd.f32 %v1673, %v1769
        %v1813 = vadd.f32 %v1678, %v1769
        %v1814 = vadd.f32 %v1681, %v1769
        %v1815 = vadd.f32 %v1686, %v1769
        %v1816 = vadd.f32 %v1689, %v1769
        %v1817 = vadd.f32 %v1694, %v1769
        %v1818 = vadd.f32 %v1697, %v1769
        %v1819 = vadd.f32 %v1702, %v1769
        %v1820 = vadd.f32 %v1705, %v1769
        %v1821 = vadd.f32 %v1710, %v1769
        %v1822 = vadd.f32 %v1713, %v1769
        %v1823 = vadd.f32 %v1718, %v1769
        %v1824 = vadd.f32 %v1721, %v1769
        %v1825 = vadd.f32 %v1726, %v1769
        %v1826 = vadd.f32 %v1729, %v1769
        %v1827 = vadd.f32 %v1734, %v1769
        %v1828 = vadd.f32 %v1737, %v1769
        %v1829 = vadd.f32 %v1742, %v1769
        %v1830 = vadd.f32 %v1745, %v1769
        %v1831 = vadd.f32 %v1750, %v1769
        %v1832 = vadd.f32 %v1753, %v1769
        %v1833 = vadd.f32 %v1758, %v1769
        %v1834 = vadd.f32 %v1761, %v1769
        %v1835 = vmax.f32 %v1771, 0.0
        %v1836 = vmax.f32 %v1772, 0.0
        %v1837 = vmax.f32 %v1773, 0.0
        %v1838 = vmax.f32 %v1774, 0.0
        %v1839 = vmax.f32 %v1775, 0.0
        %v1840 = vmax.f32 %v1776, 0.0
        %v1841 = vmax.f32 %v1777, 0.0
        %v1842 = vmax.f32 %v1778, 0.0
        %v1843 = vmax.f32 %v1779, 0.0
        %v1844 = vmax.f32 %v1780, 0.0
        %v1845 = vmax.f32 %v1781, 0.0
        %v1846 = vmax.f32 %v1782, 0.0
        %v1847 = vmax.f32 %v1783, 0.0
        %v1848 = vmax.f32 %v1784, 0.0
        %v1849 = vmax.f32 %v1785, 0.0
        %v1850 = vmax.f32 %v1786, 0.0
        %v1851 = vmax.f32 %v1787, 0.0
        %v1852 = vmax.f32 %v1788, 0.0
        %v1853 = vmax.f32 %v1789, 0.0
        %v1854 = vmax.f32 %v1790, 0.0
        %v1855 = vmax.f32 %v1791, 0.0
        %v1856 = vmax.f32 %v1792, 0.0
        %v1857 = vmax.f32 %v1793, 0.0
        %v1858 = vmax.f32 %v1794, 0.0
        %v1859 = vmax.f32 %v1795, 0.0
        %v1860 = vmax.f32 %v1796, 0.0
        %v1861 = vmax.f32 %v1797, 0.0
        %v1862 = vmax.f32 %v1798, 0.0
        %v1863 = vmax.f32 %v1799, 0.0
        %v1864 = vmax.f32 %v1800, 0.0
        %v1865 = vmax.f32 %v1801, 0.0
        %v1866 = vmax.f32 %v1802, 0.0
        %v1867 = vmax.f32 %v1803, 0.0
        %v1868 = vmax.f32 %v1804, 0.0
        %v1869 = vmax.f32 %v1805, 0.0
        %v1870 = vmax.f32 %v1806, 0.0
        %v1871 = vmax.f32 %v1807, 0.0
        %v1872 = vmax.f32 %v1808, 0.0
        %v1873 = vmax.f32 %v1809, 0.0
        %v1874 = vmax.f32 %v1810, 0.0
        %v1875 = vmax.f32 %v1811, 0.0
        %v1876 = vmax.f32 %v1812, 0.0
        %v1877 = vmax.f32 %v1813, 0.0
        %v1878 = vmax.f32 %v1814, 0.0
        %v1879 = vmax.f32 %v1815, 0.0
        %v1880 = vmax.f32 %v1816, 0.0
        %v1881 = vmax.f32 %v1817, 0.0
        %v1882 = vmax.f32 %v1818, 0.0
        %v1883 = vmax.f32 %v1819, 0.0
        %v1884 = vmax.f32 %v1820, 0.0
        %v1885 = vmax.f32 %v1821, 0.0
        %v1886 = vmax.f32 %v1822, 0.0
        %v1887 = vmax.f32 %v1823, 0.0
        %v1888 = vmax.f32 %v1824, 0.0
        %v1889 = vmax.f32 %v1825, 0.0
        %v1890 = vmax.f32 %v1826, 0.0
        %v1891 = vmax.f32 %v1827, 0.0
        %v1892 = vmax.f32 %v1828, 0.0
        %v1893 = vmax.f32 %v1829, 0.0
        %v1894 = vmax.f32 %v1830, 0.0
        %v1895 = vmax.f32 %v1831, 0.0
        %v1896 = vmax.f32 %v1832, 0.0
        %v1897 = vmax.f32 %v1833, 0.0
        %v1898 = vmax.f32 %v1834, 0.0
        %v1899 = vpack.c.bf16 %v1836, %v1835
        %v1900 = vpack.c.bf16 %v1838, %v1837
        %v1901 = vpack.c.bf16 %v1840, %v1839
        %v1902 = vpack.c.bf16 %v1842, %v1841
        %v1903 = vpack.c.bf16 %v1844, %v1843
        %v1904 = vpack.c.bf16 %v1846, %v1845
        %v1905 = vpack.c.bf16 %v1848, %v1847
        %v1906 = vpack.c.bf16 %v1850, %v1849
        %v1907 = vpack.c.bf16 %v1852, %v1851
        %v1908 = vpack.c.bf16 %v1854, %v1853
        %v1909 = vpack.c.bf16 %v1856, %v1855
        %v1910 = vpack.c.bf16 %v1858, %v1857
        %v1911 = vpack.c.bf16 %v1860, %v1859
        %v1912 = vpack.c.bf16 %v1862, %v1861
        %v1913 = vpack.c.bf16 %v1864, %v1863
        %v1914 = vpack.c.bf16 %v1866, %v1865
        %v1915 = vpack.c.bf16 %v1868, %v1867
        %v1916 = vpack.c.bf16 %v1870, %v1869
        %v1917 = vpack.c.bf16 %v1872, %v1871
        %v1918 = vpack.c.bf16 %v1874, %v1873
        %v1919 = vpack.c.bf16 %v1876, %v1875
        %v1920 = vpack.c.bf16 %v1878, %v1877
        %v1921 = vpack.c.bf16 %v1880, %v1879
        %v1922 = vpack.c.bf16 %v1882, %v1881
        %v1923 = vpack.c.bf16 %v1884, %v1883
        %v1924 = vpack.c.bf16 %v1886, %v1885
        %v1925 = vpack.c.bf16 %v1888, %v1887
        %v1926 = vpack.c.bf16 %v1890, %v1889
        %v1927 = vpack.c.bf16 %v1892, %v1891
        %v1928 = vpack.c.bf16 %v1894, %v1893
        %v1929 = vpack.c.bf16 %v1896, %v1895
        %v1930 = vpack.c.bf16 %v1898, %v1897
        %v1931 = vld [vmem:[#allocation7] sm:$0xff]
        %v1932 = vld [vmem:[#allocation7 + $0x8] sm:$0xff]
        %v1933 = vld [vmem:[#allocation7 + $0x10] sm:$0xff]
        %v1934 = vld [vmem:[#allocation7 + $0x18] sm:$0xff]
        %v1935 = vld [vmem:[#allocation7 + $0x20] sm:$0xff]
        %v1936 = vld [vmem:[#allocation7 + $0x28] sm:$0xff]
        %v1937 = vld [vmem:[#allocation7 + $0x30] sm:$0xff]
        %v1938 = vld [vmem:[#allocation7 + $0x38] sm:$0xff]
        %v1939 = vld [vmem:[%s6] sm:$0xf]
        %v1941 = vlaneseq
        %v1942 = vshrl.u32 %v1941, 7
        %v1943 = vsub.s32 0, %v1942
        %v1944 = vrot.slane %v1939, %v1943
        %v1945 = vlaneseq
        %v1946 = vshrl.u32 %v1945, 7
        %v1947 = vsub.s32 1, %v1946
        %v1948 = vrot.slane %v1939, %v1947
        %v1949 = vlaneseq
        %v1950 = vshrl.u32 %v1949, 7
        %v1951 = vsub.s32 2, %v1950
        %v1952 = vrot.slane %v1939, %v1951
        %v1953 = vlaneseq
        %v1954 = vshrl.u32 %v1953, 7
        %v1955 = vsub.s32 3, %v1954
        %v1956 = vrot.slane %v1939, %v1955
        %v1969 = vunpack.c.l.b16 %v1931
        %v1970 = vunpack.c.h.b16 %v1931
        %v1971 = vunpack.c.l.b16 %v1932
        %v1972 = vunpack.c.h.b16 %v1932
        %v1973 = vunpack.c.l.b16 %v1933
        %v1974 = vunpack.c.h.b16 %v1933
        %v1975 = vunpack.c.l.b16 %v1934
        %v1976 = vunpack.c.h.b16 %v1934
        %v1977 = vunpack.c.l.b16 %v1935
        %v1978 = vunpack.c.h.b16 %v1935
        %v1979 = vunpack.c.l.b16 %v1936
        %v1980 = vunpack.c.h.b16 %v1936
        %v1981 = vunpack.c.l.b16 %v1937
        %v1982 = vunpack.c.h.b16 %v1937
        %v1983 = vunpack.c.l.b16 %v1938
        %v1984 = vunpack.c.h.b16 %v1938
        %v1985 = vpack.c.b16 %v1973, %v1969
        %v1986 = vpack.c.b16 %v1974, %v1970
        %v1987 = vpack.c.b16 %v1975, %v1971
        %v1988 = vpack.c.b16 %v1976, %v1972
        %v1989 = vpack.c.b16 %v1981, %v1977
        %v1990 = vpack.c.b16 %v1982, %v1978
        %v1991 = vpack.c.b16 %v1983, %v1979
        %v1992 = vpack.c.b16 %v1984, %v1980
        %vm2001 = vcmask 261120
        %v2003 = vsel %vm2001, %v1899, 0
        %v2006 = vsel %vm2001, %v1900, 0
        %v2009 = vsel %vm2001, %v1901, 0
        %v2012 = vsel %vm2001, %v1902, 0
        %v2015 = vsel %vm2001, %v1903, 0
        %v2018 = vsel %vm2001, %v1904, 0
        %v2021 = vsel %vm2001, %v1905, 0
        %v2024 = vsel %vm2001, %v1906, 0
        %v2027 = vsel %vm2001, %v1907, 0
        %v2030 = vsel %vm2001, %v1908, 0
        %v2033 = vsel %vm2001, %v1909, 0
        %v2036 = vsel %vm2001, %v1910, 0
        %v2039 = vsel %vm2001, %v1911, 0
        %v2042 = vsel %vm2001, %v1912, 0
        %v2045 = vsel %vm2001, %v1913, 0
        %v2048 = vsel %vm2001, %v1914, 0
        %v2051 = vsel %vm2001, %v1915, 0
        %v2054 = vsel %vm2001, %v1916, 0
        %v2057 = vsel %vm2001, %v1917, 0
        %v2060 = vsel %vm2001, %v1918, 0
        %v2063 = vsel %vm2001, %v1919, 0
        %v2066 = vsel %vm2001, %v1920, 0
        %v2069 = vsel %vm2001, %v1921, 0
        %v2072 = vsel %vm2001, %v1922, 0
        %v2075 = vsel %vm2001, %v1923, 0
        %v2078 = vsel %vm2001, %v1924, 0
        %v2081 = vsel %vm2001, %v1925, 0
        %v2084 = vsel %vm2001, %v1926, 0
        %v2087 = vsel %vm2001, %v1927, 0
        %v2090 = vsel %vm2001, %v1928, 0
        %v2093 = vsel %vm2001, %v1929, 0
        %v2096 = vsel %vm2001, %v1930, 0
        %2098 = vmatprep.subr.bf16.mxu0 0
        %2099 = vmatpush1.bf16.msra.mxu0 0
        %2100 = vmatprep.subr.bf16.mxu0 0
        %2101 = vmatpush1.bf16.msra.mxu0 0
        %2102 = vmatprep.subr.bf16.mxu0 0
        %2103 = vmatpush1.bf16.msra.mxu0 0
        %2104 = vmatprep.subr.bf16.mxu0 0
        %2105 = vmatpush1.bf16.msra.mxu0 0
        %2106 = vmatprep.subr.bf16.mxu0 0
        %2107 = vmatpush1.bf16.msra.mxu0 0
        %2108 = vmatprep.subr.bf16.mxu0 0
        %2109 = vmatpush1.bf16.msra.mxu0 0
        %2110 = vmatprep.subr.bf16.mxu0 %v1990
        %2111 = vmatpush1.bf16.msra.mxu0 %v1989
        %2112 = vmatprep.subr.bf16.mxu0 %v1986
        %2113 = vmatpush1.bf16.msra.mxu0 %v1985
        %2114 = vmatprep.subr.bf16.mxu0 0
        %2115 = vmatpush2.bf16.msra.mxu0 0
        %2116 = vmatprep.subr.bf16.mxu0 0
        %2117 = vmatpush2.bf16.msra.mxu0 0
        %2118 = vmatprep.subr.bf16.mxu0 0
        %2119 = vmatpush2.bf16.msra.mxu0 0
        %2120 = vmatprep.subr.bf16.mxu0 0
        %2121 = vmatpush2.bf16.msra.mxu0 0
        %2122 = vmatprep.subr.bf16.mxu0 0
        %2123 = vmatpush2.bf16.msra.mxu0 0
        %2124 = vmatprep.subr.bf16.mxu0 0
        %2125 = vmatpush2.bf16.msra.mxu0 0
        %2126 = vmatprep.subr.bf16.mxu0 0
        %2127 = vmatpush2.bf16.msra.mxu0 0
        %2128 = vmatprep.subr.bf16.mxu0 0
        %2129 = vmatpush2.bf16.msra.mxu0 0
        %2130 = vmatprep.mubr.bf16.mxu0 0
        %2131 = vmatmul.mubr.bf16.gmra.mxu0 %v2003
        %v2132 = vpop.f32.mrf.mxu0
        %v2133 = vadd.f32 %v1944, %v2132
        %v2134 = vpop.f32.mrf.mxu0
        %v2135 = vadd.f32 %v1948, %v2134
        %v2136 = vpop.f32.mrf.mxu0
        %v2137 = vadd.f32 %v1944, %v2136
        %v2138 = vpop.f32.mrf.mxu0
        %v2139 = vadd.f32 %v1948, %v2138
        %2140 = vmatprep.mubr.bf16.mxu0 0
        %2141 = vmatmul.mubr.bf16.gmra.mxu0 %v2006
        %v2142 = vpop.f32.mrf.mxu0
        %v2143 = vadd.f32 %v1944, %v2142
        %v2144 = vpop.f32.mrf.mxu0
        %v2145 = vadd.f32 %v1948, %v2144
        %v2146 = vpop.f32.mrf.mxu0
        %v2147 = vadd.f32 %v1944, %v2146
        %v2148 = vpop.f32.mrf.mxu0
        %v2149 = vadd.f32 %v1948, %v2148
        %2150 = vmatprep.mubr.bf16.mxu0 0
        %2151 = vmatmul.mubr.bf16.gmra.mxu0 %v2009
        %v2152 = vpop.f32.mrf.mxu0
        %v2153 = vadd.f32 %v1944, %v2152
        %v2154 = vpop.f32.mrf.mxu0
        %v2155 = vadd.f32 %v1948, %v2154
        %v2156 = vpop.f32.mrf.mxu0
        %v2157 = vadd.f32 %v1944, %v2156
        %v2158 = vpop.f32.mrf.mxu0
        %v2159 = vadd.f32 %v1948, %v2158
        %2160 = vmatprep.mubr.bf16.mxu0 0
        %2161 = vmatmul.mubr.bf16.gmra.mxu0 %v2012
        %v2162 = vpop.f32.mrf.mxu0
        %v2163 = vadd.f32 %v1944, %v2162
        %v2164 = vpop.f32.mrf.mxu0
        %v2165 = vadd.f32 %v1948, %v2164
        %v2166 = vpop.f32.mrf.mxu0
        %v2167 = vadd.f32 %v1944, %v2166
        %v2168 = vpop.f32.mrf.mxu0
        %v2169 = vadd.f32 %v1948, %v2168
        %2170 = vmatprep.mubr.bf16.mxu0 0
        %2171 = vmatmul.mubr.bf16.gmra.mxu0 %v2015
        %v2172 = vpop.f32.mrf.mxu0
        %v2173 = vadd.f32 %v1944, %v2172
        %v2174 = vpop.f32.mrf.mxu0
        %v2175 = vadd.f32 %v1948, %v2174
        %v2176 = vpop.f32.mrf.mxu0
        %v2177 = vadd.f32 %v1944, %v2176
        %v2178 = vpop.f32.mrf.mxu0
        %v2179 = vadd.f32 %v1948, %v2178
        %2180 = vmatprep.mubr.bf16.mxu0 0
        %2181 = vmatmul.mubr.bf16.gmra.mxu0 %v2018
        %v2182 = vpop.f32.mrf.mxu0
        %v2183 = vadd.f32 %v1944, %v2182
        %v2184 = vpop.f32.mrf.mxu0
        %v2185 = vadd.f32 %v1948, %v2184
        %v2186 = vpop.f32.mrf.mxu0
        %v2187 = vadd.f32 %v1944, %v2186
        %v2188 = vpop.f32.mrf.mxu0
        %v2189 = vadd.f32 %v1948, %v2188
        %2190 = vmatprep.mubr.bf16.mxu0 0
        %2191 = vmatmul.mubr.bf16.gmra.mxu0 %v2021
        %v2192 = vpop.f32.mrf.mxu0
        %v2193 = vadd.f32 %v1944, %v2192
        %v2194 = vpop.f32.mrf.mxu0
        %v2195 = vadd.f32 %v1948, %v2194
        %v2196 = vpop.f32.mrf.mxu0
        %v2197 = vadd.f32 %v1944, %v2196
        %v2198 = vpop.f32.mrf.mxu0
        %v2199 = vadd.f32 %v1948, %v2198
        %2200 = vmatprep.mubr.bf16.mxu0 0
        %2201 = vmatmul.mubr.bf16.gmra.mxu0 %v2024
        %v2202 = vpop.f32.mrf.mxu0
        %v2203 = vadd.f32 %v1944, %v2202
        %v2204 = vpop.f32.mrf.mxu0
        %v2205 = vadd.f32 %v1948, %v2204
        %v2206 = vpop.f32.mrf.mxu0
        %v2207 = vadd.f32 %v1944, %v2206
        %v2208 = vpop.f32.mrf.mxu0
        %v2209 = vadd.f32 %v1948, %v2208
        %2210 = vmatprep.mubr.bf16.mxu0 0
        %2211 = vmatmul.mubr.bf16.gmra.mxu0 %v2027
        %v2212 = vpop.f32.mrf.mxu0
        %v2213 = vadd.f32 %v1944, %v2212
        %v2214 = vpop.f32.mrf.mxu0
        %v2215 = vadd.f32 %v1948, %v2214
        %v2216 = vpop.f32.mrf.mxu0
        %v2217 = vadd.f32 %v1944, %v2216
        %v2218 = vpop.f32.mrf.mxu0
        %v2219 = vadd.f32 %v1948, %v2218
        %2220 = vmatprep.mubr.bf16.mxu0 0
        %2221 = vmatmul.mubr.bf16.gmra.mxu0 %v2030
        %v2222 = vpop.f32.mrf.mxu0
        %v2223 = vadd.f32 %v1944, %v2222
        %v2224 = vpop.f32.mrf.mxu0
        %v2225 = vadd.f32 %v1948, %v2224
        %v2226 = vpop.f32.mrf.mxu0
        %v2227 = vadd.f32 %v1944, %v2226
        %v2228 = vpop.f32.mrf.mxu0
        %v2229 = vadd.f32 %v1948, %v2228
        %2230 = vmatprep.mubr.bf16.mxu0 0
        %2231 = vmatmul.mubr.bf16.gmra.mxu0 %v2033
        %v2232 = vpop.f32.mrf.mxu0
        %v2233 = vadd.f32 %v1944, %v2232
        %v2234 = vpop.f32.mrf.mxu0
        %v2235 = vadd.f32 %v1948, %v2234
        %v2236 = vpop.f32.mrf.mxu0
        %v2237 = vadd.f32 %v1944, %v2236
        %v2238 = vpop.f32.mrf.mxu0
        %v2239 = vadd.f32 %v1948, %v2238
        %2240 = vmatprep.mubr.bf16.mxu0 0
        %2241 = vmatmul.mubr.bf16.gmra.mxu0 %v2036
        %v2242 = vpop.f32.mrf.mxu0
        %v2243 = vadd.f32 %v1944, %v2242
        %v2244 = vpop.f32.mrf.mxu0
        %v2245 = vadd.f32 %v1948, %v2244
        %v2246 = vpop.f32.mrf.mxu0
        %v2247 = vadd.f32 %v1944, %v2246
        %v2248 = vpop.f32.mrf.mxu0
        %v2249 = vadd.f32 %v1948, %v2248
        %2250 = vmatprep.mubr.bf16.mxu0 0
        %2251 = vmatmul.mubr.bf16.gmra.mxu0 %v2039
        %v2252 = vpop.f32.mrf.mxu0
        %v2253 = vadd.f32 %v1944, %v2252
        %v2254 = vpop.f32.mrf.mxu0
        %v2255 = vadd.f32 %v1948, %v2254
        %v2256 = vpop.f32.mrf.mxu0
        %v2257 = vadd.f32 %v1944, %v2256
        %v2258 = vpop.f32.mrf.mxu0
        %v2259 = vadd.f32 %v1948, %v2258
        %2260 = vmatprep.mubr.bf16.mxu0 0
        %2261 = vmatmul.mubr.bf16.gmra.mxu0 %v2042
        %v2262 = vpop.f32.mrf.mxu0
        %v2263 = vadd.f32 %v1944, %v2262
        %v2264 = vpop.f32.mrf.mxu0
        %v2265 = vadd.f32 %v1948, %v2264
        %v2266 = vpop.f32.mrf.mxu0
        %v2267 = vadd.f32 %v1944, %v2266
        %v2268 = vpop.f32.mrf.mxu0
        %v2269 = vadd.f32 %v1948, %v2268
        %2270 = vmatprep.mubr.bf16.mxu0 0
        %2271 = vmatmul.mubr.bf16.gmra.mxu0 %v2045
        %v2272 = vpop.f32.mrf.mxu0
        %v2273 = vadd.f32 %v1944, %v2272
        %v2274 = vpop.f32.mrf.mxu0
        %v2275 = vadd.f32 %v1948, %v2274
        %v2276 = vpop.f32.mrf.mxu0
        %v2277 = vadd.f32 %v1944, %v2276
        %v2278 = vpop.f32.mrf.mxu0
        %v2279 = vadd.f32 %v1948, %v2278
        %2280 = vmatprep.mubr.bf16.mxu0 0
        %2281 = vmatmul.mubr.bf16.gmra.mxu0 %v2048
        %v2282 = vpop.f32.mrf.mxu0
        %v2283 = vadd.f32 %v1944, %v2282
        %v2284 = vpop.f32.mrf.mxu0
        %v2285 = vadd.f32 %v1948, %v2284
        %v2286 = vpop.f32.mrf.mxu0
        %v2287 = vadd.f32 %v1944, %v2286
        %v2288 = vpop.f32.mrf.mxu0
        %v2289 = vadd.f32 %v1948, %v2288
        %2290 = vmatprep.mubr.bf16.mxu0 0
        %2291 = vmatmul.mubr.bf16.gmra.mxu0 %v2051
        %v2292 = vpop.f32.mrf.mxu0
        %v2293 = vadd.f32 %v1944, %v2292
        %v2294 = vpop.f32.mrf.mxu0
        %v2295 = vadd.f32 %v1948, %v2294
        %v2296 = vpop.f32.mrf.mxu0
        %v2297 = vadd.f32 %v1944, %v2296
        %v2298 = vpop.f32.mrf.mxu0
        %v2299 = vadd.f32 %v1948, %v2298
        %2300 = vmatprep.mubr.bf16.mxu0 0
        %2301 = vmatmul.mubr.bf16.gmra.mxu0 %v2054
        %v2302 = vpop.f32.mrf.mxu0
        %v2303 = vadd.f32 %v1944, %v2302
        %v2304 = vpop.f32.mrf.mxu0
        %v2305 = vadd.f32 %v1948, %v2304
        %v2306 = vpop.f32.mrf.mxu0
        %v2307 = vadd.f32 %v1944, %v2306
        %v2308 = vpop.f32.mrf.mxu0
        %v2309 = vadd.f32 %v1948, %v2308
        %2310 = vmatprep.mubr.bf16.mxu0 0
        %2311 = vmatmul.mubr.bf16.gmra.mxu0 %v2057
        %v2312 = vpop.f32.mrf.mxu0
        %v2313 = vadd.f32 %v1944, %v2312
        %v2314 = vpop.f32.mrf.mxu0
        %v2315 = vadd.f32 %v1948, %v2314
        %v2316 = vpop.f32.mrf.mxu0
        %v2317 = vadd.f32 %v1944, %v2316
        %v2318 = vpop.f32.mrf.mxu0
        %v2319 = vadd.f32 %v1948, %v2318
        %2320 = vmatprep.mubr.bf16.mxu0 0
        %2321 = vmatmul.mubr.bf16.gmra.mxu0 %v2060
        %v2322 = vpop.f32.mrf.mxu0
        %v2323 = vadd.f32 %v1944, %v2322
        %v2324 = vpop.f32.mrf.mxu0
        %v2325 = vadd.f32 %v1948, %v2324
        %v2326 = vpop.f32.mrf.mxu0
        %v2327 = vadd.f32 %v1944, %v2326
        %v2328 = vpop.f32.mrf.mxu0
        %v2329 = vadd.f32 %v1948, %v2328
        %2330 = vmatprep.mubr.bf16.mxu0 0
        %2331 = vmatmul.mubr.bf16.gmra.mxu0 %v2063
        %v2332 = vpop.f32.mrf.mxu0
        %v2333 = vadd.f32 %v1944, %v2332
        %v2334 = vpop.f32.mrf.mxu0
        %v2335 = vadd.f32 %v1948, %v2334
        %v2336 = vpop.f32.mrf.mxu0
        %v2337 = vadd.f32 %v1944, %v2336
        %v2338 = vpop.f32.mrf.mxu0
        %v2339 = vadd.f32 %v1948, %v2338
        %2340 = vmatprep.mubr.bf16.mxu0 0
        %2341 = vmatmul.mubr.bf16.gmra.mxu0 %v2066
        %v2342 = vpop.f32.mrf.mxu0
        %v2343 = vadd.f32 %v1944, %v2342
        %v2344 = vpop.f32.mrf.mxu0
        %v2345 = vadd.f32 %v1948, %v2344
        %v2346 = vpop.f32.mrf.mxu0
        %v2347 = vadd.f32 %v1944, %v2346
        %v2348 = vpop.f32.mrf.mxu0
        %v2349 = vadd.f32 %v1948, %v2348
        %2350 = vmatprep.mubr.bf16.mxu0 0
        %2351 = vmatmul.mubr.bf16.gmra.mxu0 %v2069
        %v2352 = vpop.f32.mrf.mxu0
        %v2353 = vadd.f32 %v1944, %v2352
        %v2354 = vpop.f32.mrf.mxu0
        %v2355 = vadd.f32 %v1948, %v2354
        %v2356 = vpop.f32.mrf.mxu0
        %v2357 = vadd.f32 %v1944, %v2356
        %v2358 = vpop.f32.mrf.mxu0
        %v2359 = vadd.f32 %v1948, %v2358
        %2360 = vmatprep.mubr.bf16.mxu0 0
        %2361 = vmatmul.mubr.bf16.gmra.mxu0 %v2072
        %v2362 = vpop.f32.mrf.mxu0
        %v2363 = vadd.f32 %v1944, %v2362
        %v2364 = vpop.f32.mrf.mxu0
        %v2365 = vadd.f32 %v1948, %v2364
        %v2366 = vpop.f32.mrf.mxu0
        %v2367 = vadd.f32 %v1944, %v2366
        %v2368 = vpop.f32.mrf.mxu0
        %v2369 = vadd.f32 %v1948, %v2368
        %2370 = vmatprep.mubr.bf16.mxu0 0
        %2371 = vmatmul.mubr.bf16.gmra.mxu0 %v2075
        %v2372 = vpop.f32.mrf.mxu0
        %v2373 = vadd.f32 %v1944, %v2372
        %v2374 = vpop.f32.mrf.mxu0
        %v2375 = vadd.f32 %v1948, %v2374
        %v2376 = vpop.f32.mrf.mxu0
        %v2377 = vadd.f32 %v1944, %v2376
        %v2378 = vpop.f32.mrf.mxu0
        %v2379 = vadd.f32 %v1948, %v2378
        %2380 = vmatprep.mubr.bf16.mxu0 0
        %2381 = vmatmul.mubr.bf16.gmra.mxu0 %v2078
        %v2382 = vpop.f32.mrf.mxu0
        %v2383 = vadd.f32 %v1944, %v2382
        %v2384 = vpop.f32.mrf.mxu0
        %v2385 = vadd.f32 %v1948, %v2384
        %v2386 = vpop.f32.mrf.mxu0
        %v2387 = vadd.f32 %v1944, %v2386
        %v2388 = vpop.f32.mrf.mxu0
        %v2389 = vadd.f32 %v1948, %v2388
        %2390 = vmatprep.mubr.bf16.mxu0 0
        %2391 = vmatmul.mubr.bf16.gmra.mxu0 %v2081
        %v2392 = vpop.f32.mrf.mxu0
        %v2393 = vadd.f32 %v1944, %v2392
        %v2394 = vpop.f32.mrf.mxu0
        %v2395 = vadd.f32 %v1948, %v2394
        %v2396 = vpop.f32.mrf.mxu0
        %v2397 = vadd.f32 %v1944, %v2396
        %v2398 = vpop.f32.mrf.mxu0
        %v2399 = vadd.f32 %v1948, %v2398
        %2400 = vmatprep.mubr.bf16.mxu0 0
        %2401 = vmatmul.mubr.bf16.gmra.mxu0 %v2084
        %v2402 = vpop.f32.mrf.mxu0
        %v2403 = vadd.f32 %v1944, %v2402
        %v2404 = vpop.f32.mrf.mxu0
        %v2405 = vadd.f32 %v1948, %v2404
        %v2406 = vpop.f32.mrf.mxu0
        %v2407 = vadd.f32 %v1944, %v2406
        %v2408 = vpop.f32.mrf.mxu0
        %v2409 = vadd.f32 %v1948, %v2408
        %2410 = vmatprep.mubr.bf16.mxu0 0
        %2411 = vmatmul.mubr.bf16.gmra.mxu0 %v2087
        %v2412 = vpop.f32.mrf.mxu0
        %v2413 = vadd.f32 %v1944, %v2412
        %v2414 = vpop.f32.mrf.mxu0
        %v2415 = vadd.f32 %v1948, %v2414
        %v2416 = vpop.f32.mrf.mxu0
        %v2417 = vadd.f32 %v1944, %v2416
        %v2418 = vpop.f32.mrf.mxu0
        %v2419 = vadd.f32 %v1948, %v2418
        %2420 = vmatprep.mubr.bf16.mxu0 0
        %2421 = vmatmul.mubr.bf16.gmra.mxu0 %v2090
        %v2422 = vpop.f32.mrf.mxu0
        %v2423 = vadd.f32 %v1944, %v2422
        %v2424 = vpop.f32.mrf.mxu0
        %v2425 = vadd.f32 %v1948, %v2424
        %v2426 = vpop.f32.mrf.mxu0
        %v2427 = vadd.f32 %v1944, %v2426
        %v2428 = vpop.f32.mrf.mxu0
        %v2429 = vadd.f32 %v1948, %v2428
        %2430 = vmatprep.mubr.bf16.mxu0 0
        %2431 = vmatmul.mubr.bf16.gmra.mxu0 %v2093
        %v2432 = vpop.f32.mrf.mxu0
        %v2433 = vadd.f32 %v1944, %v2432
        %v2434 = vpop.f32.mrf.mxu0
        %v2435 = vadd.f32 %v1948, %v2434
        %v2436 = vpop.f32.mrf.mxu0
        %v2437 = vadd.f32 %v1944, %v2436
        %v2438 = vpop.f32.mrf.mxu0
        %v2439 = vadd.f32 %v1948, %v2438
        %2440 = vmatprep.mubr.bf16.mxu0 0
        %2441 = vmatmul.mubr.bf16.gmra.mxu0 %v2096
        %v2442 = vpop.f32.mrf.mxu0
        %v2443 = vadd.f32 %v1944, %v2442
        %v2444 = vpop.f32.mrf.mxu0
        %v2445 = vadd.f32 %v1948, %v2444
        %v2446 = vpop.f32.mrf.mxu0
        %v2447 = vadd.f32 %v1944, %v2446
        %v2448 = vpop.f32.mrf.mxu0
        %v2449 = vadd.f32 %v1948, %v2448
        %2450 = vdwg.mxu0
        %2451 = vmatprep.subr.bf16.mxu0 0
        %2452 = vmatpush1.bf16.msra.mxu0 0
        %2453 = vmatprep.subr.bf16.mxu0 0
        %2454 = vmatpush1.bf16.msra.mxu0 0
        %2455 = vmatprep.subr.bf16.mxu0 0
        %2456 = vmatpush1.bf16.msra.mxu0 0
        %2457 = vmatprep.subr.bf16.mxu0 0
        %2458 = vmatpush1.bf16.msra.mxu0 0
        %2459 = vmatprep.subr.bf16.mxu0 0
        %2460 = vmatpush1.bf16.msra.mxu0 0
        %2461 = vmatprep.subr.bf16.mxu0 0
        %2462 = vmatpush1.bf16.msra.mxu0 0
        %2463 = vmatprep.subr.bf16.mxu0 %v1992
        %2464 = vmatpush1.bf16.msra.mxu0 %v1991
        %2465 = vmatprep.subr.bf16.mxu0 %v1988
        %2466 = vmatpush1.bf16.msra.mxu0 %v1987
        %2467 = vmatprep.subr.bf16.mxu0 0
        %2468 = vmatpush2.bf16.msra.mxu0 0
        %2469 = vmatprep.subr.bf16.mxu0 0
        %2470 = vmatpush2.bf16.msra.mxu0 0
        %2471 = vmatprep.subr.bf16.mxu0 0
        %2472 = vmatpush2.bf16.msra.mxu0 0
        %2473 = vmatprep.subr.bf16.mxu0 0
        %2474 = vmatpush2.bf16.msra.mxu0 0
        %2475 = vmatprep.subr.bf16.mxu0 0
        %2476 = vmatpush2.bf16.msra.mxu0 0
        %2477 = vmatprep.subr.bf16.mxu0 0
        %2478 = vmatpush2.bf16.msra.mxu0 0
        %2479 = vmatprep.subr.bf16.mxu0 0
        %2480 = vmatpush2.bf16.msra.mxu0 0
        %2481 = vmatprep.subr.bf16.mxu0 0
        %2482 = vmatpush2.bf16.msra.mxu0 0
        %2483 = vmatprep.mubr.bf16.mxu0 0
        %2484 = vmatmul.mubr.bf16.gmra.mxu0 %v2003
        %v2485 = vpop.f32.mrf.mxu0
        %v2486 = vadd.f32 %v1952, %v2485
        %v2487 = vpop.f32.mrf.mxu0
        %v2488 = vadd.f32 %v1956, %v2487
        %v2489 = vpop.f32.mrf.mxu0
        %v2490 = vadd.f32 %v1952, %v2489
        %v2491 = vpop.f32.mrf.mxu0
        %v2492 = vadd.f32 %v1956, %v2491
        %2493 = vmatprep.mubr.bf16.mxu0 0
        %2494 = vmatmul.mubr.bf16.gmra.mxu0 %v2006
        %v2495 = vpop.f32.mrf.mxu0
        %v2496 = vadd.f32 %v1952, %v2495
        %v2497 = vpop.f32.mrf.mxu0
        %v2498 = vadd.f32 %v1956, %v2497
        %v2499 = vpop.f32.mrf.mxu0
        %v2500 = vadd.f32 %v1952, %v2499
        %v2501 = vpop.f32.mrf.mxu0
        %v2502 = vadd.f32 %v1956, %v2501
        %2503 = vmatprep.mubr.bf16.mxu0 0
        %2504 = vmatmul.mubr.bf16.gmra.mxu0 %v2009
        %v2505 = vpop.f32.mrf.mxu0
        %v2506 = vadd.f32 %v1952, %v2505
        %v2507 = vpop.f32.mrf.mxu0
        %v2508 = vadd.f32 %v1956, %v2507
        %v2509 = vpop.f32.mrf.mxu0
        %v2510 = vadd.f32 %v1952, %v2509
        %v2511 = vpop.f32.mrf.mxu0
        %v2512 = vadd.f32 %v1956, %v2511
        %2513 = vmatprep.mubr.bf16.mxu0 0
        %2514 = vmatmul.mubr.bf16.gmra.mxu0 %v2012
        %v2515 = vpop.f32.mrf.mxu0
        %v2516 = vadd.f32 %v1952, %v2515
        %v2517 = vpop.f32.mrf.mxu0
        %v2518 = vadd.f32 %v1956, %v2517
        %v2519 = vpop.f32.mrf.mxu0
        %v2520 = vadd.f32 %v1952, %v2519
        %v2521 = vpop.f32.mrf.mxu0
        %v2522 = vadd.f32 %v1956, %v2521
        %2523 = vmatprep.mubr.bf16.mxu0 0
        %2524 = vmatmul.mubr.bf16.gmra.mxu0 %v2015
        %v2525 = vpop.f32.mrf.mxu0
        %v2526 = vadd.f32 %v1952, %v2525
        %v2527 = vpop.f32.mrf.mxu0
        %v2528 = vadd.f32 %v1956, %v2527
        %v2529 = vpop.f32.mrf.mxu0
        %v2530 = vadd.f32 %v1952, %v2529
        %v2531 = vpop.f32.mrf.mxu0
        %v2532 = vadd.f32 %v1956, %v2531
        %2533 = vmatprep.mubr.bf16.mxu0 0
        %2534 = vmatmul.mubr.bf16.gmra.mxu0 %v2018
        %v2535 = vpop.f32.mrf.mxu0
        %v2536 = vadd.f32 %v1952, %v2535
        %v2537 = vpop.f32.mrf.mxu0
        %v2538 = vadd.f32 %v1956, %v2537
        %v2539 = vpop.f32.mrf.mxu0
        %v2540 = vadd.f32 %v1952, %v2539
        %v2541 = vpop.f32.mrf.mxu0
        %v2542 = vadd.f32 %v1956, %v2541
        %2543 = vmatprep.mubr.bf16.mxu0 0
        %2544 = vmatmul.mubr.bf16.gmra.mxu0 %v2021
        %v2545 = vpop.f32.mrf.mxu0
        %v2546 = vadd.f32 %v1952, %v2545
        %v2547 = vpop.f32.mrf.mxu0
        %v2548 = vadd.f32 %v1956, %v2547
        %v2549 = vpop.f32.mrf.mxu0
        %v2550 = vadd.f32 %v1952, %v2549
        %v2551 = vpop.f32.mrf.mxu0
        %v2552 = vadd.f32 %v1956, %v2551
        %2553 = vmatprep.mubr.bf16.mxu0 0
        %2554 = vmatmul.mubr.bf16.gmra.mxu0 %v2024
        %v2555 = vpop.f32.mrf.mxu0
        %v2556 = vadd.f32 %v1952, %v2555
        %v2557 = vpop.f32.mrf.mxu0
        %v2558 = vadd.f32 %v1956, %v2557
        %v2559 = vpop.f32.mrf.mxu0
        %v2560 = vadd.f32 %v1952, %v2559
        %v2561 = vpop.f32.mrf.mxu0
        %v2562 = vadd.f32 %v1956, %v2561
        %2563 = vmatprep.mubr.bf16.mxu0 0
        %2564 = vmatmul.mubr.bf16.gmra.mxu0 %v2027
        %v2565 = vpop.f32.mrf.mxu0
        %v2566 = vadd.f32 %v1952, %v2565
        %v2567 = vpop.f32.mrf.mxu0
        %v2568 = vadd.f32 %v1956, %v2567
        %v2569 = vpop.f32.mrf.mxu0
        %v2570 = vadd.f32 %v1952, %v2569
        %v2571 = vpop.f32.mrf.mxu0
        %v2572 = vadd.f32 %v1956, %v2571
        %2573 = vmatprep.mubr.bf16.mxu0 0
        %2574 = vmatmul.mubr.bf16.gmra.mxu0 %v2030
        %v2575 = vpop.f32.mrf.mxu0
        %v2576 = vadd.f32 %v1952, %v2575
        %v2577 = vpop.f32.mrf.mxu0
        %v2578 = vadd.f32 %v1956, %v2577
        %v2579 = vpop.f32.mrf.mxu0
        %v2580 = vadd.f32 %v1952, %v2579
        %v2581 = vpop.f32.mrf.mxu0
        %v2582 = vadd.f32 %v1956, %v2581
        %2583 = vmatprep.mubr.bf16.mxu0 0
        %2584 = vmatmul.mubr.bf16.gmra.mxu0 %v2033
        %v2585 = vpop.f32.mrf.mxu0
        %v2586 = vadd.f32 %v1952, %v2585
        %v2587 = vpop.f32.mrf.mxu0
        %v2588 = vadd.f32 %v1956, %v2587
        %v2589 = vpop.f32.mrf.mxu0
        %v2590 = vadd.f32 %v1952, %v2589
        %v2591 = vpop.f32.mrf.mxu0
        %v2592 = vadd.f32 %v1956, %v2591
        %2593 = vmatprep.mubr.bf16.mxu0 0
        %2594 = vmatmul.mubr.bf16.gmra.mxu0 %v2036
        %v2595 = vpop.f32.mrf.mxu0
        %v2596 = vadd.f32 %v1952, %v2595
        %v2597 = vpop.f32.mrf.mxu0
        %v2598 = vadd.f32 %v1956, %v2597
        %v2599 = vpop.f32.mrf.mxu0
        %v2600 = vadd.f32 %v1952, %v2599
        %v2601 = vpop.f32.mrf.mxu0
        %v2602 = vadd.f32 %v1956, %v2601
        %2603 = vmatprep.mubr.bf16.mxu0 0
        %2604 = vmatmul.mubr.bf16.gmra.mxu0 %v2039
        %v2605 = vpop.f32.mrf.mxu0
        %v2606 = vadd.f32 %v1952, %v2605
        %v2607 = vpop.f32.mrf.mxu0
        %v2608 = vadd.f32 %v1956, %v2607
        %v2609 = vpop.f32.mrf.mxu0
        %v2610 = vadd.f32 %v1952, %v2609
        %v2611 = vpop.f32.mrf.mxu0
        %v2612 = vadd.f32 %v1956, %v2611
        %2613 = vmatprep.mubr.bf16.mxu0 0
        %2614 = vmatmul.mubr.bf16.gmra.mxu0 %v2042
        %v2615 = vpop.f32.mrf.mxu0
        %v2616 = vadd.f32 %v1952, %v2615
        %v2617 = vpop.f32.mrf.mxu0
        %v2618 = vadd.f32 %v1956, %v2617
        %v2619 = vpop.f32.mrf.mxu0
        %v2620 = vadd.f32 %v1952, %v2619
        %v2621 = vpop.f32.mrf.mxu0
        %v2622 = vadd.f32 %v1956, %v2621
        %2623 = vmatprep.mubr.bf16.mxu0 0
        %2624 = vmatmul.mubr.bf16.gmra.mxu0 %v2045
        %v2625 = vpop.f32.mrf.mxu0
        %v2626 = vadd.f32 %v1952, %v2625
        %v2627 = vpop.f32.mrf.mxu0
        %v2628 = vadd.f32 %v1956, %v2627
        %v2629 = vpop.f32.mrf.mxu0
        %v2630 = vadd.f32 %v1952, %v2629
        %v2631 = vpop.f32.mrf.mxu0
        %v2632 = vadd.f32 %v1956, %v2631
        %2633 = vmatprep.mubr.bf16.mxu0 0
        %2634 = vmatmul.mubr.bf16.gmra.mxu0 %v2048
        %v2635 = vpop.f32.mrf.mxu0
        %v2636 = vadd.f32 %v1952, %v2635
        %v2637 = vpop.f32.mrf.mxu0
        %v2638 = vadd.f32 %v1956, %v2637
        %v2639 = vpop.f32.mrf.mxu0
        %v2640 = vadd.f32 %v1952, %v2639
        %v2641 = vpop.f32.mrf.mxu0
        %v2642 = vadd.f32 %v1956, %v2641
        %2643 = vmatprep.mubr.bf16.mxu0 0
        %2644 = vmatmul.mubr.bf16.gmra.mxu0 %v2051
        %v2645 = vpop.f32.mrf.mxu0
        %v2646 = vadd.f32 %v1952, %v2645
        %v2647 = vpop.f32.mrf.mxu0
        %v2648 = vadd.f32 %v1956, %v2647
        %v2649 = vpop.f32.mrf.mxu0
        %v2650 = vadd.f32 %v1952, %v2649
        %v2651 = vpop.f32.mrf.mxu0
        %v2652 = vadd.f32 %v1956, %v2651
        %2653 = vmatprep.mubr.bf16.mxu0 0
        %2654 = vmatmul.mubr.bf16.gmra.mxu0 %v2054
        %v2655 = vpop.f32.mrf.mxu0
        %v2656 = vadd.f32 %v1952, %v2655
        %v2657 = vpop.f32.mrf.mxu0
        %v2658 = vadd.f32 %v1956, %v2657
        %v2659 = vpop.f32.mrf.mxu0
        %v2660 = vadd.f32 %v1952, %v2659
        %v2661 = vpop.f32.mrf.mxu0
        %v2662 = vadd.f32 %v1956, %v2661
        %2663 = vmatprep.mubr.bf16.mxu0 0
        %2664 = vmatmul.mubr.bf16.gmra.mxu0 %v2057
        %v2665 = vpop.f32.mrf.mxu0
        %v2666 = vadd.f32 %v1952, %v2665
        %v2667 = vpop.f32.mrf.mxu0
        %v2668 = vadd.f32 %v1956, %v2667
        %v2669 = vpop.f32.mrf.mxu0
        %v2670 = vadd.f32 %v1952, %v2669
        %v2671 = vpop.f32.mrf.mxu0
        %v2672 = vadd.f32 %v1956, %v2671
        %2673 = vmatprep.mubr.bf16.mxu0 0
        %2674 = vmatmul.mubr.bf16.gmra.mxu0 %v2060
        %v2675 = vpop.f32.mrf.mxu0
        %v2676 = vadd.f32 %v1952, %v2675
        %v2677 = vpop.f32.mrf.mxu0
        %v2678 = vadd.f32 %v1956, %v2677
        %v2679 = vpop.f32.mrf.mxu0
        %v2680 = vadd.f32 %v1952, %v2679
        %v2681 = vpop.f32.mrf.mxu0
        %v2682 = vadd.f32 %v1956, %v2681
        %2683 = vmatprep.mubr.bf16.mxu0 0
        %2684 = vmatmul.mubr.bf16.gmra.mxu0 %v2063
        %v2685 = vpop.f32.mrf.mxu0
        %v2686 = vadd.f32 %v1952, %v2685
        %v2687 = vpop.f32.mrf.mxu0
        %v2688 = vadd.f32 %v1956, %v2687
        %v2689 = vpop.f32.mrf.mxu0
        %v2690 = vadd.f32 %v1952, %v2689
        %v2691 = vpop.f32.mrf.mxu0
        %v2692 = vadd.f32 %v1956, %v2691
        %2693 = vmatprep.mubr.bf16.mxu0 0
        %2694 = vmatmul.mubr.bf16.gmra.mxu0 %v2066
        %v2695 = vpop.f32.mrf.mxu0
        %v2696 = vadd.f32 %v1952, %v2695
        %v2697 = vpop.f32.mrf.mxu0
        %v2698 = vadd.f32 %v1956, %v2697
        %v2699 = vpop.f32.mrf.mxu0
        %v2700 = vadd.f32 %v1952, %v2699
        %v2701 = vpop.f32.mrf.mxu0
        %v2702 = vadd.f32 %v1956, %v2701
        %2703 = vmatprep.mubr.bf16.mxu0 0
        %2704 = vmatmul.mubr.bf16.gmra.mxu0 %v2069
        %v2705 = vpop.f32.mrf.mxu0
        %v2706 = vadd.f32 %v1952, %v2705
        %v2707 = vpop.f32.mrf.mxu0
        %v2708 = vadd.f32 %v1956, %v2707
        %v2709 = vpop.f32.mrf.mxu0
        %v2710 = vadd.f32 %v1952, %v2709
        %v2711 = vpop.f32.mrf.mxu0
        %v2712 = vadd.f32 %v1956, %v2711
        %2713 = vmatprep.mubr.bf16.mxu0 0
        %2714 = vmatmul.mubr.bf16.gmra.mxu0 %v2072
        %v2715 = vpop.f32.mrf.mxu0
        %v2716 = vadd.f32 %v1952, %v2715
        %v2717 = vpop.f32.mrf.mxu0
        %v2718 = vadd.f32 %v1956, %v2717
        %v2719 = vpop.f32.mrf.mxu0
        %v2720 = vadd.f32 %v1952, %v2719
        %v2721 = vpop.f32.mrf.mxu0
        %v2722 = vadd.f32 %v1956, %v2721
        %2723 = vmatprep.mubr.bf16.mxu0 0
        %2724 = vmatmul.mubr.bf16.gmra.mxu0 %v2075
        %v2725 = vpop.f32.mrf.mxu0
        %v2726 = vadd.f32 %v1952, %v2725
        %v2727 = vpop.f32.mrf.mxu0
        %v2728 = vadd.f32 %v1956, %v2727
        %v2729 = vpop.f32.mrf.mxu0
        %v2730 = vadd.f32 %v1952, %v2729
        %v2731 = vpop.f32.mrf.mxu0
        %v2732 = vadd.f32 %v1956, %v2731
        %2733 = vmatprep.mubr.bf16.mxu0 0
        %2734 = vmatmul.mubr.bf16.gmra.mxu0 %v2078
        %v2735 = vpop.f32.mrf.mxu0
        %v2736 = vadd.f32 %v1952, %v2735
        %v2737 = vpop.f32.mrf.mxu0
        %v2738 = vadd.f32 %v1956, %v2737
        %v2739 = vpop.f32.mrf.mxu0
        %v2740 = vadd.f32 %v1952, %v2739
        %v2741 = vpop.f32.mrf.mxu0
        %v2742 = vadd.f32 %v1956, %v2741
        %2743 = vmatprep.mubr.bf16.mxu0 0
        %2744 = vmatmul.mubr.bf16.gmra.mxu0 %v2081
        %v2745 = vpop.f32.mrf.mxu0
        %v2746 = vadd.f32 %v1952, %v2745
        %v2747 = vpop.f32.mrf.mxu0
        %v2748 = vadd.f32 %v1956, %v2747
        %v2749 = vpop.f32.mrf.mxu0
        %v2750 = vadd.f32 %v1952, %v2749
        %v2751 = vpop.f32.mrf.mxu0
        %v2752 = vadd.f32 %v1956, %v2751
        %2753 = vmatprep.mubr.bf16.mxu0 0
        %2754 = vmatmul.mubr.bf16.gmra.mxu0 %v2084
        %v2755 = vpop.f32.mrf.mxu0
        %v2756 = vadd.f32 %v1952, %v2755
        %v2757 = vpop.f32.mrf.mxu0
        %v2758 = vadd.f32 %v1956, %v2757
        %v2759 = vpop.f32.mrf.mxu0
        %v2760 = vadd.f32 %v1952, %v2759
        %v2761 = vpop.f32.mrf.mxu0
        %v2762 = vadd.f32 %v1956, %v2761
        %2763 = vmatprep.mubr.bf16.mxu0 0
        %2764 = vmatmul.mubr.bf16.gmra.mxu0 %v2087
        %v2765 = vpop.f32.mrf.mxu0
        %v2766 = vadd.f32 %v1952, %v2765
        %v2767 = vpop.f32.mrf.mxu0
        %v2768 = vadd.f32 %v1956, %v2767
        %v2769 = vpop.f32.mrf.mxu0
        %v2770 = vadd.f32 %v1952, %v2769
        %v2771 = vpop.f32.mrf.mxu0
        %v2772 = vadd.f32 %v1956, %v2771
        %2773 = vmatprep.mubr.bf16.mxu0 0
        %2774 = vmatmul.mubr.bf16.gmra.mxu0 %v2090
        %v2775 = vpop.f32.mrf.mxu0
        %v2776 = vadd.f32 %v1952, %v2775
        %v2777 = vpop.f32.mrf.mxu0
        %v2778 = vadd.f32 %v1956, %v2777
        %v2779 = vpop.f32.mrf.mxu0
        %v2780 = vadd.f32 %v1952, %v2779
        %v2781 = vpop.f32.mrf.mxu0
        %v2782 = vadd.f32 %v1956, %v2781
        %2783 = vmatprep.mubr.bf16.mxu0 0
        %2784 = vmatmul.mubr.bf16.gmra.mxu0 %v2093
        %v2785 = vpop.f32.mrf.mxu0
        %v2786 = vadd.f32 %v1952, %v2785
        %v2787 = vpop.f32.mrf.mxu0
        %v2788 = vadd.f32 %v1956, %v2787
        %v2789 = vpop.f32.mrf.mxu0
        %v2790 = vadd.f32 %v1952, %v2789
        %v2791 = vpop.f32.mrf.mxu0
        %v2792 = vadd.f32 %v1956, %v2791
        %2793 = vmatprep.mubr.bf16.mxu0 0
        %2794 = vmatmul.mubr.bf16.gmra.mxu0 %v2096
        %v2795 = vpop.f32.mrf.mxu0
        %v2796 = vadd.f32 %v1952, %v2795
        %v2797 = vpop.f32.mrf.mxu0
        %v2798 = vadd.f32 %v1956, %v2797
        %v2799 = vpop.f32.mrf.mxu0
        %v2800 = vadd.f32 %v1952, %v2799
        %v2801 = vpop.f32.mrf.mxu0
        %v2802 = vadd.f32 %v1956, %v2801
        %2803 = vdwg.mxu0
        %v2804 = vmax.f32 %v2133, 0.0
        %v2805 = vmax.f32 %v2135, 0.0
        %v2806 = vmax.f32 %v2486, 0.0
        %v2807 = vmax.f32 %v2488, 0.0
        %v2808 = vmax.f32 %v2137, 0.0
        %v2809 = vmax.f32 %v2139, 0.0
        %v2810 = vmax.f32 %v2490, 0.0
        %v2811 = vmax.f32 %v2492, 0.0
        %v2812 = vmax.f32 %v2143, 0.0
        %v2813 = vmax.f32 %v2145, 0.0
        %v2814 = vmax.f32 %v2496, 0.0
        %v2815 = vmax.f32 %v2498, 0.0
        %v2816 = vmax.f32 %v2147, 0.0
        %v2817 = vmax.f32 %v2149, 0.0
        %v2818 = vmax.f32 %v2500, 0.0
        %v2819 = vmax.f32 %v2502, 0.0
        %v2820 = vmax.f32 %v2153, 0.0
        %v2821 = vmax.f32 %v2155, 0.0
        %v2822 = vmax.f32 %v2506, 0.0
        %v2823 = vmax.f32 %v2508, 0.0
        %v2824 = vmax.f32 %v2157, 0.0
        %v2825 = vmax.f32 %v2159, 0.0
        %v2826 = vmax.f32 %v2510, 0.0
        %v2827 = vmax.f32 %v2512, 0.0
        %v2828 = vmax.f32 %v2163, 0.0
        %v2829 = vmax.f32 %v2165, 0.0
        %v2830 = vmax.f32 %v2516, 0.0
        %v2831 = vmax.f32 %v2518, 0.0
        %v2832 = vmax.f32 %v2167, 0.0
        %v2833 = vmax.f32 %v2169, 0.0
        %v2834 = vmax.f32 %v2520, 0.0
        %v2835 = vmax.f32 %v2522, 0.0
        %v2836 = vmax.f32 %v2173, 0.0
        %v2837 = vmax.f32 %v2175, 0.0
        %v2838 = vmax.f32 %v2526, 0.0
        %v2839 = vmax.f32 %v2528, 0.0
        %v2840 = vmax.f32 %v2177, 0.0
        %v2841 = vmax.f32 %v2179, 0.0
        %v2842 = vmax.f32 %v2530, 0.0
        %v2843 = vmax.f32 %v2532, 0.0
        %v2844 = vmax.f32 %v2183, 0.0
        %v2845 = vmax.f32 %v2185, 0.0
        %v2846 = vmax.f32 %v2536, 0.0
        %v2847 = vmax.f32 %v2538, 0.0
        %v2848 = vmax.f32 %v2187, 0.0
        %v2849 = vmax.f32 %v2189, 0.0
        %v2850 = vmax.f32 %v2540, 0.0
        %v2851 = vmax.f32 %v2542, 0.0
        %v2852 = vmax.f32 %v2193, 0.0
        %v2853 = vmax.f32 %v2195, 0.0
        %v2854 = vmax.f32 %v2546, 0.0
        %v2855 = vmax.f32 %v2548, 0.0
        %v2856 = vmax.f32 %v2197, 0.0
        %v2857 = vmax.f32 %v2199, 0.0
        %v2858 = vmax.f32 %v2550, 0.0
        %v2859 = vmax.f32 %v2552, 0.0
        %v2860 = vmax.f32 %v2203, 0.0
        %v2861 = vmax.f32 %v2205, 0.0
        %v2862 = vmax.f32 %v2556, 0.0
        %v2863 = vmax.f32 %v2558, 0.0
        %v2864 = vmax.f32 %v2207, 0.0
        %v2865 = vmax.f32 %v2209, 0.0
        %v2866 = vmax.f32 %v2560, 0.0
        %v2867 = vmax.f32 %v2562, 0.0
        %v2868 = vmax.f32 %v2213, 0.0
        %v2869 = vmax.f32 %v2215, 0.0
        %v2870 = vmax.f32 %v2566, 0.0
        %v2871 = vmax.f32 %v2568, 0.0
        %v2872 = vmax.f32 %v2217, 0.0
        %v2873 = vmax.f32 %v2219, 0.0
        %v2874 = vmax.f32 %v2570, 0.0
        %v2875 = vmax.f32 %v2572, 0.0
        %v2876 = vmax.f32 %v2223, 0.0
        %v2877 = vmax.f32 %v2225, 0.0
        %v2878 = vmax.f32 %v2576, 0.0
        %v2879 = vmax.f32 %v2578, 0.0
        %v2880 = vmax.f32 %v2227, 0.0
        %v2881 = vmax.f32 %v2229, 0.0
        %v2882 = vmax.f32 %v2580, 0.0
        %v2883 = vmax.f32 %v2582, 0.0
        %v2884 = vmax.f32 %v2233, 0.0
        %v2885 = vmax.f32 %v2235, 0.0
        %v2886 = vmax.f32 %v2586, 0.0
        %v2887 = vmax.f32 %v2588, 0.0
        %v2888 = vmax.f32 %v2237, 0.0
        %v2889 = vmax.f32 %v2239, 0.0
        %v2890 = vmax.f32 %v2590, 0.0
        %v2891 = vmax.f32 %v2592, 0.0
        %v2892 = vmax.f32 %v2243, 0.0
        %v2893 = vmax.f32 %v2245, 0.0
        %v2894 = vmax.f32 %v2596, 0.0
        %v2895 = vmax.f32 %v2598, 0.0
        %v2896 = vmax.f32 %v2247, 0.0
        %v2897 = vmax.f32 %v2249, 0.0
        %v2898 = vmax.f32 %v2600, 0.0
        %v2899 = vmax.f32 %v2602, 0.0
        %v2900 = vmax.f32 %v2253, 0.0
        %v2901 = vmax.f32 %v2255, 0.0
        %v2902 = vmax.f32 %v2606, 0.0
        %v2903 = vmax.f32 %v2608, 0.0
        %v2904 = vmax.f32 %v2257, 0.0
        %v2905 = vmax.f32 %v2259, 0.0
        %v2906 = vmax.f32 %v2610, 0.0
        %v2907 = vmax.f32 %v2612, 0.0
        %v2908 = vmax.f32 %v2263, 0.0
        %v2909 = vmax.f32 %v2265, 0.0
        %v2910 = vmax.f32 %v2616, 0.0
        %v2911 = vmax.f32 %v2618, 0.0
        %v2912 = vmax.f32 %v2267, 0.0
        %v2913 = vmax.f32 %v2269, 0.0
        %v2914 = vmax.f32 %v2620, 0.0
        %v2915 = vmax.f32 %v2622, 0.0
        %v2916 = vmax.f32 %v2273, 0.0
        %v2917 = vmax.f32 %v2275, 0.0
        %v2918 = vmax.f32 %v2626, 0.0
        %v2919 = vmax.f32 %v2628, 0.0
        %v2920 = vmax.f32 %v2277, 0.0
        %v2921 = vmax.f32 %v2279, 0.0
        %v2922 = vmax.f32 %v2630, 0.0
        %v2923 = vmax.f32 %v2632, 0.0
        %v2924 = vmax.f32 %v2283, 0.0
        %v2925 = vmax.f32 %v2285, 0.0
        %v2926 = vmax.f32 %v2636, 0.0
        %v2927 = vmax.f32 %v2638, 0.0
        %v2928 = vmax.f32 %v2287, 0.0
        %v2929 = vmax.f32 %v2289, 0.0
        %v2930 = vmax.f32 %v2640, 0.0
        %v2931 = vmax.f32 %v2642, 0.0
        %v2932 = vmax.f32 %v2293, 0.0
        %v2933 = vmax.f32 %v2295, 0.0
        %v2934 = vmax.f32 %v2646, 0.0
        %v2935 = vmax.f32 %v2648, 0.0
        %v2936 = vmax.f32 %v2297, 0.0
        %v2937 = vmax.f32 %v2299, 0.0
        %v2938 = vmax.f32 %v2650, 0.0
        %v2939 = vmax.f32 %v2652, 0.0
        %v2940 = vmax.f32 %v2303, 0.0
        %v2941 = vmax.f32 %v2305, 0.0
        %v2942 = vmax.f32 %v2656, 0.0
        %v2943 = vmax.f32 %v2658, 0.0
        %v2944 = vmax.f32 %v2307, 0.0
        %v2945 = vmax.f32 %v2309, 0.0
        %v2946 = vmax.f32 %v2660, 0.0
        %v2947 = vmax.f32 %v2662, 0.0
        %v2948 = vmax.f32 %v2313, 0.0
        %v2949 = vmax.f32 %v2315, 0.0
        %v2950 = vmax.f32 %v2666, 0.0
        %v2951 = vmax.f32 %v2668, 0.0
        %v2952 = vmax.f32 %v2317, 0.0
        %v2953 = vmax.f32 %v2319, 0.0
        %v2954 = vmax.f32 %v2670, 0.0
        %v2955 = vmax.f32 %v2672, 0.0
        %v2956 = vmax.f32 %v2323, 0.0
        %v2957 = vmax.f32 %v2325, 0.0
        %v2958 = vmax.f32 %v2676, 0.0
        %v2959 = vmax.f32 %v2678, 0.0
        %v2960 = vmax.f32 %v2327, 0.0
        %v2961 = vmax.f32 %v2329, 0.0
        %v2962 = vmax.f32 %v2680, 0.0
        %v2963 = vmax.f32 %v2682, 0.0
        %v2964 = vmax.f32 %v2333, 0.0
        %v2965 = vmax.f32 %v2335, 0.0
        %v2966 = vmax.f32 %v2686, 0.0
        %v2967 = vmax.f32 %v2688, 0.0
        %v2968 = vmax.f32 %v2337, 0.0
        %v2969 = vmax.f32 %v2339, 0.0
        %v2970 = vmax.f32 %v2690, 0.0
        %v2971 = vmax.f32 %v2692, 0.0
        %v2972 = vmax.f32 %v2343, 0.0
        %v2973 = vmax.f32 %v2345, 0.0
        %v2974 = vmax.f32 %v2696, 0.0
        %v2975 = vmax.f32 %v2698, 0.0
        %v2976 = vmax.f32 %v2347, 0.0
        %v2977 = vmax.f32 %v2349, 0.0
        %v2978 = vmax.f32 %v2700, 0.0
        %v2979 = vmax.f32 %v2702, 0.0
        %v2980 = vmax.f32 %v2353, 0.0
        %v2981 = vmax.f32 %v2355, 0.0
        %v2982 = vmax.f32 %v2706, 0.0
        %v2983 = vmax.f32 %v2708, 0.0
        %v2984 = vmax.f32 %v2357, 0.0
        %v2985 = vmax.f32 %v2359, 0.0
        %v2986 = vmax.f32 %v2710, 0.0
        %v2987 = vmax.f32 %v2712, 0.0
        %v2988 = vmax.f32 %v2363, 0.0
        %v2989 = vmax.f32 %v2365, 0.0
        %v2990 = vmax.f32 %v2716, 0.0
        %v2991 = vmax.f32 %v2718, 0.0
        %v2992 = vmax.f32 %v2367, 0.0
        %v2993 = vmax.f32 %v2369, 0.0
        %v2994 = vmax.f32 %v2720, 0.0
        %v2995 = vmax.f32 %v2722, 0.0
        %v2996 = vmax.f32 %v2373, 0.0
        %v2997 = vmax.f32 %v2375, 0.0
        %v2998 = vmax.f32 %v2726, 0.0
        %v2999 = vmax.f32 %v2728, 0.0
        %v3000 = vmax.f32 %v2377, 0.0
        %v3001 = vmax.f32 %v2379, 0.0
        %v3002 = vmax.f32 %v2730, 0.0
        %v3003 = vmax.f32 %v2732, 0.0
        %v3004 = vmax.f32 %v2383, 0.0
        %v3005 = vmax.f32 %v2385, 0.0
        %v3006 = vmax.f32 %v2736, 0.0
        %v3007 = vmax.f32 %v2738, 0.0
        %v3008 = vmax.f32 %v2387, 0.0
        %v3009 = vmax.f32 %v2389, 0.0
        %v3010 = vmax.f32 %v2740, 0.0
        %v3011 = vmax.f32 %v2742, 0.0
        %v3012 = vmax.f32 %v2393, 0.0
        %v3013 = vmax.f32 %v2395, 0.0
        %v3014 = vmax.f32 %v2746, 0.0
        %v3015 = vmax.f32 %v2748, 0.0
        %v3016 = vmax.f32 %v2397, 0.0
        %v3017 = vmax.f32 %v2399, 0.0
        %v3018 = vmax.f32 %v2750, 0.0
        %v3019 = vmax.f32 %v2752, 0.0
        %v3020 = vmax.f32 %v2403, 0.0
        %v3021 = vmax.f32 %v2405, 0.0
        %v3022 = vmax.f32 %v2756, 0.0
        %v3023 = vmax.f32 %v2758, 0.0
        %v3024 = vmax.f32 %v2407, 0.0
        %v3025 = vmax.f32 %v2409, 0.0
        %v3026 = vmax.f32 %v2760, 0.0
        %v3027 = vmax.f32 %v2762, 0.0
        %v3028 = vmax.f32 %v2413, 0.0
        %v3029 = vmax.f32 %v2415, 0.0
        %v3030 = vmax.f32 %v2766, 0.0
        %v3031 = vmax.f32 %v2768, 0.0
        %v3032 = vmax.f32 %v2417, 0.0
        %v3033 = vmax.f32 %v2419, 0.0
        %v3034 = vmax.f32 %v2770, 0.0
        %v3035 = vmax.f32 %v2772, 0.0
        %v3036 = vmax.f32 %v2423, 0.0
        %v3037 = vmax.f32 %v2425, 0.0
        %v3038 = vmax.f32 %v2776, 0.0
        %v3039 = vmax.f32 %v2778, 0.0
        %v3040 = vmax.f32 %v2427, 0.0
        %v3041 = vmax.f32 %v2429, 0.0
        %v3042 = vmax.f32 %v2780, 0.0
        %v3043 = vmax.f32 %v2782, 0.0
        %v3044 = vmax.f32 %v2433, 0.0
        %v3045 = vmax.f32 %v2435, 0.0
        %v3046 = vmax.f32 %v2786, 0.0
        %v3047 = vmax.f32 %v2788, 0.0
        %v3048 = vmax.f32 %v2437, 0.0
        %v3049 = vmax.f32 %v2439, 0.0
        %v3050 = vmax.f32 %v2790, 0.0
        %v3051 = vmax.f32 %v2792, 0.0
        %v3052 = vmax.f32 %v2443, 0.0
        %v3053 = vmax.f32 %v2445, 0.0
        %v3054 = vmax.f32 %v2796, 0.0
        %v3055 = vmax.f32 %v2798, 0.0
        %v3056 = vmax.f32 %v2447, 0.0
        %v3057 = vmax.f32 %v2449, 0.0
        %v3058 = vmax.f32 %v2800, 0.0
        %v3059 = vmax.f32 %v2802, 0.0
        %v3060 = vpack.c.bf16 %v2808, %v2804
        %v3061 = vpack.c.bf16 %v2809, %v2805
        %v3062 = vpack.c.bf16 %v2810, %v2806
        %v3063 = vpack.c.bf16 %v2811, %v2807
        %v3064 = vpack.c.bf16 %v2816, %v2812
        %v3065 = vpack.c.bf16 %v2817, %v2813
        %v3066 = vpack.c.bf16 %v2818, %v2814
        %v3067 = vpack.c.bf16 %v2819, %v2815
        %v3068 = vpack.c.bf16 %v2824, %v2820
        %v3069 = vpack.c.bf16 %v2825, %v2821
        %v3070 = vpack.c.bf16 %v2826, %v2822
        %v3071 = vpack.c.bf16 %v2827, %v2823
        %v3072 = vpack.c.bf16 %v2832, %v2828
        %v3073 = vpack.c.bf16 %v2833, %v2829
        %v3074 = vpack.c.bf16 %v2834, %v2830
        %v3075 = vpack.c.bf16 %v2835, %v2831
        %v3076 = vpack.c.bf16 %v2840, %v2836
        %v3077 = vpack.c.bf16 %v2841, %v2837
        %v3078 = vpack.c.bf16 %v2842, %v2838
        %v3079 = vpack.c.bf16 %v2843, %v2839
        %v3080 = vpack.c.bf16 %v2848, %v2844
        %v3081 = vpack.c.bf16 %v2849, %v2845
        %v3082 = vpack.c.bf16 %v2850, %v2846
        %v3083 = vpack.c.bf16 %v2851, %v2847
        %v3084 = vpack.c.bf16 %v2856, %v2852
        %v3085 = vpack.c.bf16 %v2857, %v2853
        %v3086 = vpack.c.bf16 %v2858, %v2854
        %v3087 = vpack.c.bf16 %v2859, %v2855
        %v3088 = vpack.c.bf16 %v2864, %v2860
        %v3089 = vpack.c.bf16 %v2865, %v2861
        %v3090 = vpack.c.bf16 %v2866, %v2862
        %v3091 = vpack.c.bf16 %v2867, %v2863
        %v3092 = vpack.c.bf16 %v2872, %v2868
        %v3093 = vpack.c.bf16 %v2873, %v2869
        %v3094 = vpack.c.bf16 %v2874, %v2870
        %v3095 = vpack.c.bf16 %v2875, %v2871
        %v3096 = vpack.c.bf16 %v2880, %v2876
        %v3097 = vpack.c.bf16 %v2881, %v2877
        %v3098 = vpack.c.bf16 %v2882, %v2878
        %v3099 = vpack.c.bf16 %v2883, %v2879
        %v3100 = vpack.c.bf16 %v2888, %v2884
        %v3101 = vpack.c.bf16 %v2889, %v2885
        %v3102 = vpack.c.bf16 %v2890, %v2886
        %v3103 = vpack.c.bf16 %v2891, %v2887
        %v3104 = vpack.c.bf16 %v2896, %v2892
        %v3105 = vpack.c.bf16 %v2897, %v2893
        %v3106 = vpack.c.bf16 %v2898, %v2894
        %v3107 = vpack.c.bf16 %v2899, %v2895
        %v3108 = vpack.c.bf16 %v2904, %v2900
        %v3109 = vpack.c.bf16 %v2905, %v2901
        %v3110 = vpack.c.bf16 %v2906, %v2902
        %v3111 = vpack.c.bf16 %v2907, %v2903
        %v3112 = vpack.c.bf16 %v2912, %v2908
        %v3113 = vpack.c.bf16 %v2913, %v2909
        %v3114 = vpack.c.bf16 %v2914, %v2910
        %v3115 = vpack.c.bf16 %v2915, %v2911
        %v3116 = vpack.c.bf16 %v2920, %v2916
        %v3117 = vpack.c.bf16 %v2921, %v2917
        %v3118 = vpack.c.bf16 %v2922, %v2918
        %v3119 = vpack.c.bf16 %v2923, %v2919
        %v3120 = vpack.c.bf16 %v2928, %v2924
        %v3121 = vpack.c.bf16 %v2929, %v2925
        %v3122 = vpack.c.bf16 %v2930, %v2926
        %v3123 = vpack.c.bf16 %v2931, %v2927
        %v3124 = vpack.c.bf16 %v2936, %v2932
        %v3125 = vpack.c.bf16 %v2937, %v2933
        %v3126 = vpack.c.bf16 %v2938, %v2934
        %v3127 = vpack.c.bf16 %v2939, %v2935
        %v3128 = vpack.c.bf16 %v2944, %v2940
        %v3129 = vpack.c.bf16 %v2945, %v2941
        %v3130 = vpack.c.bf16 %v2946, %v2942
        %v3131 = vpack.c.bf16 %v2947, %v2943
        %v3132 = vpack.c.bf16 %v2952, %v2948
        %v3133 = vpack.c.bf16 %v2953, %v2949
        %v3134 = vpack.c.bf16 %v2954, %v2950
        %v3135 = vpack.c.bf16 %v2955, %v2951
        %v3136 = vpack.c.bf16 %v2960, %v2956
        %v3137 = vpack.c.bf16 %v2961, %v2957
        %v3138 = vpack.c.bf16 %v2962, %v2958
        %v3139 = vpack.c.bf16 %v2963, %v2959
        %v3140 = vpack.c.bf16 %v2968, %v2964
        %v3141 = vpack.c.bf16 %v2969, %v2965
        %v3142 = vpack.c.bf16 %v2970, %v2966
        %v3143 = vpack.c.bf16 %v2971, %v2967
        %v3144 = vpack.c.bf16 %v2976, %v2972
        %v3145 = vpack.c.bf16 %v2977, %v2973
        %v3146 = vpack.c.bf16 %v2978, %v2974
        %v3147 = vpack.c.bf16 %v2979, %v2975
        %v3148 = vpack.c.bf16 %v2984, %v2980
        %v3149 = vpack.c.bf16 %v2985, %v2981
        %v3150 = vpack.c.bf16 %v2986, %v2982
        %v3151 = vpack.c.bf16 %v2987, %v2983
        %v3152 = vpack.c.bf16 %v2992, %v2988
        %v3153 = vpack.c.bf16 %v2993, %v2989
        %v3154 = vpack.c.bf16 %v2994, %v2990
        %v3155 = vpack.c.bf16 %v2995, %v2991
        %v3156 = vpack.c.bf16 %v3000, %v2996
        %v3157 = vpack.c.bf16 %v3001, %v2997
        %v3158 = vpack.c.bf16 %v3002, %v2998
        %v3159 = vpack.c.bf16 %v3003, %v2999
        %v3160 = vpack.c.bf16 %v3008, %v3004
        %v3161 = vpack.c.bf16 %v3009, %v3005
        %v3162 = vpack.c.bf16 %v3010, %v3006
        %v3163 = vpack.c.bf16 %v3011, %v3007
        %v3164 = vpack.c.bf16 %v3016, %v3012
        %v3165 = vpack.c.bf16 %v3017, %v3013
        %v3166 = vpack.c.bf16 %v3018, %v3014
        %v3167 = vpack.c.bf16 %v3019, %v3015
        %v3168 = vpack.c.bf16 %v3024, %v3020
        %v3169 = vpack.c.bf16 %v3025, %v3021
        %v3170 = vpack.c.bf16 %v3026, %v3022
        %v3171 = vpack.c.bf16 %v3027, %v3023
        %v3172 = vpack.c.bf16 %v3032, %v3028
        %v3173 = vpack.c.bf16 %v3033, %v3029
        %v3174 = vpack.c.bf16 %v3034, %v3030
        %v3175 = vpack.c.bf16 %v3035, %v3031
        %v3176 = vpack.c.bf16 %v3040, %v3036
        %v3177 = vpack.c.bf16 %v3041, %v3037
        %v3178 = vpack.c.bf16 %v3042, %v3038
        %v3179 = vpack.c.bf16 %v3043, %v3039
        %v3180 = vpack.c.bf16 %v3048, %v3044
        %v3181 = vpack.c.bf16 %v3049, %v3045
        %v3182 = vpack.c.bf16 %v3050, %v3046
        %v3183 = vpack.c.bf16 %v3051, %v3047
        %v3184 = vpack.c.bf16 %v3056, %v3052
        %v3185 = vpack.c.bf16 %v3057, %v3053
        %v3186 = vpack.c.bf16 %v3058, %v3054
        %v3187 = vpack.c.bf16 %v3059, %v3055
        %v3188 = vld [vmem:[#allocation8] sm:$0xff]
        %v3189 = vld [vmem:[#allocation8 + $0x8] sm:$0xff]
        %v3190 = vld [vmem:[#allocation8 + $0x10] sm:$0xff]
        %v3191 = vld [vmem:[#allocation8 + $0x18] sm:$0xff]
        %v3192 = vld [vmem:[#allocation8 + $0x20] sm:$0xff]
        %v3193 = vld [vmem:[#allocation8 + $0x28] sm:$0xff]
        %v3194 = vld [vmem:[#allocation8 + $0x30] sm:$0xff]
        %v3195 = vld [vmem:[#allocation8 + $0x38] sm:$0xff]
        %v3196 = vld [vmem:[#allocation8 + $0x40] sm:$0xff]
        %v3197 = vld [vmem:[#allocation8 + $0x48] sm:$0xff]
        %v3198 = vld [vmem:[#allocation8 + $0x50] sm:$0xff]
        %v3199 = vld [vmem:[#allocation8 + $0x58] sm:$0xff]
        %v3200 = vld [vmem:[#allocation8 + $0x60] sm:$0xff]
        %v3201 = vld [vmem:[#allocation8 + $0x68] sm:$0xff]
        %v3202 = vld [vmem:[#allocation8 + $0x70] sm:$0xff]
        %v3203 = vld [vmem:[#allocation8 + $0x78] sm:$0xff]
        %v3204 = vld [vmem:[#allocation8 + $0x80] sm:$0xff]
        %v3205 = vld [vmem:[#allocation8 + $0x88] sm:$0xff]
        %v3206 = vld [vmem:[#allocation8 + $0x90] sm:$0xff]
        %v3207 = vld [vmem:[#allocation8 + $0x98] sm:$0xff]
        %v3208 = vld [vmem:[#allocation8 + $0xa0] sm:$0xff]
        %v3209 = vld [vmem:[#allocation8 + $0xa8] sm:$0xff]
        %v3210 = vld [vmem:[#allocation8 + $0xb0] sm:$0xff]
        %v3211 = vld [vmem:[#allocation8 + $0xb8] sm:$0xff]
        %v3212 = vld [vmem:[#allocation8 + $0xc0] sm:$0xff]
        %v3213 = vld [vmem:[#allocation8 + $0xc8] sm:$0xff]
        %v3214 = vld [vmem:[#allocation8 + $0xd0] sm:$0xff]
        %v3215 = vld [vmem:[#allocation8 + $0xd8] sm:$0xff]
        %v3216 = vld [vmem:[#allocation8 + $0xe0] sm:$0xff]
        %v3217 = vld [vmem:[#allocation8 + $0xe8] sm:$0xff]
        %v3218 = vld [vmem:[#allocation8 + $0xf0] sm:$0xff]
        %v3219 = vld [vmem:[#allocation8 + $0xf8] sm:$0xff]
        %v3220 = vld [vmem:[#allocation8 + $0x100] sm:$0xff]
        %v3221 = vld [vmem:[#allocation8 + $0x108] sm:$0xff]
        %v3222 = vld [vmem:[#allocation8 + $0x110] sm:$0xff]
        %v3223 = vld [vmem:[#allocation8 + $0x118] sm:$0xff]
        %v3224 = vld [vmem:[#allocation8 + $0x120] sm:$0xff]
        %v3225 = vld [vmem:[#allocation8 + $0x128] sm:$0xff]
        %v3226 = vld [vmem:[#allocation8 + $0x130] sm:$0xff]
        %v3227 = vld [vmem:[#allocation8 + $0x138] sm:$0xff]
        %v3228 = vld [vmem:[#allocation8 + $0x140] sm:$0xff]
        %v3229 = vld [vmem:[#allocation8 + $0x148] sm:$0xff]
        %v3230 = vld [vmem:[#allocation8 + $0x150] sm:$0xff]
        %v3231 = vld [vmem:[#allocation8 + $0x158] sm:$0xff]
        %v3232 = vld [vmem:[#allocation8 + $0x160] sm:$0xff]
        %v3233 = vld [vmem:[#allocation8 + $0x168] sm:$0xff]
        %v3234 = vld [vmem:[#allocation8 + $0x170] sm:$0xff]
        %v3235 = vld [vmem:[#allocation8 + $0x178] sm:$0xff]
        %v3236 = vld [vmem:[#allocation8 + $0x180] sm:$0xff]
        %v3237 = vld [vmem:[#allocation8 + $0x188] sm:$0xff]
        %v3238 = vld [vmem:[#allocation8 + $0x190] sm:$0xff]
        %v3239 = vld [vmem:[#allocation8 + $0x198] sm:$0xff]
        %v3240 = vld [vmem:[#allocation8 + $0x1a0] sm:$0xff]
        %v3241 = vld [vmem:[#allocation8 + $0x1a8] sm:$0xff]
        %v3242 = vld [vmem:[#allocation8 + $0x1b0] sm:$0xff]
        %v3243 = vld [vmem:[#allocation8 + $0x1b8] sm:$0xff]
        %v3244 = vld [vmem:[#allocation8 + $0x1c0] sm:$0xff]
        %v3245 = vld [vmem:[#allocation8 + $0x1c8] sm:$0xff]
        %v3246 = vld [vmem:[#allocation8 + $0x1d0] sm:$0xff]
        %v3247 = vld [vmem:[#allocation8 + $0x1d8] sm:$0xff]
        %v3248 = vld [vmem:[#allocation8 + $0x1e0] sm:$0xff]
        %v3249 = vld [vmem:[#allocation8 + $0x1e8] sm:$0xff]
        %v3250 = vld [vmem:[#allocation8 + $0x1f0] sm:$0xff]
        %v3251 = vld [vmem:[#allocation8 + $0x1f8] sm:$0xff]
        %v3252 = vld [vmem:[#allocation8 + $0x200] sm:$0xff]
        %v3253 = vld [vmem:[#allocation8 + $0x208] sm:$0xff]
        %v3254 = vld [vmem:[#allocation8 + $0x210] sm:$0xff]
        %v3255 = vld [vmem:[#allocation8 + $0x218] sm:$0xff]
        %v3256 = vld [vmem:[#allocation8 + $0x220] sm:$0xff]
        %v3257 = vld [vmem:[#allocation8 + $0x228] sm:$0xff]
        %v3258 = vld [vmem:[#allocation8 + $0x230] sm:$0xff]
        %v3259 = vld [vmem:[#allocation8 + $0x238] sm:$0xff]
        %v3260 = vld [vmem:[#allocation8 + $0x240] sm:$0xff]
        %v3261 = vld [vmem:[#allocation8 + $0x248] sm:$0xff]
        %v3262 = vld [vmem:[#allocation8 + $0x250] sm:$0xff]
        %v3263 = vld [vmem:[#allocation8 + $0x258] sm:$0xff]
        %v3264 = vld [vmem:[#allocation8 + $0x260] sm:$0xff]
        %v3265 = vld [vmem:[#allocation8 + $0x268] sm:$0xff]
        %v3266 = vld [vmem:[#allocation8 + $0x270] sm:$0xff]
        %v3267 = vld [vmem:[#allocation8 + $0x278] sm:$0xff]
        %v3268 = vld [vmem:[#allocation8 + $0x280] sm:$0xff]
        %v3269 = vld [vmem:[#allocation8 + $0x288] sm:$0xff]
        %v3270 = vld [vmem:[#allocation8 + $0x290] sm:$0xff]
        %v3271 = vld [vmem:[#allocation8 + $0x298] sm:$0xff]
        %v3272 = vld [vmem:[#allocation8 + $0x2a0] sm:$0xff]
        %v3273 = vld [vmem:[#allocation8 + $0x2a8] sm:$0xff]
        %v3274 = vld [vmem:[#allocation8 + $0x2b0] sm:$0xff]
        %v3275 = vld [vmem:[#allocation8 + $0x2b8] sm:$0xff]
        %v3276 = vld [vmem:[#allocation8 + $0x2c0] sm:$0xff]
        %v3277 = vld [vmem:[#allocation8 + $0x2c8] sm:$0xff]
        %v3278 = vld [vmem:[#allocation8 + $0x2d0] sm:$0xff]
        %v3279 = vld [vmem:[#allocation8 + $0x2d8] sm:$0xff]
        %v3280 = vld [vmem:[#allocation8 + $0x2e0] sm:$0xff]
        %v3281 = vld [vmem:[#allocation8 + $0x2e8] sm:$0xff]
        %v3282 = vld [vmem:[#allocation8 + $0x2f0] sm:$0xff]
        %v3283 = vld [vmem:[#allocation8 + $0x2f8] sm:$0xff]
        %v3284 = vld [vmem:[#allocation8 + $0x300] sm:$0xff]
        %v3285 = vld [vmem:[#allocation8 + $0x308] sm:$0xff]
        %v3286 = vld [vmem:[#allocation8 + $0x310] sm:$0xff]
        %v3287 = vld [vmem:[#allocation8 + $0x318] sm:$0xff]
        %v3288 = vld [vmem:[#allocation8 + $0x320] sm:$0xff]
        %v3289 = vld [vmem:[#allocation8 + $0x328] sm:$0xff]
        %v3290 = vld [vmem:[#allocation8 + $0x330] sm:$0xff]
        %v3291 = vld [vmem:[#allocation8 + $0x338] sm:$0xff]
        %v3292 = vld [vmem:[#allocation8 + $0x340] sm:$0xff]
        %v3293 = vld [vmem:[#allocation8 + $0x348] sm:$0xff]
        %v3294 = vld [vmem:[#allocation8 + $0x350] sm:$0xff]
        %v3295 = vld [vmem:[#allocation8 + $0x358] sm:$0xff]
        %v3296 = vld [vmem:[#allocation8 + $0x360] sm:$0xff]
        %v3297 = vld [vmem:[#allocation8 + $0x368] sm:$0xff]
        %v3298 = vld [vmem:[#allocation8 + $0x370] sm:$0xff]
        %v3299 = vld [vmem:[#allocation8 + $0x378] sm:$0xff]
        %v3300 = vld [vmem:[#allocation8 + $0x380] sm:$0xff]
        %v3301 = vld [vmem:[#allocation8 + $0x388] sm:$0xff]
        %v3302 = vld [vmem:[#allocation8 + $0x390] sm:$0xff]
        %v3303 = vld [vmem:[#allocation8 + $0x398] sm:$0xff]
        %v3304 = vld [vmem:[#allocation8 + $0x3a0] sm:$0xff]
        %v3305 = vld [vmem:[#allocation8 + $0x3a8] sm:$0xff]
        %v3306 = vld [vmem:[#allocation8 + $0x3b0] sm:$0xff]
        %v3307 = vld [vmem:[#allocation8 + $0x3b8] sm:$0xff]
        %v3308 = vld [vmem:[#allocation8 + $0x3c0] sm:$0xff]
        %v3309 = vld [vmem:[#allocation8 + $0x3c8] sm:$0xff]
        %v3310 = vld [vmem:[#allocation8 + $0x3d0] sm:$0xff]
        %v3311 = vld [vmem:[#allocation8 + $0x3d8] sm:$0xff]
        %v3312 = vld [vmem:[#allocation8 + $0x3e0] sm:$0xff]
        %v3313 = vld [vmem:[#allocation8 + $0x3e8] sm:$0xff]
        %v3314 = vld [vmem:[#allocation8 + $0x3f0] sm:$0xff]
        %v3315 = vld [vmem:[#allocation8 + $0x3f8] sm:$0xff]
        %v3316 = vld [vmem:[%s8] sm:$0xf]
        %v3318 = vlaneseq
        %v3319 = vshrl.u32 %v3318, 7
        %v3320 = vsub.s32 0, %v3319
        %v3321 = vrot.slane %v3316, %v3320
        %v3322 = vlaneseq
        %v3323 = vshrl.u32 %v3322, 7
        %v3324 = vsub.s32 1, %v3323
        %v3325 = vrot.slane %v3316, %v3324
        %v3326 = vlaneseq
        %v3327 = vshrl.u32 %v3326, 7
        %v3328 = vsub.s32 2, %v3327
        %v3329 = vrot.slane %v3316, %v3328
        %v3330 = vlaneseq
        %v3331 = vshrl.u32 %v3330, 7
        %v3332 = vsub.s32 3, %v3331
        %v3333 = vrot.slane %v3316, %v3332
        %v3466 = vunpack.c.l.b16 %v3188
        %v3467 = vunpack.c.h.b16 %v3188
        %v3468 = vunpack.c.l.b16 %v3189
        %v3469 = vunpack.c.h.b16 %v3189
        %v3470 = vunpack.c.l.b16 %v3190
        %v3471 = vunpack.c.h.b16 %v3190
        %v3472 = vunpack.c.l.b16 %v3191
        %v3473 = vunpack.c.h.b16 %v3191
        %v3474 = vunpack.c.l.b16 %v3192
        %v3475 = vunpack.c.h.b16 %v3192
        %v3476 = vunpack.c.l.b16 %v3193
        %v3477 = vunpack.c.h.b16 %v3193
        %v3478 = vunpack.c.l.b16 %v3194
        %v3479 = vunpack.c.h.b16 %v3194
        %v3480 = vunpack.c.l.b16 %v3195
        %v3481 = vunpack.c.h.b16 %v3195
        %v3482 = vunpack.c.l.b16 %v3196
        %v3483 = vunpack.c.h.b16 %v3196
        %v3484 = vunpack.c.l.b16 %v3197
        %v3485 = vunpack.c.h.b16 %v3197
        %v3486 = vunpack.c.l.b16 %v3198
        %v3487 = vunpack.c.h.b16 %v3198
        %v3488 = vunpack.c.l.b16 %v3199
        %v3489 = vunpack.c.h.b16 %v3199
        %v3490 = vunpack.c.l.b16 %v3200
        %v3491 = vunpack.c.h.b16 %v3200
        %v3492 = vunpack.c.l.b16 %v3201
        %v3493 = vunpack.c.h.b16 %v3201
        %v3494 = vunpack.c.l.b16 %v3202
        %v3495 = vunpack.c.h.b16 %v3202
        %v3496 = vunpack.c.l.b16 %v3203
        %v3497 = vunpack.c.h.b16 %v3203
        %v3498 = vunpack.c.l.b16 %v3204
        %v3499 = vunpack.c.h.b16 %v3204
        %v3500 = vunpack.c.l.b16 %v3205
        %v3501 = vunpack.c.h.b16 %v3205
        %v3502 = vunpack.c.l.b16 %v3206
        %v3503 = vunpack.c.h.b16 %v3206
        %v3504 = vunpack.c.l.b16 %v3207
        %v3505 = vunpack.c.h.b16 %v3207
        %v3506 = vunpack.c.l.b16 %v3208
        %v3507 = vunpack.c.h.b16 %v3208
        %v3508 = vunpack.c.l.b16 %v3209
        %v3509 = vunpack.c.h.b16 %v3209
        %v3510 = vunpack.c.l.b16 %v3210
        %v3511 = vunpack.c.h.b16 %v3210
        %v3512 = vunpack.c.l.b16 %v3211
        %v3513 = vunpack.c.h.b16 %v3211
        %v3514 = vunpack.c.l.b16 %v3212
        %v3515 = vunpack.c.h.b16 %v3212
        %v3516 = vunpack.c.l.b16 %v3213
        %v3517 = vunpack.c.h.b16 %v3213
        %v3518 = vunpack.c.l.b16 %v3214
        %v3519 = vunpack.c.h.b16 %v3214
        %v3520 = vunpack.c.l.b16 %v3215
        %v3521 = vunpack.c.h.b16 %v3215
        %v3522 = vunpack.c.l.b16 %v3216
        %v3523 = vunpack.c.h.b16 %v3216
        %v3524 = vunpack.c.l.b16 %v3217
        %v3525 = vunpack.c.h.b16 %v3217
        %v3526 = vunpack.c.l.b16 %v3218
        %v3527 = vunpack.c.h.b16 %v3218
        %v3528 = vunpack.c.l.b16 %v3219
        %v3529 = vunpack.c.h.b16 %v3219
        %v3530 = vunpack.c.l.b16 %v3220
        %v3531 = vunpack.c.h.b16 %v3220
        %v3532 = vunpack.c.l.b16 %v3221
        %v3533 = vunpack.c.h.b16 %v3221
        %v3534 = vunpack.c.l.b16 %v3222
        %v3535 = vunpack.c.h.b16 %v3222
        %v3536 = vunpack.c.l.b16 %v3223
        %v3537 = vunpack.c.h.b16 %v3223
        %v3538 = vunpack.c.l.b16 %v3224
        %v3539 = vunpack.c.h.b16 %v3224
        %v3540 = vunpack.c.l.b16 %v3225
        %v3541 = vunpack.c.h.b16 %v3225
        %v3542 = vunpack.c.l.b16 %v3226
        %v3543 = vunpack.c.h.b16 %v3226
        %v3544 = vunpack.c.l.b16 %v3227
        %v3545 = vunpack.c.h.b16 %v3227
        %v3546 = vunpack.c.l.b16 %v3228
        %v3547 = vunpack.c.h.b16 %v3228
        %v3548 = vunpack.c.l.b16 %v3229
        %v3549 = vunpack.c.h.b16 %v3229
        %v3550 = vunpack.c.l.b16 %v3230
        %v3551 = vunpack.c.h.b16 %v3230
        %v3552 = vunpack.c.l.b16 %v3231
        %v3553 = vunpack.c.h.b16 %v3231
        %v3554 = vunpack.c.l.b16 %v3232
        %v3555 = vunpack.c.h.b16 %v3232
        %v3556 = vunpack.c.l.b16 %v3233
        %v3557 = vunpack.c.h.b16 %v3233
        %v3558 = vunpack.c.l.b16 %v3234
        %v3559 = vunpack.c.h.b16 %v3234
        %v3560 = vunpack.c.l.b16 %v3235
        %v3561 = vunpack.c.h.b16 %v3235
        %v3562 = vunpack.c.l.b16 %v3236
        %v3563 = vunpack.c.h.b16 %v3236
        %v3564 = vunpack.c.l.b16 %v3237
        %v3565 = vunpack.c.h.b16 %v3237
        %v3566 = vunpack.c.l.b16 %v3238
        %v3567 = vunpack.c.h.b16 %v3238
        %v3568 = vunpack.c.l.b16 %v3239
        %v3569 = vunpack.c.h.b16 %v3239
        %v3570 = vunpack.c.l.b16 %v3240
        %v3571 = vunpack.c.h.b16 %v3240
        %v3572 = vunpack.c.l.b16 %v3241
        %v3573 = vunpack.c.h.b16 %v3241
        %v3574 = vunpack.c.l.b16 %v3242
        %v3575 = vunpack.c.h.b16 %v3242
        %v3576 = vunpack.c.l.b16 %v3243
        %v3577 = vunpack.c.h.b16 %v3243
        %v3578 = vunpack.c.l.b16 %v3244
        %v3579 = vunpack.c.h.b16 %v3244
        %v3580 = vunpack.c.l.b16 %v3245
        %v3581 = vunpack.c.h.b16 %v3245
        %v3582 = vunpack.c.l.b16 %v3246
        %v3583 = vunpack.c.h.b16 %v3246
        %v3584 = vunpack.c.l.b16 %v3247
        %v3585 = vunpack.c.h.b16 %v3247
        %v3586 = vunpack.c.l.b16 %v3248
        %v3587 = vunpack.c.h.b16 %v3248
        %v3588 = vunpack.c.l.b16 %v3249
        %v3589 = vunpack.c.h.b16 %v3249
        %v3590 = vunpack.c.l.b16 %v3250
        %v3591 = vunpack.c.h.b16 %v3250
        %v3592 = vunpack.c.l.b16 %v3251
        %v3593 = vunpack.c.h.b16 %v3251
        %v3594 = vunpack.c.l.b16 %v3252
        %v3595 = vunpack.c.h.b16 %v3252
        %v3596 = vunpack.c.l.b16 %v3253
        %v3597 = vunpack.c.h.b16 %v3253
        %v3598 = vunpack.c.l.b16 %v3254
        %v3599 = vunpack.c.h.b16 %v3254
        %v3600 = vunpack.c.l.b16 %v3255
        %v3601 = vunpack.c.h.b16 %v3255
        %v3602 = vunpack.c.l.b16 %v3256
        %v3603 = vunpack.c.h.b16 %v3256
        %v3604 = vunpack.c.l.b16 %v3257
        %v3605 = vunpack.c.h.b16 %v3257
        %v3606 = vunpack.c.l.b16 %v3258
        %v3607 = vunpack.c.h.b16 %v3258
        %v3608 = vunpack.c.l.b16 %v3259
        %v3609 = vunpack.c.h.b16 %v3259
        %v3610 = vunpack.c.l.b16 %v3260
        %v3611 = vunpack.c.h.b16 %v3260
        %v3612 = vunpack.c.l.b16 %v3261
        %v3613 = vunpack.c.h.b16 %v3261
        %v3614 = vunpack.c.l.b16 %v3262
        %v3615 = vunpack.c.h.b16 %v3262
        %v3616 = vunpack.c.l.b16 %v3263
        %v3617 = vunpack.c.h.b16 %v3263
        %v3618 = vunpack.c.l.b16 %v3264
        %v3619 = vunpack.c.h.b16 %v3264
        %v3620 = vunpack.c.l.b16 %v3265
        %v3621 = vunpack.c.h.b16 %v3265
        %v3622 = vunpack.c.l.b16 %v3266
        %v3623 = vunpack.c.h.b16 %v3266
        %v3624 = vunpack.c.l.b16 %v3267
        %v3625 = vunpack.c.h.b16 %v3267
        %v3626 = vunpack.c.l.b16 %v3268
        %v3627 = vunpack.c.h.b16 %v3268
        %v3628 = vunpack.c.l.b16 %v3269
        %v3629 = vunpack.c.h.b16 %v3269
        %v3630 = vunpack.c.l.b16 %v3270
        %v3631 = vunpack.c.h.b16 %v3270
        %v3632 = vunpack.c.l.b16 %v3271
        %v3633 = vunpack.c.h.b16 %v3271
        %v3634 = vunpack.c.l.b16 %v3272
        %v3635 = vunpack.c.h.b16 %v3272
        %v3636 = vunpack.c.l.b16 %v3273
        %v3637 = vunpack.c.h.b16 %v3273
        %v3638 = vunpack.c.l.b16 %v3274
        %v3639 = vunpack.c.h.b16 %v3274
        %v3640 = vunpack.c.l.b16 %v3275
        %v3641 = vunpack.c.h.b16 %v3275
        %v3642 = vunpack.c.l.b16 %v3276
        %v3643 = vunpack.c.h.b16 %v3276
        %v3644 = vunpack.c.l.b16 %v3277
        %v3645 = vunpack.c.h.b16 %v3277
        %v3646 = vunpack.c.l.b16 %v3278
        %v3647 = vunpack.c.h.b16 %v3278
        %v3648 = vunpack.c.l.b16 %v3279
        %v3649 = vunpack.c.h.b16 %v3279
        %v3650 = vunpack.c.l.b16 %v3280
        %v3651 = vunpack.c.h.b16 %v3280
        %v3652 = vunpack.c.l.b16 %v3281
        %v3653 = vunpack.c.h.b16 %v3281
        %v3654 = vunpack.c.l.b16 %v3282
        %v3655 = vunpack.c.h.b16 %v3282
        %v3656 = vunpack.c.l.b16 %v3283
        %v3657 = vunpack.c.h.b16 %v3283
        %v3658 = vunpack.c.l.b16 %v3284
        %v3659 = vunpack.c.h.b16 %v3284
        %v3660 = vunpack.c.l.b16 %v3285
        %v3661 = vunpack.c.h.b16 %v3285
        %v3662 = vunpack.c.l.b16 %v3286
        %v3663 = vunpack.c.h.b16 %v3286
        %v3664 = vunpack.c.l.b16 %v3287
        %v3665 = vunpack.c.h.b16 %v3287
        %v3666 = vunpack.c.l.b16 %v3288
        %v3667 = vunpack.c.h.b16 %v3288
        %v3668 = vunpack.c.l.b16 %v3289
        %v3669 = vunpack.c.h.b16 %v3289
        %v3670 = vunpack.c.l.b16 %v3290
        %v3671 = vunpack.c.h.b16 %v3290
        %v3672 = vunpack.c.l.b16 %v3291
        %v3673 = vunpack.c.h.b16 %v3291
        %v3674 = vunpack.c.l.b16 %v3292
        %v3675 = vunpack.c.h.b16 %v3292
        %v3676 = vunpack.c.l.b16 %v3293
        %v3677 = vunpack.c.h.b16 %v3293
        %v3678 = vunpack.c.l.b16 %v3294
        %v3679 = vunpack.c.h.b16 %v3294
        %v3680 = vunpack.c.l.b16 %v3295
        %v3681 = vunpack.c.h.b16 %v3295
        %v3682 = vunpack.c.l.b16 %v3296
        %v3683 = vunpack.c.h.b16 %v3296
        %v3684 = vunpack.c.l.b16 %v3297
        %v3685 = vunpack.c.h.b16 %v3297
        %v3686 = vunpack.c.l.b16 %v3298
        %v3687 = vunpack.c.h.b16 %v3298
        %v3688 = vunpack.c.l.b16 %v3299
        %v3689 = vunpack.c.h.b16 %v3299
        %v3690 = vunpack.c.l.b16 %v3300
        %v3691 = vunpack.c.h.b16 %v3300
        %v3692 = vunpack.c.l.b16 %v3301
        %v3693 = vunpack.c.h.b16 %v3301
        %v3694 = vunpack.c.l.b16 %v3302
        %v3695 = vunpack.c.h.b16 %v3302
        %v3696 = vunpack.c.l.b16 %v3303
        %v3697 = vunpack.c.h.b16 %v3303
        %v3698 = vunpack.c.l.b16 %v3304
        %v3699 = vunpack.c.h.b16 %v3304
        %v3700 = vunpack.c.l.b16 %v3305
        %v3701 = vunpack.c.h.b16 %v3305
        %v3702 = vunpack.c.l.b16 %v3306
        %v3703 = vunpack.c.h.b16 %v3306
        %v3704 = vunpack.c.l.b16 %v3307
        %v3705 = vunpack.c.h.b16 %v3307
        %v3706 = vunpack.c.l.b16 %v3308
        %v3707 = vunpack.c.h.b16 %v3308
        %v3708 = vunpack.c.l.b16 %v3309
        %v3709 = vunpack.c.h.b16 %v3309
        %v3710 = vunpack.c.l.b16 %v3310
        %v3711 = vunpack.c.h.b16 %v3310
        %v3712 = vunpack.c.l.b16 %v3311
        %v3713 = vunpack.c.h.b16 %v3311
        %v3714 = vunpack.c.l.b16 %v3312
        %v3715 = vunpack.c.h.b16 %v3312
        %v3716 = vunpack.c.l.b16 %v3313
        %v3717 = vunpack.c.h.b16 %v3313
        %v3718 = vunpack.c.l.b16 %v3314
        %v3719 = vunpack.c.h.b16 %v3314
        %v3720 = vunpack.c.l.b16 %v3315
        %v3721 = vunpack.c.h.b16 %v3315
        %v3722 = vpack.c.b16 %v3470, %v3466
        %v3723 = vpack.c.b16 %v3471, %v3467
        %v3724 = vpack.c.b16 %v3472, %v3468
        %v3725 = vpack.c.b16 %v3473, %v3469
        %v3726 = vpack.c.b16 %v3478, %v3474
        %v3727 = vpack.c.b16 %v3479, %v3475
        %v3728 = vpack.c.b16 %v3480, %v3476
        %v3729 = vpack.c.b16 %v3481, %v3477
        %v3730 = vpack.c.b16 %v3486, %v3482
        %v3731 = vpack.c.b16 %v3487, %v3483
        %v3732 = vpack.c.b16 %v3488, %v3484
        %v3733 = vpack.c.b16 %v3489, %v3485
        %v3734 = vpack.c.b16 %v3494, %v3490
        %v3735 = vpack.c.b16 %v3495, %v3491
        %v3736 = vpack.c.b16 %v3496, %v3492
        %v3737 = vpack.c.b16 %v3497, %v3493
        %v3738 = vpack.c.b16 %v3502, %v3498
        %v3739 = vpack.c.b16 %v3503, %v3499
        %v3740 = vpack.c.b16 %v3504, %v3500
        %v3741 = vpack.c.b16 %v3505, %v3501
        %v3742 = vpack.c.b16 %v3510, %v3506
        %v3743 = vpack.c.b16 %v3511, %v3507
        %v3744 = vpack.c.b16 %v3512, %v3508
        %v3745 = vpack.c.b16 %v3513, %v3509
        %v3746 = vpack.c.b16 %v3518, %v3514
        %v3747 = vpack.c.b16 %v3519, %v3515
        %v3748 = vpack.c.b16 %v3520, %v3516
        %v3749 = vpack.c.b16 %v3521, %v3517
        %v3750 = vpack.c.b16 %v3526, %v3522
        %v3751 = vpack.c.b16 %v3527, %v3523
        %v3752 = vpack.c.b16 %v3528, %v3524
        %v3753 = vpack.c.b16 %v3529, %v3525
        %v3754 = vpack.c.b16 %v3534, %v3530
        %v3755 = vpack.c.b16 %v3535, %v3531
        %v3756 = vpack.c.b16 %v3536, %v3532
        %v3757 = vpack.c.b16 %v3537, %v3533
        %v3758 = vpack.c.b16 %v3542, %v3538
        %v3759 = vpack.c.b16 %v3543, %v3539
        %v3760 = vpack.c.b16 %v3544, %v3540
        %v3761 = vpack.c.b16 %v3545, %v3541
        %v3762 = vpack.c.b16 %v3550, %v3546
        %v3763 = vpack.c.b16 %v3551, %v3547
        %v3764 = vpack.c.b16 %v3552, %v3548
        %v3765 = vpack.c.b16 %v3553, %v3549
        %v3766 = vpack.c.b16 %v3558, %v3554
        %v3767 = vpack.c.b16 %v3559, %v3555
        %v3768 = vpack.c.b16 %v3560, %v3556
        %v3769 = vpack.c.b16 %v3561, %v3557
        %v3770 = vpack.c.b16 %v3566, %v3562
        %v3771 = vpack.c.b16 %v3567, %v3563
        %v3772 = vpack.c.b16 %v3568, %v3564
        %v3773 = vpack.c.b16 %v3569, %v3565
        %v3774 = vpack.c.b16 %v3574, %v3570
        %v3775 = vpack.c.b16 %v3575, %v3571
        %v3776 = vpack.c.b16 %v3576, %v3572
        %v3777 = vpack.c.b16 %v3577, %v3573
        %v3778 = vpack.c.b16 %v3582, %v3578
        %v3779 = vpack.c.b16 %v3583, %v3579
        %v3780 = vpack.c.b16 %v3584, %v3580
        %v3781 = vpack.c.b16 %v3585, %v3581
        %v3782 = vpack.c.b16 %v3590, %v3586
        %v3783 = vpack.c.b16 %v3591, %v3587
        %v3784 = vpack.c.b16 %v3592, %v3588
        %v3785 = vpack.c.b16 %v3593, %v3589
        %v3786 = vpack.c.b16 %v3598, %v3594
        %v3787 = vpack.c.b16 %v3599, %v3595
        %v3788 = vpack.c.b16 %v3600, %v3596
        %v3789 = vpack.c.b16 %v3601, %v3597
        %v3790 = vpack.c.b16 %v3606, %v3602
        %v3791 = vpack.c.b16 %v3607, %v3603
        %v3792 = vpack.c.b16 %v3608, %v3604
        %v3793 = vpack.c.b16 %v3609, %v3605
        %v3794 = vpack.c.b16 %v3614, %v3610
        %v3795 = vpack.c.b16 %v3615, %v3611
        %v3796 = vpack.c.b16 %v3616, %v3612
        %v3797 = vpack.c.b16 %v3617, %v3613
        %v3798 = vpack.c.b16 %v3622, %v3618
        %v3799 = vpack.c.b16 %v3623, %v3619
        %v3800 = vpack.c.b16 %v3624, %v3620
        %v3801 = vpack.c.b16 %v3625, %v3621
        %v3802 = vpack.c.b16 %v3630, %v3626
        %v3803 = vpack.c.b16 %v3631, %v3627
        %v3804 = vpack.c.b16 %v3632, %v3628
        %v3805 = vpack.c.b16 %v3633, %v3629
        %v3806 = vpack.c.b16 %v3638, %v3634
        %v3807 = vpack.c.b16 %v3639, %v3635
        %v3808 = vpack.c.b16 %v3640, %v3636
        %v3809 = vpack.c.b16 %v3641, %v3637
        %v3810 = vpack.c.b16 %v3646, %v3642
        %v3811 = vpack.c.b16 %v3647, %v3643
        %v3812 = vpack.c.b16 %v3648, %v3644
        %v3813 = vpack.c.b16 %v3649, %v3645
        %v3814 = vpack.c.b16 %v3654, %v3650
        %v3815 = vpack.c.b16 %v3655, %v3651
        %v3816 = vpack.c.b16 %v3656, %v3652
        %v3817 = vpack.c.b16 %v3657, %v3653
        %v3818 = vpack.c.b16 %v3662, %v3658
        %v3819 = vpack.c.b16 %v3663, %v3659
        %v3820 = vpack.c.b16 %v3664, %v3660
        %v3821 = vpack.c.b16 %v3665, %v3661
        %v3822 = vpack.c.b16 %v3670, %v3666
        %v3823 = vpack.c.b16 %v3671, %v3667
        %v3824 = vpack.c.b16 %v3672, %v3668
        %v3825 = vpack.c.b16 %v3673, %v3669
        %v3826 = vpack.c.b16 %v3678, %v3674
        %v3827 = vpack.c.b16 %v3679, %v3675
        %v3828 = vpack.c.b16 %v3680, %v3676
        %v3829 = vpack.c.b16 %v3681, %v3677
        %v3830 = vpack.c.b16 %v3686, %v3682
        %v3831 = vpack.c.b16 %v3687, %v3683
        %v3832 = vpack.c.b16 %v3688, %v3684
        %v3833 = vpack.c.b16 %v3689, %v3685
        %v3834 = vpack.c.b16 %v3694, %v3690
        %v3835 = vpack.c.b16 %v3695, %v3691
        %v3836 = vpack.c.b16 %v3696, %v3692
        %v3837 = vpack.c.b16 %v3697, %v3693
        %v3838 = vpack.c.b16 %v3702, %v3698
        %v3839 = vpack.c.b16 %v3703, %v3699
        %v3840 = vpack.c.b16 %v3704, %v3700
        %v3841 = vpack.c.b16 %v3705, %v3701
        %v3842 = vpack.c.b16 %v3710, %v3706
        %v3843 = vpack.c.b16 %v3711, %v3707
        %v3844 = vpack.c.b16 %v3712, %v3708
        %v3845 = vpack.c.b16 %v3713, %v3709
        %v3846 = vpack.c.b16 %v3718, %v3714
        %v3847 = vpack.c.b16 %v3719, %v3715
        %v3848 = vpack.c.b16 %v3720, %v3716
        %v3849 = vpack.c.b16 %v3721, %v3717
        %3978 = vmatprep.subr.bf16.mxu0 %v3751
        %3979 = vmatpush1.bf16.msra.mxu0 %v3750
        %3980 = vmatprep.subr.bf16.mxu0 %v3747
        %3981 = vmatpush1.bf16.msra.mxu0 %v3746
        %3982 = vmatprep.subr.bf16.mxu0 %v3743
        %3983 = vmatpush1.bf16.msra.mxu0 %v3742
        %3984 = vmatprep.subr.bf16.mxu0 %v3739
        %3985 = vmatpush1.bf16.msra.mxu0 %v3738
        %3986 = vmatprep.subr.bf16.mxu0 %v3735
        %3987 = vmatpush1.bf16.msra.mxu0 %v3734
        %3988 = vmatprep.subr.bf16.mxu0 %v3731
        %3989 = vmatpush1.bf16.msra.mxu0 %v3730
        %3990 = vmatprep.subr.bf16.mxu0 %v3727
        %3991 = vmatpush1.bf16.msra.mxu0 %v3726
        %3992 = vmatprep.subr.bf16.mxu0 %v3723
        %3993 = vmatpush1.bf16.msra.mxu0 %v3722
        %3994 = vmatprep.subr.bf16.mxu0 %v3783
        %3995 = vmatpush2.bf16.msra.mxu0 %v3782
        %3996 = vmatprep.subr.bf16.mxu0 %v3779
        %3997 = vmatpush2.bf16.msra.mxu0 %v3778
        %3998 = vmatprep.subr.bf16.mxu0 %v3775
        %3999 = vmatpush2.bf16.msra.mxu0 %v3774
        %4000 = vmatprep.subr.bf16.mxu0 %v3771
        %4001 = vmatpush2.bf16.msra.mxu0 %v3770
        %4002 = vmatprep.subr.bf16.mxu0 %v3767
        %4003 = vmatpush2.bf16.msra.mxu0 %v3766
        %4004 = vmatprep.subr.bf16.mxu0 %v3763
        %4005 = vmatpush2.bf16.msra.mxu0 %v3762
        %4006 = vmatprep.subr.bf16.mxu0 %v3759
        %4007 = vmatpush2.bf16.msra.mxu0 %v3758
        %4008 = vmatprep.subr.bf16.mxu0 %v3755
        %4009 = vmatpush2.bf16.msra.mxu0 %v3754
        %4010 = vmatprep.mubr.bf16.mxu0 %v3061
        %4011 = vmatmul.mubr.bf16.gmra.mxu0 %v3060
        %v4012 = vpop.f32.mrf.mxu0
        %v4013 = vadd.f32 %v3321, %v4012
        %v4014 = vpop.f32.mrf.mxu0
        %v4015 = vadd.f32 %v3325, %v4014
        %v4016 = vpop.f32.mrf.mxu0
        %v4017 = vadd.f32 %v3321, %v4016
        %v4018 = vpop.f32.mrf.mxu0
        %v4019 = vadd.f32 %v3325, %v4018
        %4020 = vmatprep.mubr.bf16.mxu0 %v3065
        %4021 = vmatmul.mubr.bf16.gmra.mxu0 %v3064
        %v4022 = vpop.f32.mrf.mxu0
        %v4023 = vadd.f32 %v3321, %v4022
        %v4024 = vpop.f32.mrf.mxu0
        %v4025 = vadd.f32 %v3325, %v4024
        %v4026 = vpop.f32.mrf.mxu0
        %v4027 = vadd.f32 %v3321, %v4026
        %v4028 = vpop.f32.mrf.mxu0
        %v4029 = vadd.f32 %v3325, %v4028
        %4030 = vmatprep.mubr.bf16.mxu0 %v3069
        %4031 = vmatmul.mubr.bf16.gmra.mxu0 %v3068
        %v4032 = vpop.f32.mrf.mxu0
        %v4033 = vadd.f32 %v3321, %v4032
        %v4034 = vpop.f32.mrf.mxu0
        %v4035 = vadd.f32 %v3325, %v4034
        %v4036 = vpop.f32.mrf.mxu0
        %v4037 = vadd.f32 %v3321, %v4036
        %v4038 = vpop.f32.mrf.mxu0
        %v4039 = vadd.f32 %v3325, %v4038
        %4040 = vmatprep.mubr.bf16.mxu0 %v3073
        %4041 = vmatmul.mubr.bf16.gmra.mxu0 %v3072
        %v4042 = vpop.f32.mrf.mxu0
        %v4043 = vadd.f32 %v3321, %v4042
        %v4044 = vpop.f32.mrf.mxu0
        %v4045 = vadd.f32 %v3325, %v4044
        %v4046 = vpop.f32.mrf.mxu0
        %v4047 = vadd.f32 %v3321, %v4046
        %v4048 = vpop.f32.mrf.mxu0
        %v4049 = vadd.f32 %v3325, %v4048
        %4050 = vmatprep.mubr.bf16.mxu0 %v3077
        %4051 = vmatmul.mubr.bf16.gmra.mxu0 %v3076
        %v4052 = vpop.f32.mrf.mxu0
        %v4053 = vadd.f32 %v3321, %v4052
        %v4054 = vpop.f32.mrf.mxu0
        %v4055 = vadd.f32 %v3325, %v4054
        %v4056 = vpop.f32.mrf.mxu0
        %v4057 = vadd.f32 %v3321, %v4056
        %v4058 = vpop.f32.mrf.mxu0
        %v4059 = vadd.f32 %v3325, %v4058
        %4060 = vmatprep.mubr.bf16.mxu0 %v3081
        %4061 = vmatmul.mubr.bf16.gmra.mxu0 %v3080
        %v4062 = vpop.f32.mrf.mxu0
        %v4063 = vadd.f32 %v3321, %v4062
        %v4064 = vpop.f32.mrf.mxu0
        %v4065 = vadd.f32 %v3325, %v4064
        %v4066 = vpop.f32.mrf.mxu0
        %v4067 = vadd.f32 %v3321, %v4066
        %v4068 = vpop.f32.mrf.mxu0
        %v4069 = vadd.f32 %v3325, %v4068
        %4070 = vmatprep.mubr.bf16.mxu0 %v3085
        %4071 = vmatmul.mubr.bf16.gmra.mxu0 %v3084
        %v4072 = vpop.f32.mrf.mxu0
        %v4073 = vadd.f32 %v3321, %v4072
        %v4074 = vpop.f32.mrf.mxu0
        %v4075 = vadd.f32 %v3325, %v4074
        %v4076 = vpop.f32.mrf.mxu0
        %v4077 = vadd.f32 %v3321, %v4076
        %v4078 = vpop.f32.mrf.mxu0
        %v4079 = vadd.f32 %v3325, %v4078
        %4080 = vmatprep.mubr.bf16.mxu0 %v3089
        %4081 = vmatmul.mubr.bf16.gmra.mxu0 %v3088
        %v4082 = vpop.f32.mrf.mxu0
        %v4083 = vadd.f32 %v3321, %v4082
        %v4084 = vpop.f32.mrf.mxu0
        %v4085 = vadd.f32 %v3325, %v4084
        %v4086 = vpop.f32.mrf.mxu0
        %v4087 = vadd.f32 %v3321, %v4086
        %v4088 = vpop.f32.mrf.mxu0
        %v4089 = vadd.f32 %v3325, %v4088
        %4090 = vmatprep.mubr.bf16.mxu0 %v3093
        %4091 = vmatmul.mubr.bf16.gmra.mxu0 %v3092
        %v4092 = vpop.f32.mrf.mxu0
        %v4093 = vadd.f32 %v3321, %v4092
        %v4094 = vpop.f32.mrf.mxu0
        %v4095 = vadd.f32 %v3325, %v4094
        %v4096 = vpop.f32.mrf.mxu0
        %v4097 = vadd.f32 %v3321, %v4096
        %v4098 = vpop.f32.mrf.mxu0
        %v4099 = vadd.f32 %v3325, %v4098
        %4100 = vmatprep.mubr.bf16.mxu0 %v3097
        %4101 = vmatmul.mubr.bf16.gmra.mxu0 %v3096
        %v4102 = vpop.f32.mrf.mxu0
        %v4103 = vadd.f32 %v3321, %v4102
        %v4104 = vpop.f32.mrf.mxu0
        %v4105 = vadd.f32 %v3325, %v4104
        %v4106 = vpop.f32.mrf.mxu0
        %v4107 = vadd.f32 %v3321, %v4106
        %v4108 = vpop.f32.mrf.mxu0
        %v4109 = vadd.f32 %v3325, %v4108
        %4110 = vmatprep.mubr.bf16.mxu0 %v3101
        %4111 = vmatmul.mubr.bf16.gmra.mxu0 %v3100
        %v4112 = vpop.f32.mrf.mxu0
        %v4113 = vadd.f32 %v3321, %v4112
        %v4114 = vpop.f32.mrf.mxu0
        %v4115 = vadd.f32 %v3325, %v4114
        %v4116 = vpop.f32.mrf.mxu0
        %v4117 = vadd.f32 %v3321, %v4116
        %v4118 = vpop.f32.mrf.mxu0
        %v4119 = vadd.f32 %v3325, %v4118
        %4120 = vmatprep.mubr.bf16.mxu0 %v3105
        %4121 = vmatmul.mubr.bf16.gmra.mxu0 %v3104
        %v4122 = vpop.f32.mrf.mxu0
        %v4123 = vadd.f32 %v3321, %v4122
        %v4124 = vpop.f32.mrf.mxu0
        %v4125 = vadd.f32 %v3325, %v4124
        %v4126 = vpop.f32.mrf.mxu0
        %v4127 = vadd.f32 %v3321, %v4126
        %v4128 = vpop.f32.mrf.mxu0
        %v4129 = vadd.f32 %v3325, %v4128
        %4130 = vmatprep.mubr.bf16.mxu0 %v3109
        %4131 = vmatmul.mubr.bf16.gmra.mxu0 %v3108
        %v4132 = vpop.f32.mrf.mxu0
        %v4133 = vadd.f32 %v3321, %v4132
        %v4134 = vpop.f32.mrf.mxu0
        %v4135 = vadd.f32 %v3325, %v4134
        %v4136 = vpop.f32.mrf.mxu0
        %v4137 = vadd.f32 %v3321, %v4136
        %v4138 = vpop.f32.mrf.mxu0
        %v4139 = vadd.f32 %v3325, %v4138
        %4140 = vmatprep.mubr.bf16.mxu0 %v3113
        %4141 = vmatmul.mubr.bf16.gmra.mxu0 %v3112
        %v4142 = vpop.f32.mrf.mxu0
        %v4143 = vadd.f32 %v3321, %v4142
        %v4144 = vpop.f32.mrf.mxu0
        %v4145 = vadd.f32 %v3325, %v4144
        %v4146 = vpop.f32.mrf.mxu0
        %v4147 = vadd.f32 %v3321, %v4146
        %v4148 = vpop.f32.mrf.mxu0
        %v4149 = vadd.f32 %v3325, %v4148
        %4150 = vmatprep.mubr.bf16.mxu0 %v3117
        %4151 = vmatmul.mubr.bf16.gmra.mxu0 %v3116
        %v4152 = vpop.f32.mrf.mxu0
        %v4153 = vadd.f32 %v3321, %v4152
        %v4154 = vpop.f32.mrf.mxu0
        %v4155 = vadd.f32 %v3325, %v4154
        %v4156 = vpop.f32.mrf.mxu0
        %v4157 = vadd.f32 %v3321, %v4156
        %v4158 = vpop.f32.mrf.mxu0
        %v4159 = vadd.f32 %v3325, %v4158
        %4160 = vmatprep.mubr.bf16.mxu0 %v3121
        %4161 = vmatmul.mubr.bf16.gmra.mxu0 %v3120
        %v4162 = vpop.f32.mrf.mxu0
        %v4163 = vadd.f32 %v3321, %v4162
        %v4164 = vpop.f32.mrf.mxu0
        %v4165 = vadd.f32 %v3325, %v4164
        %v4166 = vpop.f32.mrf.mxu0
        %v4167 = vadd.f32 %v3321, %v4166
        %v4168 = vpop.f32.mrf.mxu0
        %v4169 = vadd.f32 %v3325, %v4168
        %4170 = vmatprep.mubr.bf16.mxu0 %v3125
        %4171 = vmatmul.mubr.bf16.gmra.mxu0 %v3124
        %v4172 = vpop.f32.mrf.mxu0
        %v4173 = vadd.f32 %v3321, %v4172
        %v4174 = vpop.f32.mrf.mxu0
        %v4175 = vadd.f32 %v3325, %v4174
        %v4176 = vpop.f32.mrf.mxu0
        %v4177 = vadd.f32 %v3321, %v4176
        %v4178 = vpop.f32.mrf.mxu0
        %v4179 = vadd.f32 %v3325, %v4178
        %4180 = vmatprep.mubr.bf16.mxu0 %v3129
        %4181 = vmatmul.mubr.bf16.gmra.mxu0 %v3128
        %v4182 = vpop.f32.mrf.mxu0
        %v4183 = vadd.f32 %v3321, %v4182
        %v4184 = vpop.f32.mrf.mxu0
        %v4185 = vadd.f32 %v3325, %v4184
        %v4186 = vpop.f32.mrf.mxu0
        %v4187 = vadd.f32 %v3321, %v4186
        %v4188 = vpop.f32.mrf.mxu0
        %v4189 = vadd.f32 %v3325, %v4188
        %4190 = vmatprep.mubr.bf16.mxu0 %v3133
        %4191 = vmatmul.mubr.bf16.gmra.mxu0 %v3132
        %v4192 = vpop.f32.mrf.mxu0
        %v4193 = vadd.f32 %v3321, %v4192
        %v4194 = vpop.f32.mrf.mxu0
        %v4195 = vadd.f32 %v3325, %v4194
        %v4196 = vpop.f32.mrf.mxu0
        %v4197 = vadd.f32 %v3321, %v4196
        %v4198 = vpop.f32.mrf.mxu0
        %v4199 = vadd.f32 %v3325, %v4198
        %4200 = vmatprep.mubr.bf16.mxu0 %v3137
        %4201 = vmatmul.mubr.bf16.gmra.mxu0 %v3136
        %v4202 = vpop.f32.mrf.mxu0
        %v4203 = vadd.f32 %v3321, %v4202
        %v4204 = vpop.f32.mrf.mxu0
        %v4205 = vadd.f32 %v3325, %v4204
        %v4206 = vpop.f32.mrf.mxu0
        %v4207 = vadd.f32 %v3321, %v4206
        %v4208 = vpop.f32.mrf.mxu0
        %v4209 = vadd.f32 %v3325, %v4208
        %4210 = vmatprep.mubr.bf16.mxu0 %v3141
        %4211 = vmatmul.mubr.bf16.gmra.mxu0 %v3140
        %v4212 = vpop.f32.mrf.mxu0
        %v4213 = vadd.f32 %v3321, %v4212
        %v4214 = vpop.f32.mrf.mxu0
        %v4215 = vadd.f32 %v3325, %v4214
        %v4216 = vpop.f32.mrf.mxu0
        %v4217 = vadd.f32 %v3321, %v4216
        %v4218 = vpop.f32.mrf.mxu0
        %v4219 = vadd.f32 %v3325, %v4218
        %4220 = vmatprep.mubr.bf16.mxu0 %v3145
        %4221 = vmatmul.mubr.bf16.gmra.mxu0 %v3144
        %v4222 = vpop.f32.mrf.mxu0
        %v4223 = vadd.f32 %v3321, %v4222
        %v4224 = vpop.f32.mrf.mxu0
        %v4225 = vadd.f32 %v3325, %v4224
        %v4226 = vpop.f32.mrf.mxu0
        %v4227 = vadd.f32 %v3321, %v4226
        %v4228 = vpop.f32.mrf.mxu0
        %v4229 = vadd.f32 %v3325, %v4228
        %4230 = vmatprep.mubr.bf16.mxu0 %v3149
        %4231 = vmatmul.mubr.bf16.gmra.mxu0 %v3148
        %v4232 = vpop.f32.mrf.mxu0
        %v4233 = vadd.f32 %v3321, %v4232
        %v4234 = vpop.f32.mrf.mxu0
        %v4235 = vadd.f32 %v3325, %v4234
        %v4236 = vpop.f32.mrf.mxu0
        %v4237 = vadd.f32 %v3321, %v4236
        %v4238 = vpop.f32.mrf.mxu0
        %v4239 = vadd.f32 %v3325, %v4238
        %4240 = vmatprep.mubr.bf16.mxu0 %v3153
        %4241 = vmatmul.mubr.bf16.gmra.mxu0 %v3152
        %v4242 = vpop.f32.mrf.mxu0
        %v4243 = vadd.f32 %v3321, %v4242
        %v4244 = vpop.f32.mrf.mxu0
        %v4245 = vadd.f32 %v3325, %v4244
        %v4246 = vpop.f32.mrf.mxu0
        %v4247 = vadd.f32 %v3321, %v4246
        %v4248 = vpop.f32.mrf.mxu0
        %v4249 = vadd.f32 %v3325, %v4248
        %4250 = vmatprep.mubr.bf16.mxu0 %v3157
        %4251 = vmatmul.mubr.bf16.gmra.mxu0 %v3156
        %v4252 = vpop.f32.mrf.mxu0
        %v4253 = vadd.f32 %v3321, %v4252
        %v4254 = vpop.f32.mrf.mxu0
        %v4255 = vadd.f32 %v3325, %v4254
        %v4256 = vpop.f32.mrf.mxu0
        %v4257 = vadd.f32 %v3321, %v4256
        %v4258 = vpop.f32.mrf.mxu0
        %v4259 = vadd.f32 %v3325, %v4258
        %4260 = vmatprep.mubr.bf16.mxu0 %v3161
        %4261 = vmatmul.mubr.bf16.gmra.mxu0 %v3160
        %v4262 = vpop.f32.mrf.mxu0
        %v4263 = vadd.f32 %v3321, %v4262
        %v4264 = vpop.f32.mrf.mxu0
        %v4265 = vadd.f32 %v3325, %v4264
        %v4266 = vpop.f32.mrf.mxu0
        %v4267 = vadd.f32 %v3321, %v4266
        %v4268 = vpop.f32.mrf.mxu0
        %v4269 = vadd.f32 %v3325, %v4268
        %4270 = vmatprep.mubr.bf16.mxu0 %v3165
        %4271 = vmatmul.mubr.bf16.gmra.mxu0 %v3164
        %v4272 = vpop.f32.mrf.mxu0
        %v4273 = vadd.f32 %v3321, %v4272
        %v4274 = vpop.f32.mrf.mxu0
        %v4275 = vadd.f32 %v3325, %v4274
        %v4276 = vpop.f32.mrf.mxu0
        %v4277 = vadd.f32 %v3321, %v4276
        %v4278 = vpop.f32.mrf.mxu0
        %v4279 = vadd.f32 %v3325, %v4278
        %4280 = vmatprep.mubr.bf16.mxu0 %v3169
        %4281 = vmatmul.mubr.bf16.gmra.mxu0 %v3168
        %v4282 = vpop.f32.mrf.mxu0
        %v4283 = vadd.f32 %v3321, %v4282
        %v4284 = vpop.f32.mrf.mxu0
        %v4285 = vadd.f32 %v3325, %v4284
        %v4286 = vpop.f32.mrf.mxu0
        %v4287 = vadd.f32 %v3321, %v4286
        %v4288 = vpop.f32.mrf.mxu0
        %v4289 = vadd.f32 %v3325, %v4288
        %4290 = vmatprep.mubr.bf16.mxu0 %v3173
        %4291 = vmatmul.mubr.bf16.gmra.mxu0 %v3172
        %v4292 = vpop.f32.mrf.mxu0
        %v4293 = vadd.f32 %v3321, %v4292
        %v4294 = vpop.f32.mrf.mxu0
        %v4295 = vadd.f32 %v3325, %v4294
        %v4296 = vpop.f32.mrf.mxu0
        %v4297 = vadd.f32 %v3321, %v4296
        %v4298 = vpop.f32.mrf.mxu0
        %v4299 = vadd.f32 %v3325, %v4298
        %4300 = vmatprep.mubr.bf16.mxu0 %v3177
        %4301 = vmatmul.mubr.bf16.gmra.mxu0 %v3176
        %v4302 = vpop.f32.mrf.mxu0
        %v4303 = vadd.f32 %v3321, %v4302
        %v4304 = vpop.f32.mrf.mxu0
        %v4305 = vadd.f32 %v3325, %v4304
        %v4306 = vpop.f32.mrf.mxu0
        %v4307 = vadd.f32 %v3321, %v4306
        %v4308 = vpop.f32.mrf.mxu0
        %v4309 = vadd.f32 %v3325, %v4308
        %4310 = vmatprep.mubr.bf16.mxu0 %v3181
        %4311 = vmatmul.mubr.bf16.gmra.mxu0 %v3180
        %v4312 = vpop.f32.mrf.mxu0
        %v4313 = vadd.f32 %v3321, %v4312
        %v4314 = vpop.f32.mrf.mxu0
        %v4315 = vadd.f32 %v3325, %v4314
        %v4316 = vpop.f32.mrf.mxu0
        %v4317 = vadd.f32 %v3321, %v4316
        %v4318 = vpop.f32.mrf.mxu0
        %v4319 = vadd.f32 %v3325, %v4318
        %4320 = vmatprep.mubr.bf16.mxu0 %v3185
        %4321 = vmatmul.mubr.bf16.gmra.mxu0 %v3184
        %v4322 = vpop.f32.mrf.mxu0
        %v4323 = vadd.f32 %v3321, %v4322
        %v4324 = vpop.f32.mrf.mxu0
        %v4325 = vadd.f32 %v3325, %v4324
        %v4326 = vpop.f32.mrf.mxu0
        %v4327 = vadd.f32 %v3321, %v4326
        %v4328 = vpop.f32.mrf.mxu0
        %v4329 = vadd.f32 %v3325, %v4328
        %4330 = vdwg.mxu0
        %4331 = vmatprep.subr.bf16.mxu0 %v3815
        %4332 = vmatpush1.bf16.msra.mxu0 %v3814
        %4333 = vmatprep.subr.bf16.mxu0 %v3811
        %4334 = vmatpush1.bf16.msra.mxu0 %v3810
        %4335 = vmatprep.subr.bf16.mxu0 %v3807
        %4336 = vmatpush1.bf16.msra.mxu0 %v3806
        %4337 = vmatprep.subr.bf16.mxu0 %v3803
        %4338 = vmatpush1.bf16.msra.mxu0 %v3802
        %4339 = vmatprep.subr.bf16.mxu0 %v3799
        %4340 = vmatpush1.bf16.msra.mxu0 %v3798
        %4341 = vmatprep.subr.bf16.mxu0 %v3795
        %4342 = vmatpush1.bf16.msra.mxu0 %v3794
        %4343 = vmatprep.subr.bf16.mxu0 %v3791
        %4344 = vmatpush1.bf16.msra.mxu0 %v3790
        %4345 = vmatprep.subr.bf16.mxu0 %v3787
        %4346 = vmatpush1.bf16.msra.mxu0 %v3786
        %4347 = vmatprep.subr.bf16.mxu0 %v3847
        %4348 = vmatpush2.bf16.msra.mxu0 %v3846
        %4349 = vmatprep.subr.bf16.mxu0 %v3843
        %4350 = vmatpush2.bf16.msra.mxu0 %v3842
        %4351 = vmatprep.subr.bf16.mxu0 %v3839
        %4352 = vmatpush2.bf16.msra.mxu0 %v3838
        %4353 = vmatprep.subr.bf16.mxu0 %v3835
        %4354 = vmatpush2.bf16.msra.mxu0 %v3834
        %4355 = vmatprep.subr.bf16.mxu0 %v3831
        %4356 = vmatpush2.bf16.msra.mxu0 %v3830
        %4357 = vmatprep.subr.bf16.mxu0 %v3827
        %4358 = vmatpush2.bf16.msra.mxu0 %v3826
        %4359 = vmatprep.subr.bf16.mxu0 %v3823
        %4360 = vmatpush2.bf16.msra.mxu0 %v3822
        %4361 = vmatprep.subr.bf16.mxu0 %v3819
        %4362 = vmatpush2.bf16.msra.mxu0 %v3818
        %4363 = vmatprep.mubr.bf16.mxu0 %v3063
        %4364 = vmatmul.mubr.bf16.gmra.mxu0 %v3062
        %v4365 = vpop.f32.mrf.mxu0
        %v4366 = vadd.f32 %v4013, %v4365
        %v4367 = vpop.f32.mrf.mxu0
        %v4368 = vadd.f32 %v4015, %v4367
        %v4369 = vpop.f32.mrf.mxu0
        %v4370 = vadd.f32 %v4017, %v4369
        %v4371 = vpop.f32.mrf.mxu0
        %v4372 = vadd.f32 %v4019, %v4371
        %4373 = vmatprep.mubr.bf16.mxu0 %v3067
        %4374 = vmatmul.mubr.bf16.gmra.mxu0 %v3066
        %v4375 = vpop.f32.mrf.mxu0
        %v4376 = vadd.f32 %v4023, %v4375
        %v4377 = vpop.f32.mrf.mxu0
        %v4378 = vadd.f32 %v4025, %v4377
        %v4379 = vpop.f32.mrf.mxu0
        %v4380 = vadd.f32 %v4027, %v4379
        %v4381 = vpop.f32.mrf.mxu0
        %v4382 = vadd.f32 %v4029, %v4381
        %4383 = vmatprep.mubr.bf16.mxu0 %v3071
        %4384 = vmatmul.mubr.bf16.gmra.mxu0 %v3070
        %v4385 = vpop.f32.mrf.mxu0
        %v4386 = vadd.f32 %v4033, %v4385
        %v4387 = vpop.f32.mrf.mxu0
        %v4388 = vadd.f32 %v4035, %v4387
        %v4389 = vpop.f32.mrf.mxu0
        %v4390 = vadd.f32 %v4037, %v4389
        %v4391 = vpop.f32.mrf.mxu0
        %v4392 = vadd.f32 %v4039, %v4391
        %4393 = vmatprep.mubr.bf16.mxu0 %v3075
        %4394 = vmatmul.mubr.bf16.gmra.mxu0 %v3074
        %v4395 = vpop.f32.mrf.mxu0
        %v4396 = vadd.f32 %v4043, %v4395
        %v4397 = vpop.f32.mrf.mxu0
        %v4398 = vadd.f32 %v4045, %v4397
        %v4399 = vpop.f32.mrf.mxu0
        %v4400 = vadd.f32 %v4047, %v4399
        %v4401 = vpop.f32.mrf.mxu0
        %v4402 = vadd.f32 %v4049, %v4401
        %4403 = vmatprep.mubr.bf16.mxu0 %v3079
        %4404 = vmatmul.mubr.bf16.gmra.mxu0 %v3078
        %v4405 = vpop.f32.mrf.mxu0
        %v4406 = vadd.f32 %v4053, %v4405
        %v4407 = vpop.f32.mrf.mxu0
        %v4408 = vadd.f32 %v4055, %v4407
        %v4409 = vpop.f32.mrf.mxu0
        %v4410 = vadd.f32 %v4057, %v4409
        %v4411 = vpop.f32.mrf.mxu0
        %v4412 = vadd.f32 %v4059, %v4411
        %4413 = vmatprep.mubr.bf16.mxu0 %v3083
        %4414 = vmatmul.mubr.bf16.gmra.mxu0 %v3082
        %v4415 = vpop.f32.mrf.mxu0
        %v4416 = vadd.f32 %v4063, %v4415
        %v4417 = vpop.f32.mrf.mxu0
        %v4418 = vadd.f32 %v4065, %v4417
        %v4419 = vpop.f32.mrf.mxu0
        %v4420 = vadd.f32 %v4067, %v4419
        %v4421 = vpop.f32.mrf.mxu0
        %v4422 = vadd.f32 %v4069, %v4421
        %4423 = vmatprep.mubr.bf16.mxu0 %v3087
        %4424 = vmatmul.mubr.bf16.gmra.mxu0 %v3086
        %v4425 = vpop.f32.mrf.mxu0
        %v4426 = vadd.f32 %v4073, %v4425
        %v4427 = vpop.f32.mrf.mxu0
        %v4428 = vadd.f32 %v4075, %v4427
        %v4429 = vpop.f32.mrf.mxu0
        %v4430 = vadd.f32 %v4077, %v4429
        %v4431 = vpop.f32.mrf.mxu0
        %v4432 = vadd.f32 %v4079, %v4431
        %4433 = vmatprep.mubr.bf16.mxu0 %v3091
        %4434 = vmatmul.mubr.bf16.gmra.mxu0 %v3090
        %v4435 = vpop.f32.mrf.mxu0
        %v4436 = vadd.f32 %v4083, %v4435
        %v4437 = vpop.f32.mrf.mxu0
        %v4438 = vadd.f32 %v4085, %v4437
        %v4439 = vpop.f32.mrf.mxu0
        %v4440 = vadd.f32 %v4087, %v4439
        %v4441 = vpop.f32.mrf.mxu0
        %v4442 = vadd.f32 %v4089, %v4441
        %4443 = vmatprep.mubr.bf16.mxu0 %v3095
        %4444 = vmatmul.mubr.bf16.gmra.mxu0 %v3094
        %v4445 = vpop.f32.mrf.mxu0
        %v4446 = vadd.f32 %v4093, %v4445
        %v4447 = vpop.f32.mrf.mxu0
        %v4448 = vadd.f32 %v4095, %v4447
        %v4449 = vpop.f32.mrf.mxu0
        %v4450 = vadd.f32 %v4097, %v4449
        %v4451 = vpop.f32.mrf.mxu0
        %v4452 = vadd.f32 %v4099, %v4451
        %4453 = vmatprep.mubr.bf16.mxu0 %v3099
        %4454 = vmatmul.mubr.bf16.gmra.mxu0 %v3098
        %v4455 = vpop.f32.mrf.mxu0
        %v4456 = vadd.f32 %v4103, %v4455
        %v4457 = vpop.f32.mrf.mxu0
        %v4458 = vadd.f32 %v4105, %v4457
        %v4459 = vpop.f32.mrf.mxu0
        %v4460 = vadd.f32 %v4107, %v4459
        %v4461 = vpop.f32.mrf.mxu0
        %v4462 = vadd.f32 %v4109, %v4461
        %4463 = vmatprep.mubr.bf16.mxu0 %v3103
        %4464 = vmatmul.mubr.bf16.gmra.mxu0 %v3102
        %v4465 = vpop.f32.mrf.mxu0
        %v4466 = vadd.f32 %v4113, %v4465
        %v4467 = vpop.f32.mrf.mxu0
        %v4468 = vadd.f32 %v4115, %v4467
        %v4469 = vpop.f32.mrf.mxu0
        %v4470 = vadd.f32 %v4117, %v4469
        %v4471 = vpop.f32.mrf.mxu0
        %v4472 = vadd.f32 %v4119, %v4471
        %4473 = vmatprep.mubr.bf16.mxu0 %v3107
        %4474 = vmatmul.mubr.bf16.gmra.mxu0 %v3106
        %v4475 = vpop.f32.mrf.mxu0
        %v4476 = vadd.f32 %v4123, %v4475
        %v4477 = vpop.f32.mrf.mxu0
        %v4478 = vadd.f32 %v4125, %v4477
        %v4479 = vpop.f32.mrf.mxu0
        %v4480 = vadd.f32 %v4127, %v4479
        %v4481 = vpop.f32.mrf.mxu0
        %v4482 = vadd.f32 %v4129, %v4481
        %4483 = vmatprep.mubr.bf16.mxu0 %v3111
        %4484 = vmatmul.mubr.bf16.gmra.mxu0 %v3110
        %v4485 = vpop.f32.mrf.mxu0
        %v4486 = vadd.f32 %v4133, %v4485
        %v4487 = vpop.f32.mrf.mxu0
        %v4488 = vadd.f32 %v4135, %v4487
        %v4489 = vpop.f32.mrf.mxu0
        %v4490 = vadd.f32 %v4137, %v4489
        %v4491 = vpop.f32.mrf.mxu0
        %v4492 = vadd.f32 %v4139, %v4491
        %4493 = vmatprep.mubr.bf16.mxu0 %v3115
        %4494 = vmatmul.mubr.bf16.gmra.mxu0 %v3114
        %v4495 = vpop.f32.mrf.mxu0
        %v4496 = vadd.f32 %v4143, %v4495
        %v4497 = vpop.f32.mrf.mxu0
        %v4498 = vadd.f32 %v4145, %v4497
        %v4499 = vpop.f32.mrf.mxu0
        %v4500 = vadd.f32 %v4147, %v4499
        %v4501 = vpop.f32.mrf.mxu0
        %v4502 = vadd.f32 %v4149, %v4501
        %4503 = vmatprep.mubr.bf16.mxu0 %v3119
        %4504 = vmatmul.mubr.bf16.gmra.mxu0 %v3118
        %v4505 = vpop.f32.mrf.mxu0
        %v4506 = vadd.f32 %v4153, %v4505
        %v4507 = vpop.f32.mrf.mxu0
        %v4508 = vadd.f32 %v4155, %v4507
        %v4509 = vpop.f32.mrf.mxu0
        %v4510 = vadd.f32 %v4157, %v4509
        %v4511 = vpop.f32.mrf.mxu0
        %v4512 = vadd.f32 %v4159, %v4511
        %4513 = vmatprep.mubr.bf16.mxu0 %v3123
        %4514 = vmatmul.mubr.bf16.gmra.mxu0 %v3122
        %v4515 = vpop.f32.mrf.mxu0
        %v4516 = vadd.f32 %v4163, %v4515
        %v4517 = vpop.f32.mrf.mxu0
        %v4518 = vadd.f32 %v4165, %v4517
        %v4519 = vpop.f32.mrf.mxu0
        %v4520 = vadd.f32 %v4167, %v4519
        %v4521 = vpop.f32.mrf.mxu0
        %v4522 = vadd.f32 %v4169, %v4521
        %4523 = vmatprep.mubr.bf16.mxu0 %v3127
        %4524 = vmatmul.mubr.bf16.gmra.mxu0 %v3126
        %v4525 = vpop.f32.mrf.mxu0
        %v4526 = vadd.f32 %v4173, %v4525
        %v4527 = vpop.f32.mrf.mxu0
        %v4528 = vadd.f32 %v4175, %v4527
        %v4529 = vpop.f32.mrf.mxu0
        %v4530 = vadd.f32 %v4177, %v4529
        %v4531 = vpop.f32.mrf.mxu0
        %v4532 = vadd.f32 %v4179, %v4531
        %4533 = vmatprep.mubr.bf16.mxu0 %v3131
        %4534 = vmatmul.mubr.bf16.gmra.mxu0 %v3130
        %v4535 = vpop.f32.mrf.mxu0
        %v4536 = vadd.f32 %v4183, %v4535
        %v4537 = vpop.f32.mrf.mxu0
        %v4538 = vadd.f32 %v4185, %v4537
        %v4539 = vpop.f32.mrf.mxu0
        %v4540 = vadd.f32 %v4187, %v4539
        %v4541 = vpop.f32.mrf.mxu0
        %v4542 = vadd.f32 %v4189, %v4541
        %4543 = vmatprep.mubr.bf16.mxu0 %v3135
        %4544 = vmatmul.mubr.bf16.gmra.mxu0 %v3134
        %v4545 = vpop.f32.mrf.mxu0
        %v4546 = vadd.f32 %v4193, %v4545
        %v4547 = vpop.f32.mrf.mxu0
        %v4548 = vadd.f32 %v4195, %v4547
        %v4549 = vpop.f32.mrf.mxu0
        %v4550 = vadd.f32 %v4197, %v4549
        %v4551 = vpop.f32.mrf.mxu0
        %v4552 = vadd.f32 %v4199, %v4551
        %4553 = vmatprep.mubr.bf16.mxu0 %v3139
        %4554 = vmatmul.mubr.bf16.gmra.mxu0 %v3138
        %v4555 = vpop.f32.mrf.mxu0
        %v4556 = vadd.f32 %v4203, %v4555
        %v4557 = vpop.f32.mrf.mxu0
        %v4558 = vadd.f32 %v4205, %v4557
        %v4559 = vpop.f32.mrf.mxu0
        %v4560 = vadd.f32 %v4207, %v4559
        %v4561 = vpop.f32.mrf.mxu0
        %v4562 = vadd.f32 %v4209, %v4561
        %4563 = vmatprep.mubr.bf16.mxu0 %v3143
        %4564 = vmatmul.mubr.bf16.gmra.mxu0 %v3142
        %v4565 = vpop.f32.mrf.mxu0
        %v4566 = vadd.f32 %v4213, %v4565
        %v4567 = vpop.f32.mrf.mxu0
        %v4568 = vadd.f32 %v4215, %v4567
        %v4569 = vpop.f32.mrf.mxu0
        %v4570 = vadd.f32 %v4217, %v4569
        %v4571 = vpop.f32.mrf.mxu0
        %v4572 = vadd.f32 %v4219, %v4571
        %4573 = vmatprep.mubr.bf16.mxu0 %v3147
        %4574 = vmatmul.mubr.bf16.gmra.mxu0 %v3146
        %v4575 = vpop.f32.mrf.mxu0
        %v4576 = vadd.f32 %v4223, %v4575
        %v4577 = vpop.f32.mrf.mxu0
        %v4578 = vadd.f32 %v4225, %v4577
        %v4579 = vpop.f32.mrf.mxu0
        %v4580 = vadd.f32 %v4227, %v4579
        %v4581 = vpop.f32.mrf.mxu0
        %v4582 = vadd.f32 %v4229, %v4581
        %4583 = vmatprep.mubr.bf16.mxu0 %v3151
        %4584 = vmatmul.mubr.bf16.gmra.mxu0 %v3150
        %v4585 = vpop.f32.mrf.mxu0
        %v4586 = vadd.f32 %v4233, %v4585
        %v4587 = vpop.f32.mrf.mxu0
        %v4588 = vadd.f32 %v4235, %v4587
        %v4589 = vpop.f32.mrf.mxu0
        %v4590 = vadd.f32 %v4237, %v4589
        %v4591 = vpop.f32.mrf.mxu0
        %v4592 = vadd.f32 %v4239, %v4591
        %4593 = vmatprep.mubr.bf16.mxu0 %v3155
        %4594 = vmatmul.mubr.bf16.gmra.mxu0 %v3154
        %v4595 = vpop.f32.mrf.mxu0
        %v4596 = vadd.f32 %v4243, %v4595
        %v4597 = vpop.f32.mrf.mxu0
        %v4598 = vadd.f32 %v4245, %v4597
        %v4599 = vpop.f32.mrf.mxu0
        %v4600 = vadd.f32 %v4247, %v4599
        %v4601 = vpop.f32.mrf.mxu0
        %v4602 = vadd.f32 %v4249, %v4601
        %4603 = vmatprep.mubr.bf16.mxu0 %v3159
        %4604 = vmatmul.mubr.bf16.gmra.mxu0 %v3158
        %v4605 = vpop.f32.mrf.mxu0
        %v4606 = vadd.f32 %v4253, %v4605
        %v4607 = vpop.f32.mrf.mxu0
        %v4608 = vadd.f32 %v4255, %v4607
        %v4609 = vpop.f32.mrf.mxu0
        %v4610 = vadd.f32 %v4257, %v4609
        %v4611 = vpop.f32.mrf.mxu0
        %v4612 = vadd.f32 %v4259, %v4611
        %4613 = vmatprep.mubr.bf16.mxu0 %v3163
        %4614 = vmatmul.mubr.bf16.gmra.mxu0 %v3162
        %v4615 = vpop.f32.mrf.mxu0
        %v4616 = vadd.f32 %v4263, %v4615
        %v4617 = vpop.f32.mrf.mxu0
        %v4618 = vadd.f32 %v4265, %v4617
        %v4619 = vpop.f32.mrf.mxu0
        %v4620 = vadd.f32 %v4267, %v4619
        %v4621 = vpop.f32.mrf.mxu0
        %v4622 = vadd.f32 %v4269, %v4621
        %4623 = vmatprep.mubr.bf16.mxu0 %v3167
        %4624 = vmatmul.mubr.bf16.gmra.mxu0 %v3166
        %v4625 = vpop.f32.mrf.mxu0
        %v4626 = vadd.f32 %v4273, %v4625
        %v4627 = vpop.f32.mrf.mxu0
        %v4628 = vadd.f32 %v4275, %v4627
        %v4629 = vpop.f32.mrf.mxu0
        %v4630 = vadd.f32 %v4277, %v4629
        %v4631 = vpop.f32.mrf.mxu0
        %v4632 = vadd.f32 %v4279, %v4631
        %4633 = vmatprep.mubr.bf16.mxu0 %v3171
        %4634 = vmatmul.mubr.bf16.gmra.mxu0 %v3170
        %v4635 = vpop.f32.mrf.mxu0
        %v4636 = vadd.f32 %v4283, %v4635
        %v4637 = vpop.f32.mrf.mxu0
        %v4638 = vadd.f32 %v4285, %v4637
        %v4639 = vpop.f32.mrf.mxu0
        %v4640 = vadd.f32 %v4287, %v4639
        %v4641 = vpop.f32.mrf.mxu0
        %v4642 = vadd.f32 %v4289, %v4641
        %4643 = vmatprep.mubr.bf16.mxu0 %v3175
        %4644 = vmatmul.mubr.bf16.gmra.mxu0 %v3174
        %v4645 = vpop.f32.mrf.mxu0
        %v4646 = vadd.f32 %v4293, %v4645
        %v4647 = vpop.f32.mrf.mxu0
        %v4648 = vadd.f32 %v4295, %v4647
        %v4649 = vpop.f32.mrf.mxu0
        %v4650 = vadd.f32 %v4297, %v4649
        %v4651 = vpop.f32.mrf.mxu0
        %v4652 = vadd.f32 %v4299, %v4651
        %4653 = vmatprep.mubr.bf16.mxu0 %v3179
        %4654 = vmatmul.mubr.bf16.gmra.mxu0 %v3178
        %v4655 = vpop.f32.mrf.mxu0
        %v4656 = vadd.f32 %v4303, %v4655
        %v4657 = vpop.f32.mrf.mxu0
        %v4658 = vadd.f32 %v4305, %v4657
        %v4659 = vpop.f32.mrf.mxu0
        %v4660 = vadd.f32 %v4307, %v4659
        %v4661 = vpop.f32.mrf.mxu0
        %v4662 = vadd.f32 %v4309, %v4661
        %4663 = vmatprep.mubr.bf16.mxu0 %v3183
        %4664 = vmatmul.mubr.bf16.gmra.mxu0 %v3182
        %v4665 = vpop.f32.mrf.mxu0
        %v4666 = vadd.f32 %v4313, %v4665
        %v4667 = vpop.f32.mrf.mxu0
        %v4668 = vadd.f32 %v4315, %v4667
        %v4669 = vpop.f32.mrf.mxu0
        %v4670 = vadd.f32 %v4317, %v4669
        %v4671 = vpop.f32.mrf.mxu0
        %v4672 = vadd.f32 %v4319, %v4671
        %4673 = vmatprep.mubr.bf16.mxu0 %v3187
        %4674 = vmatmul.mubr.bf16.gmra.mxu0 %v3186
        %v4675 = vpop.f32.mrf.mxu0
        %v4676 = vadd.f32 %v4323, %v4675
        %v4677 = vpop.f32.mrf.mxu0
        %v4678 = vadd.f32 %v4325, %v4677
        %v4679 = vpop.f32.mrf.mxu0
        %v4680 = vadd.f32 %v4327, %v4679
        %v4681 = vpop.f32.mrf.mxu0
        %v4682 = vadd.f32 %v4329, %v4681
        %4683 = vdwg.mxu0
        %4684 = vmatprep.subr.bf16.mxu0 %v3753
        %4685 = vmatpush1.bf16.msra.mxu0 %v3752
        %4686 = vmatprep.subr.bf16.mxu0 %v3749
        %4687 = vmatpush1.bf16.msra.mxu0 %v3748
        %4688 = vmatprep.subr.bf16.mxu0 %v3745
        %4689 = vmatpush1.bf16.msra.mxu0 %v3744
        %4690 = vmatprep.subr.bf16.mxu0 %v3741
        %4691 = vmatpush1.bf16.msra.mxu0 %v3740
        %4692 = vmatprep.subr.bf16.mxu0 %v3737
        %4693 = vmatpush1.bf16.msra.mxu0 %v3736
        %4694 = vmatprep.subr.bf16.mxu0 %v3733
        %4695 = vmatpush1.bf16.msra.mxu0 %v3732
        %4696 = vmatprep.subr.bf16.mxu0 %v3729
        %4697 = vmatpush1.bf16.msra.mxu0 %v3728
        %4698 = vmatprep.subr.bf16.mxu0 %v3725
        %4699 = vmatpush1.bf16.msra.mxu0 %v3724
        %4700 = vmatprep.subr.bf16.mxu0 %v3785
        %4701 = vmatpush2.bf16.msra.mxu0 %v3784
        %4702 = vmatprep.subr.bf16.mxu0 %v3781
        %4703 = vmatpush2.bf16.msra.mxu0 %v3780
        %4704 = vmatprep.subr.bf16.mxu0 %v3777
        %4705 = vmatpush2.bf16.msra.mxu0 %v3776
        %4706 = vmatprep.subr.bf16.mxu0 %v3773
        %4707 = vmatpush2.bf16.msra.mxu0 %v3772
        %4708 = vmatprep.subr.bf16.mxu0 %v3769
        %4709 = vmatpush2.bf16.msra.mxu0 %v3768
        %4710 = vmatprep.subr.bf16.mxu0 %v3765
        %4711 = vmatpush2.bf16.msra.mxu0 %v3764
        %4712 = vmatprep.subr.bf16.mxu0 %v3761
        %4713 = vmatpush2.bf16.msra.mxu0 %v3760
        %4714 = vmatprep.subr.bf16.mxu0 %v3757
        %4715 = vmatpush2.bf16.msra.mxu0 %v3756
        %4716 = vmatprep.mubr.bf16.mxu0 %v3061
        %4717 = vmatmul.mubr.bf16.gmra.mxu0 %v3060
        %v4718 = vpop.f32.mrf.mxu0
        %v4719 = vadd.f32 %v3329, %v4718
        %v4720 = vpop.f32.mrf.mxu0
        %v4721 = vadd.f32 %v3333, %v4720
        %v4722 = vpop.f32.mrf.mxu0
        %v4723 = vadd.f32 %v3329, %v4722
        %v4724 = vpop.f32.mrf.mxu0
        %v4725 = vadd.f32 %v3333, %v4724
        %4726 = vmatprep.mubr.bf16.mxu0 %v3065
        %4727 = vmatmul.mubr.bf16.gmra.mxu0 %v3064
        %v4728 = vpop.f32.mrf.mxu0
        %v4729 = vadd.f32 %v3329, %v4728
        %v4730 = vpop.f32.mrf.mxu0
        %v4731 = vadd.f32 %v3333, %v4730
        %v4732 = vpop.f32.mrf.mxu0
        %v4733 = vadd.f32 %v3329, %v4732
        %v4734 = vpop.f32.mrf.mxu0
        %v4735 = vadd.f32 %v3333, %v4734
        %4736 = vmatprep.mubr.bf16.mxu0 %v3069
        %4737 = vmatmul.mubr.bf16.gmra.mxu0 %v3068
        %v4738 = vpop.f32.mrf.mxu0
        %v4739 = vadd.f32 %v3329, %v4738
        %v4740 = vpop.f32.mrf.mxu0
        %v4741 = vadd.f32 %v3333, %v4740
        %v4742 = vpop.f32.mrf.mxu0
        %v4743 = vadd.f32 %v3329, %v4742
        %v4744 = vpop.f32.mrf.mxu0
        %v4745 = vadd.f32 %v3333, %v4744
        %4746 = vmatprep.mubr.bf16.mxu0 %v3073
        %4747 = vmatmul.mubr.bf16.gmra.mxu0 %v3072
        %v4748 = vpop.f32.mrf.mxu0
        %v4749 = vadd.f32 %v3329, %v4748
        %v4750 = vpop.f32.mrf.mxu0
        %v4751 = vadd.f32 %v3333, %v4750
        %v4752 = vpop.f32.mrf.mxu0
        %v4753 = vadd.f32 %v3329, %v4752
        %v4754 = vpop.f32.mrf.mxu0
        %v4755 = vadd.f32 %v3333, %v4754
        %4756 = vmatprep.mubr.bf16.mxu0 %v3077
        %4757 = vmatmul.mubr.bf16.gmra.mxu0 %v3076
        %v4758 = vpop.f32.mrf.mxu0
        %v4759 = vadd.f32 %v3329, %v4758
        %v4760 = vpop.f32.mrf.mxu0
        %v4761 = vadd.f32 %v3333, %v4760
        %v4762 = vpop.f32.mrf.mxu0
        %v4763 = vadd.f32 %v3329, %v4762
        %v4764 = vpop.f32.mrf.mxu0
        %v4765 = vadd.f32 %v3333, %v4764
        %4766 = vmatprep.mubr.bf16.mxu0 %v3081
        %4767 = vmatmul.mubr.bf16.gmra.mxu0 %v3080
        %v4768 = vpop.f32.mrf.mxu0
        %v4769 = vadd.f32 %v3329, %v4768
        %v4770 = vpop.f32.mrf.mxu0
        %v4771 = vadd.f32 %v3333, %v4770
        %v4772 = vpop.f32.mrf.mxu0
        %v4773 = vadd.f32 %v3329, %v4772
        %v4774 = vpop.f32.mrf.mxu0
        %v4775 = vadd.f32 %v3333, %v4774
        %4776 = vmatprep.mubr.bf16.mxu0 %v3085
        %4777 = vmatmul.mubr.bf16.gmra.mxu0 %v3084
        %v4778 = vpop.f32.mrf.mxu0
        %v4779 = vadd.f32 %v3329, %v4778
        %v4780 = vpop.f32.mrf.mxu0
        %v4781 = vadd.f32 %v3333, %v4780
        %v4782 = vpop.f32.mrf.mxu0
        %v4783 = vadd.f32 %v3329, %v4782
        %v4784 = vpop.f32.mrf.mxu0
        %v4785 = vadd.f32 %v3333, %v4784
        %4786 = vmatprep.mubr.bf16.mxu0 %v3089
        %4787 = vmatmul.mubr.bf16.gmra.mxu0 %v3088
        %v4788 = vpop.f32.mrf.mxu0
        %v4789 = vadd.f32 %v3329, %v4788
        %v4790 = vpop.f32.mrf.mxu0
        %v4791 = vadd.f32 %v3333, %v4790
        %v4792 = vpop.f32.mrf.mxu0
        %v4793 = vadd.f32 %v3329, %v4792
        %v4794 = vpop.f32.mrf.mxu0
        %v4795 = vadd.f32 %v3333, %v4794
        %4796 = vmatprep.mubr.bf16.mxu0 %v3093
        %4797 = vmatmul.mubr.bf16.gmra.mxu0 %v3092
        %v4798 = vpop.f32.mrf.mxu0
        %v4799 = vadd.f32 %v3329, %v4798
        %v4800 = vpop.f32.mrf.mxu0
        %v4801 = vadd.f32 %v3333, %v4800
        %v4802 = vpop.f32.mrf.mxu0
        %v4803 = vadd.f32 %v3329, %v4802
        %v4804 = vpop.f32.mrf.mxu0
        %v4805 = vadd.f32 %v3333, %v4804
        %4806 = vmatprep.mubr.bf16.mxu0 %v3097
        %4807 = vmatmul.mubr.bf16.gmra.mxu0 %v3096
        %v4808 = vpop.f32.mrf.mxu0
        %v4809 = vadd.f32 %v3329, %v4808
        %v4810 = vpop.f32.mrf.mxu0
        %v4811 = vadd.f32 %v3333, %v4810
        %v4812 = vpop.f32.mrf.mxu0
        %v4813 = vadd.f32 %v3329, %v4812
        %v4814 = vpop.f32.mrf.mxu0
        %v4815 = vadd.f32 %v3333, %v4814
        %4816 = vmatprep.mubr.bf16.mxu0 %v3101
        %4817 = vmatmul.mubr.bf16.gmra.mxu0 %v3100
        %v4818 = vpop.f32.mrf.mxu0
        %v4819 = vadd.f32 %v3329, %v4818
        %v4820 = vpop.f32.mrf.mxu0
        %v4821 = vadd.f32 %v3333, %v4820
        %v4822 = vpop.f32.mrf.mxu0
        %v4823 = vadd.f32 %v3329, %v4822
        %v4824 = vpop.f32.mrf.mxu0
        %v4825 = vadd.f32 %v3333, %v4824
        %4826 = vmatprep.mubr.bf16.mxu0 %v3105
        %4827 = vmatmul.mubr.bf16.gmra.mxu0 %v3104
        %v4828 = vpop.f32.mrf.mxu0
        %v4829 = vadd.f32 %v3329, %v4828
        %v4830 = vpop.f32.mrf.mxu0
        %v4831 = vadd.f32 %v3333, %v4830
        %v4832 = vpop.f32.mrf.mxu0
        %v4833 = vadd.f32 %v3329, %v4832
        %v4834 = vpop.f32.mrf.mxu0
        %v4835 = vadd.f32 %v3333, %v4834
        %4836 = vmatprep.mubr.bf16.mxu0 %v3109
        %4837 = vmatmul.mubr.bf16.gmra.mxu0 %v3108
        %v4838 = vpop.f32.mrf.mxu0
        %v4839 = vadd.f32 %v3329, %v4838
        %v4840 = vpop.f32.mrf.mxu0
        %v4841 = vadd.f32 %v3333, %v4840
        %v4842 = vpop.f32.mrf.mxu0
        %v4843 = vadd.f32 %v3329, %v4842
        %v4844 = vpop.f32.mrf.mxu0
        %v4845 = vadd.f32 %v3333, %v4844
        %4846 = vmatprep.mubr.bf16.mxu0 %v3113
        %4847 = vmatmul.mubr.bf16.gmra.mxu0 %v3112
        %v4848 = vpop.f32.mrf.mxu0
        %v4849 = vadd.f32 %v3329, %v4848
        %v4850 = vpop.f32.mrf.mxu0
        %v4851 = vadd.f32 %v3333, %v4850
        %v4852 = vpop.f32.mrf.mxu0
        %v4853 = vadd.f32 %v3329, %v4852
        %v4854 = vpop.f32.mrf.mxu0
        %v4855 = vadd.f32 %v3333, %v4854
        %4856 = vmatprep.mubr.bf16.mxu0 %v3117
        %4857 = vmatmul.mubr.bf16.gmra.mxu0 %v3116
        %v4858 = vpop.f32.mrf.mxu0
        %v4859 = vadd.f32 %v3329, %v4858
        %v4860 = vpop.f32.mrf.mxu0
        %v4861 = vadd.f32 %v3333, %v4860
        %v4862 = vpop.f32.mrf.mxu0
        %v4863 = vadd.f32 %v3329, %v4862
        %v4864 = vpop.f32.mrf.mxu0
        %v4865 = vadd.f32 %v3333, %v4864
        %4866 = vmatprep.mubr.bf16.mxu0 %v3121
        %4867 = vmatmul.mubr.bf16.gmra.mxu0 %v3120
        %v4868 = vpop.f32.mrf.mxu0
        %v4869 = vadd.f32 %v3329, %v4868
        %v4870 = vpop.f32.mrf.mxu0
        %v4871 = vadd.f32 %v3333, %v4870
        %v4872 = vpop.f32.mrf.mxu0
        %v4873 = vadd.f32 %v3329, %v4872
        %v4874 = vpop.f32.mrf.mxu0
        %v4875 = vadd.f32 %v3333, %v4874
        %4876 = vmatprep.mubr.bf16.mxu0 %v3125
        %4877 = vmatmul.mubr.bf16.gmra.mxu0 %v3124
        %v4878 = vpop.f32.mrf.mxu0
        %v4879 = vadd.f32 %v3329, %v4878
        %v4880 = vpop.f32.mrf.mxu0
        %v4881 = vadd.f32 %v3333, %v4880
        %v4882 = vpop.f32.mrf.mxu0
        %v4883 = vadd.f32 %v3329, %v4882
        %v4884 = vpop.f32.mrf.mxu0
        %v4885 = vadd.f32 %v3333, %v4884
        %4886 = vmatprep.mubr.bf16.mxu0 %v3129
        %4887 = vmatmul.mubr.bf16.gmra.mxu0 %v3128
        %v4888 = vpop.f32.mrf.mxu0
        %v4889 = vadd.f32 %v3329, %v4888
        %v4890 = vpop.f32.mrf.mxu0
        %v4891 = vadd.f32 %v3333, %v4890
        %v4892 = vpop.f32.mrf.mxu0
        %v4893 = vadd.f32 %v3329, %v4892
        %v4894 = vpop.f32.mrf.mxu0
        %v4895 = vadd.f32 %v3333, %v4894
        %4896 = vmatprep.mubr.bf16.mxu0 %v3133
        %4897 = vmatmul.mubr.bf16.gmra.mxu0 %v3132
        %v4898 = vpop.f32.mrf.mxu0
        %v4899 = vadd.f32 %v3329, %v4898
        %v4900 = vpop.f32.mrf.mxu0
        %v4901 = vadd.f32 %v3333, %v4900
        %v4902 = vpop.f32.mrf.mxu0
        %v4903 = vadd.f32 %v3329, %v4902
        %v4904 = vpop.f32.mrf.mxu0
        %v4905 = vadd.f32 %v3333, %v4904
        %4906 = vmatprep.mubr.bf16.mxu0 %v3137
        %4907 = vmatmul.mubr.bf16.gmra.mxu0 %v3136
        %v4908 = vpop.f32.mrf.mxu0
        %v4909 = vadd.f32 %v3329, %v4908
        %v4910 = vpop.f32.mrf.mxu0
        %v4911 = vadd.f32 %v3333, %v4910
        %v4912 = vpop.f32.mrf.mxu0
        %v4913 = vadd.f32 %v3329, %v4912
        %v4914 = vpop.f32.mrf.mxu0
        %v4915 = vadd.f32 %v3333, %v4914
        %4916 = vmatprep.mubr.bf16.mxu0 %v3141
        %4917 = vmatmul.mubr.bf16.gmra.mxu0 %v3140
        %v4918 = vpop.f32.mrf.mxu0
        %v4919 = vadd.f32 %v3329, %v4918
        %v4920 = vpop.f32.mrf.mxu0
        %v4921 = vadd.f32 %v3333, %v4920
        %v4922 = vpop.f32.mrf.mxu0
        %v4923 = vadd.f32 %v3329, %v4922
        %v4924 = vpop.f32.mrf.mxu0
        %v4925 = vadd.f32 %v3333, %v4924
        %4926 = vmatprep.mubr.bf16.mxu0 %v3145
        %4927 = vmatmul.mubr.bf16.gmra.mxu0 %v3144
        %v4928 = vpop.f32.mrf.mxu0
        %v4929 = vadd.f32 %v3329, %v4928
        %v4930 = vpop.f32.mrf.mxu0
        %v4931 = vadd.f32 %v3333, %v4930
        %v4932 = vpop.f32.mrf.mxu0
        %v4933 = vadd.f32 %v3329, %v4932
        %v4934 = vpop.f32.mrf.mxu0
        %v4935 = vadd.f32 %v3333, %v4934
        %4936 = vmatprep.mubr.bf16.mxu0 %v3149
        %4937 = vmatmul.mubr.bf16.gmra.mxu0 %v3148
        %v4938 = vpop.f32.mrf.mxu0
        %v4939 = vadd.f32 %v3329, %v4938
        %v4940 = vpop.f32.mrf.mxu0
        %v4941 = vadd.f32 %v3333, %v4940
        %v4942 = vpop.f32.mrf.mxu0
        %v4943 = vadd.f32 %v3329, %v4942
        %v4944 = vpop.f32.mrf.mxu0
        %v4945 = vadd.f32 %v3333, %v4944
        %4946 = vmatprep.mubr.bf16.mxu0 %v3153
        %4947 = vmatmul.mubr.bf16.gmra.mxu0 %v3152
        %v4948 = vpop.f32.mrf.mxu0
        %v4949 = vadd.f32 %v3329, %v4948
        %v4950 = vpop.f32.mrf.mxu0
        %v4951 = vadd.f32 %v3333, %v4950
        %v4952 = vpop.f32.mrf.mxu0
        %v4953 = vadd.f32 %v3329, %v4952
        %v4954 = vpop.f32.mrf.mxu0
        %v4955 = vadd.f32 %v3333, %v4954
        %4956 = vmatprep.mubr.bf16.mxu0 %v3157
        %4957 = vmatmul.mubr.bf16.gmra.mxu0 %v3156
        %v4958 = vpop.f32.mrf.mxu0
        %v4959 = vadd.f32 %v3329, %v4958
        %v4960 = vpop.f32.mrf.mxu0
        %v4961 = vadd.f32 %v3333, %v4960
        %v4962 = vpop.f32.mrf.mxu0
        %v4963 = vadd.f32 %v3329, %v4962
        %v4964 = vpop.f32.mrf.mxu0
        %v4965 = vadd.f32 %v3333, %v4964
        %4966 = vmatprep.mubr.bf16.mxu0 %v3161
        %4967 = vmatmul.mubr.bf16.gmra.mxu0 %v3160
        %v4968 = vpop.f32.mrf.mxu0
        %v4969 = vadd.f32 %v3329, %v4968
        %v4970 = vpop.f32.mrf.mxu0
        %v4971 = vadd.f32 %v3333, %v4970
        %v4972 = vpop.f32.mrf.mxu0
        %v4973 = vadd.f32 %v3329, %v4972
        %v4974 = vpop.f32.mrf.mxu0
        %v4975 = vadd.f32 %v3333, %v4974
        %4976 = vmatprep.mubr.bf16.mxu0 %v3165
        %4977 = vmatmul.mubr.bf16.gmra.mxu0 %v3164
        %v4978 = vpop.f32.mrf.mxu0
        %v4979 = vadd.f32 %v3329, %v4978
        %v4980 = vpop.f32.mrf.mxu0
        %v4981 = vadd.f32 %v3333, %v4980
        %v4982 = vpop.f32.mrf.mxu0
        %v4983 = vadd.f32 %v3329, %v4982
        %v4984 = vpop.f32.mrf.mxu0
        %v4985 = vadd.f32 %v3333, %v4984
        %4986 = vmatprep.mubr.bf16.mxu0 %v3169
        %4987 = vmatmul.mubr.bf16.gmra.mxu0 %v3168
        %v4988 = vpop.f32.mrf.mxu0
        %v4989 = vadd.f32 %v3329, %v4988
        %v4990 = vpop.f32.mrf.mxu0
        %v4991 = vadd.f32 %v3333, %v4990
        %v4992 = vpop.f32.mrf.mxu0
        %v4993 = vadd.f32 %v3329, %v4992
        %v4994 = vpop.f32.mrf.mxu0
        %v4995 = vadd.f32 %v3333, %v4994
        %4996 = vmatprep.mubr.bf16.mxu0 %v3173
        %4997 = vmatmul.mubr.bf16.gmra.mxu0 %v3172
        %v4998 = vpop.f32.mrf.mxu0
        %v4999 = vadd.f32 %v3329, %v4998
        %v5000 = vpop.f32.mrf.mxu0
        %v5001 = vadd.f32 %v3333, %v5000
        %v5002 = vpop.f32.mrf.mxu0
        %v5003 = vadd.f32 %v3329, %v5002
        %v5004 = vpop.f32.mrf.mxu0
        %v5005 = vadd.f32 %v3333, %v5004
        %5006 = vmatprep.mubr.bf16.mxu0 %v3177
        %5007 = vmatmul.mubr.bf16.gmra.mxu0 %v3176
        %v5008 = vpop.f32.mrf.mxu0
        %v5009 = vadd.f32 %v3329, %v5008
        %v5010 = vpop.f32.mrf.mxu0
        %v5011 = vadd.f32 %v3333, %v5010
        %v5012 = vpop.f32.mrf.mxu0
        %v5013 = vadd.f32 %v3329, %v5012
        %v5014 = vpop.f32.mrf.mxu0
        %v5015 = vadd.f32 %v3333, %v5014
        %5016 = vmatprep.mubr.bf16.mxu0 %v3181
        %5017 = vmatmul.mubr.bf16.gmra.mxu0 %v3180
        %v5018 = vpop.f32.mrf.mxu0
        %v5019 = vadd.f32 %v3329, %v5018
        %v5020 = vpop.f32.mrf.mxu0
        %v5021 = vadd.f32 %v3333, %v5020
        %v5022 = vpop.f32.mrf.mxu0
        %v5023 = vadd.f32 %v3329, %v5022
        %v5024 = vpop.f32.mrf.mxu0
        %v5025 = vadd.f32 %v3333, %v5024
        %5026 = vmatprep.mubr.bf16.mxu0 %v3185
        %5027 = vmatmul.mubr.bf16.gmra.mxu0 %v3184
        %v5028 = vpop.f32.mrf.mxu0
        %v5029 = vadd.f32 %v3329, %v5028
        %v5030 = vpop.f32.mrf.mxu0
        %v5031 = vadd.f32 %v3333, %v5030
        %v5032 = vpop.f32.mrf.mxu0
        %v5033 = vadd.f32 %v3329, %v5032
        %v5034 = vpop.f32.mrf.mxu0
        %v5035 = vadd.f32 %v3333, %v5034
        %5036 = vdwg.mxu0
        %5037 = vmatprep.subr.bf16.mxu0 %v3817
        %5038 = vmatpush1.bf16.msra.mxu0 %v3816
        %5039 = vmatprep.subr.bf16.mxu0 %v3813
        %5040 = vmatpush1.bf16.msra.mxu0 %v3812
        %5041 = vmatprep.subr.bf16.mxu0 %v3809
        %5042 = vmatpush1.bf16.msra.mxu0 %v3808
        %5043 = vmatprep.subr.bf16.mxu0 %v3805
        %5044 = vmatpush1.bf16.msra.mxu0 %v3804
        %5045 = vmatprep.subr.bf16.mxu0 %v3801
        %5046 = vmatpush1.bf16.msra.mxu0 %v3800
        %5047 = vmatprep.subr.bf16.mxu0 %v3797
        %5048 = vmatpush1.bf16.msra.mxu0 %v3796
        %5049 = vmatprep.subr.bf16.mxu0 %v3793
        %5050 = vmatpush1.bf16.msra.mxu0 %v3792
        %5051 = vmatprep.subr.bf16.mxu0 %v3789
        %5052 = vmatpush1.bf16.msra.mxu0 %v3788
        %5053 = vmatprep.subr.bf16.mxu0 %v3849
        %5054 = vmatpush2.bf16.msra.mxu0 %v3848
        %5055 = vmatprep.subr.bf16.mxu0 %v3845
        %5056 = vmatpush2.bf16.msra.mxu0 %v3844
        %5057 = vmatprep.subr.bf16.mxu0 %v3841
        %5058 = vmatpush2.bf16.msra.mxu0 %v3840
        %5059 = vmatprep.subr.bf16.mxu0 %v3837
        %5060 = vmatpush2.bf16.msra.mxu0 %v3836
        %5061 = vmatprep.subr.bf16.mxu0 %v3833
        %5062 = vmatpush2.bf16.msra.mxu0 %v3832
        %5063 = vmatprep.subr.bf16.mxu0 %v3829
        %5064 = vmatpush2.bf16.msra.mxu0 %v3828
        %5065 = vmatprep.subr.bf16.mxu0 %v3825
        %5066 = vmatpush2.bf16.msra.mxu0 %v3824
        %5067 = vmatprep.subr.bf16.mxu0 %v3821
        %5068 = vmatpush2.bf16.msra.mxu0 %v3820
        %5069 = vmatprep.mubr.bf16.mxu0 %v3063
        %5070 = vmatmul.mubr.bf16.gmra.mxu0 %v3062
        %v5071 = vpop.f32.mrf.mxu0
        %v5072 = vadd.f32 %v4719, %v5071
        %v5073 = vpop.f32.mrf.mxu0
        %v5074 = vadd.f32 %v4721, %v5073
        %v5075 = vpop.f32.mrf.mxu0
        %v5076 = vadd.f32 %v4723, %v5075
        %v5077 = vpop.f32.mrf.mxu0
        %v5078 = vadd.f32 %v4725, %v5077
        %5079 = vmatprep.mubr.bf16.mxu0 %v3067
        %5080 = vmatmul.mubr.bf16.gmra.mxu0 %v3066
        %v5081 = vpop.f32.mrf.mxu0
        %v5082 = vadd.f32 %v4729, %v5081
        %v5083 = vpop.f32.mrf.mxu0
        %v5084 = vadd.f32 %v4731, %v5083
        %v5085 = vpop.f32.mrf.mxu0
        %v5086 = vadd.f32 %v4733, %v5085
        %v5087 = vpop.f32.mrf.mxu0
        %v5088 = vadd.f32 %v4735, %v5087
        %5089 = vmatprep.mubr.bf16.mxu0 %v3071
        %5090 = vmatmul.mubr.bf16.gmra.mxu0 %v3070
        %v5091 = vpop.f32.mrf.mxu0
        %v5092 = vadd.f32 %v4739, %v5091
        %v5093 = vpop.f32.mrf.mxu0
        %v5094 = vadd.f32 %v4741, %v5093
        %v5095 = vpop.f32.mrf.mxu0
        %v5096 = vadd.f32 %v4743, %v5095
        %v5097 = vpop.f32.mrf.mxu0
        %v5098 = vadd.f32 %v4745, %v5097
        %5099 = vmatprep.mubr.bf16.mxu0 %v3075
        %5100 = vmatmul.mubr.bf16.gmra.mxu0 %v3074
        %v5101 = vpop.f32.mrf.mxu0
        %v5102 = vadd.f32 %v4749, %v5101
        %v5103 = vpop.f32.mrf.mxu0
        %v5104 = vadd.f32 %v4751, %v5103
        %v5105 = vpop.f32.mrf.mxu0
        %v5106 = vadd.f32 %v4753, %v5105
        %v5107 = vpop.f32.mrf.mxu0
        %v5108 = vadd.f32 %v4755, %v5107
        %5109 = vmatprep.mubr.bf16.mxu0 %v3079
        %5110 = vmatmul.mubr.bf16.gmra.mxu0 %v3078
        %v5111 = vpop.f32.mrf.mxu0
        %v5112 = vadd.f32 %v4759, %v5111
        %v5113 = vpop.f32.mrf.mxu0
        %v5114 = vadd.f32 %v4761, %v5113
        %v5115 = vpop.f32.mrf.mxu0
        %v5116 = vadd.f32 %v4763, %v5115
        %v5117 = vpop.f32.mrf.mxu0
        %v5118 = vadd.f32 %v4765, %v5117
        %5119 = vmatprep.mubr.bf16.mxu0 %v3083
        %5120 = vmatmul.mubr.bf16.gmra.mxu0 %v3082
        %v5121 = vpop.f32.mrf.mxu0
        %v5122 = vadd.f32 %v4769, %v5121
        %v5123 = vpop.f32.mrf.mxu0
        %v5124 = vadd.f32 %v4771, %v5123
        %v5125 = vpop.f32.mrf.mxu0
        %v5126 = vadd.f32 %v4773, %v5125
        %v5127 = vpop.f32.mrf.mxu0
        %v5128 = vadd.f32 %v4775, %v5127
        %5129 = vmatprep.mubr.bf16.mxu0 %v3087
        %5130 = vmatmul.mubr.bf16.gmra.mxu0 %v3086
        %v5131 = vpop.f32.mrf.mxu0
        %v5132 = vadd.f32 %v4779, %v5131
        %v5133 = vpop.f32.mrf.mxu0
        %v5134 = vadd.f32 %v4781, %v5133
        %v5135 = vpop.f32.mrf.mxu0
        %v5136 = vadd.f32 %v4783, %v5135
        %v5137 = vpop.f32.mrf.mxu0
        %v5138 = vadd.f32 %v4785, %v5137
        %5139 = vmatprep.mubr.bf16.mxu0 %v3091
        %5140 = vmatmul.mubr.bf16.gmra.mxu0 %v3090
        %v5141 = vpop.f32.mrf.mxu0
        %v5142 = vadd.f32 %v4789, %v5141
        %v5143 = vpop.f32.mrf.mxu0
        %v5144 = vadd.f32 %v4791, %v5143
        %v5145 = vpop.f32.mrf.mxu0
        %v5146 = vadd.f32 %v4793, %v5145
        %v5147 = vpop.f32.mrf.mxu0
        %v5148 = vadd.f32 %v4795, %v5147
        %5149 = vmatprep.mubr.bf16.mxu0 %v3095
        %5150 = vmatmul.mubr.bf16.gmra.mxu0 %v3094
        %v5151 = vpop.f32.mrf.mxu0
        %v5152 = vadd.f32 %v4799, %v5151
        %v5153 = vpop.f32.mrf.mxu0
        %v5154 = vadd.f32 %v4801, %v5153
        %v5155 = vpop.f32.mrf.mxu0
        %v5156 = vadd.f32 %v4803, %v5155
        %v5157 = vpop.f32.mrf.mxu0
        %v5158 = vadd.f32 %v4805, %v5157
        %5159 = vmatprep.mubr.bf16.mxu0 %v3099
        %5160 = vmatmul.mubr.bf16.gmra.mxu0 %v3098
        %v5161 = vpop.f32.mrf.mxu0
        %v5162 = vadd.f32 %v4809, %v5161
        %v5163 = vpop.f32.mrf.mxu0
        %v5164 = vadd.f32 %v4811, %v5163
        %v5165 = vpop.f32.mrf.mxu0
        %v5166 = vadd.f32 %v4813, %v5165
        %v5167 = vpop.f32.mrf.mxu0
        %v5168 = vadd.f32 %v4815, %v5167
        %5169 = vmatprep.mubr.bf16.mxu0 %v3103
        %5170 = vmatmul.mubr.bf16.gmra.mxu0 %v3102
        %v5171 = vpop.f32.mrf.mxu0
        %v5172 = vadd.f32 %v4819, %v5171
        %v5173 = vpop.f32.mrf.mxu0
        %v5174 = vadd.f32 %v4821, %v5173
        %v5175 = vpop.f32.mrf.mxu0
        %v5176 = vadd.f32 %v4823, %v5175
        %v5177 = vpop.f32.mrf.mxu0
        %v5178 = vadd.f32 %v4825, %v5177
        %5179 = vmatprep.mubr.bf16.mxu0 %v3107
        %5180 = vmatmul.mubr.bf16.gmra.mxu0 %v3106
        %v5181 = vpop.f32.mrf.mxu0
        %v5182 = vadd.f32 %v4829, %v5181
        %v5183 = vpop.f32.mrf.mxu0
        %v5184 = vadd.f32 %v4831, %v5183
        %v5185 = vpop.f32.mrf.mxu0
        %v5186 = vadd.f32 %v4833, %v5185
        %v5187 = vpop.f32.mrf.mxu0
        %v5188 = vadd.f32 %v4835, %v5187
        %5189 = vmatprep.mubr.bf16.mxu0 %v3111
        %5190 = vmatmul.mubr.bf16.gmra.mxu0 %v3110
        %v5191 = vpop.f32.mrf.mxu0
        %v5192 = vadd.f32 %v4839, %v5191
        %v5193 = vpop.f32.mrf.mxu0
        %v5194 = vadd.f32 %v4841, %v5193
        %v5195 = vpop.f32.mrf.mxu0
        %v5196 = vadd.f32 %v4843, %v5195
        %v5197 = vpop.f32.mrf.mxu0
        %v5198 = vadd.f32 %v4845, %v5197
        %5199 = vmatprep.mubr.bf16.mxu0 %v3115
        %5200 = vmatmul.mubr.bf16.gmra.mxu0 %v3114
        %v5201 = vpop.f32.mrf.mxu0
        %v5202 = vadd.f32 %v4849, %v5201
        %v5203 = vpop.f32.mrf.mxu0
        %v5204 = vadd.f32 %v4851, %v5203
        %v5205 = vpop.f32.mrf.mxu0
        %v5206 = vadd.f32 %v4853, %v5205
        %v5207 = vpop.f32.mrf.mxu0
        %v5208 = vadd.f32 %v4855, %v5207
        %5209 = vmatprep.mubr.bf16.mxu0 %v3119
        %5210 = vmatmul.mubr.bf16.gmra.mxu0 %v3118
        %v5211 = vpop.f32.mrf.mxu0
        %v5212 = vadd.f32 %v4859, %v5211
        %v5213 = vpop.f32.mrf.mxu0
        %v5214 = vadd.f32 %v4861, %v5213
        %v5215 = vpop.f32.mrf.mxu0
        %v5216 = vadd.f32 %v4863, %v5215
        %v5217 = vpop.f32.mrf.mxu0
        %v5218 = vadd.f32 %v4865, %v5217
        %5219 = vmatprep.mubr.bf16.mxu0 %v3123
        %5220 = vmatmul.mubr.bf16.gmra.mxu0 %v3122
        %v5221 = vpop.f32.mrf.mxu0
        %v5222 = vadd.f32 %v4869, %v5221
        %v5223 = vpop.f32.mrf.mxu0
        %v5224 = vadd.f32 %v4871, %v5223
        %v5225 = vpop.f32.mrf.mxu0
        %v5226 = vadd.f32 %v4873, %v5225
        %v5227 = vpop.f32.mrf.mxu0
        %v5228 = vadd.f32 %v4875, %v5227
        %5229 = vmatprep.mubr.bf16.mxu0 %v3127
        %5230 = vmatmul.mubr.bf16.gmra.mxu0 %v3126
        %v5231 = vpop.f32.mrf.mxu0
        %v5232 = vadd.f32 %v4879, %v5231
        %v5233 = vpop.f32.mrf.mxu0
        %v5234 = vadd.f32 %v4881, %v5233
        %v5235 = vpop.f32.mrf.mxu0
        %v5236 = vadd.f32 %v4883, %v5235
        %v5237 = vpop.f32.mrf.mxu0
        %v5238 = vadd.f32 %v4885, %v5237
        %5239 = vmatprep.mubr.bf16.mxu0 %v3131
        %5240 = vmatmul.mubr.bf16.gmra.mxu0 %v3130
        %v5241 = vpop.f32.mrf.mxu0
        %v5242 = vadd.f32 %v4889, %v5241
        %v5243 = vpop.f32.mrf.mxu0
        %v5244 = vadd.f32 %v4891, %v5243
        %v5245 = vpop.f32.mrf.mxu0
        %v5246 = vadd.f32 %v4893, %v5245
        %v5247 = vpop.f32.mrf.mxu0
        %v5248 = vadd.f32 %v4895, %v5247
        %5249 = vmatprep.mubr.bf16.mxu0 %v3135
        %5250 = vmatmul.mubr.bf16.gmra.mxu0 %v3134
        %v5251 = vpop.f32.mrf.mxu0
        %v5252 = vadd.f32 %v4899, %v5251
        %v5253 = vpop.f32.mrf.mxu0
        %v5254 = vadd.f32 %v4901, %v5253
        %v5255 = vpop.f32.mrf.mxu0
        %v5256 = vadd.f32 %v4903, %v5255
        %v5257 = vpop.f32.mrf.mxu0
        %v5258 = vadd.f32 %v4905, %v5257
        %5259 = vmatprep.mubr.bf16.mxu0 %v3139
        %5260 = vmatmul.mubr.bf16.gmra.mxu0 %v3138
        %v5261 = vpop.f32.mrf.mxu0
        %v5262 = vadd.f32 %v4909, %v5261
        %v5263 = vpop.f32.mrf.mxu0
        %v5264 = vadd.f32 %v4911, %v5263
        %v5265 = vpop.f32.mrf.mxu0
        %v5266 = vadd.f32 %v4913, %v5265
        %v5267 = vpop.f32.mrf.mxu0
        %v5268 = vadd.f32 %v4915, %v5267
        %5269 = vmatprep.mubr.bf16.mxu0 %v3143
        %5270 = vmatmul.mubr.bf16.gmra.mxu0 %v3142
        %v5271 = vpop.f32.mrf.mxu0
        %v5272 = vadd.f32 %v4919, %v5271
        %v5273 = vpop.f32.mrf.mxu0
        %v5274 = vadd.f32 %v4921, %v5273
        %v5275 = vpop.f32.mrf.mxu0
        %v5276 = vadd.f32 %v4923, %v5275
        %v5277 = vpop.f32.mrf.mxu0
        %v5278 = vadd.f32 %v4925, %v5277
        %5279 = vmatprep.mubr.bf16.mxu0 %v3147
        %5280 = vmatmul.mubr.bf16.gmra.mxu0 %v3146
        %v5281 = vpop.f32.mrf.mxu0
        %v5282 = vadd.f32 %v4929, %v5281
        %v5283 = vpop.f32.mrf.mxu0
        %v5284 = vadd.f32 %v4931, %v5283
        %v5285 = vpop.f32.mrf.mxu0
        %v5286 = vadd.f32 %v4933, %v5285
        %v5287 = vpop.f32.mrf.mxu0
        %v5288 = vadd.f32 %v4935, %v5287
        %5289 = vmatprep.mubr.bf16.mxu0 %v3151
        %5290 = vmatmul.mubr.bf16.gmra.mxu0 %v3150
        %v5291 = vpop.f32.mrf.mxu0
        %v5292 = vadd.f32 %v4939, %v5291
        %v5293 = vpop.f32.mrf.mxu0
        %v5294 = vadd.f32 %v4941, %v5293
        %v5295 = vpop.f32.mrf.mxu0
        %v5296 = vadd.f32 %v4943, %v5295
        %v5297 = vpop.f32.mrf.mxu0
        %v5298 = vadd.f32 %v4945, %v5297
        %5299 = vmatprep.mubr.bf16.mxu0 %v3155
        %5300 = vmatmul.mubr.bf16.gmra.mxu0 %v3154
        %v5301 = vpop.f32.mrf.mxu0
        %v5302 = vadd.f32 %v4949, %v5301
        %v5303 = vpop.f32.mrf.mxu0
        %v5304 = vadd.f32 %v4951, %v5303
        %v5305 = vpop.f32.mrf.mxu0
        %v5306 = vadd.f32 %v4953, %v5305
        %v5307 = vpop.f32.mrf.mxu0
        %v5308 = vadd.f32 %v4955, %v5307
        %5309 = vmatprep.mubr.bf16.mxu0 %v3159
        %5310 = vmatmul.mubr.bf16.gmra.mxu0 %v3158
        %v5311 = vpop.f32.mrf.mxu0
        %v5312 = vadd.f32 %v4959, %v5311
        %v5313 = vpop.f32.mrf.mxu0
        %v5314 = vadd.f32 %v4961, %v5313
        %v5315 = vpop.f32.mrf.mxu0
        %v5316 = vadd.f32 %v4963, %v5315
        %v5317 = vpop.f32.mrf.mxu0
        %v5318 = vadd.f32 %v4965, %v5317
        %5319 = vmatprep.mubr.bf16.mxu0 %v3163
        %5320 = vmatmul.mubr.bf16.gmra.mxu0 %v3162
        %v5321 = vpop.f32.mrf.mxu0
        %v5322 = vadd.f32 %v4969, %v5321
        %v5323 = vpop.f32.mrf.mxu0
        %v5324 = vadd.f32 %v4971, %v5323
        %v5325 = vpop.f32.mrf.mxu0
        %v5326 = vadd.f32 %v4973, %v5325
        %v5327 = vpop.f32.mrf.mxu0
        %v5328 = vadd.f32 %v4975, %v5327
        %5329 = vmatprep.mubr.bf16.mxu0 %v3167
        %5330 = vmatmul.mubr.bf16.gmra.mxu0 %v3166
        %v5331 = vpop.f32.mrf.mxu0
        %v5332 = vadd.f32 %v4979, %v5331
        %v5333 = vpop.f32.mrf.mxu0
        %v5334 = vadd.f32 %v4981, %v5333
        %v5335 = vpop.f32.mrf.mxu0
        %v5336 = vadd.f32 %v4983, %v5335
        %v5337 = vpop.f32.mrf.mxu0
        %v5338 = vadd.f32 %v4985, %v5337
        %5339 = vmatprep.mubr.bf16.mxu0 %v3171
        %5340 = vmatmul.mubr.bf16.gmra.mxu0 %v3170
        %v5341 = vpop.f32.mrf.mxu0
        %v5342 = vadd.f32 %v4989, %v5341
        %v5343 = vpop.f32.mrf.mxu0
        %v5344 = vadd.f32 %v4991, %v5343
        %v5345 = vpop.f32.mrf.mxu0
        %v5346 = vadd.f32 %v4993, %v5345
        %v5347 = vpop.f32.mrf.mxu0
        %v5348 = vadd.f32 %v4995, %v5347
        %5349 = vmatprep.mubr.bf16.mxu0 %v3175
        %5350 = vmatmul.mubr.bf16.gmra.mxu0 %v3174
        %v5351 = vpop.f32.mrf.mxu0
        %v5352 = vadd.f32 %v4999, %v5351
        %v5353 = vpop.f32.mrf.mxu0
        %v5354 = vadd.f32 %v5001, %v5353
        %v5355 = vpop.f32.mrf.mxu0
        %v5356 = vadd.f32 %v5003, %v5355
        %v5357 = vpop.f32.mrf.mxu0
        %v5358 = vadd.f32 %v5005, %v5357
        %5359 = vmatprep.mubr.bf16.mxu0 %v3179
        %5360 = vmatmul.mubr.bf16.gmra.mxu0 %v3178
        %v5361 = vpop.f32.mrf.mxu0
        %v5362 = vadd.f32 %v5009, %v5361
        %v5363 = vpop.f32.mrf.mxu0
        %v5364 = vadd.f32 %v5011, %v5363
        %v5365 = vpop.f32.mrf.mxu0
        %v5366 = vadd.f32 %v5013, %v5365
        %v5367 = vpop.f32.mrf.mxu0
        %v5368 = vadd.f32 %v5015, %v5367
        %5369 = vmatprep.mubr.bf16.mxu0 %v3183
        %5370 = vmatmul.mubr.bf16.gmra.mxu0 %v3182
        %v5371 = vpop.f32.mrf.mxu0
        %v5372 = vadd.f32 %v5019, %v5371
        %v5373 = vpop.f32.mrf.mxu0
        %v5374 = vadd.f32 %v5021, %v5373
        %v5375 = vpop.f32.mrf.mxu0
        %v5376 = vadd.f32 %v5023, %v5375
        %v5377 = vpop.f32.mrf.mxu0
        %v5378 = vadd.f32 %v5025, %v5377
        %5379 = vmatprep.mubr.bf16.mxu0 %v3187
        %5380 = vmatmul.mubr.bf16.gmra.mxu0 %v3186
        %v5381 = vpop.f32.mrf.mxu0
        %v5382 = vadd.f32 %v5029, %v5381
        %v5383 = vpop.f32.mrf.mxu0
        %v5384 = vadd.f32 %v5031, %v5383
        %v5385 = vpop.f32.mrf.mxu0
        %v5386 = vadd.f32 %v5033, %v5385
        %v5387 = vpop.f32.mrf.mxu0
        %v5388 = vadd.f32 %v5035, %v5387
        %5389 = vdwg.mxu0
        %v5390 = vmax.f32 %v4366, 0.0
        %v5391 = vmax.f32 %v4368, 0.0
        %v5392 = vmax.f32 %v5072, 0.0
        %v5393 = vmax.f32 %v5074, 0.0
        %v5394 = vmax.f32 %v4370, 0.0
        %v5395 = vmax.f32 %v4372, 0.0
        %v5396 = vmax.f32 %v5076, 0.0
        %v5397 = vmax.f32 %v5078, 0.0
        %v5398 = vmax.f32 %v4376, 0.0
        %v5399 = vmax.f32 %v4378, 0.0
        %v5400 = vmax.f32 %v5082, 0.0
        %v5401 = vmax.f32 %v5084, 0.0
        %v5402 = vmax.f32 %v4380, 0.0
        %v5403 = vmax.f32 %v4382, 0.0
        %v5404 = vmax.f32 %v5086, 0.0
        %v5405 = vmax.f32 %v5088, 0.0
        %v5406 = vmax.f32 %v4386, 0.0
        %v5407 = vmax.f32 %v4388, 0.0
        %v5408 = vmax.f32 %v5092, 0.0
        %v5409 = vmax.f32 %v5094, 0.0
        %v5410 = vmax.f32 %v4390, 0.0
        %v5411 = vmax.f32 %v4392, 0.0
        %v5412 = vmax.f32 %v5096, 0.0
        %v5413 = vmax.f32 %v5098, 0.0
        %v5414 = vmax.f32 %v4396, 0.0
        %v5415 = vmax.f32 %v4398, 0.0
        %v5416 = vmax.f32 %v5102, 0.0
        %v5417 = vmax.f32 %v5104, 0.0
        %v5418 = vmax.f32 %v4400, 0.0
        %v5419 = vmax.f32 %v4402, 0.0
        %v5420 = vmax.f32 %v5106, 0.0
        %v5421 = vmax.f32 %v5108, 0.0
        %v5422 = vmax.f32 %v4406, 0.0
        %v5423 = vmax.f32 %v4408, 0.0
        %v5424 = vmax.f32 %v5112, 0.0
        %v5425 = vmax.f32 %v5114, 0.0
        %v5426 = vmax.f32 %v4410, 0.0
        %v5427 = vmax.f32 %v4412, 0.0
        %v5428 = vmax.f32 %v5116, 0.0
        %v5429 = vmax.f32 %v5118, 0.0
        %v5430 = vmax.f32 %v4416, 0.0
        %v5431 = vmax.f32 %v4418, 0.0
        %v5432 = vmax.f32 %v5122, 0.0
        %v5433 = vmax.f32 %v5124, 0.0
        %v5434 = vmax.f32 %v4420, 0.0
        %v5435 = vmax.f32 %v4422, 0.0
        %v5436 = vmax.f32 %v5126, 0.0
        %v5437 = vmax.f32 %v5128, 0.0
        %v5438 = vmax.f32 %v4426, 0.0
        %v5439 = vmax.f32 %v4428, 0.0
        %v5440 = vmax.f32 %v5132, 0.0
        %v5441 = vmax.f32 %v5134, 0.0
        %v5442 = vmax.f32 %v4430, 0.0
        %v5443 = vmax.f32 %v4432, 0.0
        %v5444 = vmax.f32 %v5136, 0.0
        %v5445 = vmax.f32 %v5138, 0.0
        %v5446 = vmax.f32 %v4436, 0.0
        %v5447 = vmax.f32 %v4438, 0.0
        %v5448 = vmax.f32 %v5142, 0.0
        %v5449 = vmax.f32 %v5144, 0.0
        %v5450 = vmax.f32 %v4440, 0.0
        %v5451 = vmax.f32 %v4442, 0.0
        %v5452 = vmax.f32 %v5146, 0.0
        %v5453 = vmax.f32 %v5148, 0.0
        %v5454 = vmax.f32 %v4446, 0.0
        %v5455 = vmax.f32 %v4448, 0.0
        %v5456 = vmax.f32 %v5152, 0.0
        %v5457 = vmax.f32 %v5154, 0.0
        %v5458 = vmax.f32 %v4450, 0.0
        %v5459 = vmax.f32 %v4452, 0.0
        %v5460 = vmax.f32 %v5156, 0.0
        %v5461 = vmax.f32 %v5158, 0.0
        %v5462 = vmax.f32 %v4456, 0.0
        %v5463 = vmax.f32 %v4458, 0.0
        %v5464 = vmax.f32 %v5162, 0.0
        %v5465 = vmax.f32 %v5164, 0.0
        %v5466 = vmax.f32 %v4460, 0.0
        %v5467 = vmax.f32 %v4462, 0.0
        %v5468 = vmax.f32 %v5166, 0.0
        %v5469 = vmax.f32 %v5168, 0.0
        %v5470 = vmax.f32 %v4466, 0.0
        %v5471 = vmax.f32 %v4468, 0.0
        %v5472 = vmax.f32 %v5172, 0.0
        %v5473 = vmax.f32 %v5174, 0.0
        %v5474 = vmax.f32 %v4470, 0.0
        %v5475 = vmax.f32 %v4472, 0.0
        %v5476 = vmax.f32 %v5176, 0.0
        %v5477 = vmax.f32 %v5178, 0.0
        %v5478 = vmax.f32 %v4476, 0.0
        %v5479 = vmax.f32 %v4478, 0.0
        %v5480 = vmax.f32 %v5182, 0.0
        %v5481 = vmax.f32 %v5184, 0.0
        %v5482 = vmax.f32 %v4480, 0.0
        %v5483 = vmax.f32 %v4482, 0.0
        %v5484 = vmax.f32 %v5186, 0.0
        %v5485 = vmax.f32 %v5188, 0.0
        %v5486 = vmax.f32 %v4486, 0.0
        %v5487 = vmax.f32 %v4488, 0.0
        %v5488 = vmax.f32 %v5192, 0.0
        %v5489 = vmax.f32 %v5194, 0.0
        %v5490 = vmax.f32 %v4490, 0.0
        %v5491 = vmax.f32 %v4492, 0.0
        %v5492 = vmax.f32 %v5196, 0.0
        %v5493 = vmax.f32 %v5198, 0.0
        %v5494 = vmax.f32 %v4496, 0.0
        %v5495 = vmax.f32 %v4498, 0.0
        %v5496 = vmax.f32 %v5202, 0.0
        %v5497 = vmax.f32 %v5204, 0.0
        %v5498 = vmax.f32 %v4500, 0.0
        %v5499 = vmax.f32 %v4502, 0.0
        %v5500 = vmax.f32 %v5206, 0.0
        %v5501 = vmax.f32 %v5208, 0.0
        %v5502 = vmax.f32 %v4506, 0.0
        %v5503 = vmax.f32 %v4508, 0.0
        %v5504 = vmax.f32 %v5212, 0.0
        %v5505 = vmax.f32 %v5214, 0.0
        %v5506 = vmax.f32 %v4510, 0.0
        %v5507 = vmax.f32 %v4512, 0.0
        %v5508 = vmax.f32 %v5216, 0.0
        %v5509 = vmax.f32 %v5218, 0.0
        %v5510 = vmax.f32 %v4516, 0.0
        %v5511 = vmax.f32 %v4518, 0.0
        %v5512 = vmax.f32 %v5222, 0.0
        %v5513 = vmax.f32 %v5224, 0.0
        %v5514 = vmax.f32 %v4520, 0.0
        %v5515 = vmax.f32 %v4522, 0.0
        %v5516 = vmax.f32 %v5226, 0.0
        %v5517 = vmax.f32 %v5228, 0.0
        %v5518 = vmax.f32 %v4526, 0.0
        %v5519 = vmax.f32 %v4528, 0.0
        %v5520 = vmax.f32 %v5232, 0.0
        %v5521 = vmax.f32 %v5234, 0.0
        %v5522 = vmax.f32 %v4530, 0.0
        %v5523 = vmax.f32 %v4532, 0.0
        %v5524 = vmax.f32 %v5236, 0.0
        %v5525 = vmax.f32 %v5238, 0.0
        %v5526 = vmax.f32 %v4536, 0.0
        %v5527 = vmax.f32 %v4538, 0.0
        %v5528 = vmax.f32 %v5242, 0.0
        %v5529 = vmax.f32 %v5244, 0.0
        %v5530 = vmax.f32 %v4540, 0.0
        %v5531 = vmax.f32 %v4542, 0.0
        %v5532 = vmax.f32 %v5246, 0.0
        %v5533 = vmax.f32 %v5248, 0.0
        %v5534 = vmax.f32 %v4546, 0.0
        %v5535 = vmax.f32 %v4548, 0.0
        %v5536 = vmax.f32 %v5252, 0.0
        %v5537 = vmax.f32 %v5254, 0.0
        %v5538 = vmax.f32 %v4550, 0.0
        %v5539 = vmax.f32 %v4552, 0.0
        %v5540 = vmax.f32 %v5256, 0.0
        %v5541 = vmax.f32 %v5258, 0.0
        %v5542 = vmax.f32 %v4556, 0.0
        %v5543 = vmax.f32 %v4558, 0.0
        %v5544 = vmax.f32 %v5262, 0.0
        %v5545 = vmax.f32 %v5264, 0.0
        %v5546 = vmax.f32 %v4560, 0.0
        %v5547 = vmax.f32 %v4562, 0.0
        %v5548 = vmax.f32 %v5266, 0.0
        %v5549 = vmax.f32 %v5268, 0.0
        %v5550 = vmax.f32 %v4566, 0.0
        %v5551 = vmax.f32 %v4568, 0.0
        %v5552 = vmax.f32 %v5272, 0.0
        %v5553 = vmax.f32 %v5274, 0.0
        %v5554 = vmax.f32 %v4570, 0.0
        %v5555 = vmax.f32 %v4572, 0.0
        %v5556 = vmax.f32 %v5276, 0.0
        %v5557 = vmax.f32 %v5278, 0.0
        %v5558 = vmax.f32 %v4576, 0.0
        %v5559 = vmax.f32 %v4578, 0.0
        %v5560 = vmax.f32 %v5282, 0.0
        %v5561 = vmax.f32 %v5284, 0.0
        %v5562 = vmax.f32 %v4580, 0.0
        %v5563 = vmax.f32 %v4582, 0.0
        %v5564 = vmax.f32 %v5286, 0.0
        %v5565 = vmax.f32 %v5288, 0.0
        %v5566 = vmax.f32 %v4586, 0.0
        %v5567 = vmax.f32 %v4588, 0.0
        %v5568 = vmax.f32 %v5292, 0.0
        %v5569 = vmax.f32 %v5294, 0.0
        %v5570 = vmax.f32 %v4590, 0.0
        %v5571 = vmax.f32 %v4592, 0.0
        %v5572 = vmax.f32 %v5296, 0.0
        %v5573 = vmax.f32 %v5298, 0.0
        %v5574 = vmax.f32 %v4596, 0.0
        %v5575 = vmax.f32 %v4598, 0.0
        %v5576 = vmax.f32 %v5302, 0.0
        %v5577 = vmax.f32 %v5304, 0.0
        %v5578 = vmax.f32 %v4600, 0.0
        %v5579 = vmax.f32 %v4602, 0.0
        %v5580 = vmax.f32 %v5306, 0.0
        %v5581 = vmax.f32 %v5308, 0.0
        %v5582 = vmax.f32 %v4606, 0.0
        %v5583 = vmax.f32 %v4608, 0.0
        %v5584 = vmax.f32 %v5312, 0.0
        %v5585 = vmax.f32 %v5314, 0.0
        %v5586 = vmax.f32 %v4610, 0.0
        %v5587 = vmax.f32 %v4612, 0.0
        %v5588 = vmax.f32 %v5316, 0.0
        %v5589 = vmax.f32 %v5318, 0.0
        %v5590 = vmax.f32 %v4616, 0.0
        %v5591 = vmax.f32 %v4618, 0.0
        %v5592 = vmax.f32 %v5322, 0.0
        %v5593 = vmax.f32 %v5324, 0.0
        %v5594 = vmax.f32 %v4620, 0.0
        %v5595 = vmax.f32 %v4622, 0.0
        %v5596 = vmax.f32 %v5326, 0.0
        %v5597 = vmax.f32 %v5328, 0.0
        %v5598 = vmax.f32 %v4626, 0.0
        %v5599 = vmax.f32 %v4628, 0.0
        %v5600 = vmax.f32 %v5332, 0.0
        %v5601 = vmax.f32 %v5334, 0.0
        %v5602 = vmax.f32 %v4630, 0.0
        %v5603 = vmax.f32 %v4632, 0.0
        %v5604 = vmax.f32 %v5336, 0.0
        %v5605 = vmax.f32 %v5338, 0.0
        %v5606 = vmax.f32 %v4636, 0.0
        %v5607 = vmax.f32 %v4638, 0.0
        %v5608 = vmax.f32 %v5342, 0.0
        %v5609 = vmax.f32 %v5344, 0.0
        %v5610 = vmax.f32 %v4640, 0.0
        %v5611 = vmax.f32 %v4642, 0.0
        %v5612 = vmax.f32 %v5346, 0.0
        %v5613 = vmax.f32 %v5348, 0.0
        %v5614 = vmax.f32 %v4646, 0.0
        %v5615 = vmax.f32 %v4648, 0.0
        %v5616 = vmax.f32 %v5352, 0.0
        %v5617 = vmax.f32 %v5354, 0.0
        %v5618 = vmax.f32 %v4650, 0.0
        %v5619 = vmax.f32 %v4652, 0.0
        %v5620 = vmax.f32 %v5356, 0.0
        %v5621 = vmax.f32 %v5358, 0.0
        %v5622 = vmax.f32 %v4656, 0.0
        %v5623 = vmax.f32 %v4658, 0.0
        %v5624 = vmax.f32 %v5362, 0.0
        %v5625 = vmax.f32 %v5364, 0.0
        %v5626 = vmax.f32 %v4660, 0.0
        %v5627 = vmax.f32 %v4662, 0.0
        %v5628 = vmax.f32 %v5366, 0.0
        %v5629 = vmax.f32 %v5368, 0.0
        %v5630 = vmax.f32 %v4666, 0.0
        %v5631 = vmax.f32 %v4668, 0.0
        %v5632 = vmax.f32 %v5372, 0.0
        %v5633 = vmax.f32 %v5374, 0.0
        %v5634 = vmax.f32 %v4670, 0.0
        %v5635 = vmax.f32 %v4672, 0.0
        %v5636 = vmax.f32 %v5376, 0.0
        %v5637 = vmax.f32 %v5378, 0.0
        %v5638 = vmax.f32 %v4676, 0.0
        %v5639 = vmax.f32 %v4678, 0.0
        %v5640 = vmax.f32 %v5382, 0.0
        %v5641 = vmax.f32 %v5384, 0.0
        %v5642 = vmax.f32 %v4680, 0.0
        %v5643 = vmax.f32 %v4682, 0.0
        %v5644 = vmax.f32 %v5386, 0.0
        %v5645 = vmax.f32 %v5388, 0.0
        %v5646 = vpack.c.bf16 %v5394, %v5390
        %v5647 = vpack.c.bf16 %v5395, %v5391
        %v5648 = vpack.c.bf16 %v5396, %v5392
        %v5649 = vpack.c.bf16 %v5397, %v5393
        %v5650 = vpack.c.bf16 %v5402, %v5398
        %v5651 = vpack.c.bf16 %v5403, %v5399
        %v5652 = vpack.c.bf16 %v5404, %v5400
        %v5653 = vpack.c.bf16 %v5405, %v5401
        %v5654 = vpack.c.bf16 %v5410, %v5406
        %v5655 = vpack.c.bf16 %v5411, %v5407
        %v5656 = vpack.c.bf16 %v5412, %v5408
        %v5657 = vpack.c.bf16 %v5413, %v5409
        %v5658 = vpack.c.bf16 %v5418, %v5414
        %v5659 = vpack.c.bf16 %v5419, %v5415
        %v5660 = vpack.c.bf16 %v5420, %v5416
        %v5661 = vpack.c.bf16 %v5421, %v5417
        %v5662 = vpack.c.bf16 %v5426, %v5422
        %v5663 = vpack.c.bf16 %v5427, %v5423
        %v5664 = vpack.c.bf16 %v5428, %v5424
        %v5665 = vpack.c.bf16 %v5429, %v5425
        %v5666 = vpack.c.bf16 %v5434, %v5430
        %v5667 = vpack.c.bf16 %v5435, %v5431
        %v5668 = vpack.c.bf16 %v5436, %v5432
        %v5669 = vpack.c.bf16 %v5437, %v5433
        %v5670 = vpack.c.bf16 %v5442, %v5438
        %v5671 = vpack.c.bf16 %v5443, %v5439
        %v5672 = vpack.c.bf16 %v5444, %v5440
        %v5673 = vpack.c.bf16 %v5445, %v5441
        %v5674 = vpack.c.bf16 %v5450, %v5446
        %v5675 = vpack.c.bf16 %v5451, %v5447
        %v5676 = vpack.c.bf16 %v5452, %v5448
        %v5677 = vpack.c.bf16 %v5453, %v5449
        %v5678 = vpack.c.bf16 %v5458, %v5454
        %v5679 = vpack.c.bf16 %v5459, %v5455
        %v5680 = vpack.c.bf16 %v5460, %v5456
        %v5681 = vpack.c.bf16 %v5461, %v5457
        %v5682 = vpack.c.bf16 %v5466, %v5462
        %v5683 = vpack.c.bf16 %v5467, %v5463
        %v5684 = vpack.c.bf16 %v5468, %v5464
        %v5685 = vpack.c.bf16 %v5469, %v5465
        %v5686 = vpack.c.bf16 %v5474, %v5470
        %v5687 = vpack.c.bf16 %v5475, %v5471
        %v5688 = vpack.c.bf16 %v5476, %v5472
        %v5689 = vpack.c.bf16 %v5477, %v5473
        %v5690 = vpack.c.bf16 %v5482, %v5478
        %v5691 = vpack.c.bf16 %v5483, %v5479
        %v5692 = vpack.c.bf16 %v5484, %v5480
        %v5693 = vpack.c.bf16 %v5485, %v5481
        %v5694 = vpack.c.bf16 %v5490, %v5486
        %v5695 = vpack.c.bf16 %v5491, %v5487
        %v5696 = vpack.c.bf16 %v5492, %v5488
        %v5697 = vpack.c.bf16 %v5493, %v5489
        %v5698 = vpack.c.bf16 %v5498, %v5494
        %v5699 = vpack.c.bf16 %v5499, %v5495
        %v5700 = vpack.c.bf16 %v5500, %v5496
        %v5701 = vpack.c.bf16 %v5501, %v5497
        %v5702 = vpack.c.bf16 %v5506, %v5502
        %v5703 = vpack.c.bf16 %v5507, %v5503
        %v5704 = vpack.c.bf16 %v5508, %v5504
        %v5705 = vpack.c.bf16 %v5509, %v5505
        %v5706 = vpack.c.bf16 %v5514, %v5510
        %v5707 = vpack.c.bf16 %v5515, %v5511
        %v5708 = vpack.c.bf16 %v5516, %v5512
        %v5709 = vpack.c.bf16 %v5517, %v5513
        %v5710 = vpack.c.bf16 %v5522, %v5518
        %v5711 = vpack.c.bf16 %v5523, %v5519
        %v5712 = vpack.c.bf16 %v5524, %v5520
        %v5713 = vpack.c.bf16 %v5525, %v5521
        %v5714 = vpack.c.bf16 %v5530, %v5526
        %v5715 = vpack.c.bf16 %v5531, %v5527
        %v5716 = vpack.c.bf16 %v5532, %v5528
        %v5717 = vpack.c.bf16 %v5533, %v5529
        %v5718 = vpack.c.bf16 %v5538, %v5534
        %v5719 = vpack.c.bf16 %v5539, %v5535
        %v5720 = vpack.c.bf16 %v5540, %v5536
        %v5721 = vpack.c.bf16 %v5541, %v5537
        %v5722 = vpack.c.bf16 %v5546, %v5542
        %v5723 = vpack.c.bf16 %v5547, %v5543
        %v5724 = vpack.c.bf16 %v5548, %v5544
        %v5725 = vpack.c.bf16 %v5549, %v5545
        %v5726 = vpack.c.bf16 %v5554, %v5550
        %v5727 = vpack.c.bf16 %v5555, %v5551
        %v5728 = vpack.c.bf16 %v5556, %v5552
        %v5729 = vpack.c.bf16 %v5557, %v5553
        %v5730 = vpack.c.bf16 %v5562, %v5558
        %v5731 = vpack.c.bf16 %v5563, %v5559
        %v5732 = vpack.c.bf16 %v5564, %v5560
        %v5733 = vpack.c.bf16 %v5565, %v5561
        %v5734 = vpack.c.bf16 %v5570, %v5566
        %v5735 = vpack.c.bf16 %v5571, %v5567
        %v5736 = vpack.c.bf16 %v5572, %v5568
        %v5737 = vpack.c.bf16 %v5573, %v5569
        %v5738 = vpack.c.bf16 %v5578, %v5574
        %v5739 = vpack.c.bf16 %v5579, %v5575
        %v5740 = vpack.c.bf16 %v5580, %v5576
        %v5741 = vpack.c.bf16 %v5581, %v5577
        %v5742 = vpack.c.bf16 %v5586, %v5582
        %v5743 = vpack.c.bf16 %v5587, %v5583
        %v5744 = vpack.c.bf16 %v5588, %v5584
        %v5745 = vpack.c.bf16 %v5589, %v5585
        %v5746 = vpack.c.bf16 %v5594, %v5590
        %v5747 = vpack.c.bf16 %v5595, %v5591
        %v5748 = vpack.c.bf16 %v5596, %v5592
        %v5749 = vpack.c.bf16 %v5597, %v5593
        %v5750 = vpack.c.bf16 %v5602, %v5598
        %v5751 = vpack.c.bf16 %v5603, %v5599
        %v5752 = vpack.c.bf16 %v5604, %v5600
        %v5753 = vpack.c.bf16 %v5605, %v5601
        %v5754 = vpack.c.bf16 %v5610, %v5606
        %v5755 = vpack.c.bf16 %v5611, %v5607
        %v5756 = vpack.c.bf16 %v5612, %v5608
        %v5757 = vpack.c.bf16 %v5613, %v5609
        %v5758 = vpack.c.bf16 %v5618, %v5614
        %v5759 = vpack.c.bf16 %v5619, %v5615
        %v5760 = vpack.c.bf16 %v5620, %v5616
        %v5761 = vpack.c.bf16 %v5621, %v5617
        %v5762 = vpack.c.bf16 %v5626, %v5622
        %v5763 = vpack.c.bf16 %v5627, %v5623
        %v5764 = vpack.c.bf16 %v5628, %v5624
        %v5765 = vpack.c.bf16 %v5629, %v5625
        %v5766 = vpack.c.bf16 %v5634, %v5630
        %v5767 = vpack.c.bf16 %v5635, %v5631
        %v5768 = vpack.c.bf16 %v5636, %v5632
        %v5769 = vpack.c.bf16 %v5637, %v5633
        %v5770 = vpack.c.bf16 %v5642, %v5638
        %v5771 = vpack.c.bf16 %v5643, %v5639
        %v5772 = vpack.c.bf16 %v5644, %v5640
        %v5773 = vpack.c.bf16 %v5645, %v5641
        %v5774 = vld [vmem:[#allocation10] sm:$0xff]
        %v5775 = vld [vmem:[#allocation10 + $0x8] sm:$0xff]
        %v5776 = vld [vmem:[#allocation10 + $0x10] sm:$0xff]
        %v5777 = vld [vmem:[#allocation10 + $0x18] sm:$0xff]
        %v5778 = vld [vmem:[#allocation10 + $0x20] sm:$0xff]
        %v5779 = vld [vmem:[#allocation10 + $0x28] sm:$0xff]
        %v5780 = vld [vmem:[#allocation10 + $0x30] sm:$0xff]
        %v5781 = vld [vmem:[#allocation10 + $0x38] sm:$0xff]
        %v5782 = vld [vmem:[#allocation10 + $0x40] sm:$0xff]
        %v5783 = vld [vmem:[#allocation10 + $0x48] sm:$0xff]
        %v5784 = vld [vmem:[#allocation10 + $0x50] sm:$0xff]
        %v5785 = vld [vmem:[#allocation10 + $0x58] sm:$0xff]
        %v5786 = vld [vmem:[#allocation10 + $0x60] sm:$0xff]
        %v5787 = vld [vmem:[#allocation10 + $0x68] sm:$0xff]
        %v5788 = vld [vmem:[#allocation10 + $0x70] sm:$0xff]
        %v5789 = vld [vmem:[#allocation10 + $0x78] sm:$0xff]
        %v5790 = vld [vmem:[#allocation10 + $0x80] sm:$0xff]
        %v5791 = vld [vmem:[#allocation10 + $0x88] sm:$0xff]
        %v5792 = vld [vmem:[#allocation10 + $0x90] sm:$0xff]
        %v5793 = vld [vmem:[#allocation10 + $0x98] sm:$0xff]
        %v5794 = vld [vmem:[#allocation10 + $0xa0] sm:$0xff]
        %v5795 = vld [vmem:[#allocation10 + $0xa8] sm:$0xff]
        %v5796 = vld [vmem:[#allocation10 + $0xb0] sm:$0xff]
        %v5797 = vld [vmem:[#allocation10 + $0xb8] sm:$0xff]
        %v5798 = vld [vmem:[#allocation10 + $0xc0] sm:$0xff]
        %v5799 = vld [vmem:[#allocation10 + $0xc8] sm:$0xff]
        %v5800 = vld [vmem:[#allocation10 + $0xd0] sm:$0xff]
        %v5801 = vld [vmem:[#allocation10 + $0xd8] sm:$0xff]
        %v5802 = vld [vmem:[#allocation10 + $0xe0] sm:$0xff]
        %v5803 = vld [vmem:[#allocation10 + $0xe8] sm:$0xff]
        %v5804 = vld [vmem:[#allocation10 + $0xf0] sm:$0xff]
        %v5805 = vld [vmem:[#allocation10 + $0xf8] sm:$0xff]
        %v5806 = vld [vmem:[#allocation10 + $0x100] sm:$0xff]
        %v5807 = vld [vmem:[#allocation10 + $0x108] sm:$0xff]
        %v5808 = vld [vmem:[#allocation10 + $0x110] sm:$0xff]
        %v5809 = vld [vmem:[#allocation10 + $0x118] sm:$0xff]
        %v5810 = vld [vmem:[#allocation10 + $0x120] sm:$0xff]
        %v5811 = vld [vmem:[#allocation10 + $0x128] sm:$0xff]
        %v5812 = vld [vmem:[#allocation10 + $0x130] sm:$0xff]
        %v5813 = vld [vmem:[#allocation10 + $0x138] sm:$0xff]
        %v5814 = vld [vmem:[#allocation10 + $0x140] sm:$0xff]
        %v5815 = vld [vmem:[#allocation10 + $0x148] sm:$0xff]
        %v5816 = vld [vmem:[#allocation10 + $0x150] sm:$0xff]
        %v5817 = vld [vmem:[#allocation10 + $0x158] sm:$0xff]
        %v5818 = vld [vmem:[#allocation10 + $0x160] sm:$0xff]
        %v5819 = vld [vmem:[#allocation10 + $0x168] sm:$0xff]
        %v5820 = vld [vmem:[#allocation10 + $0x170] sm:$0xff]
        %v5821 = vld [vmem:[#allocation10 + $0x178] sm:$0xff]
        %v5822 = vld [vmem:[#allocation10 + $0x180] sm:$0xff]
        %v5823 = vld [vmem:[#allocation10 + $0x188] sm:$0xff]
        %v5824 = vld [vmem:[#allocation10 + $0x190] sm:$0xff]
        %v5825 = vld [vmem:[#allocation10 + $0x198] sm:$0xff]
        %v5826 = vld [vmem:[#allocation10 + $0x1a0] sm:$0xff]
        %v5827 = vld [vmem:[#allocation10 + $0x1a8] sm:$0xff]
        %v5828 = vld [vmem:[#allocation10 + $0x1b0] sm:$0xff]
        %v5829 = vld [vmem:[#allocation10 + $0x1b8] sm:$0xff]
        %v5830 = vld [vmem:[#allocation10 + $0x1c0] sm:$0xff]
        %v5831 = vld [vmem:[#allocation10 + $0x1c8] sm:$0xff]
        %v5832 = vld [vmem:[#allocation10 + $0x1d0] sm:$0xff]
        %v5833 = vld [vmem:[#allocation10 + $0x1d8] sm:$0xff]
        %v5834 = vld [vmem:[#allocation10 + $0x1e0] sm:$0xff]
        %v5835 = vld [vmem:[#allocation10 + $0x1e8] sm:$0xff]
        %v5836 = vld [vmem:[#allocation10 + $0x1f0] sm:$0xff]
        %v5837 = vld [vmem:[#allocation10 + $0x1f8] sm:$0xff]
        %v5838 = vld [vmem:[%s10] sm:$0x3]
        %v5840 = vlaneseq
        %v5841 = vshrl.u32 %v5840, 7
        %v5842 = vsub.s32 0, %v5841
        %v5843 = vrot.slane %v5838, %v5842
        %v5844 = vlaneseq
        %v5845 = vshrl.u32 %v5844, 7
        %v5846 = vsub.s32 1, %v5845
        %v5847 = vrot.slane %v5838, %v5846
        %v5914 = vunpack.c.l.b16 %v5774
        %v5915 = vunpack.c.h.b16 %v5774
        %v5916 = vunpack.c.l.b16 %v5775
        %v5917 = vunpack.c.h.b16 %v5775
        %v5918 = vunpack.c.l.b16 %v5776
        %v5919 = vunpack.c.h.b16 %v5776
        %v5920 = vunpack.c.l.b16 %v5777
        %v5921 = vunpack.c.h.b16 %v5777
        %v5922 = vunpack.c.l.b16 %v5778
        %v5923 = vunpack.c.h.b16 %v5778
        %v5924 = vunpack.c.l.b16 %v5779
        %v5925 = vunpack.c.h.b16 %v5779
        %v5926 = vunpack.c.l.b16 %v5780
        %v5927 = vunpack.c.h.b16 %v5780
        %v5928 = vunpack.c.l.b16 %v5781
        %v5929 = vunpack.c.h.b16 %v5781
        %v5930 = vunpack.c.l.b16 %v5782
        %v5931 = vunpack.c.h.b16 %v5782
        %v5932 = vunpack.c.l.b16 %v5783
        %v5933 = vunpack.c.h.b16 %v5783
        %v5934 = vunpack.c.l.b16 %v5784
        %v5935 = vunpack.c.h.b16 %v5784
        %v5936 = vunpack.c.l.b16 %v5785
        %v5937 = vunpack.c.h.b16 %v5785
        %v5938 = vunpack.c.l.b16 %v5786
        %v5939 = vunpack.c.h.b16 %v5786
        %v5940 = vunpack.c.l.b16 %v5787
        %v5941 = vunpack.c.h.b16 %v5787
        %v5942 = vunpack.c.l.b16 %v5788
        %v5943 = vunpack.c.h.b16 %v5788
        %v5944 = vunpack.c.l.b16 %v5789
        %v5945 = vunpack.c.h.b16 %v5789
        %v5946 = vunpack.c.l.b16 %v5790
        %v5947 = vunpack.c.h.b16 %v5790
        %v5948 = vunpack.c.l.b16 %v5791
        %v5949 = vunpack.c.h.b16 %v5791
        %v5950 = vunpack.c.l.b16 %v5792
        %v5951 = vunpack.c.h.b16 %v5792
        %v5952 = vunpack.c.l.b16 %v5793
        %v5953 = vunpack.c.h.b16 %v5793
        %v5954 = vunpack.c.l.b16 %v5794
        %v5955 = vunpack.c.h.b16 %v5794
        %v5956 = vunpack.c.l.b16 %v5795
        %v5957 = vunpack.c.h.b16 %v5795
        %v5958 = vunpack.c.l.b16 %v5796
        %v5959 = vunpack.c.h.b16 %v5796
        %v5960 = vunpack.c.l.b16 %v5797
        %v5961 = vunpack.c.h.b16 %v5797
        %v5962 = vunpack.c.l.b16 %v5798
        %v5963 = vunpack.c.h.b16 %v5798
        %v5964 = vunpack.c.l.b16 %v5799
        %v5965 = vunpack.c.h.b16 %v5799
        %v5966 = vunpack.c.l.b16 %v5800
        %v5967 = vunpack.c.h.b16 %v5800
        %v5968 = vunpack.c.l.b16 %v5801
        %v5969 = vunpack.c.h.b16 %v5801
        %v5970 = vunpack.c.l.b16 %v5802
        %v5971 = vunpack.c.h.b16 %v5802
        %v5972 = vunpack.c.l.b16 %v5803
        %v5973 = vunpack.c.h.b16 %v5803
        %v5974 = vunpack.c.l.b16 %v5804
        %v5975 = vunpack.c.h.b16 %v5804
        %v5976 = vunpack.c.l.b16 %v5805
        %v5977 = vunpack.c.h.b16 %v5805
        %v5978 = vunpack.c.l.b16 %v5806
        %v5979 = vunpack.c.h.b16 %v5806
        %v5980 = vunpack.c.l.b16 %v5807
        %v5981 = vunpack.c.h.b16 %v5807
        %v5982 = vunpack.c.l.b16 %v5808
        %v5983 = vunpack.c.h.b16 %v5808
        %v5984 = vunpack.c.l.b16 %v5809
        %v5985 = vunpack.c.h.b16 %v5809
        %v5986 = vunpack.c.l.b16 %v5810
        %v5987 = vunpack.c.h.b16 %v5810
        %v5988 = vunpack.c.l.b16 %v5811
        %v5989 = vunpack.c.h.b16 %v5811
        %v5990 = vunpack.c.l.b16 %v5812
        %v5991 = vunpack.c.h.b16 %v5812
        %v5992 = vunpack.c.l.b16 %v5813
        %v5993 = vunpack.c.h.b16 %v5813
        %v5994 = vunpack.c.l.b16 %v5814
        %v5995 = vunpack.c.h.b16 %v5814
        %v5996 = vunpack.c.l.b16 %v5815
        %v5997 = vunpack.c.h.b16 %v5815
        %v5998 = vunpack.c.l.b16 %v5816
        %v5999 = vunpack.c.h.b16 %v5816
        %v6000 = vunpack.c.l.b16 %v5817
        %v6001 = vunpack.c.h.b16 %v5817
        %v6002 = vunpack.c.l.b16 %v5818
        %v6003 = vunpack.c.h.b16 %v5818
        %v6004 = vunpack.c.l.b16 %v5819
        %v6005 = vunpack.c.h.b16 %v5819
        %v6006 = vunpack.c.l.b16 %v5820
        %v6007 = vunpack.c.h.b16 %v5820
        %v6008 = vunpack.c.l.b16 %v5821
        %v6009 = vunpack.c.h.b16 %v5821
        %v6010 = vunpack.c.l.b16 %v5822
        %v6011 = vunpack.c.h.b16 %v5822
        %v6012 = vunpack.c.l.b16 %v5823
        %v6013 = vunpack.c.h.b16 %v5823
        %v6014 = vunpack.c.l.b16 %v5824
        %v6015 = vunpack.c.h.b16 %v5824
        %v6016 = vunpack.c.l.b16 %v5825
        %v6017 = vunpack.c.h.b16 %v5825
        %v6018 = vunpack.c.l.b16 %v5826
        %v6019 = vunpack.c.h.b16 %v5826
        %v6020 = vunpack.c.l.b16 %v5827
        %v6021 = vunpack.c.h.b16 %v5827
        %v6022 = vunpack.c.l.b16 %v5828
        %v6023 = vunpack.c.h.b16 %v5828
        %v6024 = vunpack.c.l.b16 %v5829
        %v6025 = vunpack.c.h.b16 %v5829
        %v6026 = vunpack.c.l.b16 %v5830
        %v6027 = vunpack.c.h.b16 %v5830
        %v6028 = vunpack.c.l.b16 %v5831
        %v6029 = vunpack.c.h.b16 %v5831
        %v6030 = vunpack.c.l.b16 %v5832
        %v6031 = vunpack.c.h.b16 %v5832
        %v6032 = vunpack.c.l.b16 %v5833
        %v6033 = vunpack.c.h.b16 %v5833
        %v6034 = vunpack.c.l.b16 %v5834
        %v6035 = vunpack.c.h.b16 %v5834
        %v6036 = vunpack.c.l.b16 %v5835
        %v6037 = vunpack.c.h.b16 %v5835
        %v6038 = vunpack.c.l.b16 %v5836
        %v6039 = vunpack.c.h.b16 %v5836
        %v6040 = vunpack.c.l.b16 %v5837
        %v6041 = vunpack.c.h.b16 %v5837
        %v6042 = vpack.c.b16 %v5916, %v5914
        %v6043 = vpack.c.b16 %v5917, %v5915
        %v6044 = vpack.c.b16 %v5920, %v5918
        %v6045 = vpack.c.b16 %v5921, %v5919
        %v6046 = vpack.c.b16 %v5924, %v5922
        %v6047 = vpack.c.b16 %v5925, %v5923
        %v6048 = vpack.c.b16 %v5928, %v5926
        %v6049 = vpack.c.b16 %v5929, %v5927
        %v6050 = vpack.c.b16 %v5932, %v5930
        %v6051 = vpack.c.b16 %v5933, %v5931
        %v6052 = vpack.c.b16 %v5936, %v5934
        %v6053 = vpack.c.b16 %v5937, %v5935
        %v6054 = vpack.c.b16 %v5940, %v5938
        %v6055 = vpack.c.b16 %v5941, %v5939
        %v6056 = vpack.c.b16 %v5944, %v5942
        %v6057 = vpack.c.b16 %v5945, %v5943
        %v6058 = vpack.c.b16 %v5948, %v5946
        %v6059 = vpack.c.b16 %v5949, %v5947
        %v6060 = vpack.c.b16 %v5952, %v5950
        %v6061 = vpack.c.b16 %v5953, %v5951
        %v6062 = vpack.c.b16 %v5956, %v5954
        %v6063 = vpack.c.b16 %v5957, %v5955
        %v6064 = vpack.c.b16 %v5960, %v5958
        %v6065 = vpack.c.b16 %v5961, %v5959
        %v6066 = vpack.c.b16 %v5964, %v5962
        %v6067 = vpack.c.b16 %v5965, %v5963
        %v6068 = vpack.c.b16 %v5968, %v5966
        %v6069 = vpack.c.b16 %v5969, %v5967
        %v6070 = vpack.c.b16 %v5972, %v5970
        %v6071 = vpack.c.b16 %v5973, %v5971
        %v6072 = vpack.c.b16 %v5976, %v5974
        %v6073 = vpack.c.b16 %v5977, %v5975
        %v6074 = vpack.c.b16 %v5980, %v5978
        %v6075 = vpack.c.b16 %v5981, %v5979
        %v6076 = vpack.c.b16 %v5984, %v5982
        %v6077 = vpack.c.b16 %v5985, %v5983
        %v6078 = vpack.c.b16 %v5988, %v5986
        %v6079 = vpack.c.b16 %v5989, %v5987
        %v6080 = vpack.c.b16 %v5992, %v5990
        %v6081 = vpack.c.b16 %v5993, %v5991
        %v6082 = vpack.c.b16 %v5996, %v5994
        %v6083 = vpack.c.b16 %v5997, %v5995
        %v6084 = vpack.c.b16 %v6000, %v5998
        %v6085 = vpack.c.b16 %v6001, %v5999
        %v6086 = vpack.c.b16 %v6004, %v6002
        %v6087 = vpack.c.b16 %v6005, %v6003
        %v6088 = vpack.c.b16 %v6008, %v6006
        %v6089 = vpack.c.b16 %v6009, %v6007
        %v6090 = vpack.c.b16 %v6012, %v6010
        %v6091 = vpack.c.b16 %v6013, %v6011
        %v6092 = vpack.c.b16 %v6016, %v6014
        %v6093 = vpack.c.b16 %v6017, %v6015
        %v6094 = vpack.c.b16 %v6020, %v6018
        %v6095 = vpack.c.b16 %v6021, %v6019
        %v6096 = vpack.c.b16 %v6024, %v6022
        %v6097 = vpack.c.b16 %v6025, %v6023
        %v6098 = vpack.c.b16 %v6028, %v6026
        %v6099 = vpack.c.b16 %v6029, %v6027
        %v6100 = vpack.c.b16 %v6032, %v6030
        %v6101 = vpack.c.b16 %v6033, %v6031
        %v6102 = vpack.c.b16 %v6036, %v6034
        %v6103 = vpack.c.b16 %v6037, %v6035
        %v6104 = vpack.c.b16 %v6040, %v6038
        %v6105 = vpack.c.b16 %v6041, %v6039
        %6170 = vmatprep.subr.bf16.mxu0 %v6057
        %6171 = vmatpush1.bf16.msra.mxu0 %v6056
        %6172 = vmatprep.subr.bf16.mxu0 %v6055
        %6173 = vmatpush1.bf16.msra.mxu0 %v6054
        %6174 = vmatprep.subr.bf16.mxu0 %v6053
        %6175 = vmatpush1.bf16.msra.mxu0 %v6052
        %6176 = vmatprep.subr.bf16.mxu0 %v6051
        %6177 = vmatpush1.bf16.msra.mxu0 %v6050
        %6178 = vmatprep.subr.bf16.mxu0 %v6049
        %6179 = vmatpush1.bf16.msra.mxu0 %v6048
        %6180 = vmatprep.subr.bf16.mxu0 %v6047
        %6181 = vmatpush1.bf16.msra.mxu0 %v6046
        %6182 = vmatprep.subr.bf16.mxu0 %v6045
        %6183 = vmatpush1.bf16.msra.mxu0 %v6044
        %6184 = vmatprep.subr.bf16.mxu0 %v6043
        %6185 = vmatpush1.bf16.msra.mxu0 %v6042
        %6186 = vmatprep.subr.bf16.mxu0 %v6073
        %6187 = vmatpush2.bf16.msra.mxu0 %v6072
        %6188 = vmatprep.subr.bf16.mxu0 %v6071
        %6189 = vmatpush2.bf16.msra.mxu0 %v6070
        %6190 = vmatprep.subr.bf16.mxu0 %v6069
        %6191 = vmatpush2.bf16.msra.mxu0 %v6068
        %6192 = vmatprep.subr.bf16.mxu0 %v6067
        %6193 = vmatpush2.bf16.msra.mxu0 %v6066
        %6194 = vmatprep.subr.bf16.mxu0 %v6065
        %6195 = vmatpush2.bf16.msra.mxu0 %v6064
        %6196 = vmatprep.subr.bf16.mxu0 %v6063
        %6197 = vmatpush2.bf16.msra.mxu0 %v6062
        %6198 = vmatprep.subr.bf16.mxu0 %v6061
        %6199 = vmatpush2.bf16.msra.mxu0 %v6060
        %6200 = vmatprep.subr.bf16.mxu0 %v6059
        %6201 = vmatpush2.bf16.msra.mxu0 %v6058
        %6202 = vmatprep.mubr.bf16.mxu0 %v5647
        %6203 = vmatmul.mubr.bf16.gmra.mxu0 %v5646
        %v6204 = vpop.f32.mrf.mxu0
        %v6205 = vadd.f32 %v5843, %v6204
        %v6206 = vpop.f32.mrf.mxu0
        %v6207 = vadd.f32 %v5847, %v6206
        %v6208 = vpop.f32.mrf.mxu0
        %v6209 = vadd.f32 %v5843, %v6208
        %v6210 = vpop.f32.mrf.mxu0
        %v6211 = vadd.f32 %v5847, %v6210
        %6212 = vmatprep.mubr.bf16.mxu0 %v5651
        %6213 = vmatmul.mubr.bf16.gmra.mxu0 %v5650
        %v6214 = vpop.f32.mrf.mxu0
        %v6215 = vadd.f32 %v5843, %v6214
        %v6216 = vpop.f32.mrf.mxu0
        %v6217 = vadd.f32 %v5847, %v6216
        %v6218 = vpop.f32.mrf.mxu0
        %v6219 = vadd.f32 %v5843, %v6218
        %v6220 = vpop.f32.mrf.mxu0
        %v6221 = vadd.f32 %v5847, %v6220
        %6222 = vmatprep.mubr.bf16.mxu0 %v5655
        %6223 = vmatmul.mubr.bf16.gmra.mxu0 %v5654
        %v6224 = vpop.f32.mrf.mxu0
        %v6225 = vadd.f32 %v5843, %v6224
        %v6226 = vpop.f32.mrf.mxu0
        %v6227 = vadd.f32 %v5847, %v6226
        %v6228 = vpop.f32.mrf.mxu0
        %v6229 = vadd.f32 %v5843, %v6228
        %v6230 = vpop.f32.mrf.mxu0
        %v6231 = vadd.f32 %v5847, %v6230
        %6232 = vmatprep.mubr.bf16.mxu0 %v5659
        %6233 = vmatmul.mubr.bf16.gmra.mxu0 %v5658
        %v6234 = vpop.f32.mrf.mxu0
        %v6235 = vadd.f32 %v5843, %v6234
        %v6236 = vpop.f32.mrf.mxu0
        %v6237 = vadd.f32 %v5847, %v6236
        %v6238 = vpop.f32.mrf.mxu0
        %v6239 = vadd.f32 %v5843, %v6238
        %v6240 = vpop.f32.mrf.mxu0
        %v6241 = vadd.f32 %v5847, %v6240
        %6242 = vmatprep.mubr.bf16.mxu0 %v5663
        %6243 = vmatmul.mubr.bf16.gmra.mxu0 %v5662
        %v6244 = vpop.f32.mrf.mxu0
        %v6245 = vadd.f32 %v5843, %v6244
        %v6246 = vpop.f32.mrf.mxu0
        %v6247 = vadd.f32 %v5847, %v6246
        %v6248 = vpop.f32.mrf.mxu0
        %v6249 = vadd.f32 %v5843, %v6248
        %v6250 = vpop.f32.mrf.mxu0
        %v6251 = vadd.f32 %v5847, %v6250
        %6252 = vmatprep.mubr.bf16.mxu0 %v5667
        %6253 = vmatmul.mubr.bf16.gmra.mxu0 %v5666
        %v6254 = vpop.f32.mrf.mxu0
        %v6255 = vadd.f32 %v5843, %v6254
        %v6256 = vpop.f32.mrf.mxu0
        %v6257 = vadd.f32 %v5847, %v6256
        %v6258 = vpop.f32.mrf.mxu0
        %v6259 = vadd.f32 %v5843, %v6258
        %v6260 = vpop.f32.mrf.mxu0
        %v6261 = vadd.f32 %v5847, %v6260
        %6262 = vmatprep.mubr.bf16.mxu0 %v5671
        %6263 = vmatmul.mubr.bf16.gmra.mxu0 %v5670
        %v6264 = vpop.f32.mrf.mxu0
        %v6265 = vadd.f32 %v5843, %v6264
        %v6266 = vpop.f32.mrf.mxu0
        %v6267 = vadd.f32 %v5847, %v6266
        %v6268 = vpop.f32.mrf.mxu0
        %v6269 = vadd.f32 %v5843, %v6268
        %v6270 = vpop.f32.mrf.mxu0
        %v6271 = vadd.f32 %v5847, %v6270
        %6272 = vmatprep.mubr.bf16.mxu0 %v5675
        %6273 = vmatmul.mubr.bf16.gmra.mxu0 %v5674
        %v6274 = vpop.f32.mrf.mxu0
        %v6275 = vadd.f32 %v5843, %v6274
        %v6276 = vpop.f32.mrf.mxu0
        %v6277 = vadd.f32 %v5847, %v6276
        %v6278 = vpop.f32.mrf.mxu0
        %v6279 = vadd.f32 %v5843, %v6278
        %v6280 = vpop.f32.mrf.mxu0
        %v6281 = vadd.f32 %v5847, %v6280
        %6282 = vmatprep.mubr.bf16.mxu0 %v5679
        %6283 = vmatmul.mubr.bf16.gmra.mxu0 %v5678
        %v6284 = vpop.f32.mrf.mxu0
        %v6285 = vadd.f32 %v5843, %v6284
        %v6286 = vpop.f32.mrf.mxu0
        %v6287 = vadd.f32 %v5847, %v6286
        %v6288 = vpop.f32.mrf.mxu0
        %v6289 = vadd.f32 %v5843, %v6288
        %v6290 = vpop.f32.mrf.mxu0
        %v6291 = vadd.f32 %v5847, %v6290
        %6292 = vmatprep.mubr.bf16.mxu0 %v5683
        %6293 = vmatmul.mubr.bf16.gmra.mxu0 %v5682
        %v6294 = vpop.f32.mrf.mxu0
        %v6295 = vadd.f32 %v5843, %v6294
        %v6296 = vpop.f32.mrf.mxu0
        %v6297 = vadd.f32 %v5847, %v6296
        %v6298 = vpop.f32.mrf.mxu0
        %v6299 = vadd.f32 %v5843, %v6298
        %v6300 = vpop.f32.mrf.mxu0
        %v6301 = vadd.f32 %v5847, %v6300
        %6302 = vmatprep.mubr.bf16.mxu0 %v5687
        %6303 = vmatmul.mubr.bf16.gmra.mxu0 %v5686
        %v6304 = vpop.f32.mrf.mxu0
        %v6305 = vadd.f32 %v5843, %v6304
        %v6306 = vpop.f32.mrf.mxu0
        %v6307 = vadd.f32 %v5847, %v6306
        %v6308 = vpop.f32.mrf.mxu0
        %v6309 = vadd.f32 %v5843, %v6308
        %v6310 = vpop.f32.mrf.mxu0
        %v6311 = vadd.f32 %v5847, %v6310
        %6312 = vmatprep.mubr.bf16.mxu0 %v5691
        %6313 = vmatmul.mubr.bf16.gmra.mxu0 %v5690
        %v6314 = vpop.f32.mrf.mxu0
        %v6315 = vadd.f32 %v5843, %v6314
        %v6316 = vpop.f32.mrf.mxu0
        %v6317 = vadd.f32 %v5847, %v6316
        %v6318 = vpop.f32.mrf.mxu0
        %v6319 = vadd.f32 %v5843, %v6318
        %v6320 = vpop.f32.mrf.mxu0
        %v6321 = vadd.f32 %v5847, %v6320
        %6322 = vmatprep.mubr.bf16.mxu0 %v5695
        %6323 = vmatmul.mubr.bf16.gmra.mxu0 %v5694
        %v6324 = vpop.f32.mrf.mxu0
        %v6325 = vadd.f32 %v5843, %v6324
        %v6326 = vpop.f32.mrf.mxu0
        %v6327 = vadd.f32 %v5847, %v6326
        %v6328 = vpop.f32.mrf.mxu0
        %v6329 = vadd.f32 %v5843, %v6328
        %v6330 = vpop.f32.mrf.mxu0
        %v6331 = vadd.f32 %v5847, %v6330
        %6332 = vmatprep.mubr.bf16.mxu0 %v5699
        %6333 = vmatmul.mubr.bf16.gmra.mxu0 %v5698
        %v6334 = vpop.f32.mrf.mxu0
        %v6335 = vadd.f32 %v5843, %v6334
        %v6336 = vpop.f32.mrf.mxu0
        %v6337 = vadd.f32 %v5847, %v6336
        %v6338 = vpop.f32.mrf.mxu0
        %v6339 = vadd.f32 %v5843, %v6338
        %v6340 = vpop.f32.mrf.mxu0
        %v6341 = vadd.f32 %v5847, %v6340
        %6342 = vmatprep.mubr.bf16.mxu0 %v5703
        %6343 = vmatmul.mubr.bf16.gmra.mxu0 %v5702
        %v6344 = vpop.f32.mrf.mxu0
        %v6345 = vadd.f32 %v5843, %v6344
        %v6346 = vpop.f32.mrf.mxu0
        %v6347 = vadd.f32 %v5847, %v6346
        %v6348 = vpop.f32.mrf.mxu0
        %v6349 = vadd.f32 %v5843, %v6348
        %v6350 = vpop.f32.mrf.mxu0
        %v6351 = vadd.f32 %v5847, %v6350
        %6352 = vmatprep.mubr.bf16.mxu0 %v5707
        %6353 = vmatmul.mubr.bf16.gmra.mxu0 %v5706
        %v6354 = vpop.f32.mrf.mxu0
        %v6355 = vadd.f32 %v5843, %v6354
        %v6356 = vpop.f32.mrf.mxu0
        %v6357 = vadd.f32 %v5847, %v6356
        %v6358 = vpop.f32.mrf.mxu0
        %v6359 = vadd.f32 %v5843, %v6358
        %v6360 = vpop.f32.mrf.mxu0
        %v6361 = vadd.f32 %v5847, %v6360
        %6362 = vmatprep.mubr.bf16.mxu0 %v5711
        %6363 = vmatmul.mubr.bf16.gmra.mxu0 %v5710
        %v6364 = vpop.f32.mrf.mxu0
        %v6365 = vadd.f32 %v5843, %v6364
        %v6366 = vpop.f32.mrf.mxu0
        %v6367 = vadd.f32 %v5847, %v6366
        %v6368 = vpop.f32.mrf.mxu0
        %v6369 = vadd.f32 %v5843, %v6368
        %v6370 = vpop.f32.mrf.mxu0
        %v6371 = vadd.f32 %v5847, %v6370
        %6372 = vmatprep.mubr.bf16.mxu0 %v5715
        %6373 = vmatmul.mubr.bf16.gmra.mxu0 %v5714
        %v6374 = vpop.f32.mrf.mxu0
        %v6375 = vadd.f32 %v5843, %v6374
        %v6376 = vpop.f32.mrf.mxu0
        %v6377 = vadd.f32 %v5847, %v6376
        %v6378 = vpop.f32.mrf.mxu0
        %v6379 = vadd.f32 %v5843, %v6378
        %v6380 = vpop.f32.mrf.mxu0
        %v6381 = vadd.f32 %v5847, %v6380
        %6382 = vmatprep.mubr.bf16.mxu0 %v5719
        %6383 = vmatmul.mubr.bf16.gmra.mxu0 %v5718
        %v6384 = vpop.f32.mrf.mxu0
        %v6385 = vadd.f32 %v5843, %v6384
        %v6386 = vpop.f32.mrf.mxu0
        %v6387 = vadd.f32 %v5847, %v6386
        %v6388 = vpop.f32.mrf.mxu0
        %v6389 = vadd.f32 %v5843, %v6388
        %v6390 = vpop.f32.mrf.mxu0
        %v6391 = vadd.f32 %v5847, %v6390
        %6392 = vmatprep.mubr.bf16.mxu0 %v5723
        %6393 = vmatmul.mubr.bf16.gmra.mxu0 %v5722
        %v6394 = vpop.f32.mrf.mxu0
        %v6395 = vadd.f32 %v5843, %v6394
        %v6396 = vpop.f32.mrf.mxu0
        %v6397 = vadd.f32 %v5847, %v6396
        %v6398 = vpop.f32.mrf.mxu0
        %v6399 = vadd.f32 %v5843, %v6398
        %v6400 = vpop.f32.mrf.mxu0
        %v6401 = vadd.f32 %v5847, %v6400
        %6402 = vmatprep.mubr.bf16.mxu0 %v5727
        %6403 = vmatmul.mubr.bf16.gmra.mxu0 %v5726
        %v6404 = vpop.f32.mrf.mxu0
        %v6405 = vadd.f32 %v5843, %v6404
        %v6406 = vpop.f32.mrf.mxu0
        %v6407 = vadd.f32 %v5847, %v6406
        %v6408 = vpop.f32.mrf.mxu0
        %v6409 = vadd.f32 %v5843, %v6408
        %v6410 = vpop.f32.mrf.mxu0
        %v6411 = vadd.f32 %v5847, %v6410
        %6412 = vmatprep.mubr.bf16.mxu0 %v5731
        %6413 = vmatmul.mubr.bf16.gmra.mxu0 %v5730
        %v6414 = vpop.f32.mrf.mxu0
        %v6415 = vadd.f32 %v5843, %v6414
        %v6416 = vpop.f32.mrf.mxu0
        %v6417 = vadd.f32 %v5847, %v6416
        %v6418 = vpop.f32.mrf.mxu0
        %v6419 = vadd.f32 %v5843, %v6418
        %v6420 = vpop.f32.mrf.mxu0
        %v6421 = vadd.f32 %v5847, %v6420
        %6422 = vmatprep.mubr.bf16.mxu0 %v5735
        %6423 = vmatmul.mubr.bf16.gmra.mxu0 %v5734
        %v6424 = vpop.f32.mrf.mxu0
        %v6425 = vadd.f32 %v5843, %v6424
        %v6426 = vpop.f32.mrf.mxu0
        %v6427 = vadd.f32 %v5847, %v6426
        %v6428 = vpop.f32.mrf.mxu0
        %v6429 = vadd.f32 %v5843, %v6428
        %v6430 = vpop.f32.mrf.mxu0
        %v6431 = vadd.f32 %v5847, %v6430
        %6432 = vmatprep.mubr.bf16.mxu0 %v5739
        %6433 = vmatmul.mubr.bf16.gmra.mxu0 %v5738
        %v6434 = vpop.f32.mrf.mxu0
        %v6435 = vadd.f32 %v5843, %v6434
        %v6436 = vpop.f32.mrf.mxu0
        %v6437 = vadd.f32 %v5847, %v6436
        %v6438 = vpop.f32.mrf.mxu0
        %v6439 = vadd.f32 %v5843, %v6438
        %v6440 = vpop.f32.mrf.mxu0
        %v6441 = vadd.f32 %v5847, %v6440
        %6442 = vmatprep.mubr.bf16.mxu0 %v5743
        %6443 = vmatmul.mubr.bf16.gmra.mxu0 %v5742
        %v6444 = vpop.f32.mrf.mxu0
        %v6445 = vadd.f32 %v5843, %v6444
        %v6446 = vpop.f32.mrf.mxu0
        %v6447 = vadd.f32 %v5847, %v6446
        %v6448 = vpop.f32.mrf.mxu0
        %v6449 = vadd.f32 %v5843, %v6448
        %v6450 = vpop.f32.mrf.mxu0
        %v6451 = vadd.f32 %v5847, %v6450
        %6452 = vmatprep.mubr.bf16.mxu0 %v5747
        %6453 = vmatmul.mubr.bf16.gmra.mxu0 %v5746
        %v6454 = vpop.f32.mrf.mxu0
        %v6455 = vadd.f32 %v5843, %v6454
        %v6456 = vpop.f32.mrf.mxu0
        %v6457 = vadd.f32 %v5847, %v6456
        %v6458 = vpop.f32.mrf.mxu0
        %v6459 = vadd.f32 %v5843, %v6458
        %v6460 = vpop.f32.mrf.mxu0
        %v6461 = vadd.f32 %v5847, %v6460
        %6462 = vmatprep.mubr.bf16.mxu0 %v5751
        %6463 = vmatmul.mubr.bf16.gmra.mxu0 %v5750
        %v6464 = vpop.f32.mrf.mxu0
        %v6465 = vadd.f32 %v5843, %v6464
        %v6466 = vpop.f32.mrf.mxu0
        %v6467 = vadd.f32 %v5847, %v6466
        %v6468 = vpop.f32.mrf.mxu0
        %v6469 = vadd.f32 %v5843, %v6468
        %v6470 = vpop.f32.mrf.mxu0
        %v6471 = vadd.f32 %v5847, %v6470
        %6472 = vmatprep.mubr.bf16.mxu0 %v5755
        %6473 = vmatmul.mubr.bf16.gmra.mxu0 %v5754
        %v6474 = vpop.f32.mrf.mxu0
        %v6475 = vadd.f32 %v5843, %v6474
        %v6476 = vpop.f32.mrf.mxu0
        %v6477 = vadd.f32 %v5847, %v6476
        %v6478 = vpop.f32.mrf.mxu0
        %v6479 = vadd.f32 %v5843, %v6478
        %v6480 = vpop.f32.mrf.mxu0
        %v6481 = vadd.f32 %v5847, %v6480
        %6482 = vmatprep.mubr.bf16.mxu0 %v5759
        %6483 = vmatmul.mubr.bf16.gmra.mxu0 %v5758
        %v6484 = vpop.f32.mrf.mxu0
        %v6485 = vadd.f32 %v5843, %v6484
        %v6486 = vpop.f32.mrf.mxu0
        %v6487 = vadd.f32 %v5847, %v6486
        %v6488 = vpop.f32.mrf.mxu0
        %v6489 = vadd.f32 %v5843, %v6488
        %v6490 = vpop.f32.mrf.mxu0
        %v6491 = vadd.f32 %v5847, %v6490
        %6492 = vmatprep.mubr.bf16.mxu0 %v5763
        %6493 = vmatmul.mubr.bf16.gmra.mxu0 %v5762
        %v6494 = vpop.f32.mrf.mxu0
        %v6495 = vadd.f32 %v5843, %v6494
        %v6496 = vpop.f32.mrf.mxu0
        %v6497 = vadd.f32 %v5847, %v6496
        %v6498 = vpop.f32.mrf.mxu0
        %v6499 = vadd.f32 %v5843, %v6498
        %v6500 = vpop.f32.mrf.mxu0
        %v6501 = vadd.f32 %v5847, %v6500
        %6502 = vmatprep.mubr.bf16.mxu0 %v5767
        %6503 = vmatmul.mubr.bf16.gmra.mxu0 %v5766
        %v6504 = vpop.f32.mrf.mxu0
        %v6505 = vadd.f32 %v5843, %v6504
        %v6506 = vpop.f32.mrf.mxu0
        %v6507 = vadd.f32 %v5847, %v6506
        %v6508 = vpop.f32.mrf.mxu0
        %v6509 = vadd.f32 %v5843, %v6508
        %v6510 = vpop.f32.mrf.mxu0
        %v6511 = vadd.f32 %v5847, %v6510
        %6512 = vmatprep.mubr.bf16.mxu0 %v5771
        %6513 = vmatmul.mubr.bf16.gmra.mxu0 %v5770
        %v6514 = vpop.f32.mrf.mxu0
        %v6515 = vadd.f32 %v5843, %v6514
        %v6516 = vpop.f32.mrf.mxu0
        %v6517 = vadd.f32 %v5847, %v6516
        %v6518 = vpop.f32.mrf.mxu0
        %v6519 = vadd.f32 %v5843, %v6518
        %v6520 = vpop.f32.mrf.mxu0
        %v6521 = vadd.f32 %v5847, %v6520
        %6522 = vdwg.mxu0
        %6523 = vmatprep.subr.bf16.mxu0 %v6089
        %6524 = vmatpush1.bf16.msra.mxu0 %v6088
        %6525 = vmatprep.subr.bf16.mxu0 %v6087
        %6526 = vmatpush1.bf16.msra.mxu0 %v6086
        %6527 = vmatprep.subr.bf16.mxu0 %v6085
        %6528 = vmatpush1.bf16.msra.mxu0 %v6084
        %6529 = vmatprep.subr.bf16.mxu0 %v6083
        %6530 = vmatpush1.bf16.msra.mxu0 %v6082
        %6531 = vmatprep.subr.bf16.mxu0 %v6081
        %6532 = vmatpush1.bf16.msra.mxu0 %v6080
        %6533 = vmatprep.subr.bf16.mxu0 %v6079
        %6534 = vmatpush1.bf16.msra.mxu0 %v6078
        %6535 = vmatprep.subr.bf16.mxu0 %v6077
        %6536 = vmatpush1.bf16.msra.mxu0 %v6076
        %6537 = vmatprep.subr.bf16.mxu0 %v6075
        %6538 = vmatpush1.bf16.msra.mxu0 %v6074
        %6539 = vmatprep.subr.bf16.mxu0 %v6105
        %6540 = vmatpush2.bf16.msra.mxu0 %v6104
        %6541 = vmatprep.subr.bf16.mxu0 %v6103
        %6542 = vmatpush2.bf16.msra.mxu0 %v6102
        %6543 = vmatprep.subr.bf16.mxu0 %v6101
        %6544 = vmatpush2.bf16.msra.mxu0 %v6100
        %6545 = vmatprep.subr.bf16.mxu0 %v6099
        %6546 = vmatpush2.bf16.msra.mxu0 %v6098
        %6547 = vmatprep.subr.bf16.mxu0 %v6097
        %6548 = vmatpush2.bf16.msra.mxu0 %v6096
        %6549 = vmatprep.subr.bf16.mxu0 %v6095
        %6550 = vmatpush2.bf16.msra.mxu0 %v6094
        %6551 = vmatprep.subr.bf16.mxu0 %v6093
        %6552 = vmatpush2.bf16.msra.mxu0 %v6092
        %6553 = vmatprep.subr.bf16.mxu0 %v6091
        %6554 = vmatpush2.bf16.msra.mxu0 %v6090
        %6555 = vmatprep.mubr.bf16.mxu0 %v5649
        %6556 = vmatmul.mubr.bf16.gmra.mxu0 %v5648
        %v6557 = vpop.f32.mrf.mxu0
        %v6558 = vadd.f32 %v6205, %v6557
        %v6559 = vpop.f32.mrf.mxu0
        %v6560 = vadd.f32 %v6207, %v6559
        %v6561 = vpop.f32.mrf.mxu0
        %v6562 = vadd.f32 %v6209, %v6561
        %v6563 = vpop.f32.mrf.mxu0
        %v6564 = vadd.f32 %v6211, %v6563
        %6565 = vmatprep.mubr.bf16.mxu0 %v5653
        %6566 = vmatmul.mubr.bf16.gmra.mxu0 %v5652
        %v6567 = vpop.f32.mrf.mxu0
        %v6568 = vadd.f32 %v6215, %v6567
        %v6569 = vpop.f32.mrf.mxu0
        %v6570 = vadd.f32 %v6217, %v6569
        %v6571 = vpop.f32.mrf.mxu0
        %v6572 = vadd.f32 %v6219, %v6571
        %v6573 = vpop.f32.mrf.mxu0
        %v6574 = vadd.f32 %v6221, %v6573
        %6575 = vmatprep.mubr.bf16.mxu0 %v5657
        %6576 = vmatmul.mubr.bf16.gmra.mxu0 %v5656
        %v6577 = vpop.f32.mrf.mxu0
        %v6578 = vadd.f32 %v6225, %v6577
        %v6579 = vpop.f32.mrf.mxu0
        %v6580 = vadd.f32 %v6227, %v6579
        %v6581 = vpop.f32.mrf.mxu0
        %v6582 = vadd.f32 %v6229, %v6581
        %v6583 = vpop.f32.mrf.mxu0
        %v6584 = vadd.f32 %v6231, %v6583
        %6585 = vmatprep.mubr.bf16.mxu0 %v5661
        %6586 = vmatmul.mubr.bf16.gmra.mxu0 %v5660
        %v6587 = vpop.f32.mrf.mxu0
        %v6588 = vadd.f32 %v6235, %v6587
        %v6589 = vpop.f32.mrf.mxu0
        %v6590 = vadd.f32 %v6237, %v6589
        %v6591 = vpop.f32.mrf.mxu0
        %v6592 = vadd.f32 %v6239, %v6591
        %v6593 = vpop.f32.mrf.mxu0
        %v6594 = vadd.f32 %v6241, %v6593
        %6595 = vmatprep.mubr.bf16.mxu0 %v5665
        %6596 = vmatmul.mubr.bf16.gmra.mxu0 %v5664
        %v6597 = vpop.f32.mrf.mxu0
        %v6598 = vadd.f32 %v6245, %v6597
        %v6599 = vpop.f32.mrf.mxu0
        %v6600 = vadd.f32 %v6247, %v6599
        %v6601 = vpop.f32.mrf.mxu0
        %v6602 = vadd.f32 %v6249, %v6601
        %v6603 = vpop.f32.mrf.mxu0
        %v6604 = vadd.f32 %v6251, %v6603
        %6605 = vmatprep.mubr.bf16.mxu0 %v5669
        %6606 = vmatmul.mubr.bf16.gmra.mxu0 %v5668
        %v6607 = vpop.f32.mrf.mxu0
        %v6608 = vadd.f32 %v6255, %v6607
        %v6609 = vpop.f32.mrf.mxu0
        %v6610 = vadd.f32 %v6257, %v6609
        %v6611 = vpop.f32.mrf.mxu0
        %v6612 = vadd.f32 %v6259, %v6611
        %v6613 = vpop.f32.mrf.mxu0
        %v6614 = vadd.f32 %v6261, %v6613
        %6615 = vmatprep.mubr.bf16.mxu0 %v5673
        %6616 = vmatmul.mubr.bf16.gmra.mxu0 %v5672
        %v6617 = vpop.f32.mrf.mxu0
        %v6618 = vadd.f32 %v6265, %v6617
        %v6619 = vpop.f32.mrf.mxu0
        %v6620 = vadd.f32 %v6267, %v6619
        %v6621 = vpop.f32.mrf.mxu0
        %v6622 = vadd.f32 %v6269, %v6621
        %v6623 = vpop.f32.mrf.mxu0
        %v6624 = vadd.f32 %v6271, %v6623
        %6625 = vmatprep.mubr.bf16.mxu0 %v5677
        %6626 = vmatmul.mubr.bf16.gmra.mxu0 %v5676
        %v6627 = vpop.f32.mrf.mxu0
        %v6628 = vadd.f32 %v6275, %v6627
        %v6629 = vpop.f32.mrf.mxu0
        %v6630 = vadd.f32 %v6277, %v6629
        %v6631 = vpop.f32.mrf.mxu0
        %v6632 = vadd.f32 %v6279, %v6631
        %v6633 = vpop.f32.mrf.mxu0
        %v6634 = vadd.f32 %v6281, %v6633
        %6635 = vmatprep.mubr.bf16.mxu0 %v5681
        %6636 = vmatmul.mubr.bf16.gmra.mxu0 %v5680
        %v6637 = vpop.f32.mrf.mxu0
        %v6638 = vadd.f32 %v6285, %v6637
        %v6639 = vpop.f32.mrf.mxu0
        %v6640 = vadd.f32 %v6287, %v6639
        %v6641 = vpop.f32.mrf.mxu0
        %v6642 = vadd.f32 %v6289, %v6641
        %v6643 = vpop.f32.mrf.mxu0
        %v6644 = vadd.f32 %v6291, %v6643
        %6645 = vmatprep.mubr.bf16.mxu0 %v5685
        %6646 = vmatmul.mubr.bf16.gmra.mxu0 %v5684
        %v6647 = vpop.f32.mrf.mxu0
        %v6648 = vadd.f32 %v6295, %v6647
        %v6649 = vpop.f32.mrf.mxu0
        %v6650 = vadd.f32 %v6297, %v6649
        %v6651 = vpop.f32.mrf.mxu0
        %v6652 = vadd.f32 %v6299, %v6651
        %v6653 = vpop.f32.mrf.mxu0
        %v6654 = vadd.f32 %v6301, %v6653
        %6655 = vmatprep.mubr.bf16.mxu0 %v5689
        %6656 = vmatmul.mubr.bf16.gmra.mxu0 %v5688
        %v6657 = vpop.f32.mrf.mxu0
        %v6658 = vadd.f32 %v6305, %v6657
        %v6659 = vpop.f32.mrf.mxu0
        %v6660 = vadd.f32 %v6307, %v6659
        %v6661 = vpop.f32.mrf.mxu0
        %v6662 = vadd.f32 %v6309, %v6661
        %v6663 = vpop.f32.mrf.mxu0
        %v6664 = vadd.f32 %v6311, %v6663
        %6665 = vmatprep.mubr.bf16.mxu0 %v5693
        %6666 = vmatmul.mubr.bf16.gmra.mxu0 %v5692
        %v6667 = vpop.f32.mrf.mxu0
        %v6668 = vadd.f32 %v6315, %v6667
        %v6669 = vpop.f32.mrf.mxu0
        %v6670 = vadd.f32 %v6317, %v6669
        %v6671 = vpop.f32.mrf.mxu0
        %v6672 = vadd.f32 %v6319, %v6671
        %v6673 = vpop.f32.mrf.mxu0
        %v6674 = vadd.f32 %v6321, %v6673
        %6675 = vmatprep.mubr.bf16.mxu0 %v5697
        %6676 = vmatmul.mubr.bf16.gmra.mxu0 %v5696
        %v6677 = vpop.f32.mrf.mxu0
        %v6678 = vadd.f32 %v6325, %v6677
        %v6679 = vpop.f32.mrf.mxu0
        %v6680 = vadd.f32 %v6327, %v6679
        %v6681 = vpop.f32.mrf.mxu0
        %v6682 = vadd.f32 %v6329, %v6681
        %v6683 = vpop.f32.mrf.mxu0
        %v6684 = vadd.f32 %v6331, %v6683
        %6685 = vmatprep.mubr.bf16.mxu0 %v5701
        %6686 = vmatmul.mubr.bf16.gmra.mxu0 %v5700
        %v6687 = vpop.f32.mrf.mxu0
        %v6688 = vadd.f32 %v6335, %v6687
        %v6689 = vpop.f32.mrf.mxu0
        %v6690 = vadd.f32 %v6337, %v6689
        %v6691 = vpop.f32.mrf.mxu0
        %v6692 = vadd.f32 %v6339, %v6691
        %v6693 = vpop.f32.mrf.mxu0
        %v6694 = vadd.f32 %v6341, %v6693
        %6695 = vmatprep.mubr.bf16.mxu0 %v5705
        %6696 = vmatmul.mubr.bf16.gmra.mxu0 %v5704
        %v6697 = vpop.f32.mrf.mxu0
        %v6698 = vadd.f32 %v6345, %v6697
        %v6699 = vpop.f32.mrf.mxu0
        %v6700 = vadd.f32 %v6347, %v6699
        %v6701 = vpop.f32.mrf.mxu0
        %v6702 = vadd.f32 %v6349, %v6701
        %v6703 = vpop.f32.mrf.mxu0
        %v6704 = vadd.f32 %v6351, %v6703
        %6705 = vmatprep.mubr.bf16.mxu0 %v5709
        %6706 = vmatmul.mubr.bf16.gmra.mxu0 %v5708
        %v6707 = vpop.f32.mrf.mxu0
        %v6708 = vadd.f32 %v6355, %v6707
        %v6709 = vpop.f32.mrf.mxu0
        %v6710 = vadd.f32 %v6357, %v6709
        %v6711 = vpop.f32.mrf.mxu0
        %v6712 = vadd.f32 %v6359, %v6711
        %v6713 = vpop.f32.mrf.mxu0
        %v6714 = vadd.f32 %v6361, %v6713
        %6715 = vmatprep.mubr.bf16.mxu0 %v5713
        %6716 = vmatmul.mubr.bf16.gmra.mxu0 %v5712
        %v6717 = vpop.f32.mrf.mxu0
        %v6718 = vadd.f32 %v6365, %v6717
        %v6719 = vpop.f32.mrf.mxu0
        %v6720 = vadd.f32 %v6367, %v6719
        %v6721 = vpop.f32.mrf.mxu0
        %v6722 = vadd.f32 %v6369, %v6721
        %v6723 = vpop.f32.mrf.mxu0
        %v6724 = vadd.f32 %v6371, %v6723
        %6725 = vmatprep.mubr.bf16.mxu0 %v5717
        %6726 = vmatmul.mubr.bf16.gmra.mxu0 %v5716
        %v6727 = vpop.f32.mrf.mxu0
        %v6728 = vadd.f32 %v6375, %v6727
        %v6729 = vpop.f32.mrf.mxu0
        %v6730 = vadd.f32 %v6377, %v6729
        %v6731 = vpop.f32.mrf.mxu0
        %v6732 = vadd.f32 %v6379, %v6731
        %v6733 = vpop.f32.mrf.mxu0
        %v6734 = vadd.f32 %v6381, %v6733
        %6735 = vmatprep.mubr.bf16.mxu0 %v5721
        %6736 = vmatmul.mubr.bf16.gmra.mxu0 %v5720
        %v6737 = vpop.f32.mrf.mxu0
        %v6738 = vadd.f32 %v6385, %v6737
        %v6739 = vpop.f32.mrf.mxu0
        %v6740 = vadd.f32 %v6387, %v6739
        %v6741 = vpop.f32.mrf.mxu0
        %v6742 = vadd.f32 %v6389, %v6741
        %v6743 = vpop.f32.mrf.mxu0
        %v6744 = vadd.f32 %v6391, %v6743
        %6745 = vmatprep.mubr.bf16.mxu0 %v5725
        %6746 = vmatmul.mubr.bf16.gmra.mxu0 %v5724
        %v6747 = vpop.f32.mrf.mxu0
        %v6748 = vadd.f32 %v6395, %v6747
        %v6749 = vpop.f32.mrf.mxu0
        %v6750 = vadd.f32 %v6397, %v6749
        %v6751 = vpop.f32.mrf.mxu0
        %v6752 = vadd.f32 %v6399, %v6751
        %v6753 = vpop.f32.mrf.mxu0
        %v6754 = vadd.f32 %v6401, %v6753
        %6755 = vmatprep.mubr.bf16.mxu0 %v5729
        %6756 = vmatmul.mubr.bf16.gmra.mxu0 %v5728
        %v6757 = vpop.f32.mrf.mxu0
        %v6758 = vadd.f32 %v6405, %v6757
        %v6759 = vpop.f32.mrf.mxu0
        %v6760 = vadd.f32 %v6407, %v6759
        %v6761 = vpop.f32.mrf.mxu0
        %v6762 = vadd.f32 %v6409, %v6761
        %v6763 = vpop.f32.mrf.mxu0
        %v6764 = vadd.f32 %v6411, %v6763
        %6765 = vmatprep.mubr.bf16.mxu0 %v5733
        %6766 = vmatmul.mubr.bf16.gmra.mxu0 %v5732
        %v6767 = vpop.f32.mrf.mxu0
        %v6768 = vadd.f32 %v6415, %v6767
        %v6769 = vpop.f32.mrf.mxu0
        %v6770 = vadd.f32 %v6417, %v6769
        %v6771 = vpop.f32.mrf.mxu0
        %v6772 = vadd.f32 %v6419, %v6771
        %v6773 = vpop.f32.mrf.mxu0
        %v6774 = vadd.f32 %v6421, %v6773
        %6775 = vmatprep.mubr.bf16.mxu0 %v5737
        %6776 = vmatmul.mubr.bf16.gmra.mxu0 %v5736
        %v6777 = vpop.f32.mrf.mxu0
        %v6778 = vadd.f32 %v6425, %v6777
        %v6779 = vpop.f32.mrf.mxu0
        %v6780 = vadd.f32 %v6427, %v6779
        %v6781 = vpop.f32.mrf.mxu0
        %v6782 = vadd.f32 %v6429, %v6781
        %v6783 = vpop.f32.mrf.mxu0
        %v6784 = vadd.f32 %v6431, %v6783
        %6785 = vmatprep.mubr.bf16.mxu0 %v5741
        %6786 = vmatmul.mubr.bf16.gmra.mxu0 %v5740
        %v6787 = vpop.f32.mrf.mxu0
        %v6788 = vadd.f32 %v6435, %v6787
        %v6789 = vpop.f32.mrf.mxu0
        %v6790 = vadd.f32 %v6437, %v6789
        %v6791 = vpop.f32.mrf.mxu0
        %v6792 = vadd.f32 %v6439, %v6791
        %v6793 = vpop.f32.mrf.mxu0
        %v6794 = vadd.f32 %v6441, %v6793
        %6795 = vmatprep.mubr.bf16.mxu0 %v5745
        %6796 = vmatmul.mubr.bf16.gmra.mxu0 %v5744
        %v6797 = vpop.f32.mrf.mxu0
        %v6798 = vadd.f32 %v6445, %v6797
        %v6799 = vpop.f32.mrf.mxu0
        %v6800 = vadd.f32 %v6447, %v6799
        %v6801 = vpop.f32.mrf.mxu0
        %v6802 = vadd.f32 %v6449, %v6801
        %v6803 = vpop.f32.mrf.mxu0
        %v6804 = vadd.f32 %v6451, %v6803
        %6805 = vmatprep.mubr.bf16.mxu0 %v5749
        %6806 = vmatmul.mubr.bf16.gmra.mxu0 %v5748
        %v6807 = vpop.f32.mrf.mxu0
        %v6808 = vadd.f32 %v6455, %v6807
        %v6809 = vpop.f32.mrf.mxu0
        %v6810 = vadd.f32 %v6457, %v6809
        %v6811 = vpop.f32.mrf.mxu0
        %v6812 = vadd.f32 %v6459, %v6811
        %v6813 = vpop.f32.mrf.mxu0
        %v6814 = vadd.f32 %v6461, %v6813
        %6815 = vmatprep.mubr.bf16.mxu0 %v5753
        %6816 = vmatmul.mubr.bf16.gmra.mxu0 %v5752
        %v6817 = vpop.f32.mrf.mxu0
        %v6818 = vadd.f32 %v6465, %v6817
        %v6819 = vpop.f32.mrf.mxu0
        %v6820 = vadd.f32 %v6467, %v6819
        %v6821 = vpop.f32.mrf.mxu0
        %v6822 = vadd.f32 %v6469, %v6821
        %v6823 = vpop.f32.mrf.mxu0
        %v6824 = vadd.f32 %v6471, %v6823
        %6825 = vmatprep.mubr.bf16.mxu0 %v5757
        %6826 = vmatmul.mubr.bf16.gmra.mxu0 %v5756
        %v6827 = vpop.f32.mrf.mxu0
        %v6828 = vadd.f32 %v6475, %v6827
        %v6829 = vpop.f32.mrf.mxu0
        %v6830 = vadd.f32 %v6477, %v6829
        %v6831 = vpop.f32.mrf.mxu0
        %v6832 = vadd.f32 %v6479, %v6831
        %v6833 = vpop.f32.mrf.mxu0
        %v6834 = vadd.f32 %v6481, %v6833
        %6835 = vmatprep.mubr.bf16.mxu0 %v5761
        %6836 = vmatmul.mubr.bf16.gmra.mxu0 %v5760
        %v6837 = vpop.f32.mrf.mxu0
        %v6838 = vadd.f32 %v6485, %v6837
        %v6839 = vpop.f32.mrf.mxu0
        %v6840 = vadd.f32 %v6487, %v6839
        %v6841 = vpop.f32.mrf.mxu0
        %v6842 = vadd.f32 %v6489, %v6841
        %v6843 = vpop.f32.mrf.mxu0
        %v6844 = vadd.f32 %v6491, %v6843
        %6845 = vmatprep.mubr.bf16.mxu0 %v5765
        %6846 = vmatmul.mubr.bf16.gmra.mxu0 %v5764
        %v6847 = vpop.f32.mrf.mxu0
        %v6848 = vadd.f32 %v6495, %v6847
        %v6849 = vpop.f32.mrf.mxu0
        %v6850 = vadd.f32 %v6497, %v6849
        %v6851 = vpop.f32.mrf.mxu0
        %v6852 = vadd.f32 %v6499, %v6851
        %v6853 = vpop.f32.mrf.mxu0
        %v6854 = vadd.f32 %v6501, %v6853
        %6855 = vmatprep.mubr.bf16.mxu0 %v5769
        %6856 = vmatmul.mubr.bf16.gmra.mxu0 %v5768
        %v6857 = vpop.f32.mrf.mxu0
        %v6858 = vadd.f32 %v6505, %v6857
        %v6859 = vpop.f32.mrf.mxu0
        %v6860 = vadd.f32 %v6507, %v6859
        %v6861 = vpop.f32.mrf.mxu0
        %v6862 = vadd.f32 %v6509, %v6861
        %v6863 = vpop.f32.mrf.mxu0
        %v6864 = vadd.f32 %v6511, %v6863
        %6865 = vmatprep.mubr.bf16.mxu0 %v5773
        %6866 = vmatmul.mubr.bf16.gmra.mxu0 %v5772
        %v6867 = vpop.f32.mrf.mxu0
        %v6868 = vadd.f32 %v6515, %v6867
        %v6869 = vpop.f32.mrf.mxu0
        %v6870 = vadd.f32 %v6517, %v6869
        %v6871 = vpop.f32.mrf.mxu0
        %v6872 = vadd.f32 %v6519, %v6871
        %v6873 = vpop.f32.mrf.mxu0
        %v6874 = vadd.f32 %v6521, %v6873
        %6875 = vdwg.mxu0
        %v6876 = vmax.f32 %v6558, 0.0
        %v6877 = vmax.f32 %v6560, 0.0
        %v6878 = vmax.f32 %v6562, 0.0
        %v6879 = vmax.f32 %v6564, 0.0
        %v6880 = vmax.f32 %v6568, 0.0
        %v6881 = vmax.f32 %v6570, 0.0
        %v6882 = vmax.f32 %v6572, 0.0
        %v6883 = vmax.f32 %v6574, 0.0
        %v6884 = vmax.f32 %v6578, 0.0
        %v6885 = vmax.f32 %v6580, 0.0
        %v6886 = vmax.f32 %v6582, 0.0
        %v6887 = vmax.f32 %v6584, 0.0
        %v6888 = vmax.f32 %v6588, 0.0
        %v6889 = vmax.f32 %v6590, 0.0
        %v6890 = vmax.f32 %v6592, 0.0
        %v6891 = vmax.f32 %v6594, 0.0
        %v6892 = vmax.f32 %v6598, 0.0
        %v6893 = vmax.f32 %v6600, 0.0
        %v6894 = vmax.f32 %v6602, 0.0
        %v6895 = vmax.f32 %v6604, 0.0
        %v6896 = vmax.f32 %v6608, 0.0
        %v6897 = vmax.f32 %v6610, 0.0
        %v6898 = vmax.f32 %v6612, 0.0
        %v6899 = vmax.f32 %v6614, 0.0
        %v6900 = vmax.f32 %v6618, 0.0
        %v6901 = vmax.f32 %v6620, 0.0
        %v6902 = vmax.f32 %v6622, 0.0
        %v6903 = vmax.f32 %v6624, 0.0
        %v6904 = vmax.f32 %v6628, 0.0
        %v6905 = vmax.f32 %v6630, 0.0
        %v6906 = vmax.f32 %v6632, 0.0
        %v6907 = vmax.f32 %v6634, 0.0
        %v6908 = vmax.f32 %v6638, 0.0
        %v6909 = vmax.f32 %v6640, 0.0
        %v6910 = vmax.f32 %v6642, 0.0
        %v6911 = vmax.f32 %v6644, 0.0
        %v6912 = vmax.f32 %v6648, 0.0
        %v6913 = vmax.f32 %v6650, 0.0
        %v6914 = vmax.f32 %v6652, 0.0
        %v6915 = vmax.f32 %v6654, 0.0
        %v6916 = vmax.f32 %v6658, 0.0
        %v6917 = vmax.f32 %v6660, 0.0
        %v6918 = vmax.f32 %v6662, 0.0
        %v6919 = vmax.f32 %v6664, 0.0
        %v6920 = vmax.f32 %v6668, 0.0
        %v6921 = vmax.f32 %v6670, 0.0
        %v6922 = vmax.f32 %v6672, 0.0
        %v6923 = vmax.f32 %v6674, 0.0
        %v6924 = vmax.f32 %v6678, 0.0
        %v6925 = vmax.f32 %v6680, 0.0
        %v6926 = vmax.f32 %v6682, 0.0
        %v6927 = vmax.f32 %v6684, 0.0
        %v6928 = vmax.f32 %v6688, 0.0
        %v6929 = vmax.f32 %v6690, 0.0
        %v6930 = vmax.f32 %v6692, 0.0
        %v6931 = vmax.f32 %v6694, 0.0
        %v6932 = vmax.f32 %v6698, 0.0
        %v6933 = vmax.f32 %v6700, 0.0
        %v6934 = vmax.f32 %v6702, 0.0
        %v6935 = vmax.f32 %v6704, 0.0
        %v6936 = vmax.f32 %v6708, 0.0
        %v6937 = vmax.f32 %v6710, 0.0
        %v6938 = vmax.f32 %v6712, 0.0
        %v6939 = vmax.f32 %v6714, 0.0
        %v6940 = vmax.f32 %v6718, 0.0
        %v6941 = vmax.f32 %v6720, 0.0
        %v6942 = vmax.f32 %v6722, 0.0
        %v6943 = vmax.f32 %v6724, 0.0
        %v6944 = vmax.f32 %v6728, 0.0
        %v6945 = vmax.f32 %v6730, 0.0
        %v6946 = vmax.f32 %v6732, 0.0
        %v6947 = vmax.f32 %v6734, 0.0
        %v6948 = vmax.f32 %v6738, 0.0
        %v6949 = vmax.f32 %v6740, 0.0
        %v6950 = vmax.f32 %v6742, 0.0
        %v6951 = vmax.f32 %v6744, 0.0
        %v6952 = vmax.f32 %v6748, 0.0
        %v6953 = vmax.f32 %v6750, 0.0
        %v6954 = vmax.f32 %v6752, 0.0
        %v6955 = vmax.f32 %v6754, 0.0
        %v6956 = vmax.f32 %v6758, 0.0
        %v6957 = vmax.f32 %v6760, 0.0
        %v6958 = vmax.f32 %v6762, 0.0
        %v6959 = vmax.f32 %v6764, 0.0
        %v6960 = vmax.f32 %v6768, 0.0
        %v6961 = vmax.f32 %v6770, 0.0
        %v6962 = vmax.f32 %v6772, 0.0
        %v6963 = vmax.f32 %v6774, 0.0
        %v6964 = vmax.f32 %v6778, 0.0
        %v6965 = vmax.f32 %v6780, 0.0
        %v6966 = vmax.f32 %v6782, 0.0
        %v6967 = vmax.f32 %v6784, 0.0
        %v6968 = vmax.f32 %v6788, 0.0
        %v6969 = vmax.f32 %v6790, 0.0
        %v6970 = vmax.f32 %v6792, 0.0
        %v6971 = vmax.f32 %v6794, 0.0
        %v6972 = vmax.f32 %v6798, 0.0
        %v6973 = vmax.f32 %v6800, 0.0
        %v6974 = vmax.f32 %v6802, 0.0
        %v6975 = vmax.f32 %v6804, 0.0
        %v6976 = vmax.f32 %v6808, 0.0
        %v6977 = vmax.f32 %v6810, 0.0
        %v6978 = vmax.f32 %v6812, 0.0
        %v6979 = vmax.f32 %v6814, 0.0
        %v6980 = vmax.f32 %v6818, 0.0
        %v6981 = vmax.f32 %v6820, 0.0
        %v6982 = vmax.f32 %v6822, 0.0
        %v6983 = vmax.f32 %v6824, 0.0
        %v6984 = vmax.f32 %v6828, 0.0
        %v6985 = vmax.f32 %v6830, 0.0
        %v6986 = vmax.f32 %v6832, 0.0
        %v6987 = vmax.f32 %v6834, 0.0
        %v6988 = vmax.f32 %v6838, 0.0
        %v6989 = vmax.f32 %v6840, 0.0
        %v6990 = vmax.f32 %v6842, 0.0
        %v6991 = vmax.f32 %v6844, 0.0
        %v6992 = vmax.f32 %v6848, 0.0
        %v6993 = vmax.f32 %v6850, 0.0
        %v6994 = vmax.f32 %v6852, 0.0
        %v6995 = vmax.f32 %v6854, 0.0
        %v6996 = vmax.f32 %v6858, 0.0
        %v6997 = vmax.f32 %v6860, 0.0
        %v6998 = vmax.f32 %v6862, 0.0
        %v6999 = vmax.f32 %v6864, 0.0
        %v7000 = vmax.f32 %v6868, 0.0
        %v7001 = vmax.f32 %v6870, 0.0
        %v7002 = vmax.f32 %v6872, 0.0
        %v7003 = vmax.f32 %v6874, 0.0
        %v7004 = vpack.c.bf16 %v6878, %v6876
        %v7005 = vpack.c.bf16 %v6879, %v6877
        %v7006 = vpack.c.bf16 %v6882, %v6880
        %v7007 = vpack.c.bf16 %v6883, %v6881
        %v7008 = vpack.c.bf16 %v6886, %v6884
        %v7009 = vpack.c.bf16 %v6887, %v6885
        %v7010 = vpack.c.bf16 %v6890, %v6888
        %v7011 = vpack.c.bf16 %v6891, %v6889
        %v7012 = vpack.c.bf16 %v6894, %v6892
        %v7013 = vpack.c.bf16 %v6895, %v6893
        %v7014 = vpack.c.bf16 %v6898, %v6896
        %v7015 = vpack.c.bf16 %v6899, %v6897
        %v7016 = vpack.c.bf16 %v6902, %v6900
        %v7017 = vpack.c.bf16 %v6903, %v6901
        %v7018 = vpack.c.bf16 %v6906, %v6904
        %v7019 = vpack.c.bf16 %v6907, %v6905
        %v7020 = vpack.c.bf16 %v6910, %v6908
        %v7021 = vpack.c.bf16 %v6911, %v6909
        %v7022 = vpack.c.bf16 %v6914, %v6912
        %v7023 = vpack.c.bf16 %v6915, %v6913
        %v7024 = vpack.c.bf16 %v6918, %v6916
        %v7025 = vpack.c.bf16 %v6919, %v6917
        %v7026 = vpack.c.bf16 %v6922, %v6920
        %v7027 = vpack.c.bf16 %v6923, %v6921
        %v7028 = vpack.c.bf16 %v6926, %v6924
        %v7029 = vpack.c.bf16 %v6927, %v6925
        %v7030 = vpack.c.bf16 %v6930, %v6928
        %v7031 = vpack.c.bf16 %v6931, %v6929
        %v7032 = vpack.c.bf16 %v6934, %v6932
        %v7033 = vpack.c.bf16 %v6935, %v6933
        %v7034 = vpack.c.bf16 %v6938, %v6936
        %v7035 = vpack.c.bf16 %v6939, %v6937
        %v7036 = vpack.c.bf16 %v6942, %v6940
        %v7037 = vpack.c.bf16 %v6943, %v6941
        %v7038 = vpack.c.bf16 %v6946, %v6944
        %v7039 = vpack.c.bf16 %v6947, %v6945
        %v7040 = vpack.c.bf16 %v6950, %v6948
        %v7041 = vpack.c.bf16 %v6951, %v6949
        %v7042 = vpack.c.bf16 %v6954, %v6952
        %v7043 = vpack.c.bf16 %v6955, %v6953
        %v7044 = vpack.c.bf16 %v6958, %v6956
        %v7045 = vpack.c.bf16 %v6959, %v6957
        %v7046 = vpack.c.bf16 %v6962, %v6960
        %v7047 = vpack.c.bf16 %v6963, %v6961
        %v7048 = vpack.c.bf16 %v6966, %v6964
        %v7049 = vpack.c.bf16 %v6967, %v6965
        %v7050 = vpack.c.bf16 %v6970, %v6968
        %v7051 = vpack.c.bf16 %v6971, %v6969
        %v7052 = vpack.c.bf16 %v6974, %v6972
        %v7053 = vpack.c.bf16 %v6975, %v6973
        %v7054 = vpack.c.bf16 %v6978, %v6976
        %v7055 = vpack.c.bf16 %v6979, %v6977
        %v7056 = vpack.c.bf16 %v6982, %v6980
        %v7057 = vpack.c.bf16 %v6983, %v6981
        %v7058 = vpack.c.bf16 %v6986, %v6984
        %v7059 = vpack.c.bf16 %v6987, %v6985
        %v7060 = vpack.c.bf16 %v6990, %v6988
        %v7061 = vpack.c.bf16 %v6991, %v6989
        %v7062 = vpack.c.bf16 %v6994, %v6992
        %v7063 = vpack.c.bf16 %v6995, %v6993
        %v7064 = vpack.c.bf16 %v6998, %v6996
        %v7065 = vpack.c.bf16 %v6999, %v6997
        %v7066 = vpack.c.bf16 %v7002, %v7000
        %v7067 = vpack.c.bf16 %v7003, %v7001
        %v7068 = vld [vmem:[%s11] sm:$0xf]
        %v7069 = vld [vmem:[%s11 + $0x4] sm:$0xf]
        %v7070 = vld [vmem:[%s11 + $0x8] sm:$0xf]
        %v7071 = vld [vmem:[%s11 + $0xc] sm:$0xf]
        %v7072 = vld [vmem:[%s11 + $0x10] sm:$0xf]
        %v7073 = vld [vmem:[%s11 + $0x14] sm:$0xf]
        %v7074 = vld [vmem:[%s11 + $0x18] sm:$0xf]
        %v7075 = vld [vmem:[%s11 + $0x1c] sm:$0xf]
        %v7076 = vld [vmem:[%s11 + $0x20] sm:$0xf]
        %v7077 = vld [vmem:[%s11 + $0x24] sm:$0xf]
        %v7078 = vld [vmem:[%s11 + $0x28] sm:$0xf]
        %v7079 = vld [vmem:[%s11 + $0x2c] sm:$0xf]
        %v7080 = vld [vmem:[%s11 + $0x30] sm:$0xf]
        %v7081 = vld [vmem:[%s11 + $0x34] sm:$0xf]
        %v7082 = vld [vmem:[%s11 + $0x38] sm:$0xf]
        %v7083 = vld [vmem:[%s11 + $0x3c] sm:$0xf]
        %v7084 = vld [vmem:[%s11 + $0x40] sm:$0xf]
        %v7085 = vld [vmem:[%s11 + $0x44] sm:$0xf]
        %v7086 = vld [vmem:[%s11 + $0x48] sm:$0xf]
        %v7087 = vld [vmem:[%s11 + $0x4c] sm:$0xf]
        %v7088 = vld [vmem:[%s11 + $0x50] sm:$0xf]
        %v7089 = vld [vmem:[%s11 + $0x54] sm:$0xf]
        %v7090 = vld [vmem:[%s11 + $0x58] sm:$0xf]
        %v7091 = vld [vmem:[%s11 + $0x5c] sm:$0xf]
        %v7092 = vld [vmem:[%s11 + $0x60] sm:$0xf]
        %v7093 = vld [vmem:[%s11 + $0x64] sm:$0xf]
        %v7094 = vld [vmem:[%s11 + $0x68] sm:$0xf]
        %v7095 = vld [vmem:[%s11 + $0x6c] sm:$0xf]
        %v7096 = vld [vmem:[%s11 + $0x70] sm:$0xf]
        %v7097 = vld [vmem:[%s11 + $0x74] sm:$0xf]
        %v7098 = vld [vmem:[%s11 + $0x78] sm:$0xf]
        %v7099 = vld [vmem:[%s11 + $0x7c] sm:$0xf]
        %v7100 = vld [vmem:[%s12] sm:$0x1]
        %v7102 = vlaneseq
        %v7103 = vshrl.u32 %v7102, 7
        %v7104 = vsub.s32 0, %v7103
        %v7105 = vrot.slane %v7100, %v7104
        %v7139 = vunpack.c.l.b16 %v7068
        %v7140 = vunpack.c.l.b16 %v7069
        %v7141 = vunpack.c.l.b16 %v7070
        %v7142 = vunpack.c.l.b16 %v7071
        %v7143 = vunpack.c.l.b16 %v7072
        %v7144 = vunpack.c.l.b16 %v7073
        %v7145 = vunpack.c.l.b16 %v7074
        %v7146 = vunpack.c.l.b16 %v7075
        %v7147 = vunpack.c.l.b16 %v7076
        %v7148 = vunpack.c.l.b16 %v7077
        %v7149 = vunpack.c.l.b16 %v7078
        %v7150 = vunpack.c.l.b16 %v7079
        %v7151 = vunpack.c.l.b16 %v7080
        %v7152 = vunpack.c.l.b16 %v7081
        %v7153 = vunpack.c.l.b16 %v7082
        %v7154 = vunpack.c.l.b16 %v7083
        %v7155 = vunpack.c.l.b16 %v7084
        %v7156 = vunpack.c.l.b16 %v7085
        %v7157 = vunpack.c.l.b16 %v7086
        %v7158 = vunpack.c.l.b16 %v7087
        %v7159 = vunpack.c.l.b16 %v7088
        %v7160 = vunpack.c.l.b16 %v7089
        %v7161 = vunpack.c.l.b16 %v7090
        %v7162 = vunpack.c.l.b16 %v7091
        %v7163 = vunpack.c.l.b16 %v7092
        %v7164 = vunpack.c.l.b16 %v7093
        %v7165 = vunpack.c.l.b16 %v7094
        %v7166 = vunpack.c.l.b16 %v7095
        %v7167 = vunpack.c.l.b16 %v7096
        %v7168 = vunpack.c.l.b16 %v7097
        %v7169 = vunpack.c.l.b16 %v7098
        %v7170 = vunpack.c.l.b16 %v7099
        %v7171 = vpack.c.b16 %v7140, %v7139
        %v7172 = vpack.c.b16 %v7142, %v7141
        %v7173 = vpack.c.b16 %v7144, %v7143
        %v7174 = vpack.c.b16 %v7146, %v7145
        %v7175 = vpack.c.b16 %v7148, %v7147
        %v7176 = vpack.c.b16 %v7150, %v7149
        %v7177 = vpack.c.b16 %v7152, %v7151
        %v7178 = vpack.c.b16 %v7154, %v7153
        %v7179 = vpack.c.b16 %v7156, %v7155
        %v7180 = vpack.c.b16 %v7158, %v7157
        %v7181 = vpack.c.b16 %v7160, %v7159
        %v7182 = vpack.c.b16 %v7162, %v7161
        %v7183 = vpack.c.b16 %v7164, %v7163
        %v7184 = vpack.c.b16 %v7166, %v7165
        %v7185 = vpack.c.b16 %v7168, %v7167
        %v7186 = vpack.c.b16 %v7170, %v7169
        %7203 = vmatprep.subr.bf16.mxu0 0
        %7204 = vmatpush1.bf16.msra.mxu0 %v7178
        %7205 = vmatprep.subr.bf16.mxu0 0
        %7206 = vmatpush1.bf16.msra.mxu0 %v7177
        %7207 = vmatprep.subr.bf16.mxu0 0
        %7208 = vmatpush1.bf16.msra.mxu0 %v7176
        %7209 = vmatprep.subr.bf16.mxu0 0
        %7210 = vmatpush1.bf16.msra.mxu0 %v7175
        %7211 = vmatprep.subr.bf16.mxu0 0
        %7212 = vmatpush1.bf16.msra.mxu0 %v7174
        %7213 = vmatprep.subr.bf16.mxu0 0
        %7214 = vmatpush1.bf16.msra.mxu0 %v7173
        %7215 = vmatprep.subr.bf16.mxu0 0
        %7216 = vmatpush1.bf16.msra.mxu0 %v7172
        %7217 = vmatprep.subr.bf16.mxu0 0
        %7218 = vmatpush1.bf16.msra.mxu0 %v7171
        %7219 = vmatprep.subr.bf16.mxu0 0
        %7220 = vmatpush2.bf16.msra.mxu0 %v7186
        %7221 = vmatprep.subr.bf16.mxu0 0
        %7222 = vmatpush2.bf16.msra.mxu0 %v7185
        %7223 = vmatprep.subr.bf16.mxu0 0
        %7224 = vmatpush2.bf16.msra.mxu0 %v7184
        %7225 = vmatprep.subr.bf16.mxu0 0
        %7226 = vmatpush2.bf16.msra.mxu0 %v7183
        %7227 = vmatprep.subr.bf16.mxu0 0
        %7228 = vmatpush2.bf16.msra.mxu0 %v7182
        %7229 = vmatprep.subr.bf16.mxu0 0
        %7230 = vmatpush2.bf16.msra.mxu0 %v7181
        %7231 = vmatprep.subr.bf16.mxu0 0
        %7232 = vmatpush2.bf16.msra.mxu0 %v7180
        %7233 = vmatprep.subr.bf16.mxu0 0
        %7234 = vmatpush2.bf16.msra.mxu0 %v7179
        %7235 = vmatprep.mubr.bf16.mxu0 %v7005
        %7236 = vmatmul.mubr.bf16.gmra.mxu0 %v7004
        %v7237 = vpop.f32.mrf.mxu0
        %v7238 = vadd.f32 %v7105, %v7237
        %v7239 = vpop.f32.mrf.mxu0
        %v7240 = vpop.f32.mrf.mxu0
        %v7241 = vadd.f32 %v7105, %v7240
        %v7242 = vpop.f32.mrf.mxu0
        %7243 = vmatprep.mubr.bf16.mxu0 %v7007
        %7244 = vmatmul.mubr.bf16.gmra.mxu0 %v7006
        %v7245 = vpop.f32.mrf.mxu0
        %v7246 = vadd.f32 %v7105, %v7245
        %v7247 = vpop.f32.mrf.mxu0
        %v7248 = vpop.f32.mrf.mxu0
        %v7249 = vadd.f32 %v7105, %v7248
        %v7250 = vpop.f32.mrf.mxu0
        %7251 = vmatprep.mubr.bf16.mxu0 %v7009
        %7252 = vmatmul.mubr.bf16.gmra.mxu0 %v7008
        %v7253 = vpop.f32.mrf.mxu0
        %v7254 = vadd.f32 %v7105, %v7253
        %v7255 = vpop.f32.mrf.mxu0
        %v7256 = vpop.f32.mrf.mxu0
        %v7257 = vadd.f32 %v7105, %v7256
        %v7258 = vpop.f32.mrf.mxu0
        %7259 = vmatprep.mubr.bf16.mxu0 %v7011
        %7260 = vmatmul.mubr.bf16.gmra.mxu0 %v7010
        %v7261 = vpop.f32.mrf.mxu0
        %v7262 = vadd.f32 %v7105, %v7261
        %v7263 = vpop.f32.mrf.mxu0
        %v7264 = vpop.f32.mrf.mxu0
        %v7265 = vadd.f32 %v7105, %v7264
        %v7266 = vpop.f32.mrf.mxu0
        %7267 = vmatprep.mubr.bf16.mxu0 %v7013
        %7268 = vmatmul.mubr.bf16.gmra.mxu0 %v7012
        %v7269 = vpop.f32.mrf.mxu0
        %v7270 = vadd.f32 %v7105, %v7269
        %v7271 = vpop.f32.mrf.mxu0
        %v7272 = vpop.f32.mrf.mxu0
        %v7273 = vadd.f32 %v7105, %v7272
        %v7274 = vpop.f32.mrf.mxu0
        %7275 = vmatprep.mubr.bf16.mxu0 %v7015
        %7276 = vmatmul.mubr.bf16.gmra.mxu0 %v7014
        %v7277 = vpop.f32.mrf.mxu0
        %v7278 = vadd.f32 %v7105, %v7277
        %v7279 = vpop.f32.mrf.mxu0
        %v7280 = vpop.f32.mrf.mxu0
        %v7281 = vadd.f32 %v7105, %v7280
        %v7282 = vpop.f32.mrf.mxu0
        %7283 = vmatprep.mubr.bf16.mxu0 %v7017
        %7284 = vmatmul.mubr.bf16.gmra.mxu0 %v7016
        %v7285 = vpop.f32.mrf.mxu0
        %v7286 = vadd.f32 %v7105, %v7285
        %v7287 = vpop.f32.mrf.mxu0
        %v7288 = vpop.f32.mrf.mxu0
        %v7289 = vadd.f32 %v7105, %v7288
        %v7290 = vpop.f32.mrf.mxu0
        %7291 = vmatprep.mubr.bf16.mxu0 %v7019
        %7292 = vmatmul.mubr.bf16.gmra.mxu0 %v7018
        %v7293 = vpop.f32.mrf.mxu0
        %v7294 = vadd.f32 %v7105, %v7293
        %v7295 = vpop.f32.mrf.mxu0
        %v7296 = vpop.f32.mrf.mxu0
        %v7297 = vadd.f32 %v7105, %v7296
        %v7298 = vpop.f32.mrf.mxu0
        %7299 = vmatprep.mubr.bf16.mxu0 %v7021
        %7300 = vmatmul.mubr.bf16.gmra.mxu0 %v7020
        %v7301 = vpop.f32.mrf.mxu0
        %v7302 = vadd.f32 %v7105, %v7301
        %v7303 = vpop.f32.mrf.mxu0
        %v7304 = vpop.f32.mrf.mxu0
        %v7305 = vadd.f32 %v7105, %v7304
        %v7306 = vpop.f32.mrf.mxu0
        %7307 = vmatprep.mubr.bf16.mxu0 %v7023
        %7308 = vmatmul.mubr.bf16.gmra.mxu0 %v7022
        %v7309 = vpop.f32.mrf.mxu0
        %v7310 = vadd.f32 %v7105, %v7309
        %v7311 = vpop.f32.mrf.mxu0
        %v7312 = vpop.f32.mrf.mxu0
        %v7313 = vadd.f32 %v7105, %v7312
        %v7314 = vpop.f32.mrf.mxu0
        %7315 = vmatprep.mubr.bf16.mxu0 %v7025
        %7316 = vmatmul.mubr.bf16.gmra.mxu0 %v7024
        %v7317 = vpop.f32.mrf.mxu0
        %v7318 = vadd.f32 %v7105, %v7317
        %v7319 = vpop.f32.mrf.mxu0
        %v7320 = vpop.f32.mrf.mxu0
        %v7321 = vadd.f32 %v7105, %v7320
        %v7322 = vpop.f32.mrf.mxu0
        %7323 = vmatprep.mubr.bf16.mxu0 %v7027
        %7324 = vmatmul.mubr.bf16.gmra.mxu0 %v7026
        %v7325 = vpop.f32.mrf.mxu0
        %v7326 = vadd.f32 %v7105, %v7325
        %v7327 = vpop.f32.mrf.mxu0
        %v7328 = vpop.f32.mrf.mxu0
        %v7329 = vadd.f32 %v7105, %v7328
        %v7330 = vpop.f32.mrf.mxu0
        %7331 = vmatprep.mubr.bf16.mxu0 %v7029
        %7332 = vmatmul.mubr.bf16.gmra.mxu0 %v7028
        %v7333 = vpop.f32.mrf.mxu0
        %v7334 = vadd.f32 %v7105, %v7333
        %v7335 = vpop.f32.mrf.mxu0
        %v7336 = vpop.f32.mrf.mxu0
        %v7337 = vadd.f32 %v7105, %v7336
        %v7338 = vpop.f32.mrf.mxu0
        %7339 = vmatprep.mubr.bf16.mxu0 %v7031
        %7340 = vmatmul.mubr.bf16.gmra.mxu0 %v7030
        %v7341 = vpop.f32.mrf.mxu0
        %v7342 = vadd.f32 %v7105, %v7341
        %v7343 = vpop.f32.mrf.mxu0
        %v7344 = vpop.f32.mrf.mxu0
        %v7345 = vadd.f32 %v7105, %v7344
        %v7346 = vpop.f32.mrf.mxu0
        %7347 = vmatprep.mubr.bf16.mxu0 %v7033
        %7348 = vmatmul.mubr.bf16.gmra.mxu0 %v7032
        %v7349 = vpop.f32.mrf.mxu0
        %v7350 = vadd.f32 %v7105, %v7349
        %v7351 = vpop.f32.mrf.mxu0
        %v7352 = vpop.f32.mrf.mxu0
        %v7353 = vadd.f32 %v7105, %v7352
        %v7354 = vpop.f32.mrf.mxu0
        %7355 = vmatprep.mubr.bf16.mxu0 %v7035
        %7356 = vmatmul.mubr.bf16.gmra.mxu0 %v7034
        %v7357 = vpop.f32.mrf.mxu0
        %v7358 = vadd.f32 %v7105, %v7357
        %v7359 = vpop.f32.mrf.mxu0
        %v7360 = vpop.f32.mrf.mxu0
        %v7361 = vadd.f32 %v7105, %v7360
        %v7362 = vpop.f32.mrf.mxu0
        %7363 = vmatprep.mubr.bf16.mxu0 %v7037
        %7364 = vmatmul.mubr.bf16.gmra.mxu0 %v7036
        %v7365 = vpop.f32.mrf.mxu0
        %v7366 = vadd.f32 %v7105, %v7365
        %v7367 = vpop.f32.mrf.mxu0
        %v7368 = vpop.f32.mrf.mxu0
        %v7369 = vadd.f32 %v7105, %v7368
        %v7370 = vpop.f32.mrf.mxu0
        %7371 = vmatprep.mubr.bf16.mxu0 %v7039
        %7372 = vmatmul.mubr.bf16.gmra.mxu0 %v7038
        %v7373 = vpop.f32.mrf.mxu0
        %v7374 = vadd.f32 %v7105, %v7373
        %v7375 = vpop.f32.mrf.mxu0
        %v7376 = vpop.f32.mrf.mxu0
        %v7377 = vadd.f32 %v7105, %v7376
        %v7378 = vpop.f32.mrf.mxu0
        %7379 = vmatprep.mubr.bf16.mxu0 %v7041
        %7380 = vmatmul.mubr.bf16.gmra.mxu0 %v7040
        %v7381 = vpop.f32.mrf.mxu0
        %v7382 = vadd.f32 %v7105, %v7381
        %v7383 = vpop.f32.mrf.mxu0
        %v7384 = vpop.f32.mrf.mxu0
        %v7385 = vadd.f32 %v7105, %v7384
        %v7386 = vpop.f32.mrf.mxu0
        %7387 = vmatprep.mubr.bf16.mxu0 %v7043
        %7388 = vmatmul.mubr.bf16.gmra.mxu0 %v7042
        %v7389 = vpop.f32.mrf.mxu0
        %v7390 = vadd.f32 %v7105, %v7389
        %v7391 = vpop.f32.mrf.mxu0
        %v7392 = vpop.f32.mrf.mxu0
        %v7393 = vadd.f32 %v7105, %v7392
        %v7394 = vpop.f32.mrf.mxu0
        %7395 = vmatprep.mubr.bf16.mxu0 %v7045
        %7396 = vmatmul.mubr.bf16.gmra.mxu0 %v7044
        %v7397 = vpop.f32.mrf.mxu0
        %v7398 = vadd.f32 %v7105, %v7397
        %v7399 = vpop.f32.mrf.mxu0
        %v7400 = vpop.f32.mrf.mxu0
        %v7401 = vadd.f32 %v7105, %v7400
        %v7402 = vpop.f32.mrf.mxu0
        %7403 = vmatprep.mubr.bf16.mxu0 %v7047
        %7404 = vmatmul.mubr.bf16.gmra.mxu0 %v7046
        %v7405 = vpop.f32.mrf.mxu0
        %v7406 = vadd.f32 %v7105, %v7405
        %v7407 = vpop.f32.mrf.mxu0
        %v7408 = vpop.f32.mrf.mxu0
        %v7409 = vadd.f32 %v7105, %v7408
        %v7410 = vpop.f32.mrf.mxu0
        %7411 = vmatprep.mubr.bf16.mxu0 %v7049
        %7412 = vmatmul.mubr.bf16.gmra.mxu0 %v7048
        %v7413 = vpop.f32.mrf.mxu0
        %v7414 = vadd.f32 %v7105, %v7413
        %v7415 = vpop.f32.mrf.mxu0
        %v7416 = vpop.f32.mrf.mxu0
        %v7417 = vadd.f32 %v7105, %v7416
        %v7418 = vpop.f32.mrf.mxu0
        %7419 = vmatprep.mubr.bf16.mxu0 %v7051
        %7420 = vmatmul.mubr.bf16.gmra.mxu0 %v7050
        %v7421 = vpop.f32.mrf.mxu0
        %v7422 = vadd.f32 %v7105, %v7421
        %v7423 = vpop.f32.mrf.mxu0
        %v7424 = vpop.f32.mrf.mxu0
        %v7425 = vadd.f32 %v7105, %v7424
        %v7426 = vpop.f32.mrf.mxu0
        %7427 = vmatprep.mubr.bf16.mxu0 %v7053
        %7428 = vmatmul.mubr.bf16.gmra.mxu0 %v7052
        %v7429 = vpop.f32.mrf.mxu0
        %v7430 = vadd.f32 %v7105, %v7429
        %v7431 = vpop.f32.mrf.mxu0
        %v7432 = vpop.f32.mrf.mxu0
        %v7433 = vadd.f32 %v7105, %v7432
        %v7434 = vpop.f32.mrf.mxu0
        %7435 = vmatprep.mubr.bf16.mxu0 %v7055
        %7436 = vmatmul.mubr.bf16.gmra.mxu0 %v7054
        %v7437 = vpop.f32.mrf.mxu0
        %v7438 = vadd.f32 %v7105, %v7437
        %v7439 = vpop.f32.mrf.mxu0
        %v7440 = vpop.f32.mrf.mxu0
        %v7441 = vadd.f32 %v7105, %v7440
        %v7442 = vpop.f32.mrf.mxu0
        %7443 = vmatprep.mubr.bf16.mxu0 %v7057
        %7444 = vmatmul.mubr.bf16.gmra.mxu0 %v7056
        %v7445 = vpop.f32.mrf.mxu0
        %v7446 = vadd.f32 %v7105, %v7445
        %v7447 = vpop.f32.mrf.mxu0
        %v7448 = vpop.f32.mrf.mxu0
        %v7449 = vadd.f32 %v7105, %v7448
        %v7450 = vpop.f32.mrf.mxu0
        %7451 = vmatprep.mubr.bf16.mxu0 %v7059
        %7452 = vmatmul.mubr.bf16.gmra.mxu0 %v7058
        %v7453 = vpop.f32.mrf.mxu0
        %v7454 = vadd.f32 %v7105, %v7453
        %v7455 = vpop.f32.mrf.mxu0
        %v7456 = vpop.f32.mrf.mxu0
        %v7457 = vadd.f32 %v7105, %v7456
        %v7458 = vpop.f32.mrf.mxu0
        %7459 = vmatprep.mubr.bf16.mxu0 %v7061
        %7460 = vmatmul.mubr.bf16.gmra.mxu0 %v7060
        %v7461 = vpop.f32.mrf.mxu0
        %v7462 = vadd.f32 %v7105, %v7461
        %v7463 = vpop.f32.mrf.mxu0
        %v7464 = vpop.f32.mrf.mxu0
        %v7465 = vadd.f32 %v7105, %v7464
        %v7466 = vpop.f32.mrf.mxu0
        %7467 = vmatprep.mubr.bf16.mxu0 %v7063
        %7468 = vmatmul.mubr.bf16.gmra.mxu0 %v7062
        %v7469 = vpop.f32.mrf.mxu0
        %v7470 = vadd.f32 %v7105, %v7469
        %v7471 = vpop.f32.mrf.mxu0
        %v7472 = vpop.f32.mrf.mxu0
        %v7473 = vadd.f32 %v7105, %v7472
        %v7474 = vpop.f32.mrf.mxu0
        %7475 = vmatprep.mubr.bf16.mxu0 %v7065
        %7476 = vmatmul.mubr.bf16.gmra.mxu0 %v7064
        %v7477 = vpop.f32.mrf.mxu0
        %v7478 = vadd.f32 %v7105, %v7477
        %v7479 = vpop.f32.mrf.mxu0
        %v7480 = vpop.f32.mrf.mxu0
        %v7481 = vadd.f32 %v7105, %v7480
        %v7482 = vpop.f32.mrf.mxu0
        %7483 = vmatprep.mubr.bf16.mxu0 %v7067
        %7484 = vmatmul.mubr.bf16.gmra.mxu0 %v7066
        %v7485 = vpop.f32.mrf.mxu0
        %v7486 = vadd.f32 %v7105, %v7485
        %v7487 = vpop.f32.mrf.mxu0
        %v7488 = vpop.f32.mrf.mxu0
        %v7489 = vadd.f32 %v7105, %v7488
        %v7490 = vpop.f32.mrf.mxu0
        %7491 = vdwg.mxu0
        %7492 = vst [vmem:[%s541] sm:$0xff] %v7238
        %7493 = vst [vmem:[%s541 + $0x8] sm:$0xff] %v7241
        %7494 = vst [vmem:[%s541 + $0x10] sm:$0xff] %v7246
        %7495 = vst [vmem:[%s541 + $0x18] sm:$0xff] %v7249
        %7496 = vst [vmem:[%s541 + $0x20] sm:$0xff] %v7254
        %7497 = vst [vmem:[%s541 + $0x28] sm:$0xff] %v7257
        %7498 = vst [vmem:[%s541 + $0x30] sm:$0xff] %v7262
        %7499 = vst [vmem:[%s541 + $0x38] sm:$0xff] %v7265
        %7500 = vst [vmem:[%s541 + $0x40] sm:$0xff] %v7270
        %7501 = vst [vmem:[%s541 + $0x48] sm:$0xff] %v7273
        %7502 = vst [vmem:[%s541 + $0x50] sm:$0xff] %v7278
        %7503 = vst [vmem:[%s541 + $0x58] sm:$0xff] %v7281
        %7504 = vst [vmem:[%s541 + $0x60] sm:$0xff] %v7286
        %7505 = vst [vmem:[%s541 + $0x68] sm:$0xff] %v7289
        %7506 = vst [vmem:[%s541 + $0x70] sm:$0xff] %v7294
        %7507 = vst [vmem:[%s541 + $0x78] sm:$0xff] %v7297
        %7508 = vst [vmem:[%s541 + $0x80] sm:$0xff] %v7302
        %7509 = vst [vmem:[%s541 + $0x88] sm:$0xff] %v7305
        %7510 = vst [vmem:[%s541 + $0x90] sm:$0xff] %v7310
        %7511 = vst [vmem:[%s541 + $0x98] sm:$0xff] %v7313
        %7512 = vst [vmem:[%s541 + $0xa0] sm:$0xff] %v7318
        %7513 = vst [vmem:[%s541 + $0xa8] sm:$0xff] %v7321
        %7514 = vst [vmem:[%s541 + $0xb0] sm:$0xff] %v7326
        %7515 = vst [vmem:[%s541 + $0xb8] sm:$0xff] %v7329
        %7516 = vst [vmem:[%s541 + $0xc0] sm:$0xff] %v7334
        %7517 = vst [vmem:[%s541 + $0xc8] sm:$0xff] %v7337
        %7518 = vst [vmem:[%s541 + $0xd0] sm:$0xff] %v7342
        %7519 = vst [vmem:[%s541 + $0xd8] sm:$0xff] %v7345
        %7520 = vst [vmem:[%s541 + $0xe0] sm:$0xff] %v7350
        %7521 = vst [vmem:[%s541 + $0xe8] sm:$0xff] %v7353
        %7522 = vst [vmem:[%s541 + $0xf0] sm:$0xff] %v7358
        %7523 = vst [vmem:[%s541 + $0xf8] sm:$0xff] %v7361
        %7524 = vst [vmem:[%s541 + $0x100] sm:$0xff] %v7366
        %7525 = vst [vmem:[%s541 + $0x108] sm:$0xff] %v7369
        %7526 = vst [vmem:[%s541 + $0x110] sm:$0xff] %v7374
        %7527 = vst [vmem:[%s541 + $0x118] sm:$0xff] %v7377
        %7528 = vst [vmem:[%s541 + $0x120] sm:$0xff] %v7382
        %7529 = vst [vmem:[%s541 + $0x128] sm:$0xff] %v7385
        %7530 = vst [vmem:[%s541 + $0x130] sm:$0xff] %v7390
        %7531 = vst [vmem:[%s541 + $0x138] sm:$0xff] %v7393
        %7532 = vst [vmem:[%s541 + $0x140] sm:$0xff] %v7398
        %7533 = vst [vmem:[%s541 + $0x148] sm:$0xff] %v7401
        %7534 = vst [vmem:[%s541 + $0x150] sm:$0xff] %v7406
        %7535 = vst [vmem:[%s541 + $0x158] sm:$0xff] %v7409
        %7536 = vst [vmem:[%s541 + $0x160] sm:$0xff] %v7414
        %7537 = vst [vmem:[%s541 + $0x168] sm:$0xff] %v7417
        %7538 = vst [vmem:[%s541 + $0x170] sm:$0xff] %v7422
        %7539 = vst [vmem:[%s541 + $0x178] sm:$0xff] %v7425
        %7540 = vst [vmem:[%s541 + $0x180] sm:$0xff] %v7430
        %7541 = vst [vmem:[%s541 + $0x188] sm:$0xff] %v7433
        %7542 = vst [vmem:[%s541 + $0x190] sm:$0xff] %v7438
        %7543 = vst [vmem:[%s541 + $0x198] sm:$0xff] %v7441
        %7544 = vst [vmem:[%s541 + $0x1a0] sm:$0xff] %v7446
        %7545 = vst [vmem:[%s541 + $0x1a8] sm:$0xff] %v7449
        %7546 = vst [vmem:[%s541 + $0x1b0] sm:$0xff] %v7454
        %7547 = vst [vmem:[%s541 + $0x1b8] sm:$0xff] %v7457
        %7548 = vst [vmem:[%s541 + $0x1c0] sm:$0xff] %v7462
        %7549 = vst [vmem:[%s541 + $0x1c8] sm:$0xff] %v7465
        %7550 = vst [vmem:[%s541 + $0x1d0] sm:$0xff] %v7470
        %7551 = vst [vmem:[%s541 + $0x1d8] sm:$0xff] %v7473
        %7552 = vst [vmem:[%s541 + $0x1e0] sm:$0xff] %v7478
        %7553 = vst [vmem:[%s541 + $0x1e8] sm:$0xff] %v7481
        %7554 = vst [vmem:[%s541 + $0x1f0] sm:$0xff] %v7486
        %7555 = vst [vmem:[%s541 + $0x1f8] sm:$0xff] %v7489
        %s7556 = sand.u32 %s325, 1
        %s7557 = scalar_lea.sflag [#allocation4], %s7556
        %s7558 = sand.u32 %s325, 1
        %s7559 = smul.addr %s7558, 512
        %s7560 = scalar_lea.vmem [#allocation11], %s7559
        // Predicated region
        $region93: #{tpu_custom_call.1} parent=71 // pred_check
          %p7561 = pneg %p335
        $region94: #{tpu_custom_call.1} parent=71 // pred_check_branch
          %7563 = sbr.rel (%p7561) target = $region96
        $region95: #{tpu_custom_call.1} parent=71 // pred_region
          %s7564 = smul.u32 64, %s34
          %s7566 = ssub.s32 8192, 8192
          %7567 = vsyncadd %s7557, %s7566
          %s7568 = smul.addr %s7564, 128
          %s7569 = scalar_lea.hbm %s13, %s7568
          %s7570 = sshll.u32 %s7560, 4
          %s7571 = int_to_ptr.vmem [resolvable:$true] %s7570
          %7576 = dma.vmem_to_hbm [thread:$0]  %s7571, 8192, %s7569, %s7557, 128, 128, 8
        $region96: #{tpu_custom_call.1} parent=71 // pred_fallthru
          _
      $region72: #{tpu_custom_call.1} parent=5 // pred_fallthru
        _
      %p7577 = scmp.le.s32.totalorder 2, %s29
      // Predicated region
      $region97: #{tpu_custom_call.1} parent=5 // pred_check
        %p7578 = pneg %p7577
      $region98: #{tpu_custom_call.1} parent=5 // pred_check_branch
        %7580 = sbr.rel (%p7578) target = $region100
      $region99: #{tpu_custom_call.1} parent=5 // pred_region
        %s7581 = ssub.s32 %s29, 2
        // Predicated region
        $region101: #{tpu_custom_call.1} parent=99 // pred_check
          %p7582 = pneg %p341
        $region102: #{tpu_custom_call.1} parent=99 // pred_check_branch
          %7584 = sbr.rel (%p7582) target = $region104
        $region103: #{tpu_custom_call.1} parent=99 // pred_region
          %s7585 = sand.u32 %s326, 1
          %s7586 = scalar_lea.sflag [#allocation4], %s7585
          %s7587 = sand.u32 %s326, 1
          %s7588 = smul.addr %s7587, 512
          %s7589 = scalar_lea.vmem [#allocation11], %s7588
          %7590 = dma.done %s7586, 8192
        $region104: #{tpu_custom_call.1} parent=99 // pred_fallthru
          _
      $region100: #{tpu_custom_call.1} parent=5 // pred_fallthru
        _
    $region6: #{tpu_custom_call.1} parent=1 // loop_footer
      %s33 = sadd.s32 1, %s29
    $region7: #{tpu_custom_call.1} parent=1 // loop_footer_branch
      %28 = sbr.rel target = $region3
    $region8: #{tpu_custom_call.1} parent=1 // loop_exit
      _
    %7591 = vsyncpa [#allocation3], 1
    %s7592 = scalar_lea.sflag [#allocation3], 1
    %7593 = vsyncpa %s7592, 1
    %7594 = vsyncpa [#allocation6], 1
    %s7595 = scalar_lea.sflag [#allocation6], 1
    %7596 = vsyncpa %s7595, 1
    %7597 = vsyncpa [#allocation9], 1
    %7598 = vsyncpa [#allocation4], 1
    %s7599 = scalar_lea.sflag [#allocation4], 1
    %7600 = vsyncpa %s7599, 1

</llo_original>
